<compile_context>
chip_gen: v6e
topology: v6e:2x2x1
jax: 0.10.0
libtpu: 0.0.40
codegen_flags: <defaults>
</compile_context>

<pallas_src>
import functools

import jax
import jax.numpy as jnp
from jax.experimental import pallas as pl
from jax.experimental.pallas import tpu as pltpu

LN_EPS = 1e-5
NORM_EPS = 1e-8

_F32_BYTES = 4
_LANE = 128
_SUBLANE = 8


def _round_up(x, m):
    return ((x + m - 1) // m) * m


def _tpu_vmem_and_cores():
    """Best-effort (VMEM bytes per core, TensorCores per chip) with conservative fallbacks."""
    vmem_bytes = 64 * 1024 * 1024      # v7x-sized fallback (smallest current part)
    num_cores = 1                      # single-TC fallback (v5e / v6e)
    try:
        info = pltpu.get_tpu_info()
        for name in ("vmem_capacity_bytes", "vmem_bytes", "vmem_size_bytes"):
            val = getattr(info, name, None)
            if val:
                vmem_bytes = int(val)
                break
        for name in ("num_cores", "num_tensorcores", "tensorcores_per_chip",
                     "cores_per_chip"):
            val = getattr(info, name, None)
            if val:
                num_cores = int(val)
                break
    except Exception:
        pass
    return vmem_bytes, num_cores


def _pick_tile_n(n, vmem_bytes, num_cores):
    """Node rows per grid step (sublane axis), generation-aware."""
    n8 = _round_up(max(n, 1), _SUBLANE)
    # Per-row VMEM cost: 4 pipelined blocks (s_in, v_in, s_out, v_out), minor dim
    # padded to 128 lanes, double-buffered => 2 * 4 * 128 * 4 B = 4 KiB per row.
    bytes_per_row = 2 * 4 * _LANE * _F32_BYTES
    budget = max(vmem_bytes * 2 // 5, 8 * 1024 * 1024)   # ~40% of VMEM for pipeline buffers
    vmem_tile = max(_SUBLANE, (budget // bytes_per_row) // _SUBLANE * _SUBLANE)
    # 8192 rows ~= 2.9 MB of HBM per step at S=32, Vc=4: step time >> 0.35 us overhead.
    tile = min(n8, vmem_tile, 8192)
    if num_cores > 1 and n8 > num_cores * _SUBLANE:
        # keep at least one grid step per TensorCore so megacore sharding has work
        tile = min(tile, _round_up(pl.cdiv(n8, num_cores), _SUBLANE))
    return max(_SUBLANE, tile)


def _gvp_layernorm_kernel(s_ref, v_ref, gamma_ref, beta_ref,
                          ln_ones_ref, group_ref, v_ones_ref,
                          s_out_ref, v_out_ref, *, s_dim, vc):
    f32 = jnp.float32
    hi = jax.lax.Precision.HIGHEST

    # ---- scalar-channel LayerNorm (reduce over the S lanes, per node row) ----
    s = s_ref[...].astype(f32)                      # (TN, S)
    ln_ones = ln_ones_ref[...]                      # (S, S) all-ones
    # Row sums on the (otherwise idle) MXU; the result is already replicated
    # across the S lanes, so no cross-lane broadcast is needed afterwards.
    sum_s = jnp.dot(s, ln_ones, precision=hi, preferred_element_type=f32)
    sum_s2 = jnp.dot(s * s, ln_ones, precision=hi, preferred_element_type=f32)
    mean = sum_s * (1.0 / s_dim)
    var = jnp.maximum(sum_s2 * (1.0 / s_dim) - mean * mean, 0.0)   # one-pass moments
    inv_std = jax.lax.rsqrt(var + LN_EPS)                          # EUP
    gamma = gamma_ref[...].astype(f32)              # (1, S)
    beta = beta_ref[...].astype(f32)                # (1, S)
    s_out_ref[...] = ((s - mean) * inv_std * gamma + beta).astype(s_out_ref.dtype)

    # ---- vector-channel normalization (lanes are (channel, xyz) pairs) ----
    v = v_ref[...].astype(f32)                      # (TN, 3*Vc)
    v2 = v * v
    # Per-channel squared norms, replicated into the 3 lanes of each channel
    # (block-diagonal ones matrix on the MXU).
    ch_norm = jnp.dot(v2, group_ref[...], precision=hi, preferred_element_type=f32)
    ch_norm = jnp.maximum(ch_norm, NORM_EPS)        # norm_no_nan clamp (before the mean)
    # Mean over channels: each channel's norm appears 3x in the full lane sum.
    tot = jnp.dot(ch_norm, v_ones_ref[...], precision=hi, preferred_element_type=f32)
    inv_vn = jax.lax.rsqrt(tot * (1.0 / (3 * vc)))  # (TN, 3*Vc), replicated
    v_out_ref[...] = (v * inv_vn).astype(v_out_ref.dtype)


def gvp_layernorm(s, v, gamma, beta, *, tile_n=None, interpret=False):
    """s: (N, S), v: (N, Vc, 3), gamma/beta: (S,). Returns (s_out, v_out) same shapes."""
    N, S = s.shape
    Nv, Vc, three = v.shape
    assert Nv == N and three == 3
    D = 3 * Vc

    # Free relayouts only (collapse of contiguous minor dims, no HBM pass).
    v2d = v.reshape(N, D)
    gamma2d = gamma.reshape(1, S)
    beta2d = beta.reshape(1, S)

    # Small constant matrices that drive the MXU lane-reductions.
    ln_ones = jnp.ones((S, S), jnp.float32)
    ch = jnp.arange(D) // 3
    group = (ch[:, None] == ch[None, :]).astype(jnp.float32)       # (D, D) block-diag ones
    v_ones = jnp.ones((D, D), jnp.float32)

    vmem_bytes, num_cores = _tpu_vmem_and_cores()
    if tile_n is None:
        tile_n = _pick_tile_n(N, vmem_bytes, num_cores)
    tile_n = max(_SUBLANE, _round_up(int(tile_n), _SUBLANE))
    grid = (pl.cdiv(N, tile_n),)

    # VMEM footprint of the double-buffered pipeline blocks (+ small extras),
    # used to set a matching compiler limit instead of a hard-coded one.
    footprint = 2 * tile_n * 4 * _LANE * _F32_BYTES + (1 << 20)
    vmem_limit = int(min(128 * 1024 * 1024,
                         max(32 * 1024 * 1024, footprint + (8 << 20))))

    s_spec = pl.BlockSpec((tile_n, S), lambda i: (i, 0))
    v_spec = pl.BlockSpec((tile_n, D), lambda i: (i, 0))
    p_spec = pl.BlockSpec((1, S), lambda i: (0, 0))
    ones_s_spec = pl.BlockSpec((S, S), lambda i: (0, 0))
    ones_v_spec = pl.BlockSpec((D, D), lambda i: (0, 0))

    kernel = functools.partial(_gvp_layernorm_kernel, s_dim=S, vc=Vc)

    s_out, v_out2d = pl.pallas_call(
        kernel,
        out_shape=(
            jax.ShapeDtypeStruct((N, S), s.dtype),
            jax.ShapeDtypeStruct((N, D), v.dtype),
        ),
        grid_spec=pltpu.PrefetchScalarGridSpec(
            num_scalar_prefetch=0,
            grid=grid,
            in_specs=[s_spec, v_spec, p_spec, p_spec,
                      ones_s_spec, ones_v_spec, ones_v_spec],
            out_specs=[s_spec, v_spec],
        ),
        compiler_params=pltpu.CompilerParams(
            dimension_semantics=("parallel",),
            vmem_limit_bytes=vmem_limit,
        ),
        interpret=interpret,
    )(s, v2d, gamma2d, beta2d, ln_ones, group, v_ones)

    return s_out, v_out2d.reshape(N, Vc, 3)


def _reference(s, v, gamma, beta):
    # pure-JAX reference mirroring the PyTorch module
    mean = jnp.mean(s, axis=-1, keepdims=True)
    var = jnp.mean((s - mean) ** 2, axis=-1, keepdims=True)
    s_out = (s - mean) / jnp.sqrt(var + LN_EPS) * gamma + beta
    vn = jnp.maximum(jnp.sum(v * v, axis=-1, keepdims=True), NORM_EPS)
    vn = jnp.sqrt(jnp.mean(vn, axis=-2, keepdims=True))
    return s_out, v / vn


if __name__ == "__main__":
    key = jax.random.PRNGKey(0)
    k_s, k_v = jax.random.split(key)

    N = 300    # flattened nodes (not a multiple of 8: exercises the ragged tail block)
    S = 32     # scalar channels (dims[0])
    Vc = 4     # vector channels (dims[1])

    s = jax.random.normal(k_s, (N, S), dtype=jnp.float32)
    v = jax.random.normal(k_v, (N, Vc, 3), dtype=jnp.float32)

    # deterministic parameter init, matching nn.LayerNorm defaults
    gamma = jnp.ones((S,), dtype=jnp.float32)
    beta = jnp.zeros((S,), dtype=jnp.float32)

    s_ref, v_ref = _reference(s, v, gamma, beta)

    # default (auto-tiled) path
    s_out, v_out = gvp_layernorm(s, v, gamma, beta)
    jax.block_until_ready((s_out, v_out))
    assert s_out.shape == s.shape and v_out.shape == v.shape
    assert jnp.allclose(s_out, s_ref, atol=1e-5, rtol=1e-5), "scalar LayerNorm mismatch"
    assert jnp.allclose(v_out, v_ref, atol=1e-5, rtol=1e-5), "vector norm mismatch"

    # explicit small tile: exercises the multi-step grid + ragged last block
    s_out2, v_out2 = gvp_layernorm(s, v, gamma, beta, tile_n=128)
    jax.block_until_ready((s_out2, v_out2))
    assert jnp.allclose(s_out2, s_ref, atol=1e-5, rtol=1e-5), "scalar LayerNorm mismatch (tiled)"
    assert jnp.allclose(v_out2, v_ref, atol=1e-5, rtol=1e-5), "vector norm mismatch (tiled)"

    print("KERNEL_OK")
</pallas_src>

<mosaic_0001>
module attributes {stable_mosaic.version = 11 : i64} {
  func.func @_gvp_layernorm_kernel(%arg0: i32, %arg1: memref<304x32xf32, #tpu.memory_space<vmem>>, %arg2: memref<304x12xf32, #tpu.memory_space<vmem>>, %arg3: memref<1x32xf32, #tpu.memory_space<vmem>>, %arg4: memref<1x32xf32, #tpu.memory_space<vmem>>, %arg5: memref<32x32xf32, #tpu.memory_space<vmem>>, %arg6: memref<12x12xf32, #tpu.memory_space<vmem>>, %arg7: memref<12x12xf32, #tpu.memory_space<vmem>>, %arg8: memref<304x32xf32, #tpu.memory_space<vmem>>, %arg9: memref<304x12xf32, #tpu.memory_space<vmem>>) attributes {dimension_semantics = [#tpu.dimension_semantics<parallel>], iteration_bounds = array<i64: 1>, scalar_prefetch = 0 : i64, scratch_operands = 0 : i64, tpu.core_type = #tpu.core_type<tc>, window_params = [{transform_indices = @transform_0, window_bounds = array<i64: 304, 32>}, {transform_indices = @transform_1, window_bounds = array<i64: 304, 12>}, {pipeline_mode = #tpu.pipeline_mode<synchronous>, transform_indices = @transform_2, window_bounds = array<i64: 1, 32>}, {pipeline_mode = #tpu.pipeline_mode<synchronous>, transform_indices = @transform_3, window_bounds = array<i64: 1, 32>}, {pipeline_mode = #tpu.pipeline_mode<synchronous>, transform_indices = @transform_4, window_bounds = array<i64: 32, 32>}, {pipeline_mode = #tpu.pipeline_mode<synchronous>, transform_indices = @transform_5, window_bounds = array<i64: 12, 12>}, {pipeline_mode = #tpu.pipeline_mode<synchronous>, transform_indices = @transform_6, window_bounds = array<i64: 12, 12>}, {transform_indices = @transform_7, window_bounds = array<i64: 304, 32>}, {transform_indices = @transform_8, window_bounds = array<i64: 304, 12>}]} {
    %c0 = arith.constant 0 : index
    %c0_0 = arith.constant 0 : index
    %0 = vector.load %arg1[%c0, %c0_0] : memref<304x32xf32, #tpu.memory_space<vmem>>, vector<304x32xf32>
    %c0_1 = arith.constant 0 : index
    %c0_2 = arith.constant 0 : index
    %1 = vector.load %arg5[%c0_1, %c0_2] : memref<32x32xf32, #tpu.memory_space<vmem>>, vector<32x32xf32>
    %cst = arith.constant dense<0.000000e+00> : vector<304x32xf32>
    %2 = tpu.matmul %0, %1, %cst {dimension_numbers = #tpu.dot_dimension_numbers<[1], [0], [0], [1], [0, 0, 1, 1], [], []>, precision = #tpu.contract_precision<fp32>} : vector<304x32xf32>, vector<32x32xf32>, vector<304x32xf32> -> vector<304x32xf32>
    %3 = arith.mulf %0, %0 : vector<304x32xf32>
    %cst_3 = arith.constant dense<0.000000e+00> : vector<304x32xf32>
    %4 = tpu.matmul %3, %1, %cst_3 {dimension_numbers = #tpu.dot_dimension_numbers<[1], [0], [0], [1], [0, 0, 1, 1], [], []>, precision = #tpu.contract_precision<fp32>} : vector<304x32xf32>, vector<32x32xf32>, vector<304x32xf32> -> vector<304x32xf32>
    %cst_4 = arith.constant 3.125000e-02 : f32
    %5 = vector.broadcast %cst_4 : f32 to vector<304x32xf32>
    %6 = arith.mulf %2, %5 : vector<304x32xf32>
    %cst_5 = arith.constant 3.125000e-02 : f32
    %7 = vector.broadcast %cst_5 : f32 to vector<304x32xf32>
    %8 = arith.mulf %4, %7 : vector<304x32xf32>
    %9 = arith.mulf %6, %6 : vector<304x32xf32>
    %10 = arith.subf %8, %9 : vector<304x32xf32>
    %cst_6 = arith.constant 0.000000e+00 : f32
    %11 = vector.broadcast %cst_6 : f32 to vector<304x32xf32>
    %12 = arith.maximumf %10, %11 : vector<304x32xf32>
    %cst_7 = arith.constant 9.99999974E-6 : f32
    %13 = vector.broadcast %cst_7 : f32 to vector<304x32xf32>
    %14 = arith.addf %12, %13 : vector<304x32xf32>
    %15 = math.rsqrt %14 : vector<304x32xf32>
    %c0_8 = arith.constant 0 : index
    %c0_9 = arith.constant 0 : index
    %16 = vector.load %arg3[%c0_8, %c0_9] : memref<1x32xf32, #tpu.memory_space<vmem>>, vector<1x32xf32>
    %c0_10 = arith.constant 0 : index
    %c0_11 = arith.constant 0 : index
    %17 = vector.load %arg4[%c0_10, %c0_11] : memref<1x32xf32, #tpu.memory_space<vmem>>, vector<1x32xf32>
    %18 = arith.subf %0, %6 : vector<304x32xf32>
    %19 = arith.mulf %18, %15 : vector<304x32xf32>
    %20 = vector.broadcast %16 : vector<1x32xf32> to vector<304x32xf32>
    %21 = arith.mulf %19, %20 : vector<304x32xf32>
    %22 = vector.broadcast %17 : vector<1x32xf32> to vector<304x32xf32>
    %23 = arith.addf %21, %22 : vector<304x32xf32>
    %c0_12 = arith.constant 0 : index
    %c0_13 = arith.constant 0 : index
    %24 = vector.load %arg8[%c0_12, %c0_13] : memref<304x32xf32, #tpu.memory_space<vmem>>, vector<304x32xf32>
    tpu.vector_store %arg8[%c0_12, %c0_13], %23 {strides = array<i32>} : memref<304x32xf32, #tpu.memory_space<vmem>>, vector<304x32xf32>,
    %c0_14 = arith.constant 0 : index
    %c0_15 = arith.constant 0 : index
    %25 = vector.load %arg2[%c0_14, %c0_15] : memref<304x12xf32, #tpu.memory_space<vmem>>, vector<304x12xf32>
    %26 = arith.mulf %25, %25 : vector<304x12xf32>
    %c0_16 = arith.constant 0 : index
    %c0_17 = arith.constant 0 : index
    %27 = vector.load %arg6[%c0_16, %c0_17] : memref<12x12xf32, #tpu.memory_space<vmem>>, vector<12x12xf32>
    %cst_18 = arith.constant dense<0.000000e+00> : vector<304x12xf32>
    %28 = tpu.matmul %26, %27, %cst_18 {dimension_numbers = #tpu.dot_dimension_numbers<[1], [0], [0], [1], [0, 0, 1, 1], [], []>, precision = #tpu.contract_precision<fp32>} : vector<304x12xf32>, vector<12x12xf32>, vector<304x12xf32> -> vector<304x12xf32>
    %cst_19 = arith.constant 9.99999993E-9 : f32
    %29 = vector.broadcast %cst_19 : f32 to vector<304x12xf32>
    %30 = arith.maximumf %28, %29 : vector<304x12xf32>
    %c0_20 = arith.constant 0 : index
    %c0_21 = arith.constant 0 : index
    %31 = vector.load %arg7[%c0_20, %c0_21] : memref<12x12xf32, #tpu.memory_space<vmem>>, vector<12x12xf32>
    %cst_22 = arith.constant dense<0.000000e+00> : vector<304x12xf32>
    %32 = tpu.matmul %30, %31, %cst_22 {dimension_numbers = #tpu.dot_dimension_numbers<[1], [0], [0], [1], [0, 0, 1, 1], [], []>, precision = #tpu.contract_precision<fp32>} : vector<304x12xf32>, vector<12x12xf32>, vector<304x12xf32> -> vector<304x12xf32>
    %cst_23 = arith.constant 0.0833333358 : f32
    %33 = vector.broadcast %cst_23 : f32 to vector<304x12xf32>
    %34 = arith.mulf %32, %33 : vector<304x12xf32>
    %35 = math.rsqrt %34 : vector<304x12xf32>
    %36 = arith.mulf %25, %35 : vector<304x12xf32>
    %c0_24 = arith.constant 0 : index
    %c0_25 = arith.constant 0 : index
    %37 = vector.load %arg9[%c0_24, %c0_25] : memref<304x12xf32, #tpu.memory_space<vmem>>, vector<304x12xf32>
    tpu.vector_store %arg9[%c0_24, %c0_25], %36 {strides = array<i32>} : memref<304x12xf32, #tpu.memory_space<vmem>>, vector<304x12xf32>,
    return
  }
  func.func @transform_0(%arg0: i32) -> (i32, i32) {
    %c0_i32 = arith.constant 0 : i32
    %c0_i32_0 = arith.constant 0 : i32
    return %arg0, %c0_i32 : i32, i32
  }
  func.func @transform_1(%arg0: i32) -> (i32, i32) {
    %c0_i32 = arith.constant 0 : i32
    %c0_i32_0 = arith.constant 0 : i32
    return %arg0, %c0_i32 : i32, i32
  }
  func.func @transform_2(%arg0: i32) -> (i32, i32) {
    %c0_i32 = arith.constant 0 : i32
    %c0_i32_0 = arith.constant 0 : i32
    %c0_i32_1 = arith.constant 0 : i32
    return %c0_i32, %c0_i32_0 : i32, i32
  }
  func.func @transform_3(%arg0: i32) -> (i32, i32) {
    %c0_i32 = arith.constant 0 : i32
    %c0_i32_0 = arith.constant 0 : i32
    %c0_i32_1 = arith.constant 0 : i32
    return %c0_i32, %c0_i32_0 : i32, i32
  }
  func.func @transform_4(%arg0: i32) -> (i32, i32) {
    %c0_i32 = arith.constant 0 : i32
    %c0_i32_0 = arith.constant 0 : i32
    %c0_i32_1 = arith.constant 0 : i32
    return %c0_i32, %c0_i32_0 : i32, i32
  }
  func.func @transform_5(%arg0: i32) -> (i32, i32) {
    %c0_i32 = arith.constant 0 : i32
    %c0_i32_0 = arith.constant 0 : i32
    %c0_i32_1 = arith.constant 0 : i32
    return %c0_i32, %c0_i32_0 : i32, i32
  }
  func.func @transform_6(%arg0: i32) -> (i32, i32) {
    %c0_i32 = arith.constant 0 : i32
    %c0_i32_0 = arith.constant 0 : i32
    %c0_i32_1 = arith.constant 0 : i32
    return %c0_i32, %c0_i32_0 : i32, i32
  }
  func.func @transform_7(%arg0: i32) -> (i32, i32) {
    %c0_i32 = arith.constant 0 : i32
    %c0_i32_0 = arith.constant 0 : i32
    return %arg0, %c0_i32 : i32, i32
  }
  func.func @transform_8(%arg0: i32) -> (i32, i32) {
    %c0_i32 = arith.constant 0 : i32
    %c0_i32_0 = arith.constant 0 : i32
    return %arg0, %c0_i32 : i32, i32
  }
}

</mosaic_0001>

<llo_original>
// kernel: tpu_custom_call.1
$region0: #{tpu_custom_call.1}
  #allocation0 [shape = 'u32[]', space=smem, size = 0x4, offset = 0x4, fixed_abs, tag = 'smem constant byte address 0x4 - core index']
  #allocation1 [shape = 'u32[144,128]{1,0:T(1,128)}', space=vmem, size = 0x12000, scoped, tag = 'internal scratch']
  %s0 = inlined_call_operand.vmem [shape: f32[300,32], index: 0, kind: input, shape index: {}]
  %s1 = inlined_call_operand.vmem [shape: f32[300,12], index: 1, kind: input, shape index: {}]
  %s2 = inlined_call_operand.vmem [shape: f32[1,32], index: 2, kind: input, shape index: {}]
  %s3 = inlined_call_operand.vmem [shape: f32[1,32], index: 3, kind: input, shape index: {}]
  %s4 = inlined_call_operand.vmem [shape: f32[32,32], index: 4, kind: input, shape index: {}]
  %s5 = inlined_call_operand.vmem [shape: f32[12,12], index: 5, kind: input, shape index: {}]
  %s6 = inlined_call_operand.vmem [shape: f32[12,12], index: 6, kind: input, shape index: {}]
  %s7 = inlined_call_operand.vmem [shape: f32[300,32], index: 7, kind: output, shape index: {0}]
  %s8 = inlined_call_operand.vmem [shape: f32[300,12], index: 8, kind: output, shape index: {1}]
  %9 = xla_tuple %s7, %s8
  %s10 = sld [smem:[#allocation0]]
  $region46: #{tpu_custom_call.1} parent=0
    _
  %s12 = ssub.s32 1, %s10
  %s13 = scalar_select 0, %s12, %s10
  // Predicated region
  $region2: #{tpu_custom_call.1} parent=0 // pred_check
    _
  $region3: #{tpu_custom_call.1} parent=0 // pred_check_branch
    %15 = sbr.rel (0) target = $region5
  $region4: #{tpu_custom_call.1} parent=0 // pred_region
    _
  $region5: #{tpu_custom_call.1} parent=0 // pred_fallthru
    _
  // Predicated region
  $region6: #{tpu_custom_call.1} parent=0 // pred_check
    _
  $region7: #{tpu_custom_call.1} parent=0 // pred_check_branch
    %17 = sbr.rel (0) target = $region9
  $region8: #{tpu_custom_call.1} parent=0 // pred_region
    _
  $region9: #{tpu_custom_call.1} parent=0 // pred_fallthru
    _
  // Predicated region
  $region10: #{tpu_custom_call.1} parent=0 // pred_check
    _
  $region11: #{tpu_custom_call.1} parent=0 // pred_check_branch
    %19 = sbr.rel (0) target = $region13
  $region12: #{tpu_custom_call.1} parent=0 // pred_region
    _
  $region13: #{tpu_custom_call.1} parent=0 // pred_fallthru
    _
  // Predicated region
  $region14: #{tpu_custom_call.1} parent=0 // pred_check
    _
  $region15: #{tpu_custom_call.1} parent=0 // pred_check_branch
    %21 = sbr.rel (0) target = $region17
  $region16: #{tpu_custom_call.1} parent=0 // pred_region
    _
  $region17: #{tpu_custom_call.1} parent=0 // pred_fallthru
    _
  // Predicated region
  $region18: #{tpu_custom_call.1} parent=0 // pred_check
    _
  $region19: #{tpu_custom_call.1} parent=0 // pred_check_branch
    %23 = sbr.rel (0) target = $region21
  $region20: #{tpu_custom_call.1} parent=0 // pred_region
    _
  $region21: #{tpu_custom_call.1} parent=0 // pred_fallthru
    _
  // Predicated region
  $region22: #{tpu_custom_call.1} parent=0 // pred_check
    _
  $region23: #{tpu_custom_call.1} parent=0 // pred_check_branch
    %25 = sbr.rel (0) target = $region25
  $region24: #{tpu_custom_call.1} parent=0 // pred_region
    _
  $region25: #{tpu_custom_call.1} parent=0 // pred_fallthru
    _
  // Predicated region
  $region26: #{tpu_custom_call.1} parent=0 // pred_check
    _
  $region27: #{tpu_custom_call.1} parent=0 // pred_check_branch
    %27 = sbr.rel (0) target = $region29
  $region28: #{tpu_custom_call.1} parent=0 // pred_region
    _
  $region29: #{tpu_custom_call.1} parent=0 // pred_fallthru
    _
  %v28 = vld [vmem:[%s0] sm:$0xff]
  %v29 = vld [vmem:[%s0 + $0x8] sm:$0xff]
  %v30 = vld [vmem:[%s0 + $0x10] sm:$0xff]
  %v31 = vld [vmem:[%s0 + $0x18] sm:$0xff]
  %v32 = vld [vmem:[%s0 + $0x20] sm:$0xff]
  %v33 = vld [vmem:[%s0 + $0x28] sm:$0xff]
  %v34 = vld [vmem:[%s0 + $0x30] sm:$0xff]
  %v35 = vld [vmem:[%s0 + $0x38] sm:$0xff]
  %v36 = vld [vmem:[%s0 + $0x40] sm:$0xff]
  %v37 = vld [vmem:[%s0 + $0x48] sm:$0xff]
  %v38 = vld [vmem:[%s0 + $0x50] sm:$0xff]
  %v39 = vld [vmem:[%s0 + $0x58] sm:$0xff]
  %v40 = vld [vmem:[%s0 + $0x60] sm:$0xff]
  %v41 = vld [vmem:[%s0 + $0x68] sm:$0xff]
  %v42 = vld [vmem:[%s0 + $0x70] sm:$0xff]
  %v43 = vld [vmem:[%s0 + $0x78] sm:$0xff]
  %v44 = vld [vmem:[%s0 + $0x80] sm:$0xff]
  %v45 = vld [vmem:[%s0 + $0x88] sm:$0xff]
  %v46 = vld [vmem:[%s0 + $0x90] sm:$0xff]
  %v47 = vld [vmem:[%s0 + $0x98] sm:$0xff]
  %v48 = vld [vmem:[%s0 + $0xa0] sm:$0xff]
  %v49 = vld [vmem:[%s0 + $0xa8] sm:$0xff]
  %v50 = vld [vmem:[%s0 + $0xb0] sm:$0xff]
  %v51 = vld [vmem:[%s0 + $0xb8] sm:$0xff]
  %v52 = vld [vmem:[%s0 + $0xc0] sm:$0xff]
  %v53 = vld [vmem:[%s0 + $0xc8] sm:$0xff]
  %v54 = vld [vmem:[%s0 + $0xd0] sm:$0xff]
  %v55 = vld [vmem:[%s0 + $0xd8] sm:$0xff]
  %v56 = vld [vmem:[%s0 + $0xe0] sm:$0xff]
  %v57 = vld [vmem:[%s0 + $0xe8] sm:$0xff]
  %v58 = vld [vmem:[%s0 + $0xf0] sm:$0xff]
  %v59 = vld [vmem:[%s0 + $0xf8] sm:$0xff]
  %v60 = vld [vmem:[%s0 + $0x100] sm:$0xff]
  %v61 = vld [vmem:[%s0 + $0x108] sm:$0xff]
  %v62 = vld [vmem:[%s0 + $0x110] sm:$0xff]
  %v63 = vld [vmem:[%s0 + $0x118] sm:$0xff]
  %v64 = vld [vmem:[%s0 + $0x120] sm:$0xff]
  %v65 = vld [vmem:[%s0 + $0x128] sm:$0xff]
  %v66 = vld [vmem:[%s4] sm:$0xff]
  %v67 = vld [vmem:[%s4 + $0x8] sm:$0xff]
  %v68 = vld [vmem:[%s4 + $0x10] sm:$0xff]
  %v69 = vld [vmem:[%s4 + $0x18] sm:$0xff]
  %vm70 = vcmask 261120
  %v72 = vsel %vm70, %v28, 0
  %v75 = vsel %vm70, %v29, 0
  %v78 = vsel %vm70, %v30, 0
  %v81 = vsel %vm70, %v31, 0
  %v84 = vsel %vm70, %v32, 0
  %v87 = vsel %vm70, %v33, 0
  %v90 = vsel %vm70, %v34, 0
  %v93 = vsel %vm70, %v35, 0
  %v96 = vsel %vm70, %v36, 0
  %v99 = vsel %vm70, %v37, 0
  %v102 = vsel %vm70, %v38, 0
  %v105 = vsel %vm70, %v39, 0
  %v108 = vsel %vm70, %v40, 0
  %v111 = vsel %vm70, %v41, 0
  %v114 = vsel %vm70, %v42, 0
  %v117 = vsel %vm70, %v43, 0
  %v120 = vsel %vm70, %v44, 0
  %v123 = vsel %vm70, %v45, 0
  %v126 = vsel %vm70, %v46, 0
  %v129 = vsel %vm70, %v47, 0
  %v132 = vsel %vm70, %v48, 0
  %v135 = vsel %vm70, %v49, 0
  %v138 = vsel %vm70, %v50, 0
  %v141 = vsel %vm70, %v51, 0
  %v144 = vsel %vm70, %v52, 0
  %v147 = vsel %vm70, %v53, 0
  %v150 = vsel %vm70, %v54, 0
  %v153 = vsel %vm70, %v55, 0
  %v156 = vsel %vm70, %v56, 0
  %v159 = vsel %vm70, %v57, 0
  %v162 = vsel %vm70, %v58, 0
  %v165 = vsel %vm70, %v59, 0
  %v168 = vsel %vm70, %v60, 0
  %v171 = vsel %vm70, %v61, 0
  %v174 = vsel %vm70, %v62, 0
  %v177 = vsel %vm70, %v63, 0
  %v180 = vsel %vm70, %v64, 0
  %v183 = vsel %vm70, %v65, 0
  %185 = vmatprep.subr.mxu0 0.0
  %186 = vmatpush1.msra.mxu0 0.0
  %187 = vmatprep.subr.mxu0 0.0
  %188 = vmatpush1.msra.mxu0 0.0
  %189 = vmatprep.subr.mxu0 0.0
  %190 = vmatpush1.msra.mxu0 0.0
  %191 = vmatprep.subr.mxu0 0.0
  %192 = vmatpush1.msra.mxu0 0.0
  %193 = vmatprep.subr.mxu0 0.0
  %194 = vmatpush1.msra.mxu0 0.0
  %195 = vmatprep.subr.mxu0 0.0
  %196 = vmatpush1.msra.mxu0 0.0
  %197 = vmatprep.subr.mxu0 0.0
  %198 = vmatpush1.msra.mxu0 0.0
  %199 = vmatprep.subr.mxu0 0.0
  %200 = vmatpush1.msra.mxu0 0.0
  %201 = vmatprep.subr.mxu0 0.0
  %202 = vmatpush1.msra.mxu0 0.0
  %203 = vmatprep.subr.mxu0 0.0
  %204 = vmatpush1.msra.mxu0 0.0
  %205 = vmatprep.subr.mxu0 0.0
  %206 = vmatpush1.msra.mxu0 0.0
  %207 = vmatprep.subr.mxu0 0.0
  %208 = vmatpush1.msra.mxu0 0.0
  %209 = vmatprep.subr.mxu0 0.0
  %v210 = vand.u32 %v69, 4294901760
  %211 = vmatpush1.msra.mxu0 %v210
  %212 = vmatprep.subr.mxu0 0.0
  %v213 = vand.u32 %v68, 4294901760
  %214 = vmatpush1.msra.mxu0 %v213
  %215 = vmatprep.subr.mxu0 0.0
  %v216 = vand.u32 %v67, 4294901760
  %217 = vmatpush1.msra.mxu0 %v216
  %218 = vmatprep.subr.mxu0 0.0
  %v219 = vand.u32 %v66, 4294901760
  %220 = vmatpush1.msra.mxu0 %v219
  %221 = vmatprep.subr.mxu0 0.0
  %222 = vmatpush2.msra.mxu0 0.0
  %223 = vmatprep.subr.mxu0 0.0
  %224 = vmatpush2.msra.mxu0 0.0
  %225 = vmatprep.subr.mxu0 0.0
  %226 = vmatpush2.msra.mxu0 0.0
  %227 = vmatprep.subr.mxu0 0.0
  %228 = vmatpush2.msra.mxu0 0.0
  %229 = vmatprep.subr.mxu0 0.0
  %230 = vmatpush2.msra.mxu0 0.0
  %231 = vmatprep.subr.mxu0 0.0
  %232 = vmatpush2.msra.mxu0 0.0
  %233 = vmatprep.subr.mxu0 0.0
  %234 = vmatpush2.msra.mxu0 0.0
  %235 = vmatprep.subr.mxu0 0.0
  %236 = vmatpush2.msra.mxu0 0.0
  %237 = vmatprep.subr.mxu0 0.0
  %238 = vmatpush2.msra.mxu0 0.0
  %239 = vmatprep.subr.mxu0 0.0
  %240 = vmatpush2.msra.mxu0 0.0
  %241 = vmatprep.subr.mxu0 0.0
  %242 = vmatpush2.msra.mxu0 0.0
  %243 = vmatprep.subr.mxu0 0.0
  %244 = vmatpush2.msra.mxu0 0.0
  %245 = vmatprep.subr.mxu0 0.0
  %246 = vmatpush2.msra.mxu0 0.0
  %247 = vmatprep.subr.mxu0 0.0
  %248 = vmatpush2.msra.mxu0 0.0
  %249 = vmatprep.subr.mxu0 0.0
  %250 = vmatpush2.msra.mxu0 0.0
  %251 = vmatprep.subr.mxu0 0.0
  %252 = vmatpush2.msra.mxu0 0.0
  %253 = vmatprep.mubr.f32.mxu0 0.0
  %v254 = vand.u32 %v72, 4294901760
  %v255 = vsub.f32 %v72, %v254
  %v256 = vand.u32 %v255, 4294901760
  %v257 = vsub.f32 %v255, %v256
  %v258 = vand.u32 %v257, 4294901760
  %259 = vmatmul.mubr.f32.gmra.mxu0 %v258
  %v260 = vpop.f32.mrf.mxu0
  %v261 = vadd.f32 0.0, %v260
  %v262 = vpop.f32.mrf.mxu0
  %263 = vmatprep.mubr.f32.mxu0 0.0
  %v264 = vand.u32 %v75, 4294901760
  %v265 = vsub.f32 %v75, %v264
  %v266 = vand.u32 %v265, 4294901760
  %v267 = vsub.f32 %v265, %v266
  %v268 = vand.u32 %v267, 4294901760
  %269 = vmatmul.mubr.f32.gmra.mxu0 %v268
  %v270 = vpop.f32.mrf.mxu0
  %v271 = vadd.f32 0.0, %v270
  %v272 = vpop.f32.mrf.mxu0
  %273 = vmatprep.mubr.f32.mxu0 0.0
  %v274 = vand.u32 %v78, 4294901760
  %v275 = vsub.f32 %v78, %v274
  %v276 = vand.u32 %v275, 4294901760
  %v277 = vsub.f32 %v275, %v276
  %v278 = vand.u32 %v277, 4294901760
  %279 = vmatmul.mubr.f32.gmra.mxu0 %v278
  %v280 = vpop.f32.mrf.mxu0
  %v281 = vadd.f32 0.0, %v280
  %v282 = vpop.f32.mrf.mxu0
  %283 = vmatprep.mubr.f32.mxu0 0.0
  %v284 = vand.u32 %v81, 4294901760
  %v285 = vsub.f32 %v81, %v284
  %v286 = vand.u32 %v285, 4294901760
  %v287 = vsub.f32 %v285, %v286
  %v288 = vand.u32 %v287, 4294901760
  %289 = vmatmul.mubr.f32.gmra.mxu0 %v288
  %v290 = vpop.f32.mrf.mxu0
  %v291 = vadd.f32 0.0, %v290
  %v292 = vpop.f32.mrf.mxu0
  %293 = vmatprep.mubr.f32.mxu0 0.0
  %v294 = vand.u32 %v84, 4294901760
  %v295 = vsub.f32 %v84, %v294
  %v296 = vand.u32 %v295, 4294901760
  %v297 = vsub.f32 %v295, %v296
  %v298 = vand.u32 %v297, 4294901760
  %299 = vmatmul.mubr.f32.gmra.mxu0 %v298
  %v300 = vpop.f32.mrf.mxu0
  %v301 = vadd.f32 0.0, %v300
  %v302 = vpop.f32.mrf.mxu0
  %303 = vmatprep.mubr.f32.mxu0 0.0
  %v304 = vand.u32 %v87, 4294901760
  %v305 = vsub.f32 %v87, %v304
  %v306 = vand.u32 %v305, 4294901760
  %v307 = vsub.f32 %v305, %v306
  %v308 = vand.u32 %v307, 4294901760
  %309 = vmatmul.mubr.f32.gmra.mxu0 %v308
  %v310 = vpop.f32.mrf.mxu0
  %v311 = vadd.f32 0.0, %v310
  %v312 = vpop.f32.mrf.mxu0
  %313 = vmatprep.mubr.f32.mxu0 0.0
  %v314 = vand.u32 %v90, 4294901760
  %v315 = vsub.f32 %v90, %v314
  %v316 = vand.u32 %v315, 4294901760
  %v317 = vsub.f32 %v315, %v316
  %v318 = vand.u32 %v317, 4294901760
  %319 = vmatmul.mubr.f32.gmra.mxu0 %v318
  %v320 = vpop.f32.mrf.mxu0
  %v321 = vadd.f32 0.0, %v320
  %v322 = vpop.f32.mrf.mxu0
  %323 = vmatprep.mubr.f32.mxu0 0.0
  %v324 = vand.u32 %v93, 4294901760
  %v325 = vsub.f32 %v93, %v324
  %v326 = vand.u32 %v325, 4294901760
  %v327 = vsub.f32 %v325, %v326
  %v328 = vand.u32 %v327, 4294901760
  %329 = vmatmul.mubr.f32.gmra.mxu0 %v328
  %v330 = vpop.f32.mrf.mxu0
  %v331 = vadd.f32 0.0, %v330
  %v332 = vpop.f32.mrf.mxu0
  %333 = vmatprep.mubr.f32.mxu0 0.0
  %v334 = vand.u32 %v96, 4294901760
  %v335 = vsub.f32 %v96, %v334
  %v336 = vand.u32 %v335, 4294901760
  %v337 = vsub.f32 %v335, %v336
  %v338 = vand.u32 %v337, 4294901760
  %339 = vmatmul.mubr.f32.gmra.mxu0 %v338
  %v340 = vpop.f32.mrf.mxu0
  %v341 = vadd.f32 0.0, %v340
  %v342 = vpop.f32.mrf.mxu0
  %343 = vmatprep.mubr.f32.mxu0 0.0
  %v344 = vand.u32 %v99, 4294901760
  %v345 = vsub.f32 %v99, %v344
  %v346 = vand.u32 %v345, 4294901760
  %v347 = vsub.f32 %v345, %v346
  %v348 = vand.u32 %v347, 4294901760
  %349 = vmatmul.mubr.f32.gmra.mxu0 %v348
  %v350 = vpop.f32.mrf.mxu0
  %v351 = vadd.f32 0.0, %v350
  %v352 = vpop.f32.mrf.mxu0
  %353 = vmatprep.mubr.f32.mxu0 0.0
  %v354 = vand.u32 %v102, 4294901760
  %v355 = vsub.f32 %v102, %v354
  %v356 = vand.u32 %v355, 4294901760
  %v357 = vsub.f32 %v355, %v356
  %v358 = vand.u32 %v357, 4294901760
  %359 = vmatmul.mubr.f32.gmra.mxu0 %v358
  %v360 = vpop.f32.mrf.mxu0
  %v361 = vadd.f32 0.0, %v360
  %v362 = vpop.f32.mrf.mxu0
  %363 = vmatprep.mubr.f32.mxu0 0.0
  %v364 = vand.u32 %v105, 4294901760
  %v365 = vsub.f32 %v105, %v364
  %v366 = vand.u32 %v365, 4294901760
  %v367 = vsub.f32 %v365, %v366
  %v368 = vand.u32 %v367, 4294901760
  %369 = vmatmul.mubr.f32.gmra.mxu0 %v368
  %v370 = vpop.f32.mrf.mxu0
  %v371 = vadd.f32 0.0, %v370
  %v372 = vpop.f32.mrf.mxu0
  %373 = vmatprep.mubr.f32.mxu0 0.0
  %v374 = vand.u32 %v108, 4294901760
  %v375 = vsub.f32 %v108, %v374
  %v376 = vand.u32 %v375, 4294901760
  %v377 = vsub.f32 %v375, %v376
  %v378 = vand.u32 %v377, 4294901760
  %379 = vmatmul.mubr.f32.gmra.mxu0 %v378
  %v380 = vpop.f32.mrf.mxu0
  %v381 = vadd.f32 0.0, %v380
  %v382 = vpop.f32.mrf.mxu0
  %383 = vmatprep.mubr.f32.mxu0 0.0
  %v384 = vand.u32 %v111, 4294901760
  %v385 = vsub.f32 %v111, %v384
  %v386 = vand.u32 %v385, 4294901760
  %v387 = vsub.f32 %v385, %v386
  %v388 = vand.u32 %v387, 4294901760
  %389 = vmatmul.mubr.f32.gmra.mxu0 %v388
  %v390 = vpop.f32.mrf.mxu0
  %v391 = vadd.f32 0.0, %v390
  %v392 = vpop.f32.mrf.mxu0
  %393 = vmatprep.mubr.f32.mxu0 0.0
  %v394 = vand.u32 %v114, 4294901760
  %v395 = vsub.f32 %v114, %v394
  %v396 = vand.u32 %v395, 4294901760
  %v397 = vsub.f32 %v395, %v396
  %v398 = vand.u32 %v397, 4294901760
  %399 = vmatmul.mubr.f32.gmra.mxu0 %v398
  %v400 = vpop.f32.mrf.mxu0
  %v401 = vadd.f32 0.0, %v400
  %v402 = vpop.f32.mrf.mxu0
  %403 = vmatprep.mubr.f32.mxu0 0.0
  %v404 = vand.u32 %v117, 4294901760
  %v405 = vsub.f32 %v117, %v404
  %v406 = vand.u32 %v405, 4294901760
  %v407 = vsub.f32 %v405, %v406
  %v408 = vand.u32 %v407, 4294901760
  %409 = vmatmul.mubr.f32.gmra.mxu0 %v408
  %v410 = vpop.f32.mrf.mxu0
  %v411 = vadd.f32 0.0, %v410
  %v412 = vpop.f32.mrf.mxu0
  %413 = vmatprep.mubr.f32.mxu0 0.0
  %v414 = vand.u32 %v120, 4294901760
  %v415 = vsub.f32 %v120, %v414
  %v416 = vand.u32 %v415, 4294901760
  %v417 = vsub.f32 %v415, %v416
  %v418 = vand.u32 %v417, 4294901760
  %419 = vmatmul.mubr.f32.gmra.mxu0 %v418
  %v420 = vpop.f32.mrf.mxu0
  %v421 = vadd.f32 0.0, %v420
  %v422 = vpop.f32.mrf.mxu0
  %423 = vmatprep.mubr.f32.mxu0 0.0
  %v424 = vand.u32 %v123, 4294901760
  %v425 = vsub.f32 %v123, %v424
  %v426 = vand.u32 %v425, 4294901760
  %v427 = vsub.f32 %v425, %v426
  %v428 = vand.u32 %v427, 4294901760
  %429 = vmatmul.mubr.f32.gmra.mxu0 %v428
  %v430 = vpop.f32.mrf.mxu0
  %v431 = vadd.f32 0.0, %v430
  %v432 = vpop.f32.mrf.mxu0
  %433 = vmatprep.mubr.f32.mxu0 0.0
  %v434 = vand.u32 %v126, 4294901760
  %v435 = vsub.f32 %v126, %v434
  %v436 = vand.u32 %v435, 4294901760
  %v437 = vsub.f32 %v435, %v436
  %v438 = vand.u32 %v437, 4294901760
  %439 = vmatmul.mubr.f32.gmra.mxu0 %v438
  %v440 = vpop.f32.mrf.mxu0
  %v441 = vadd.f32 0.0, %v440
  %v442 = vpop.f32.mrf.mxu0
  %443 = vmatprep.mubr.f32.mxu0 0.0
  %v444 = vand.u32 %v129, 4294901760
  %v445 = vsub.f32 %v129, %v444
  %v446 = vand.u32 %v445, 4294901760
  %v447 = vsub.f32 %v445, %v446
  %v448 = vand.u32 %v447, 4294901760
  %449 = vmatmul.mubr.f32.gmra.mxu0 %v448
  %v450 = vpop.f32.mrf.mxu0
  %v451 = vadd.f32 0.0, %v450
  %v452 = vpop.f32.mrf.mxu0
  %453 = vmatprep.mubr.f32.mxu0 0.0
  %v454 = vand.u32 %v132, 4294901760
  %v455 = vsub.f32 %v132, %v454
  %v456 = vand.u32 %v455, 4294901760
  %v457 = vsub.f32 %v455, %v456
  %v458 = vand.u32 %v457, 4294901760
  %459 = vmatmul.mubr.f32.gmra.mxu0 %v458
  %v460 = vpop.f32.mrf.mxu0
  %v461 = vadd.f32 0.0, %v460
  %v462 = vpop.f32.mrf.mxu0
  %463 = vmatprep.mubr.f32.mxu0 0.0
  %v464 = vand.u32 %v135, 4294901760
  %v465 = vsub.f32 %v135, %v464
  %v466 = vand.u32 %v465, 4294901760
  %v467 = vsub.f32 %v465, %v466
  %v468 = vand.u32 %v467, 4294901760
  %469 = vmatmul.mubr.f32.gmra.mxu0 %v468
  %v470 = vpop.f32.mrf.mxu0
  %v471 = vadd.f32 0.0, %v470
  %v472 = vpop.f32.mrf.mxu0
  %473 = vmatprep.mubr.f32.mxu0 0.0
  %v474 = vand.u32 %v138, 4294901760
  %v475 = vsub.f32 %v138, %v474
  %v476 = vand.u32 %v475, 4294901760
  %v477 = vsub.f32 %v475, %v476
  %v478 = vand.u32 %v477, 4294901760
  %479 = vmatmul.mubr.f32.gmra.mxu0 %v478
  %v480 = vpop.f32.mrf.mxu0
  %v481 = vadd.f32 0.0, %v480
  %v482 = vpop.f32.mrf.mxu0
  %483 = vmatprep.mubr.f32.mxu0 0.0
  %v484 = vand.u32 %v141, 4294901760
  %v485 = vsub.f32 %v141, %v484
  %v486 = vand.u32 %v485, 4294901760
  %v487 = vsub.f32 %v485, %v486
  %v488 = vand.u32 %v487, 4294901760
  %489 = vmatmul.mubr.f32.gmra.mxu0 %v488
  %v490 = vpop.f32.mrf.mxu0
  %v491 = vadd.f32 0.0, %v490
  %v492 = vpop.f32.mrf.mxu0
  %493 = vmatprep.mubr.f32.mxu0 0.0
  %v494 = vand.u32 %v144, 4294901760
  %v495 = vsub.f32 %v144, %v494
  %v496 = vand.u32 %v495, 4294901760
  %v497 = vsub.f32 %v495, %v496
  %v498 = vand.u32 %v497, 4294901760
  %499 = vmatmul.mubr.f32.gmra.mxu0 %v498
  %v500 = vpop.f32.mrf.mxu0
  %v501 = vadd.f32 0.0, %v500
  %v502 = vpop.f32.mrf.mxu0
  %503 = vmatprep.mubr.f32.mxu0 0.0
  %v504 = vand.u32 %v147, 4294901760
  %v505 = vsub.f32 %v147, %v504
  %v506 = vand.u32 %v505, 4294901760
  %v507 = vsub.f32 %v505, %v506
  %v508 = vand.u32 %v507, 4294901760
  %509 = vmatmul.mubr.f32.gmra.mxu0 %v508
  %v510 = vpop.f32.mrf.mxu0
  %v511 = vadd.f32 0.0, %v510
  %v512 = vpop.f32.mrf.mxu0
  %513 = vmatprep.mubr.f32.mxu0 0.0
  %v514 = vand.u32 %v150, 4294901760
  %v515 = vsub.f32 %v150, %v514
  %v516 = vand.u32 %v515, 4294901760
  %v517 = vsub.f32 %v515, %v516
  %v518 = vand.u32 %v517, 4294901760
  %519 = vmatmul.mubr.f32.gmra.mxu0 %v518
  %v520 = vpop.f32.mrf.mxu0
  %v521 = vadd.f32 0.0, %v520
  %v522 = vpop.f32.mrf.mxu0
  %523 = vmatprep.mubr.f32.mxu0 0.0
  %v524 = vand.u32 %v153, 4294901760
  %v525 = vsub.f32 %v153, %v524
  %v526 = vand.u32 %v525, 4294901760
  %v527 = vsub.f32 %v525, %v526
  %v528 = vand.u32 %v527, 4294901760
  %529 = vmatmul.mubr.f32.gmra.mxu0 %v528
  %v530 = vpop.f32.mrf.mxu0
  %v531 = vadd.f32 0.0, %v530
  %v532 = vpop.f32.mrf.mxu0
  %533 = vmatprep.mubr.f32.mxu0 0.0
  %v534 = vand.u32 %v156, 4294901760
  %v535 = vsub.f32 %v156, %v534
  %v536 = vand.u32 %v535, 4294901760
  %v537 = vsub.f32 %v535, %v536
  %v538 = vand.u32 %v537, 4294901760
  %539 = vmatmul.mubr.f32.gmra.mxu0 %v538
  %v540 = vpop.f32.mrf.mxu0
  %v541 = vadd.f32 0.0, %v540
  %v542 = vpop.f32.mrf.mxu0
  %543 = vmatprep.mubr.f32.mxu0 0.0
  %v544 = vand.u32 %v159, 4294901760
  %v545 = vsub.f32 %v159, %v544
  %v546 = vand.u32 %v545, 4294901760
  %v547 = vsub.f32 %v545, %v546
  %v548 = vand.u32 %v547, 4294901760
  %549 = vmatmul.mubr.f32.gmra.mxu0 %v548
  %v550 = vpop.f32.mrf.mxu0
  %v551 = vadd.f32 0.0, %v550
  %v552 = vpop.f32.mrf.mxu0
  %553 = vmatprep.mubr.f32.mxu0 0.0
  %v554 = vand.u32 %v162, 4294901760
  %v555 = vsub.f32 %v162, %v554
  %v556 = vand.u32 %v555, 4294901760
  %v557 = vsub.f32 %v555, %v556
  %v558 = vand.u32 %v557, 4294901760
  %559 = vmatmul.mubr.f32.gmra.mxu0 %v558
  %v560 = vpop.f32.mrf.mxu0
  %v561 = vadd.f32 0.0, %v560
  %v562 = vpop.f32.mrf.mxu0
  %563 = vmatprep.mubr.f32.mxu0 0.0
  %v564 = vand.u32 %v165, 4294901760
  %v565 = vsub.f32 %v165, %v564
  %v566 = vand.u32 %v565, 4294901760
  %v567 = vsub.f32 %v565, %v566
  %v568 = vand.u32 %v567, 4294901760
  %569 = vmatmul.mubr.f32.gmra.mxu0 %v568
  %v570 = vpop.f32.mrf.mxu0
  %v571 = vadd.f32 0.0, %v570
  %v572 = vpop.f32.mrf.mxu0
  %573 = vmatprep.mubr.f32.mxu0 0.0
  %v574 = vand.u32 %v168, 4294901760
  %v575 = vsub.f32 %v168, %v574
  %v576 = vand.u32 %v575, 4294901760
  %v577 = vsub.f32 %v575, %v576
  %v578 = vand.u32 %v577, 4294901760
  %579 = vmatmul.mubr.f32.gmra.mxu0 %v578
  %v580 = vpop.f32.mrf.mxu0
  %v581 = vadd.f32 0.0, %v580
  %v582 = vpop.f32.mrf.mxu0
  %583 = vmatprep.mubr.f32.mxu0 0.0
  %v584 = vand.u32 %v171, 4294901760
  %v585 = vsub.f32 %v171, %v584
  %v586 = vand.u32 %v585, 4294901760
  %v587 = vsub.f32 %v585, %v586
  %v588 = vand.u32 %v587, 4294901760
  %589 = vmatmul.mubr.f32.gmra.mxu0 %v588
  %v590 = vpop.f32.mrf.mxu0
  %v591 = vadd.f32 0.0, %v590
  %v592 = vpop.f32.mrf.mxu0
  %593 = vmatprep.mubr.f32.mxu0 0.0
  %v594 = vand.u32 %v174, 4294901760
  %v595 = vsub.f32 %v174, %v594
  %v596 = vand.u32 %v595, 4294901760
  %v597 = vsub.f32 %v595, %v596
  %v598 = vand.u32 %v597, 4294901760
  %599 = vmatmul.mubr.f32.gmra.mxu0 %v598
  %v600 = vpop.f32.mrf.mxu0
  %v601 = vadd.f32 0.0, %v600
  %v602 = vpop.f32.mrf.mxu0
  %603 = vmatprep.mubr.f32.mxu0 0.0
  %v604 = vand.u32 %v177, 4294901760
  %v605 = vsub.f32 %v177, %v604
  %v606 = vand.u32 %v605, 4294901760
  %v607 = vsub.f32 %v605, %v606
  %v608 = vand.u32 %v607, 4294901760
  %609 = vmatmul.mubr.f32.gmra.mxu0 %v608
  %v610 = vpop.f32.mrf.mxu0
  %v611 = vadd.f32 0.0, %v610
  %v612 = vpop.f32.mrf.mxu0
  %613 = vmatprep.mubr.f32.mxu0 0.0
  %v614 = vand.u32 %v180, 4294901760
  %v615 = vsub.f32 %v180, %v614
  %v616 = vand.u32 %v615, 4294901760
  %v617 = vsub.f32 %v615, %v616
  %v618 = vand.u32 %v617, 4294901760
  %619 = vmatmul.mubr.f32.gmra.mxu0 %v618
  %v620 = vpop.f32.mrf.mxu0
  %v621 = vadd.f32 0.0, %v620
  %v622 = vpop.f32.mrf.mxu0
  %623 = vmatprep.mubr.f32.mxu0 0.0
  %v624 = vand.u32 %v183, 4294901760
  %v625 = vsub.f32 %v183, %v624
  %v626 = vand.u32 %v625, 4294901760
  %v627 = vsub.f32 %v625, %v626
  %v628 = vand.u32 %v627, 4294901760
  %629 = vmatmul.mubr.f32.gmra.mxu0 %v628
  %v630 = vpop.f32.mrf.mxu0
  %v631 = vadd.f32 0.0, %v630
  %v632 = vpop.f32.mrf.mxu0
  %633 = vdwg.mxu0
  %634 = vmatprep.subr.mxu0 0.0
  %635 = vmatpush1.msra.mxu0 0.0
  %636 = vmatprep.subr.mxu0 0.0
  %637 = vmatpush1.msra.mxu0 0.0
  %638 = vmatprep.subr.mxu0 0.0
  %639 = vmatpush1.msra.mxu0 0.0
  %640 = vmatprep.subr.mxu0 0.0
  %641 = vmatpush1.msra.mxu0 0.0
  %642 = vmatprep.subr.mxu0 0.0
  %643 = vmatpush1.msra.mxu0 0.0
  %644 = vmatprep.subr.mxu0 0.0
  %645 = vmatpush1.msra.mxu0 0.0
  %646 = vmatprep.subr.mxu0 0.0
  %647 = vmatpush1.msra.mxu0 0.0
  %648 = vmatprep.subr.mxu0 0.0
  %649 = vmatpush1.msra.mxu0 0.0
  %650 = vmatprep.subr.mxu0 0.0
  %651 = vmatpush1.msra.mxu0 0.0
  %652 = vmatprep.subr.mxu0 0.0
  %653 = vmatpush1.msra.mxu0 0.0
  %654 = vmatprep.subr.mxu0 0.0
  %655 = vmatpush1.msra.mxu0 0.0
  %656 = vmatprep.subr.mxu0 0.0
  %657 = vmatpush1.msra.mxu0 0.0
  %658 = vmatprep.subr.mxu0 0.0
  %v659 = vand.u32 %v69, 4294901760
  %v660 = vsub.f32 %v69, %v659
  %v661 = vand.u32 %v660, 4294901760
  %v662 = vsub.f32 %v660, %v661
  %v663 = vand.u32 %v662, 4294901760
  %664 = vmatpush1.msra.mxu0 %v663
  %665 = vmatprep.subr.mxu0 0.0
  %v666 = vand.u32 %v68, 4294901760
  %v667 = vsub.f32 %v68, %v666
  %v668 = vand.u32 %v667, 4294901760
  %v669 = vsub.f32 %v667, %v668
  %v670 = vand.u32 %v669, 4294901760
  %671 = vmatpush1.msra.mxu0 %v670
  %672 = vmatprep.subr.mxu0 0.0
  %v673 = vand.u32 %v67, 4294901760
  %v674 = vsub.f32 %v67, %v673
  %v675 = vand.u32 %v674, 4294901760
  %v676 = vsub.f32 %v674, %v675
  %v677 = vand.u32 %v676, 4294901760
  %678 = vmatpush1.msra.mxu0 %v677
  %679 = vmatprep.subr.mxu0 0.0
  %v680 = vand.u32 %v66, 4294901760
  %v681 = vsub.f32 %v66, %v680
  %v682 = vand.u32 %v681, 4294901760
  %v683 = vsub.f32 %v681, %v682
  %v684 = vand.u32 %v683, 4294901760
  %685 = vmatpush1.msra.mxu0 %v684
  %686 = vmatprep.subr.mxu0 0.0
  %687 = vmatpush2.msra.mxu0 0.0
  %688 = vmatprep.subr.mxu0 0.0
  %689 = vmatpush2.msra.mxu0 0.0
  %690 = vmatprep.subr.mxu0 0.0
  %691 = vmatpush2.msra.mxu0 0.0
  %692 = vmatprep.subr.mxu0 0.0
  %693 = vmatpush2.msra.mxu0 0.0
  %694 = vmatprep.subr.mxu0 0.0
  %695 = vmatpush2.msra.mxu0 0.0
  %696 = vmatprep.subr.mxu0 0.0
  %697 = vmatpush2.msra.mxu0 0.0
  %698 = vmatprep.subr.mxu0 0.0
  %699 = vmatpush2.msra.mxu0 0.0
  %700 = vmatprep.subr.mxu0 0.0
  %701 = vmatpush2.msra.mxu0 0.0
  %702 = vmatprep.subr.mxu0 0.0
  %703 = vmatpush2.msra.mxu0 0.0
  %704 = vmatprep.subr.mxu0 0.0
  %705 = vmatpush2.msra.mxu0 0.0
  %706 = vmatprep.subr.mxu0 0.0
  %707 = vmatpush2.msra.mxu0 0.0
  %708 = vmatprep.subr.mxu0 0.0
  %709 = vmatpush2.msra.mxu0 0.0
  %710 = vmatprep.subr.mxu0 0.0
  %711 = vmatpush2.msra.mxu0 0.0
  %712 = vmatprep.subr.mxu0 0.0
  %713 = vmatpush2.msra.mxu0 0.0
  %714 = vmatprep.subr.mxu0 0.0
  %715 = vmatpush2.msra.mxu0 0.0
  %716 = vmatprep.subr.mxu0 0.0
  %717 = vmatpush2.msra.mxu0 0.0
  %718 = vmatprep.mubr.f32.mxu0 0.0
  %v719 = vand.u32 %v72, 4294901760
  %720 = vmatmul.mubr.f32.gmra.mxu0 %v719
  %v721 = vpop.f32.mrf.mxu0
  %v722 = vadd.f32 %v261, %v721
  %v723 = vpop.f32.mrf.mxu0
  %724 = vmatprep.mubr.f32.mxu0 0.0
  %v725 = vand.u32 %v75, 4294901760
  %726 = vmatmul.mubr.f32.gmra.mxu0 %v725
  %v727 = vpop.f32.mrf.mxu0
  %v728 = vadd.f32 %v271, %v727
  %v729 = vpop.f32.mrf.mxu0
  %730 = vmatprep.mubr.f32.mxu0 0.0
  %v731 = vand.u32 %v78, 4294901760
  %732 = vmatmul.mubr.f32.gmra.mxu0 %v731
  %v733 = vpop.f32.mrf.mxu0
  %v734 = vadd.f32 %v281, %v733
  %v735 = vpop.f32.mrf.mxu0
  %736 = vmatprep.mubr.f32.mxu0 0.0
  %v737 = vand.u32 %v81, 4294901760
  %738 = vmatmul.mubr.f32.gmra.mxu0 %v737
  %v739 = vpop.f32.mrf.mxu0
  %v740 = vadd.f32 %v291, %v739
  %v741 = vpop.f32.mrf.mxu0
  %742 = vmatprep.mubr.f32.mxu0 0.0
  %v743 = vand.u32 %v84, 4294901760
  %744 = vmatmul.mubr.f32.gmra.mxu0 %v743
  %v745 = vpop.f32.mrf.mxu0
  %v746 = vadd.f32 %v301, %v745
  %v747 = vpop.f32.mrf.mxu0
  %748 = vmatprep.mubr.f32.mxu0 0.0
  %v749 = vand.u32 %v87, 4294901760
  %750 = vmatmul.mubr.f32.gmra.mxu0 %v749
  %v751 = vpop.f32.mrf.mxu0
  %v752 = vadd.f32 %v311, %v751
  %v753 = vpop.f32.mrf.mxu0
  %754 = vmatprep.mubr.f32.mxu0 0.0
  %v755 = vand.u32 %v90, 4294901760
  %756 = vmatmul.mubr.f32.gmra.mxu0 %v755
  %v757 = vpop.f32.mrf.mxu0
  %v758 = vadd.f32 %v321, %v757
  %v759 = vpop.f32.mrf.mxu0
  %760 = vmatprep.mubr.f32.mxu0 0.0
  %v761 = vand.u32 %v93, 4294901760
  %762 = vmatmul.mubr.f32.gmra.mxu0 %v761
  %v763 = vpop.f32.mrf.mxu0
  %v764 = vadd.f32 %v331, %v763
  %v765 = vpop.f32.mrf.mxu0
  %766 = vmatprep.mubr.f32.mxu0 0.0
  %v767 = vand.u32 %v96, 4294901760
  %768 = vmatmul.mubr.f32.gmra.mxu0 %v767
  %v769 = vpop.f32.mrf.mxu0
  %v770 = vadd.f32 %v341, %v769
  %v771 = vpop.f32.mrf.mxu0
  %772 = vmatprep.mubr.f32.mxu0 0.0
  %v773 = vand.u32 %v99, 4294901760
  %774 = vmatmul.mubr.f32.gmra.mxu0 %v773
  %v775 = vpop.f32.mrf.mxu0
  %v776 = vadd.f32 %v351, %v775
  %v777 = vpop.f32.mrf.mxu0
  %778 = vmatprep.mubr.f32.mxu0 0.0
  %v779 = vand.u32 %v102, 4294901760
  %780 = vmatmul.mubr.f32.gmra.mxu0 %v779
  %v781 = vpop.f32.mrf.mxu0
  %v782 = vadd.f32 %v361, %v781
  %v783 = vpop.f32.mrf.mxu0
  %784 = vmatprep.mubr.f32.mxu0 0.0
  %v785 = vand.u32 %v105, 4294901760
  %786 = vmatmul.mubr.f32.gmra.mxu0 %v785
  %v787 = vpop.f32.mrf.mxu0
  %v788 = vadd.f32 %v371, %v787
  %v789 = vpop.f32.mrf.mxu0
  %790 = vmatprep.mubr.f32.mxu0 0.0
  %v791 = vand.u32 %v108, 4294901760
  %792 = vmatmul.mubr.f32.gmra.mxu0 %v791
  %v793 = vpop.f32.mrf.mxu0
  %v794 = vadd.f32 %v381, %v793
  %v795 = vpop.f32.mrf.mxu0
  %796 = vmatprep.mubr.f32.mxu0 0.0
  %v797 = vand.u32 %v111, 4294901760
  %798 = vmatmul.mubr.f32.gmra.mxu0 %v797
  %v799 = vpop.f32.mrf.mxu0
  %v800 = vadd.f32 %v391, %v799
  %v801 = vpop.f32.mrf.mxu0
  %802 = vmatprep.mubr.f32.mxu0 0.0
  %v803 = vand.u32 %v114, 4294901760
  %804 = vmatmul.mubr.f32.gmra.mxu0 %v803
  %v805 = vpop.f32.mrf.mxu0
  %v806 = vadd.f32 %v401, %v805
  %v807 = vpop.f32.mrf.mxu0
  %808 = vmatprep.mubr.f32.mxu0 0.0
  %v809 = vand.u32 %v117, 4294901760
  %810 = vmatmul.mubr.f32.gmra.mxu0 %v809
  %v811 = vpop.f32.mrf.mxu0
  %v812 = vadd.f32 %v411, %v811
  %v813 = vpop.f32.mrf.mxu0
  %814 = vmatprep.mubr.f32.mxu0 0.0
  %v815 = vand.u32 %v120, 4294901760
  %816 = vmatmul.mubr.f32.gmra.mxu0 %v815
  %v817 = vpop.f32.mrf.mxu0
  %v818 = vadd.f32 %v421, %v817
  %v819 = vpop.f32.mrf.mxu0
  %820 = vmatprep.mubr.f32.mxu0 0.0
  %v821 = vand.u32 %v123, 4294901760
  %822 = vmatmul.mubr.f32.gmra.mxu0 %v821
  %v823 = vpop.f32.mrf.mxu0
  %v824 = vadd.f32 %v431, %v823
  %v825 = vpop.f32.mrf.mxu0
  %826 = vmatprep.mubr.f32.mxu0 0.0
  %v827 = vand.u32 %v126, 4294901760
  %828 = vmatmul.mubr.f32.gmra.mxu0 %v827
  %v829 = vpop.f32.mrf.mxu0
  %v830 = vadd.f32 %v441, %v829
  %v831 = vpop.f32.mrf.mxu0
  %832 = vmatprep.mubr.f32.mxu0 0.0
  %v833 = vand.u32 %v129, 4294901760
  %834 = vmatmul.mubr.f32.gmra.mxu0 %v833
  %v835 = vpop.f32.mrf.mxu0
  %v836 = vadd.f32 %v451, %v835
  %v837 = vpop.f32.mrf.mxu0
  %838 = vmatprep.mubr.f32.mxu0 0.0
  %v839 = vand.u32 %v132, 4294901760
  %840 = vmatmul.mubr.f32.gmra.mxu0 %v839
  %v841 = vpop.f32.mrf.mxu0
  %v842 = vadd.f32 %v461, %v841
  %v843 = vpop.f32.mrf.mxu0
  %844 = vmatprep.mubr.f32.mxu0 0.0
  %v845 = vand.u32 %v135, 4294901760
  %846 = vmatmul.mubr.f32.gmra.mxu0 %v845
  %v847 = vpop.f32.mrf.mxu0
  %v848 = vadd.f32 %v471, %v847
  %v849 = vpop.f32.mrf.mxu0
  %850 = vmatprep.mubr.f32.mxu0 0.0
  %v851 = vand.u32 %v138, 4294901760
  %852 = vmatmul.mubr.f32.gmra.mxu0 %v851
  %v853 = vpop.f32.mrf.mxu0
  %v854 = vadd.f32 %v481, %v853
  %v855 = vpop.f32.mrf.mxu0
  %856 = vmatprep.mubr.f32.mxu0 0.0
  %v857 = vand.u32 %v141, 4294901760
  %858 = vmatmul.mubr.f32.gmra.mxu0 %v857
  %v859 = vpop.f32.mrf.mxu0
  %v860 = vadd.f32 %v491, %v859
  %v861 = vpop.f32.mrf.mxu0
  %862 = vmatprep.mubr.f32.mxu0 0.0
  %v863 = vand.u32 %v144, 4294901760
  %864 = vmatmul.mubr.f32.gmra.mxu0 %v863
  %v865 = vpop.f32.mrf.mxu0
  %v866 = vadd.f32 %v501, %v865
  %v867 = vpop.f32.mrf.mxu0
  %868 = vmatprep.mubr.f32.mxu0 0.0
  %v869 = vand.u32 %v147, 4294901760
  %870 = vmatmul.mubr.f32.gmra.mxu0 %v869
  %v871 = vpop.f32.mrf.mxu0
  %v872 = vadd.f32 %v511, %v871
  %v873 = vpop.f32.mrf.mxu0
  %874 = vmatprep.mubr.f32.mxu0 0.0
  %v875 = vand.u32 %v150, 4294901760
  %876 = vmatmul.mubr.f32.gmra.mxu0 %v875
  %v877 = vpop.f32.mrf.mxu0
  %v878 = vadd.f32 %v521, %v877
  %v879 = vpop.f32.mrf.mxu0
  %880 = vmatprep.mubr.f32.mxu0 0.0
  %v881 = vand.u32 %v153, 4294901760
  %882 = vmatmul.mubr.f32.gmra.mxu0 %v881
  %v883 = vpop.f32.mrf.mxu0
  %v884 = vadd.f32 %v531, %v883
  %v885 = vpop.f32.mrf.mxu0
  %886 = vmatprep.mubr.f32.mxu0 0.0
  %v887 = vand.u32 %v156, 4294901760
  %888 = vmatmul.mubr.f32.gmra.mxu0 %v887
  %v889 = vpop.f32.mrf.mxu0
  %v890 = vadd.f32 %v541, %v889
  %v891 = vpop.f32.mrf.mxu0
  %892 = vmatprep.mubr.f32.mxu0 0.0
  %v893 = vand.u32 %v159, 4294901760
  %894 = vmatmul.mubr.f32.gmra.mxu0 %v893
  %v895 = vpop.f32.mrf.mxu0
  %v896 = vadd.f32 %v551, %v895
  %v897 = vpop.f32.mrf.mxu0
  %898 = vmatprep.mubr.f32.mxu0 0.0
  %v899 = vand.u32 %v162, 4294901760
  %900 = vmatmul.mubr.f32.gmra.mxu0 %v899
  %v901 = vpop.f32.mrf.mxu0
  %v902 = vadd.f32 %v561, %v901
  %v903 = vpop.f32.mrf.mxu0
  %904 = vmatprep.mubr.f32.mxu0 0.0
  %v905 = vand.u32 %v165, 4294901760
  %906 = vmatmul.mubr.f32.gmra.mxu0 %v905
  %v907 = vpop.f32.mrf.mxu0
  %v908 = vadd.f32 %v571, %v907
  %v909 = vpop.f32.mrf.mxu0
  %910 = vmatprep.mubr.f32.mxu0 0.0
  %v911 = vand.u32 %v168, 4294901760
  %912 = vmatmul.mubr.f32.gmra.mxu0 %v911
  %v913 = vpop.f32.mrf.mxu0
  %v914 = vadd.f32 %v581, %v913
  %v915 = vpop.f32.mrf.mxu0
  %916 = vmatprep.mubr.f32.mxu0 0.0
  %v917 = vand.u32 %v171, 4294901760
  %918 = vmatmul.mubr.f32.gmra.mxu0 %v917
  %v919 = vpop.f32.mrf.mxu0
  %v920 = vadd.f32 %v591, %v919
  %v921 = vpop.f32.mrf.mxu0
  %922 = vmatprep.mubr.f32.mxu0 0.0
  %v923 = vand.u32 %v174, 4294901760
  %924 = vmatmul.mubr.f32.gmra.mxu0 %v923
  %v925 = vpop.f32.mrf.mxu0
  %v926 = vadd.f32 %v601, %v925
  %v927 = vpop.f32.mrf.mxu0
  %928 = vmatprep.mubr.f32.mxu0 0.0
  %v929 = vand.u32 %v177, 4294901760
  %930 = vmatmul.mubr.f32.gmra.mxu0 %v929
  %v931 = vpop.f32.mrf.mxu0
  %v932 = vadd.f32 %v611, %v931
  %v933 = vpop.f32.mrf.mxu0
  %934 = vmatprep.mubr.f32.mxu0 0.0
  %v935 = vand.u32 %v180, 4294901760
  %936 = vmatmul.mubr.f32.gmra.mxu0 %v935
  %v937 = vpop.f32.mrf.mxu0
  %v938 = vadd.f32 %v621, %v937
  %v939 = vpop.f32.mrf.mxu0
  %940 = vmatprep.mubr.f32.mxu0 0.0
  %v941 = vand.u32 %v183, 4294901760
  %942 = vmatmul.mubr.f32.gmra.mxu0 %v941
  %v943 = vpop.f32.mrf.mxu0
  %v944 = vadd.f32 %v631, %v943
  %v945 = vpop.f32.mrf.mxu0
  %946 = vdwg.mxu0
  %947 = vmatprep.subr.mxu0 0.0
  %948 = vmatpush1.msra.mxu0 0.0
  %949 = vmatprep.subr.mxu0 0.0
  %950 = vmatpush1.msra.mxu0 0.0
  %951 = vmatprep.subr.mxu0 0.0
  %952 = vmatpush1.msra.mxu0 0.0
  %953 = vmatprep.subr.mxu0 0.0
  %954 = vmatpush1.msra.mxu0 0.0
  %955 = vmatprep.subr.mxu0 0.0
  %956 = vmatpush1.msra.mxu0 0.0
  %957 = vmatprep.subr.mxu0 0.0
  %958 = vmatpush1.msra.mxu0 0.0
  %959 = vmatprep.subr.mxu0 0.0
  %960 = vmatpush1.msra.mxu0 0.0
  %961 = vmatprep.subr.mxu0 0.0
  %962 = vmatpush1.msra.mxu0 0.0
  %963 = vmatprep.subr.mxu0 0.0
  %964 = vmatpush1.msra.mxu0 0.0
  %965 = vmatprep.subr.mxu0 0.0
  %966 = vmatpush1.msra.mxu0 0.0
  %967 = vmatprep.subr.mxu0 0.0
  %968 = vmatpush1.msra.mxu0 0.0
  %969 = vmatprep.subr.mxu0 0.0
  %970 = vmatpush1.msra.mxu0 0.0
  %971 = vmatprep.subr.mxu0 0.0
  %v972 = vand.u32 %v69, 4294901760
  %v973 = vsub.f32 %v69, %v972
  %974 = vmatpush1.msra.mxu0 %v973
  %975 = vmatprep.subr.mxu0 0.0
  %v976 = vand.u32 %v68, 4294901760
  %v977 = vsub.f32 %v68, %v976
  %978 = vmatpush1.msra.mxu0 %v977
  %979 = vmatprep.subr.mxu0 0.0
  %v980 = vand.u32 %v67, 4294901760
  %v981 = vsub.f32 %v67, %v980
  %982 = vmatpush1.msra.mxu0 %v981
  %983 = vmatprep.subr.mxu0 0.0
  %v984 = vand.u32 %v66, 4294901760
  %v985 = vsub.f32 %v66, %v984
  %986 = vmatpush1.msra.mxu0 %v985
  %987 = vmatprep.subr.mxu0 0.0
  %988 = vmatpush2.msra.mxu0 0.0
  %989 = vmatprep.subr.mxu0 0.0
  %990 = vmatpush2.msra.mxu0 0.0
  %991 = vmatprep.subr.mxu0 0.0
  %992 = vmatpush2.msra.mxu0 0.0
  %993 = vmatprep.subr.mxu0 0.0
  %994 = vmatpush2.msra.mxu0 0.0
  %995 = vmatprep.subr.mxu0 0.0
  %996 = vmatpush2.msra.mxu0 0.0
  %997 = vmatprep.subr.mxu0 0.0
  %998 = vmatpush2.msra.mxu0 0.0
  %999 = vmatprep.subr.mxu0 0.0
  %1000 = vmatpush2.msra.mxu0 0.0
  %1001 = vmatprep.subr.mxu0 0.0
  %1002 = vmatpush2.msra.mxu0 0.0
  %1003 = vmatprep.subr.mxu0 0.0
  %1004 = vmatpush2.msra.mxu0 0.0
  %1005 = vmatprep.subr.mxu0 0.0
  %1006 = vmatpush2.msra.mxu0 0.0
  %1007 = vmatprep.subr.mxu0 0.0
  %1008 = vmatpush2.msra.mxu0 0.0
  %1009 = vmatprep.subr.mxu0 0.0
  %1010 = vmatpush2.msra.mxu0 0.0
  %1011 = vmatprep.subr.mxu0 0.0
  %1012 = vmatpush2.msra.mxu0 0.0
  %1013 = vmatprep.subr.mxu0 0.0
  %1014 = vmatpush2.msra.mxu0 0.0
  %1015 = vmatprep.subr.mxu0 0.0
  %1016 = vmatpush2.msra.mxu0 0.0
  %1017 = vmatprep.subr.mxu0 0.0
  %1018 = vmatpush2.msra.mxu0 0.0
  %1019 = vmatprep.mubr.f32.mxu0 0.0
  %v1020 = vand.u32 %v72, 4294901760
  %v1021 = vsub.f32 %v72, %v1020
  %1022 = vmatmul.mubr.f32.gmra.mxu0 %v1021
  %v1023 = vpop.f32.mrf.mxu0
  %v1024 = vadd.f32 %v722, %v1023
  %v1025 = vpop.f32.mrf.mxu0
  %1026 = vmatprep.mubr.f32.mxu0 0.0
  %v1027 = vand.u32 %v75, 4294901760
  %v1028 = vsub.f32 %v75, %v1027
  %1029 = vmatmul.mubr.f32.gmra.mxu0 %v1028
  %v1030 = vpop.f32.mrf.mxu0
  %v1031 = vadd.f32 %v728, %v1030
  %v1032 = vpop.f32.mrf.mxu0
  %1033 = vmatprep.mubr.f32.mxu0 0.0
  %v1034 = vand.u32 %v78, 4294901760
  %v1035 = vsub.f32 %v78, %v1034
  %1036 = vmatmul.mubr.f32.gmra.mxu0 %v1035
  %v1037 = vpop.f32.mrf.mxu0
  %v1038 = vadd.f32 %v734, %v1037
  %v1039 = vpop.f32.mrf.mxu0
  %1040 = vmatprep.mubr.f32.mxu0 0.0
  %v1041 = vand.u32 %v81, 4294901760
  %v1042 = vsub.f32 %v81, %v1041
  %1043 = vmatmul.mubr.f32.gmra.mxu0 %v1042
  %v1044 = vpop.f32.mrf.mxu0
  %v1045 = vadd.f32 %v740, %v1044
  %v1046 = vpop.f32.mrf.mxu0
  %1047 = vmatprep.mubr.f32.mxu0 0.0
  %v1048 = vand.u32 %v84, 4294901760
  %v1049 = vsub.f32 %v84, %v1048
  %1050 = vmatmul.mubr.f32.gmra.mxu0 %v1049
  %v1051 = vpop.f32.mrf.mxu0
  %v1052 = vadd.f32 %v746, %v1051
  %v1053 = vpop.f32.mrf.mxu0
  %1054 = vmatprep.mubr.f32.mxu0 0.0
  %v1055 = vand.u32 %v87, 4294901760
  %v1056 = vsub.f32 %v87, %v1055
  %1057 = vmatmul.mubr.f32.gmra.mxu0 %v1056
  %v1058 = vpop.f32.mrf.mxu0
  %v1059 = vadd.f32 %v752, %v1058
  %v1060 = vpop.f32.mrf.mxu0
  %1061 = vmatprep.mubr.f32.mxu0 0.0
  %v1062 = vand.u32 %v90, 4294901760
  %v1063 = vsub.f32 %v90, %v1062
  %1064 = vmatmul.mubr.f32.gmra.mxu0 %v1063
  %v1065 = vpop.f32.mrf.mxu0
  %v1066 = vadd.f32 %v758, %v1065
  %v1067 = vpop.f32.mrf.mxu0
  %1068 = vmatprep.mubr.f32.mxu0 0.0
  %v1069 = vand.u32 %v93, 4294901760
  %v1070 = vsub.f32 %v93, %v1069
  %1071 = vmatmul.mubr.f32.gmra.mxu0 %v1070
  %v1072 = vpop.f32.mrf.mxu0
  %v1073 = vadd.f32 %v764, %v1072
  %v1074 = vpop.f32.mrf.mxu0
  %1075 = vmatprep.mubr.f32.mxu0 0.0
  %v1076 = vand.u32 %v96, 4294901760
  %v1077 = vsub.f32 %v96, %v1076
  %1078 = vmatmul.mubr.f32.gmra.mxu0 %v1077
  %v1079 = vpop.f32.mrf.mxu0
  %v1080 = vadd.f32 %v770, %v1079
  %v1081 = vpop.f32.mrf.mxu0
  %1082 = vmatprep.mubr.f32.mxu0 0.0
  %v1083 = vand.u32 %v99, 4294901760
  %v1084 = vsub.f32 %v99, %v1083
  %1085 = vmatmul.mubr.f32.gmra.mxu0 %v1084
  %v1086 = vpop.f32.mrf.mxu0
  %v1087 = vadd.f32 %v776, %v1086
  %v1088 = vpop.f32.mrf.mxu0
  %1089 = vmatprep.mubr.f32.mxu0 0.0
  %v1090 = vand.u32 %v102, 4294901760
  %v1091 = vsub.f32 %v102, %v1090
  %1092 = vmatmul.mubr.f32.gmra.mxu0 %v1091
  %v1093 = vpop.f32.mrf.mxu0
  %v1094 = vadd.f32 %v782, %v1093
  %v1095 = vpop.f32.mrf.mxu0
  %1096 = vmatprep.mubr.f32.mxu0 0.0
  %v1097 = vand.u32 %v105, 4294901760
  %v1098 = vsub.f32 %v105, %v1097
  %1099 = vmatmul.mubr.f32.gmra.mxu0 %v1098
  %v1100 = vpop.f32.mrf.mxu0
  %v1101 = vadd.f32 %v788, %v1100
  %v1102 = vpop.f32.mrf.mxu0
  %1103 = vmatprep.mubr.f32.mxu0 0.0
  %v1104 = vand.u32 %v108, 4294901760
  %v1105 = vsub.f32 %v108, %v1104
  %1106 = vmatmul.mubr.f32.gmra.mxu0 %v1105
  %v1107 = vpop.f32.mrf.mxu0
  %v1108 = vadd.f32 %v794, %v1107
  %v1109 = vpop.f32.mrf.mxu0
  %1110 = vmatprep.mubr.f32.mxu0 0.0
  %v1111 = vand.u32 %v111, 4294901760
  %v1112 = vsub.f32 %v111, %v1111
  %1113 = vmatmul.mubr.f32.gmra.mxu0 %v1112
  %v1114 = vpop.f32.mrf.mxu0
  %v1115 = vadd.f32 %v800, %v1114
  %v1116 = vpop.f32.mrf.mxu0
  %1117 = vmatprep.mubr.f32.mxu0 0.0
  %v1118 = vand.u32 %v114, 4294901760
  %v1119 = vsub.f32 %v114, %v1118
  %1120 = vmatmul.mubr.f32.gmra.mxu0 %v1119
  %v1121 = vpop.f32.mrf.mxu0
  %v1122 = vadd.f32 %v806, %v1121
  %v1123 = vpop.f32.mrf.mxu0
  %1124 = vmatprep.mubr.f32.mxu0 0.0
  %v1125 = vand.u32 %v117, 4294901760
  %v1126 = vsub.f32 %v117, %v1125
  %1127 = vmatmul.mubr.f32.gmra.mxu0 %v1126
  %v1128 = vpop.f32.mrf.mxu0
  %v1129 = vadd.f32 %v812, %v1128
  %v1130 = vpop.f32.mrf.mxu0
  %1131 = vmatprep.mubr.f32.mxu0 0.0
  %v1132 = vand.u32 %v120, 4294901760
  %v1133 = vsub.f32 %v120, %v1132
  %1134 = vmatmul.mubr.f32.gmra.mxu0 %v1133
  %v1135 = vpop.f32.mrf.mxu0
  %v1136 = vadd.f32 %v818, %v1135
  %v1137 = vpop.f32.mrf.mxu0
  %1138 = vmatprep.mubr.f32.mxu0 0.0
  %v1139 = vand.u32 %v123, 4294901760
  %v1140 = vsub.f32 %v123, %v1139
  %1141 = vmatmul.mubr.f32.gmra.mxu0 %v1140
  %v1142 = vpop.f32.mrf.mxu0
  %v1143 = vadd.f32 %v824, %v1142
  %v1144 = vpop.f32.mrf.mxu0
  %1145 = vmatprep.mubr.f32.mxu0 0.0
  %v1146 = vand.u32 %v126, 4294901760
  %v1147 = vsub.f32 %v126, %v1146
  %1148 = vmatmul.mubr.f32.gmra.mxu0 %v1147
  %v1149 = vpop.f32.mrf.mxu0
  %v1150 = vadd.f32 %v830, %v1149
  %v1151 = vpop.f32.mrf.mxu0
  %1152 = vmatprep.mubr.f32.mxu0 0.0
  %v1153 = vand.u32 %v129, 4294901760
  %v1154 = vsub.f32 %v129, %v1153
  %1155 = vmatmul.mubr.f32.gmra.mxu0 %v1154
  %v1156 = vpop.f32.mrf.mxu0
  %v1157 = vadd.f32 %v836, %v1156
  %v1158 = vpop.f32.mrf.mxu0
  %1159 = vmatprep.mubr.f32.mxu0 0.0
  %v1160 = vand.u32 %v132, 4294901760
  %v1161 = vsub.f32 %v132, %v1160
  %1162 = vmatmul.mubr.f32.gmra.mxu0 %v1161
  %v1163 = vpop.f32.mrf.mxu0
  %v1164 = vadd.f32 %v842, %v1163
  %v1165 = vpop.f32.mrf.mxu0
  %1166 = vmatprep.mubr.f32.mxu0 0.0
  %v1167 = vand.u32 %v135, 4294901760
  %v1168 = vsub.f32 %v135, %v1167
  %1169 = vmatmul.mubr.f32.gmra.mxu0 %v1168
  %v1170 = vpop.f32.mrf.mxu0
  %v1171 = vadd.f32 %v848, %v1170
  %v1172 = vpop.f32.mrf.mxu0
  %1173 = vmatprep.mubr.f32.mxu0 0.0
  %v1174 = vand.u32 %v138, 4294901760
  %v1175 = vsub.f32 %v138, %v1174
  %1176 = vmatmul.mubr.f32.gmra.mxu0 %v1175
  %v1177 = vpop.f32.mrf.mxu0
  %v1178 = vadd.f32 %v854, %v1177
  %v1179 = vpop.f32.mrf.mxu0
  %1180 = vmatprep.mubr.f32.mxu0 0.0
  %v1181 = vand.u32 %v141, 4294901760
  %v1182 = vsub.f32 %v141, %v1181
  %1183 = vmatmul.mubr.f32.gmra.mxu0 %v1182
  %v1184 = vpop.f32.mrf.mxu0
  %v1185 = vadd.f32 %v860, %v1184
  %v1186 = vpop.f32.mrf.mxu0
  %1187 = vmatprep.mubr.f32.mxu0 0.0
  %v1188 = vand.u32 %v144, 4294901760
  %v1189 = vsub.f32 %v144, %v1188
  %1190 = vmatmul.mubr.f32.gmra.mxu0 %v1189
  %v1191 = vpop.f32.mrf.mxu0
  %v1192 = vadd.f32 %v866, %v1191
  %v1193 = vpop.f32.mrf.mxu0
  %1194 = vmatprep.mubr.f32.mxu0 0.0
  %v1195 = vand.u32 %v147, 4294901760
  %v1196 = vsub.f32 %v147, %v1195
  %1197 = vmatmul.mubr.f32.gmra.mxu0 %v1196
  %v1198 = vpop.f32.mrf.mxu0
  %v1199 = vadd.f32 %v872, %v1198
  %v1200 = vpop.f32.mrf.mxu0
  %1201 = vmatprep.mubr.f32.mxu0 0.0
  %v1202 = vand.u32 %v150, 4294901760
  %v1203 = vsub.f32 %v150, %v1202
  %1204 = vmatmul.mubr.f32.gmra.mxu0 %v1203
  %v1205 = vpop.f32.mrf.mxu0
  %v1206 = vadd.f32 %v878, %v1205
  %v1207 = vpop.f32.mrf.mxu0
  %1208 = vmatprep.mubr.f32.mxu0 0.0
  %v1209 = vand.u32 %v153, 4294901760
  %v1210 = vsub.f32 %v153, %v1209
  %1211 = vmatmul.mubr.f32.gmra.mxu0 %v1210
  %v1212 = vpop.f32.mrf.mxu0
  %v1213 = vadd.f32 %v884, %v1212
  %v1214 = vpop.f32.mrf.mxu0
  %1215 = vmatprep.mubr.f32.mxu0 0.0
  %v1216 = vand.u32 %v156, 4294901760
  %v1217 = vsub.f32 %v156, %v1216
  %1218 = vmatmul.mubr.f32.gmra.mxu0 %v1217
  %v1219 = vpop.f32.mrf.mxu0
  %v1220 = vadd.f32 %v890, %v1219
  %v1221 = vpop.f32.mrf.mxu0
  %1222 = vmatprep.mubr.f32.mxu0 0.0
  %v1223 = vand.u32 %v159, 4294901760
  %v1224 = vsub.f32 %v159, %v1223
  %1225 = vmatmul.mubr.f32.gmra.mxu0 %v1224
  %v1226 = vpop.f32.mrf.mxu0
  %v1227 = vadd.f32 %v896, %v1226
  %v1228 = vpop.f32.mrf.mxu0
  %1229 = vmatprep.mubr.f32.mxu0 0.0
  %v1230 = vand.u32 %v162, 4294901760
  %v1231 = vsub.f32 %v162, %v1230
  %1232 = vmatmul.mubr.f32.gmra.mxu0 %v1231
  %v1233 = vpop.f32.mrf.mxu0
  %v1234 = vadd.f32 %v902, %v1233
  %v1235 = vpop.f32.mrf.mxu0
  %1236 = vmatprep.mubr.f32.mxu0 0.0
  %v1237 = vand.u32 %v165, 4294901760
  %v1238 = vsub.f32 %v165, %v1237
  %1239 = vmatmul.mubr.f32.gmra.mxu0 %v1238
  %v1240 = vpop.f32.mrf.mxu0
  %v1241 = vadd.f32 %v908, %v1240
  %v1242 = vpop.f32.mrf.mxu0
  %1243 = vmatprep.mubr.f32.mxu0 0.0
  %v1244 = vand.u32 %v168, 4294901760
  %v1245 = vsub.f32 %v168, %v1244
  %1246 = vmatmul.mubr.f32.gmra.mxu0 %v1245
  %v1247 = vpop.f32.mrf.mxu0
  %v1248 = vadd.f32 %v914, %v1247
  %v1249 = vpop.f32.mrf.mxu0
  %1250 = vmatprep.mubr.f32.mxu0 0.0
  %v1251 = vand.u32 %v171, 4294901760
  %v1252 = vsub.f32 %v171, %v1251
  %1253 = vmatmul.mubr.f32.gmra.mxu0 %v1252
  %v1254 = vpop.f32.mrf.mxu0
  %v1255 = vadd.f32 %v920, %v1254
  %v1256 = vpop.f32.mrf.mxu0
  %1257 = vmatprep.mubr.f32.mxu0 0.0
  %v1258 = vand.u32 %v174, 4294901760
  %v1259 = vsub.f32 %v174, %v1258
  %1260 = vmatmul.mubr.f32.gmra.mxu0 %v1259
  %v1261 = vpop.f32.mrf.mxu0
  %v1262 = vadd.f32 %v926, %v1261
  %v1263 = vpop.f32.mrf.mxu0
  %1264 = vmatprep.mubr.f32.mxu0 0.0
  %v1265 = vand.u32 %v177, 4294901760
  %v1266 = vsub.f32 %v177, %v1265
  %1267 = vmatmul.mubr.f32.gmra.mxu0 %v1266
  %v1268 = vpop.f32.mrf.mxu0
  %v1269 = vadd.f32 %v932, %v1268
  %v1270 = vpop.f32.mrf.mxu0
  %1271 = vmatprep.mubr.f32.mxu0 0.0
  %v1272 = vand.u32 %v180, 4294901760
  %v1273 = vsub.f32 %v180, %v1272
  %1274 = vmatmul.mubr.f32.gmra.mxu0 %v1273
  %v1275 = vpop.f32.mrf.mxu0
  %v1276 = vadd.f32 %v938, %v1275
  %v1277 = vpop.f32.mrf.mxu0
  %1278 = vmatprep.mubr.f32.mxu0 0.0
  %v1279 = vand.u32 %v183, 4294901760
  %v1280 = vsub.f32 %v183, %v1279
  %1281 = vmatmul.mubr.f32.gmra.mxu0 %v1280
  %v1282 = vpop.f32.mrf.mxu0
  %v1283 = vadd.f32 %v944, %v1282
  %v1284 = vpop.f32.mrf.mxu0
  %1285 = vdwg.mxu0
  %1286 = vmatprep.subr.mxu0 0.0
  %1287 = vmatpush1.msra.mxu0 0.0
  %1288 = vmatprep.subr.mxu0 0.0
  %1289 = vmatpush1.msra.mxu0 0.0
  %1290 = vmatprep.subr.mxu0 0.0
  %1291 = vmatpush1.msra.mxu0 0.0
  %1292 = vmatprep.subr.mxu0 0.0
  %1293 = vmatpush1.msra.mxu0 0.0
  %1294 = vmatprep.subr.mxu0 0.0
  %1295 = vmatpush1.msra.mxu0 0.0
  %1296 = vmatprep.subr.mxu0 0.0
  %1297 = vmatpush1.msra.mxu0 0.0
  %1298 = vmatprep.subr.mxu0 0.0
  %1299 = vmatpush1.msra.mxu0 0.0
  %1300 = vmatprep.subr.mxu0 0.0
  %1301 = vmatpush1.msra.mxu0 0.0
  %1302 = vmatprep.subr.mxu0 0.0
  %1303 = vmatpush1.msra.mxu0 0.0
  %1304 = vmatprep.subr.mxu0 0.0
  %1305 = vmatpush1.msra.mxu0 0.0
  %1306 = vmatprep.subr.mxu0 0.0
  %1307 = vmatpush1.msra.mxu0 0.0
  %1308 = vmatprep.subr.mxu0 0.0
  %1309 = vmatpush1.msra.mxu0 0.0
  %1310 = vmatprep.subr.mxu0 0.0
  %v1311 = vand.u32 %v69, 4294901760
  %1312 = vmatpush1.msra.mxu0 %v1311
  %1313 = vmatprep.subr.mxu0 0.0
  %v1314 = vand.u32 %v68, 4294901760
  %1315 = vmatpush1.msra.mxu0 %v1314
  %1316 = vmatprep.subr.mxu0 0.0
  %v1317 = vand.u32 %v67, 4294901760
  %1318 = vmatpush1.msra.mxu0 %v1317
  %1319 = vmatprep.subr.mxu0 0.0
  %v1320 = vand.u32 %v66, 4294901760
  %1321 = vmatpush1.msra.mxu0 %v1320
  %1322 = vmatprep.subr.mxu0 0.0
  %1323 = vmatpush2.msra.mxu0 0.0
  %1324 = vmatprep.subr.mxu0 0.0
  %1325 = vmatpush2.msra.mxu0 0.0
  %1326 = vmatprep.subr.mxu0 0.0
  %1327 = vmatpush2.msra.mxu0 0.0
  %1328 = vmatprep.subr.mxu0 0.0
  %1329 = vmatpush2.msra.mxu0 0.0
  %1330 = vmatprep.subr.mxu0 0.0
  %1331 = vmatpush2.msra.mxu0 0.0
  %1332 = vmatprep.subr.mxu0 0.0
  %1333 = vmatpush2.msra.mxu0 0.0
  %1334 = vmatprep.subr.mxu0 0.0
  %1335 = vmatpush2.msra.mxu0 0.0
  %1336 = vmatprep.subr.mxu0 0.0
  %1337 = vmatpush2.msra.mxu0 0.0
  %1338 = vmatprep.subr.mxu0 0.0
  %1339 = vmatpush2.msra.mxu0 0.0
  %1340 = vmatprep.subr.mxu0 0.0
  %1341 = vmatpush2.msra.mxu0 0.0
  %1342 = vmatprep.subr.mxu0 0.0
  %1343 = vmatpush2.msra.mxu0 0.0
  %1344 = vmatprep.subr.mxu0 0.0
  %1345 = vmatpush2.msra.mxu0 0.0
  %1346 = vmatprep.subr.mxu0 0.0
  %1347 = vmatpush2.msra.mxu0 0.0
  %1348 = vmatprep.subr.mxu0 0.0
  %1349 = vmatpush2.msra.mxu0 0.0
  %1350 = vmatprep.subr.mxu0 0.0
  %1351 = vmatpush2.msra.mxu0 0.0
  %1352 = vmatprep.subr.mxu0 0.0
  %1353 = vmatpush2.msra.mxu0 0.0
  %1354 = vmatprep.mubr.f32.mxu0 0.0
  %v1355 = vand.u32 %v72, 4294901760
  %v1356 = vsub.f32 %v72, %v1355
  %v1357 = vand.u32 %v1356, 4294901760
  %1358 = vmatmul.mubr.f32.gmra.mxu0 %v1357
  %v1359 = vpop.f32.mrf.mxu0
  %v1360 = vadd.f32 %v1024, %v1359
  %v1361 = vpop.f32.mrf.mxu0
  %1362 = vmatprep.mubr.f32.mxu0 0.0
  %v1363 = vand.u32 %v75, 4294901760
  %v1364 = vsub.f32 %v75, %v1363
  %v1365 = vand.u32 %v1364, 4294901760
  %1366 = vmatmul.mubr.f32.gmra.mxu0 %v1365
  %v1367 = vpop.f32.mrf.mxu0
  %v1368 = vadd.f32 %v1031, %v1367
  %v1369 = vpop.f32.mrf.mxu0
  %1370 = vmatprep.mubr.f32.mxu0 0.0
  %v1371 = vand.u32 %v78, 4294901760
  %v1372 = vsub.f32 %v78, %v1371
  %v1373 = vand.u32 %v1372, 4294901760
  %1374 = vmatmul.mubr.f32.gmra.mxu0 %v1373
  %v1375 = vpop.f32.mrf.mxu0
  %v1376 = vadd.f32 %v1038, %v1375
  %v1377 = vpop.f32.mrf.mxu0
  %1378 = vmatprep.mubr.f32.mxu0 0.0
  %v1379 = vand.u32 %v81, 4294901760
  %v1380 = vsub.f32 %v81, %v1379
  %v1381 = vand.u32 %v1380, 4294901760
  %1382 = vmatmul.mubr.f32.gmra.mxu0 %v1381
  %v1383 = vpop.f32.mrf.mxu0
  %v1384 = vadd.f32 %v1045, %v1383
  %v1385 = vpop.f32.mrf.mxu0
  %1386 = vmatprep.mubr.f32.mxu0 0.0
  %v1387 = vand.u32 %v84, 4294901760
  %v1388 = vsub.f32 %v84, %v1387
  %v1389 = vand.u32 %v1388, 4294901760
  %1390 = vmatmul.mubr.f32.gmra.mxu0 %v1389
  %v1391 = vpop.f32.mrf.mxu0
  %v1392 = vadd.f32 %v1052, %v1391
  %v1393 = vpop.f32.mrf.mxu0
  %1394 = vmatprep.mubr.f32.mxu0 0.0
  %v1395 = vand.u32 %v87, 4294901760
  %v1396 = vsub.f32 %v87, %v1395
  %v1397 = vand.u32 %v1396, 4294901760
  %1398 = vmatmul.mubr.f32.gmra.mxu0 %v1397
  %v1399 = vpop.f32.mrf.mxu0
  %v1400 = vadd.f32 %v1059, %v1399
  %v1401 = vpop.f32.mrf.mxu0
  %1402 = vmatprep.mubr.f32.mxu0 0.0
  %v1403 = vand.u32 %v90, 4294901760
  %v1404 = vsub.f32 %v90, %v1403
  %v1405 = vand.u32 %v1404, 4294901760
  %1406 = vmatmul.mubr.f32.gmra.mxu0 %v1405
  %v1407 = vpop.f32.mrf.mxu0
  %v1408 = vadd.f32 %v1066, %v1407
  %v1409 = vpop.f32.mrf.mxu0
  %1410 = vmatprep.mubr.f32.mxu0 0.0
  %v1411 = vand.u32 %v93, 4294901760
  %v1412 = vsub.f32 %v93, %v1411
  %v1413 = vand.u32 %v1412, 4294901760
  %1414 = vmatmul.mubr.f32.gmra.mxu0 %v1413
  %v1415 = vpop.f32.mrf.mxu0
  %v1416 = vadd.f32 %v1073, %v1415
  %v1417 = vpop.f32.mrf.mxu0
  %1418 = vmatprep.mubr.f32.mxu0 0.0
  %v1419 = vand.u32 %v96, 4294901760
  %v1420 = vsub.f32 %v96, %v1419
  %v1421 = vand.u32 %v1420, 4294901760
  %1422 = vmatmul.mubr.f32.gmra.mxu0 %v1421
  %v1423 = vpop.f32.mrf.mxu0
  %v1424 = vadd.f32 %v1080, %v1423
  %v1425 = vpop.f32.mrf.mxu0
  %1426 = vmatprep.mubr.f32.mxu0 0.0
  %v1427 = vand.u32 %v99, 4294901760
  %v1428 = vsub.f32 %v99, %v1427
  %v1429 = vand.u32 %v1428, 4294901760
  %1430 = vmatmul.mubr.f32.gmra.mxu0 %v1429
  %v1431 = vpop.f32.mrf.mxu0
  %v1432 = vadd.f32 %v1087, %v1431
  %v1433 = vpop.f32.mrf.mxu0
  %1434 = vmatprep.mubr.f32.mxu0 0.0
  %v1435 = vand.u32 %v102, 4294901760
  %v1436 = vsub.f32 %v102, %v1435
  %v1437 = vand.u32 %v1436, 4294901760
  %1438 = vmatmul.mubr.f32.gmra.mxu0 %v1437
  %v1439 = vpop.f32.mrf.mxu0
  %v1440 = vadd.f32 %v1094, %v1439
  %v1441 = vpop.f32.mrf.mxu0
  %1442 = vmatprep.mubr.f32.mxu0 0.0
  %v1443 = vand.u32 %v105, 4294901760
  %v1444 = vsub.f32 %v105, %v1443
  %v1445 = vand.u32 %v1444, 4294901760
  %1446 = vmatmul.mubr.f32.gmra.mxu0 %v1445
  %v1447 = vpop.f32.mrf.mxu0
  %v1448 = vadd.f32 %v1101, %v1447
  %v1449 = vpop.f32.mrf.mxu0
  %1450 = vmatprep.mubr.f32.mxu0 0.0
  %v1451 = vand.u32 %v108, 4294901760
  %v1452 = vsub.f32 %v108, %v1451
  %v1453 = vand.u32 %v1452, 4294901760
  %1454 = vmatmul.mubr.f32.gmra.mxu0 %v1453
  %v1455 = vpop.f32.mrf.mxu0
  %v1456 = vadd.f32 %v1108, %v1455
  %v1457 = vpop.f32.mrf.mxu0
  %1458 = vmatprep.mubr.f32.mxu0 0.0
  %v1459 = vand.u32 %v111, 4294901760
  %v1460 = vsub.f32 %v111, %v1459
  %v1461 = vand.u32 %v1460, 4294901760
  %1462 = vmatmul.mubr.f32.gmra.mxu0 %v1461
  %v1463 = vpop.f32.mrf.mxu0
  %v1464 = vadd.f32 %v1115, %v1463
  %v1465 = vpop.f32.mrf.mxu0
  %1466 = vmatprep.mubr.f32.mxu0 0.0
  %v1467 = vand.u32 %v114, 4294901760
  %v1468 = vsub.f32 %v114, %v1467
  %v1469 = vand.u32 %v1468, 4294901760
  %1470 = vmatmul.mubr.f32.gmra.mxu0 %v1469
  %v1471 = vpop.f32.mrf.mxu0
  %v1472 = vadd.f32 %v1122, %v1471
  %v1473 = vpop.f32.mrf.mxu0
  %1474 = vmatprep.mubr.f32.mxu0 0.0
  %v1475 = vand.u32 %v117, 4294901760
  %v1476 = vsub.f32 %v117, %v1475
  %v1477 = vand.u32 %v1476, 4294901760
  %1478 = vmatmul.mubr.f32.gmra.mxu0 %v1477
  %v1479 = vpop.f32.mrf.mxu0
  %v1480 = vadd.f32 %v1129, %v1479
  %v1481 = vpop.f32.mrf.mxu0
  %1482 = vmatprep.mubr.f32.mxu0 0.0
  %v1483 = vand.u32 %v120, 4294901760
  %v1484 = vsub.f32 %v120, %v1483
  %v1485 = vand.u32 %v1484, 4294901760
  %1486 = vmatmul.mubr.f32.gmra.mxu0 %v1485
  %v1487 = vpop.f32.mrf.mxu0
  %v1488 = vadd.f32 %v1136, %v1487
  %v1489 = vpop.f32.mrf.mxu0
  %1490 = vmatprep.mubr.f32.mxu0 0.0
  %v1491 = vand.u32 %v123, 4294901760
  %v1492 = vsub.f32 %v123, %v1491
  %v1493 = vand.u32 %v1492, 4294901760
  %1494 = vmatmul.mubr.f32.gmra.mxu0 %v1493
  %v1495 = vpop.f32.mrf.mxu0
  %v1496 = vadd.f32 %v1143, %v1495
  %v1497 = vpop.f32.mrf.mxu0
  %1498 = vmatprep.mubr.f32.mxu0 0.0
  %v1499 = vand.u32 %v126, 4294901760
  %v1500 = vsub.f32 %v126, %v1499
  %v1501 = vand.u32 %v1500, 4294901760
  %1502 = vmatmul.mubr.f32.gmra.mxu0 %v1501
  %v1503 = vpop.f32.mrf.mxu0
  %v1504 = vadd.f32 %v1150, %v1503
  %v1505 = vpop.f32.mrf.mxu0
  %1506 = vmatprep.mubr.f32.mxu0 0.0
  %v1507 = vand.u32 %v129, 4294901760
  %v1508 = vsub.f32 %v129, %v1507
  %v1509 = vand.u32 %v1508, 4294901760
  %1510 = vmatmul.mubr.f32.gmra.mxu0 %v1509
  %v1511 = vpop.f32.mrf.mxu0
  %v1512 = vadd.f32 %v1157, %v1511
  %v1513 = vpop.f32.mrf.mxu0
  %1514 = vmatprep.mubr.f32.mxu0 0.0
  %v1515 = vand.u32 %v132, 4294901760
  %v1516 = vsub.f32 %v132, %v1515
  %v1517 = vand.u32 %v1516, 4294901760
  %1518 = vmatmul.mubr.f32.gmra.mxu0 %v1517
  %v1519 = vpop.f32.mrf.mxu0
  %v1520 = vadd.f32 %v1164, %v1519
  %v1521 = vpop.f32.mrf.mxu0
  %1522 = vmatprep.mubr.f32.mxu0 0.0
  %v1523 = vand.u32 %v135, 4294901760
  %v1524 = vsub.f32 %v135, %v1523
  %v1525 = vand.u32 %v1524, 4294901760
  %1526 = vmatmul.mubr.f32.gmra.mxu0 %v1525
  %v1527 = vpop.f32.mrf.mxu0
  %v1528 = vadd.f32 %v1171, %v1527
  %v1529 = vpop.f32.mrf.mxu0
  %1530 = vmatprep.mubr.f32.mxu0 0.0
  %v1531 = vand.u32 %v138, 4294901760
  %v1532 = vsub.f32 %v138, %v1531
  %v1533 = vand.u32 %v1532, 4294901760
  %1534 = vmatmul.mubr.f32.gmra.mxu0 %v1533
  %v1535 = vpop.f32.mrf.mxu0
  %v1536 = vadd.f32 %v1178, %v1535
  %v1537 = vpop.f32.mrf.mxu0
  %1538 = vmatprep.mubr.f32.mxu0 0.0
  %v1539 = vand.u32 %v141, 4294901760
  %v1540 = vsub.f32 %v141, %v1539
  %v1541 = vand.u32 %v1540, 4294901760
  %1542 = vmatmul.mubr.f32.gmra.mxu0 %v1541
  %v1543 = vpop.f32.mrf.mxu0
  %v1544 = vadd.f32 %v1185, %v1543
  %v1545 = vpop.f32.mrf.mxu0
  %1546 = vmatprep.mubr.f32.mxu0 0.0
  %v1547 = vand.u32 %v144, 4294901760
  %v1548 = vsub.f32 %v144, %v1547
  %v1549 = vand.u32 %v1548, 4294901760
  %1550 = vmatmul.mubr.f32.gmra.mxu0 %v1549
  %v1551 = vpop.f32.mrf.mxu0
  %v1552 = vadd.f32 %v1192, %v1551
  %v1553 = vpop.f32.mrf.mxu0
  %1554 = vmatprep.mubr.f32.mxu0 0.0
  %v1555 = vand.u32 %v147, 4294901760
  %v1556 = vsub.f32 %v147, %v1555
  %v1557 = vand.u32 %v1556, 4294901760
  %1558 = vmatmul.mubr.f32.gmra.mxu0 %v1557
  %v1559 = vpop.f32.mrf.mxu0
  %v1560 = vadd.f32 %v1199, %v1559
  %v1561 = vpop.f32.mrf.mxu0
  %1562 = vmatprep.mubr.f32.mxu0 0.0
  %v1563 = vand.u32 %v150, 4294901760
  %v1564 = vsub.f32 %v150, %v1563
  %v1565 = vand.u32 %v1564, 4294901760
  %1566 = vmatmul.mubr.f32.gmra.mxu0 %v1565
  %v1567 = vpop.f32.mrf.mxu0
  %v1568 = vadd.f32 %v1206, %v1567
  %v1569 = vpop.f32.mrf.mxu0
  %1570 = vmatprep.mubr.f32.mxu0 0.0
  %v1571 = vand.u32 %v153, 4294901760
  %v1572 = vsub.f32 %v153, %v1571
  %v1573 = vand.u32 %v1572, 4294901760
  %1574 = vmatmul.mubr.f32.gmra.mxu0 %v1573
  %v1575 = vpop.f32.mrf.mxu0
  %v1576 = vadd.f32 %v1213, %v1575
  %v1577 = vpop.f32.mrf.mxu0
  %1578 = vmatprep.mubr.f32.mxu0 0.0
  %v1579 = vand.u32 %v156, 4294901760
  %v1580 = vsub.f32 %v156, %v1579
  %v1581 = vand.u32 %v1580, 4294901760
  %1582 = vmatmul.mubr.f32.gmra.mxu0 %v1581
  %v1583 = vpop.f32.mrf.mxu0
  %v1584 = vadd.f32 %v1220, %v1583
  %v1585 = vpop.f32.mrf.mxu0
  %1586 = vmatprep.mubr.f32.mxu0 0.0
  %v1587 = vand.u32 %v159, 4294901760
  %v1588 = vsub.f32 %v159, %v1587
  %v1589 = vand.u32 %v1588, 4294901760
  %1590 = vmatmul.mubr.f32.gmra.mxu0 %v1589
  %v1591 = vpop.f32.mrf.mxu0
  %v1592 = vadd.f32 %v1227, %v1591
  %v1593 = vpop.f32.mrf.mxu0
  %1594 = vmatprep.mubr.f32.mxu0 0.0
  %v1595 = vand.u32 %v162, 4294901760
  %v1596 = vsub.f32 %v162, %v1595
  %v1597 = vand.u32 %v1596, 4294901760
  %1598 = vmatmul.mubr.f32.gmra.mxu0 %v1597
  %v1599 = vpop.f32.mrf.mxu0
  %v1600 = vadd.f32 %v1234, %v1599
  %v1601 = vpop.f32.mrf.mxu0
  %1602 = vmatprep.mubr.f32.mxu0 0.0
  %v1603 = vand.u32 %v165, 4294901760
  %v1604 = vsub.f32 %v165, %v1603
  %v1605 = vand.u32 %v1604, 4294901760
  %1606 = vmatmul.mubr.f32.gmra.mxu0 %v1605
  %v1607 = vpop.f32.mrf.mxu0
  %v1608 = vadd.f32 %v1241, %v1607
  %v1609 = vpop.f32.mrf.mxu0
  %1610 = vmatprep.mubr.f32.mxu0 0.0
  %v1611 = vand.u32 %v168, 4294901760
  %v1612 = vsub.f32 %v168, %v1611
  %v1613 = vand.u32 %v1612, 4294901760
  %1614 = vmatmul.mubr.f32.gmra.mxu0 %v1613
  %v1615 = vpop.f32.mrf.mxu0
  %v1616 = vadd.f32 %v1248, %v1615
  %v1617 = vpop.f32.mrf.mxu0
  %1618 = vmatprep.mubr.f32.mxu0 0.0
  %v1619 = vand.u32 %v171, 4294901760
  %v1620 = vsub.f32 %v171, %v1619
  %v1621 = vand.u32 %v1620, 4294901760
  %1622 = vmatmul.mubr.f32.gmra.mxu0 %v1621
  %v1623 = vpop.f32.mrf.mxu0
  %v1624 = vadd.f32 %v1255, %v1623
  %v1625 = vpop.f32.mrf.mxu0
  %1626 = vmatprep.mubr.f32.mxu0 0.0
  %v1627 = vand.u32 %v174, 4294901760
  %v1628 = vsub.f32 %v174, %v1627
  %v1629 = vand.u32 %v1628, 4294901760
  %1630 = vmatmul.mubr.f32.gmra.mxu0 %v1629
  %v1631 = vpop.f32.mrf.mxu0
  %v1632 = vadd.f32 %v1262, %v1631
  %v1633 = vpop.f32.mrf.mxu0
  %1634 = vmatprep.mubr.f32.mxu0 0.0
  %v1635 = vand.u32 %v177, 4294901760
  %v1636 = vsub.f32 %v177, %v1635
  %v1637 = vand.u32 %v1636, 4294901760
  %1638 = vmatmul.mubr.f32.gmra.mxu0 %v1637
  %v1639 = vpop.f32.mrf.mxu0
  %v1640 = vadd.f32 %v1269, %v1639
  %v1641 = vpop.f32.mrf.mxu0
  %1642 = vmatprep.mubr.f32.mxu0 0.0
  %v1643 = vand.u32 %v180, 4294901760
  %v1644 = vsub.f32 %v180, %v1643
  %v1645 = vand.u32 %v1644, 4294901760
  %1646 = vmatmul.mubr.f32.gmra.mxu0 %v1645
  %v1647 = vpop.f32.mrf.mxu0
  %v1648 = vadd.f32 %v1276, %v1647
  %v1649 = vpop.f32.mrf.mxu0
  %1650 = vmatprep.mubr.f32.mxu0 0.0
  %v1651 = vand.u32 %v183, 4294901760
  %v1652 = vsub.f32 %v183, %v1651
  %v1653 = vand.u32 %v1652, 4294901760
  %1654 = vmatmul.mubr.f32.gmra.mxu0 %v1653
  %v1655 = vpop.f32.mrf.mxu0
  %v1656 = vadd.f32 %v1283, %v1655
  %v1657 = vpop.f32.mrf.mxu0
  %1658 = vdwg.mxu0
  %1659 = vmatprep.subr.mxu0 0.0
  %1660 = vmatpush1.msra.mxu0 0.0
  %1661 = vmatprep.subr.mxu0 0.0
  %1662 = vmatpush1.msra.mxu0 0.0
  %1663 = vmatprep.subr.mxu0 0.0
  %1664 = vmatpush1.msra.mxu0 0.0
  %1665 = vmatprep.subr.mxu0 0.0
  %1666 = vmatpush1.msra.mxu0 0.0
  %1667 = vmatprep.subr.mxu0 0.0
  %1668 = vmatpush1.msra.mxu0 0.0
  %1669 = vmatprep.subr.mxu0 0.0
  %1670 = vmatpush1.msra.mxu0 0.0
  %1671 = vmatprep.subr.mxu0 0.0
  %1672 = vmatpush1.msra.mxu0 0.0
  %1673 = vmatprep.subr.mxu0 0.0
  %1674 = vmatpush1.msra.mxu0 0.0
  %1675 = vmatprep.subr.mxu0 0.0
  %1676 = vmatpush1.msra.mxu0 0.0
  %1677 = vmatprep.subr.mxu0 0.0
  %1678 = vmatpush1.msra.mxu0 0.0
  %1679 = vmatprep.subr.mxu0 0.0
  %1680 = vmatpush1.msra.mxu0 0.0
  %1681 = vmatprep.subr.mxu0 0.0
  %1682 = vmatpush1.msra.mxu0 0.0
  %1683 = vmatprep.subr.mxu0 0.0
  %v1684 = vand.u32 %v69, 4294901760
  %v1685 = vsub.f32 %v69, %v1684
  %v1686 = vand.u32 %v1685, 4294901760
  %1687 = vmatpush1.msra.mxu0 %v1686
  %1688 = vmatprep.subr.mxu0 0.0
  %v1689 = vand.u32 %v68, 4294901760
  %v1690 = vsub.f32 %v68, %v1689
  %v1691 = vand.u32 %v1690, 4294901760
  %1692 = vmatpush1.msra.mxu0 %v1691
  %1693 = vmatprep.subr.mxu0 0.0
  %v1694 = vand.u32 %v67, 4294901760
  %v1695 = vsub.f32 %v67, %v1694
  %v1696 = vand.u32 %v1695, 4294901760
  %1697 = vmatpush1.msra.mxu0 %v1696
  %1698 = vmatprep.subr.mxu0 0.0
  %v1699 = vand.u32 %v66, 4294901760
  %v1700 = vsub.f32 %v66, %v1699
  %v1701 = vand.u32 %v1700, 4294901760
  %1702 = vmatpush1.msra.mxu0 %v1701
  %1703 = vmatprep.subr.mxu0 0.0
  %1704 = vmatpush2.msra.mxu0 0.0
  %1705 = vmatprep.subr.mxu0 0.0
  %1706 = vmatpush2.msra.mxu0 0.0
  %1707 = vmatprep.subr.mxu0 0.0
  %1708 = vmatpush2.msra.mxu0 0.0
  %1709 = vmatprep.subr.mxu0 0.0
  %1710 = vmatpush2.msra.mxu0 0.0
  %1711 = vmatprep.subr.mxu0 0.0
  %1712 = vmatpush2.msra.mxu0 0.0
  %1713 = vmatprep.subr.mxu0 0.0
  %1714 = vmatpush2.msra.mxu0 0.0
  %1715 = vmatprep.subr.mxu0 0.0
  %1716 = vmatpush2.msra.mxu0 0.0
  %1717 = vmatprep.subr.mxu0 0.0
  %1718 = vmatpush2.msra.mxu0 0.0
  %1719 = vmatprep.subr.mxu0 0.0
  %1720 = vmatpush2.msra.mxu0 0.0
  %1721 = vmatprep.subr.mxu0 0.0
  %1722 = vmatpush2.msra.mxu0 0.0
  %1723 = vmatprep.subr.mxu0 0.0
  %1724 = vmatpush2.msra.mxu0 0.0
  %1725 = vmatprep.subr.mxu0 0.0
  %1726 = vmatpush2.msra.mxu0 0.0
  %1727 = vmatprep.subr.mxu0 0.0
  %1728 = vmatpush2.msra.mxu0 0.0
  %1729 = vmatprep.subr.mxu0 0.0
  %1730 = vmatpush2.msra.mxu0 0.0
  %1731 = vmatprep.subr.mxu0 0.0
  %1732 = vmatpush2.msra.mxu0 0.0
  %1733 = vmatprep.subr.mxu0 0.0
  %1734 = vmatpush2.msra.mxu0 0.0
  %1735 = vmatprep.mubr.f32.mxu0 0.0
  %v1736 = vand.u32 %v72, 4294901760
  %1737 = vmatmul.mubr.f32.gmra.mxu0 %v1736
  %v1738 = vpop.f32.mrf.mxu0
  %v1739 = vadd.f32 %v1360, %v1738
  %v1740 = vpop.f32.mrf.mxu0
  %1741 = vmatprep.mubr.f32.mxu0 0.0
  %v1742 = vand.u32 %v75, 4294901760
  %1743 = vmatmul.mubr.f32.gmra.mxu0 %v1742
  %v1744 = vpop.f32.mrf.mxu0
  %v1745 = vadd.f32 %v1368, %v1744
  %v1746 = vpop.f32.mrf.mxu0
  %1747 = vmatprep.mubr.f32.mxu0 0.0
  %v1748 = vand.u32 %v78, 4294901760
  %1749 = vmatmul.mubr.f32.gmra.mxu0 %v1748
  %v1750 = vpop.f32.mrf.mxu0
  %v1751 = vadd.f32 %v1376, %v1750
  %v1752 = vpop.f32.mrf.mxu0
  %1753 = vmatprep.mubr.f32.mxu0 0.0
  %v1754 = vand.u32 %v81, 4294901760
  %1755 = vmatmul.mubr.f32.gmra.mxu0 %v1754
  %v1756 = vpop.f32.mrf.mxu0
  %v1757 = vadd.f32 %v1384, %v1756
  %v1758 = vpop.f32.mrf.mxu0
  %1759 = vmatprep.mubr.f32.mxu0 0.0
  %v1760 = vand.u32 %v84, 4294901760
  %1761 = vmatmul.mubr.f32.gmra.mxu0 %v1760
  %v1762 = vpop.f32.mrf.mxu0
  %v1763 = vadd.f32 %v1392, %v1762
  %v1764 = vpop.f32.mrf.mxu0
  %1765 = vmatprep.mubr.f32.mxu0 0.0
  %v1766 = vand.u32 %v87, 4294901760
  %1767 = vmatmul.mubr.f32.gmra.mxu0 %v1766
  %v1768 = vpop.f32.mrf.mxu0
  %v1769 = vadd.f32 %v1400, %v1768
  %v1770 = vpop.f32.mrf.mxu0
  %1771 = vmatprep.mubr.f32.mxu0 0.0
  %v1772 = vand.u32 %v90, 4294901760
  %1773 = vmatmul.mubr.f32.gmra.mxu0 %v1772
  %v1774 = vpop.f32.mrf.mxu0
  %v1775 = vadd.f32 %v1408, %v1774
  %v1776 = vpop.f32.mrf.mxu0
  %1777 = vmatprep.mubr.f32.mxu0 0.0
  %v1778 = vand.u32 %v93, 4294901760
  %1779 = vmatmul.mubr.f32.gmra.mxu0 %v1778
  %v1780 = vpop.f32.mrf.mxu0
  %v1781 = vadd.f32 %v1416, %v1780
  %v1782 = vpop.f32.mrf.mxu0
  %1783 = vmatprep.mubr.f32.mxu0 0.0
  %v1784 = vand.u32 %v96, 4294901760
  %1785 = vmatmul.mubr.f32.gmra.mxu0 %v1784
  %v1786 = vpop.f32.mrf.mxu0
  %v1787 = vadd.f32 %v1424, %v1786
  %v1788 = vpop.f32.mrf.mxu0
  %1789 = vmatprep.mubr.f32.mxu0 0.0
  %v1790 = vand.u32 %v99, 4294901760
  %1791 = vmatmul.mubr.f32.gmra.mxu0 %v1790
  %v1792 = vpop.f32.mrf.mxu0
  %v1793 = vadd.f32 %v1432, %v1792
  %v1794 = vpop.f32.mrf.mxu0
  %1795 = vmatprep.mubr.f32.mxu0 0.0
  %v1796 = vand.u32 %v102, 4294901760
  %1797 = vmatmul.mubr.f32.gmra.mxu0 %v1796
  %v1798 = vpop.f32.mrf.mxu0
  %v1799 = vadd.f32 %v1440, %v1798
  %v1800 = vpop.f32.mrf.mxu0
  %1801 = vmatprep.mubr.f32.mxu0 0.0
  %v1802 = vand.u32 %v105, 4294901760
  %1803 = vmatmul.mubr.f32.gmra.mxu0 %v1802
  %v1804 = vpop.f32.mrf.mxu0
  %v1805 = vadd.f32 %v1448, %v1804
  %v1806 = vpop.f32.mrf.mxu0
  %1807 = vmatprep.mubr.f32.mxu0 0.0
  %v1808 = vand.u32 %v108, 4294901760
  %1809 = vmatmul.mubr.f32.gmra.mxu0 %v1808
  %v1810 = vpop.f32.mrf.mxu0
  %v1811 = vadd.f32 %v1456, %v1810
  %v1812 = vpop.f32.mrf.mxu0
  %1813 = vmatprep.mubr.f32.mxu0 0.0
  %v1814 = vand.u32 %v111, 4294901760
  %1815 = vmatmul.mubr.f32.gmra.mxu0 %v1814
  %v1816 = vpop.f32.mrf.mxu0
  %v1817 = vadd.f32 %v1464, %v1816
  %v1818 = vpop.f32.mrf.mxu0
  %1819 = vmatprep.mubr.f32.mxu0 0.0
  %v1820 = vand.u32 %v114, 4294901760
  %1821 = vmatmul.mubr.f32.gmra.mxu0 %v1820
  %v1822 = vpop.f32.mrf.mxu0
  %v1823 = vadd.f32 %v1472, %v1822
  %v1824 = vpop.f32.mrf.mxu0
  %1825 = vmatprep.mubr.f32.mxu0 0.0
  %v1826 = vand.u32 %v117, 4294901760
  %1827 = vmatmul.mubr.f32.gmra.mxu0 %v1826
  %v1828 = vpop.f32.mrf.mxu0
  %v1829 = vadd.f32 %v1480, %v1828
  %v1830 = vpop.f32.mrf.mxu0
  %1831 = vmatprep.mubr.f32.mxu0 0.0
  %v1832 = vand.u32 %v120, 4294901760
  %1833 = vmatmul.mubr.f32.gmra.mxu0 %v1832
  %v1834 = vpop.f32.mrf.mxu0
  %v1835 = vadd.f32 %v1488, %v1834
  %v1836 = vpop.f32.mrf.mxu0
  %1837 = vmatprep.mubr.f32.mxu0 0.0
  %v1838 = vand.u32 %v123, 4294901760
  %1839 = vmatmul.mubr.f32.gmra.mxu0 %v1838
  %v1840 = vpop.f32.mrf.mxu0
  %v1841 = vadd.f32 %v1496, %v1840
  %v1842 = vpop.f32.mrf.mxu0
  %1843 = vmatprep.mubr.f32.mxu0 0.0
  %v1844 = vand.u32 %v126, 4294901760
  %1845 = vmatmul.mubr.f32.gmra.mxu0 %v1844
  %v1846 = vpop.f32.mrf.mxu0
  %v1847 = vadd.f32 %v1504, %v1846
  %v1848 = vpop.f32.mrf.mxu0
  %1849 = vmatprep.mubr.f32.mxu0 0.0
  %v1850 = vand.u32 %v129, 4294901760
  %1851 = vmatmul.mubr.f32.gmra.mxu0 %v1850
  %v1852 = vpop.f32.mrf.mxu0
  %v1853 = vadd.f32 %v1512, %v1852
  %v1854 = vpop.f32.mrf.mxu0
  %1855 = vmatprep.mubr.f32.mxu0 0.0
  %v1856 = vand.u32 %v132, 4294901760
  %1857 = vmatmul.mubr.f32.gmra.mxu0 %v1856
  %v1858 = vpop.f32.mrf.mxu0
  %v1859 = vadd.f32 %v1520, %v1858
  %v1860 = vpop.f32.mrf.mxu0
  %1861 = vmatprep.mubr.f32.mxu0 0.0
  %v1862 = vand.u32 %v135, 4294901760
  %1863 = vmatmul.mubr.f32.gmra.mxu0 %v1862
  %v1864 = vpop.f32.mrf.mxu0
  %v1865 = vadd.f32 %v1528, %v1864
  %v1866 = vpop.f32.mrf.mxu0
  %1867 = vmatprep.mubr.f32.mxu0 0.0
  %v1868 = vand.u32 %v138, 4294901760
  %1869 = vmatmul.mubr.f32.gmra.mxu0 %v1868
  %v1870 = vpop.f32.mrf.mxu0
  %v1871 = vadd.f32 %v1536, %v1870
  %v1872 = vpop.f32.mrf.mxu0
  %1873 = vmatprep.mubr.f32.mxu0 0.0
  %v1874 = vand.u32 %v141, 4294901760
  %1875 = vmatmul.mubr.f32.gmra.mxu0 %v1874
  %v1876 = vpop.f32.mrf.mxu0
  %v1877 = vadd.f32 %v1544, %v1876
  %v1878 = vpop.f32.mrf.mxu0
  %1879 = vmatprep.mubr.f32.mxu0 0.0
  %v1880 = vand.u32 %v144, 4294901760
  %1881 = vmatmul.mubr.f32.gmra.mxu0 %v1880
  %v1882 = vpop.f32.mrf.mxu0
  %v1883 = vadd.f32 %v1552, %v1882
  %v1884 = vpop.f32.mrf.mxu0
  %1885 = vmatprep.mubr.f32.mxu0 0.0
  %v1886 = vand.u32 %v147, 4294901760
  %1887 = vmatmul.mubr.f32.gmra.mxu0 %v1886
  %v1888 = vpop.f32.mrf.mxu0
  %v1889 = vadd.f32 %v1560, %v1888
  %v1890 = vpop.f32.mrf.mxu0
  %1891 = vmatprep.mubr.f32.mxu0 0.0
  %v1892 = vand.u32 %v150, 4294901760
  %1893 = vmatmul.mubr.f32.gmra.mxu0 %v1892
  %v1894 = vpop.f32.mrf.mxu0
  %v1895 = vadd.f32 %v1568, %v1894
  %v1896 = vpop.f32.mrf.mxu0
  %1897 = vmatprep.mubr.f32.mxu0 0.0
  %v1898 = vand.u32 %v153, 4294901760
  %1899 = vmatmul.mubr.f32.gmra.mxu0 %v1898
  %v1900 = vpop.f32.mrf.mxu0
  %v1901 = vadd.f32 %v1576, %v1900
  %v1902 = vpop.f32.mrf.mxu0
  %1903 = vmatprep.mubr.f32.mxu0 0.0
  %v1904 = vand.u32 %v156, 4294901760
  %1905 = vmatmul.mubr.f32.gmra.mxu0 %v1904
  %v1906 = vpop.f32.mrf.mxu0
  %v1907 = vadd.f32 %v1584, %v1906
  %v1908 = vpop.f32.mrf.mxu0
  %1909 = vmatprep.mubr.f32.mxu0 0.0
  %v1910 = vand.u32 %v159, 4294901760
  %1911 = vmatmul.mubr.f32.gmra.mxu0 %v1910
  %v1912 = vpop.f32.mrf.mxu0
  %v1913 = vadd.f32 %v1592, %v1912
  %v1914 = vpop.f32.mrf.mxu0
  %1915 = vmatprep.mubr.f32.mxu0 0.0
  %v1916 = vand.u32 %v162, 4294901760
  %1917 = vmatmul.mubr.f32.gmra.mxu0 %v1916
  %v1918 = vpop.f32.mrf.mxu0
  %v1919 = vadd.f32 %v1600, %v1918
  %v1920 = vpop.f32.mrf.mxu0
  %1921 = vmatprep.mubr.f32.mxu0 0.0
  %v1922 = vand.u32 %v165, 4294901760
  %1923 = vmatmul.mubr.f32.gmra.mxu0 %v1922
  %v1924 = vpop.f32.mrf.mxu0
  %v1925 = vadd.f32 %v1608, %v1924
  %v1926 = vpop.f32.mrf.mxu0
  %1927 = vmatprep.mubr.f32.mxu0 0.0
  %v1928 = vand.u32 %v168, 4294901760
  %1929 = vmatmul.mubr.f32.gmra.mxu0 %v1928
  %v1930 = vpop.f32.mrf.mxu0
  %v1931 = vadd.f32 %v1616, %v1930
  %v1932 = vpop.f32.mrf.mxu0
  %1933 = vmatprep.mubr.f32.mxu0 0.0
  %v1934 = vand.u32 %v171, 4294901760
  %1935 = vmatmul.mubr.f32.gmra.mxu0 %v1934
  %v1936 = vpop.f32.mrf.mxu0
  %v1937 = vadd.f32 %v1624, %v1936
  %v1938 = vpop.f32.mrf.mxu0
  %1939 = vmatprep.mubr.f32.mxu0 0.0
  %v1940 = vand.u32 %v174, 4294901760
  %1941 = vmatmul.mubr.f32.gmra.mxu0 %v1940
  %v1942 = vpop.f32.mrf.mxu0
  %v1943 = vadd.f32 %v1632, %v1942
  %v1944 = vpop.f32.mrf.mxu0
  %1945 = vmatprep.mubr.f32.mxu0 0.0
  %v1946 = vand.u32 %v177, 4294901760
  %1947 = vmatmul.mubr.f32.gmra.mxu0 %v1946
  %v1948 = vpop.f32.mrf.mxu0
  %v1949 = vadd.f32 %v1640, %v1948
  %v1950 = vpop.f32.mrf.mxu0
  %1951 = vmatprep.mubr.f32.mxu0 0.0
  %v1952 = vand.u32 %v180, 4294901760
  %1953 = vmatmul.mubr.f32.gmra.mxu0 %v1952
  %v1954 = vpop.f32.mrf.mxu0
  %v1955 = vadd.f32 %v1648, %v1954
  %v1956 = vpop.f32.mrf.mxu0
  %1957 = vmatprep.mubr.f32.mxu0 0.0
  %v1958 = vand.u32 %v183, 4294901760
  %1959 = vmatmul.mubr.f32.gmra.mxu0 %v1958
  %v1960 = vpop.f32.mrf.mxu0
  %v1961 = vadd.f32 %v1656, %v1960
  %v1962 = vpop.f32.mrf.mxu0
  %1963 = vdwg.mxu0
  %1964 = vmatprep.subr.mxu0 0.0
  %1965 = vmatpush1.msra.mxu0 0.0
  %1966 = vmatprep.subr.mxu0 0.0
  %1967 = vmatpush1.msra.mxu0 0.0
  %1968 = vmatprep.subr.mxu0 0.0
  %1969 = vmatpush1.msra.mxu0 0.0
  %1970 = vmatprep.subr.mxu0 0.0
  %1971 = vmatpush1.msra.mxu0 0.0
  %1972 = vmatprep.subr.mxu0 0.0
  %1973 = vmatpush1.msra.mxu0 0.0
  %1974 = vmatprep.subr.mxu0 0.0
  %1975 = vmatpush1.msra.mxu0 0.0
  %1976 = vmatprep.subr.mxu0 0.0
  %1977 = vmatpush1.msra.mxu0 0.0
  %1978 = vmatprep.subr.mxu0 0.0
  %1979 = vmatpush1.msra.mxu0 0.0
  %1980 = vmatprep.subr.mxu0 0.0
  %1981 = vmatpush1.msra.mxu0 0.0
  %1982 = vmatprep.subr.mxu0 0.0
  %1983 = vmatpush1.msra.mxu0 0.0
  %1984 = vmatprep.subr.mxu0 0.0
  %1985 = vmatpush1.msra.mxu0 0.0
  %1986 = vmatprep.subr.mxu0 0.0
  %1987 = vmatpush1.msra.mxu0 0.0
  %1988 = vmatprep.subr.mxu0 0.0
  %v1989 = vand.u32 %v69, 4294901760
  %1990 = vmatpush1.msra.mxu0 %v1989
  %1991 = vmatprep.subr.mxu0 0.0
  %v1992 = vand.u32 %v68, 4294901760
  %1993 = vmatpush1.msra.mxu0 %v1992
  %1994 = vmatprep.subr.mxu0 0.0
  %v1995 = vand.u32 %v67, 4294901760
  %1996 = vmatpush1.msra.mxu0 %v1995
  %1997 = vmatprep.subr.mxu0 0.0
  %v1998 = vand.u32 %v66, 4294901760
  %1999 = vmatpush1.msra.mxu0 %v1998
  %2000 = vmatprep.subr.mxu0 0.0
  %2001 = vmatpush2.msra.mxu0 0.0
  %2002 = vmatprep.subr.mxu0 0.0
  %2003 = vmatpush2.msra.mxu0 0.0
  %2004 = vmatprep.subr.mxu0 0.0
  %2005 = vmatpush2.msra.mxu0 0.0
  %2006 = vmatprep.subr.mxu0 0.0
  %2007 = vmatpush2.msra.mxu0 0.0
  %2008 = vmatprep.subr.mxu0 0.0
  %2009 = vmatpush2.msra.mxu0 0.0
  %2010 = vmatprep.subr.mxu0 0.0
  %2011 = vmatpush2.msra.mxu0 0.0
  %2012 = vmatprep.subr.mxu0 0.0
  %2013 = vmatpush2.msra.mxu0 0.0
  %2014 = vmatprep.subr.mxu0 0.0
  %2015 = vmatpush2.msra.mxu0 0.0
  %2016 = vmatprep.subr.mxu0 0.0
  %2017 = vmatpush2.msra.mxu0 0.0
  %2018 = vmatprep.subr.mxu0 0.0
  %2019 = vmatpush2.msra.mxu0 0.0
  %2020 = vmatprep.subr.mxu0 0.0
  %2021 = vmatpush2.msra.mxu0 0.0
  %2022 = vmatprep.subr.mxu0 0.0
  %2023 = vmatpush2.msra.mxu0 0.0
  %2024 = vmatprep.subr.mxu0 0.0
  %2025 = vmatpush2.msra.mxu0 0.0
  %2026 = vmatprep.subr.mxu0 0.0
  %2027 = vmatpush2.msra.mxu0 0.0
  %2028 = vmatprep.subr.mxu0 0.0
  %2029 = vmatpush2.msra.mxu0 0.0
  %2030 = vmatprep.subr.mxu0 0.0
  %2031 = vmatpush2.msra.mxu0 0.0
  %2032 = vmatprep.mubr.f32.mxu0 0.0
  %v2033 = vand.u32 %v72, 4294901760
  %2034 = vmatmul.mubr.f32.gmra.mxu0 %v2033
  %v2035 = vpop.f32.mrf.mxu0
  %v2036 = vadd.f32 %v1739, %v2035
  %v2037 = vpop.f32.mrf.mxu0
  %2038 = vmatprep.mubr.f32.mxu0 0.0
  %v2039 = vand.u32 %v75, 4294901760
  %2040 = vmatmul.mubr.f32.gmra.mxu0 %v2039
  %v2041 = vpop.f32.mrf.mxu0
  %v2042 = vadd.f32 %v1745, %v2041
  %v2043 = vpop.f32.mrf.mxu0
  %2044 = vmatprep.mubr.f32.mxu0 0.0
  %v2045 = vand.u32 %v78, 4294901760
  %2046 = vmatmul.mubr.f32.gmra.mxu0 %v2045
  %v2047 = vpop.f32.mrf.mxu0
  %v2048 = vadd.f32 %v1751, %v2047
  %v2049 = vpop.f32.mrf.mxu0
  %2050 = vmatprep.mubr.f32.mxu0 0.0
  %v2051 = vand.u32 %v81, 4294901760
  %2052 = vmatmul.mubr.f32.gmra.mxu0 %v2051
  %v2053 = vpop.f32.mrf.mxu0
  %v2054 = vadd.f32 %v1757, %v2053
  %v2055 = vpop.f32.mrf.mxu0
  %2056 = vmatprep.mubr.f32.mxu0 0.0
  %v2057 = vand.u32 %v84, 4294901760
  %2058 = vmatmul.mubr.f32.gmra.mxu0 %v2057
  %v2059 = vpop.f32.mrf.mxu0
  %v2060 = vadd.f32 %v1763, %v2059
  %v2061 = vpop.f32.mrf.mxu0
  %2062 = vmatprep.mubr.f32.mxu0 0.0
  %v2063 = vand.u32 %v87, 4294901760
  %2064 = vmatmul.mubr.f32.gmra.mxu0 %v2063
  %v2065 = vpop.f32.mrf.mxu0
  %v2066 = vadd.f32 %v1769, %v2065
  %v2067 = vpop.f32.mrf.mxu0
  %2068 = vmatprep.mubr.f32.mxu0 0.0
  %v2069 = vand.u32 %v90, 4294901760
  %2070 = vmatmul.mubr.f32.gmra.mxu0 %v2069
  %v2071 = vpop.f32.mrf.mxu0
  %v2072 = vadd.f32 %v1775, %v2071
  %v2073 = vpop.f32.mrf.mxu0
  %2074 = vmatprep.mubr.f32.mxu0 0.0
  %v2075 = vand.u32 %v93, 4294901760
  %2076 = vmatmul.mubr.f32.gmra.mxu0 %v2075
  %v2077 = vpop.f32.mrf.mxu0
  %v2078 = vadd.f32 %v1781, %v2077
  %v2079 = vpop.f32.mrf.mxu0
  %2080 = vmatprep.mubr.f32.mxu0 0.0
  %v2081 = vand.u32 %v96, 4294901760
  %2082 = vmatmul.mubr.f32.gmra.mxu0 %v2081
  %v2083 = vpop.f32.mrf.mxu0
  %v2084 = vadd.f32 %v1787, %v2083
  %v2085 = vpop.f32.mrf.mxu0
  %2086 = vmatprep.mubr.f32.mxu0 0.0
  %v2087 = vand.u32 %v99, 4294901760
  %2088 = vmatmul.mubr.f32.gmra.mxu0 %v2087
  %v2089 = vpop.f32.mrf.mxu0
  %v2090 = vadd.f32 %v1793, %v2089
  %v2091 = vpop.f32.mrf.mxu0
  %2092 = vmatprep.mubr.f32.mxu0 0.0
  %v2093 = vand.u32 %v102, 4294901760
  %2094 = vmatmul.mubr.f32.gmra.mxu0 %v2093
  %v2095 = vpop.f32.mrf.mxu0
  %v2096 = vadd.f32 %v1799, %v2095
  %v2097 = vpop.f32.mrf.mxu0
  %2098 = vmatprep.mubr.f32.mxu0 0.0
  %v2099 = vand.u32 %v105, 4294901760
  %2100 = vmatmul.mubr.f32.gmra.mxu0 %v2099
  %v2101 = vpop.f32.mrf.mxu0
  %v2102 = vadd.f32 %v1805, %v2101
  %v2103 = vpop.f32.mrf.mxu0
  %2104 = vmatprep.mubr.f32.mxu0 0.0
  %v2105 = vand.u32 %v108, 4294901760
  %2106 = vmatmul.mubr.f32.gmra.mxu0 %v2105
  %v2107 = vpop.f32.mrf.mxu0
  %v2108 = vadd.f32 %v1811, %v2107
  %v2109 = vpop.f32.mrf.mxu0
  %2110 = vmatprep.mubr.f32.mxu0 0.0
  %v2111 = vand.u32 %v111, 4294901760
  %2112 = vmatmul.mubr.f32.gmra.mxu0 %v2111
  %v2113 = vpop.f32.mrf.mxu0
  %v2114 = vadd.f32 %v1817, %v2113
  %v2115 = vpop.f32.mrf.mxu0
  %2116 = vmatprep.mubr.f32.mxu0 0.0
  %v2117 = vand.u32 %v114, 4294901760
  %2118 = vmatmul.mubr.f32.gmra.mxu0 %v2117
  %v2119 = vpop.f32.mrf.mxu0
  %v2120 = vadd.f32 %v1823, %v2119
  %v2121 = vpop.f32.mrf.mxu0
  %2122 = vmatprep.mubr.f32.mxu0 0.0
  %v2123 = vand.u32 %v117, 4294901760
  %2124 = vmatmul.mubr.f32.gmra.mxu0 %v2123
  %v2125 = vpop.f32.mrf.mxu0
  %v2126 = vadd.f32 %v1829, %v2125
  %v2127 = vpop.f32.mrf.mxu0
  %2128 = vmatprep.mubr.f32.mxu0 0.0
  %v2129 = vand.u32 %v120, 4294901760
  %2130 = vmatmul.mubr.f32.gmra.mxu0 %v2129
  %v2131 = vpop.f32.mrf.mxu0
  %v2132 = vadd.f32 %v1835, %v2131
  %v2133 = vpop.f32.mrf.mxu0
  %2134 = vmatprep.mubr.f32.mxu0 0.0
  %v2135 = vand.u32 %v123, 4294901760
  %2136 = vmatmul.mubr.f32.gmra.mxu0 %v2135
  %v2137 = vpop.f32.mrf.mxu0
  %v2138 = vadd.f32 %v1841, %v2137
  %v2139 = vpop.f32.mrf.mxu0
  %2140 = vmatprep.mubr.f32.mxu0 0.0
  %v2141 = vand.u32 %v126, 4294901760
  %2142 = vmatmul.mubr.f32.gmra.mxu0 %v2141
  %v2143 = vpop.f32.mrf.mxu0
  %v2144 = vadd.f32 %v1847, %v2143
  %v2145 = vpop.f32.mrf.mxu0
  %2146 = vmatprep.mubr.f32.mxu0 0.0
  %v2147 = vand.u32 %v129, 4294901760
  %2148 = vmatmul.mubr.f32.gmra.mxu0 %v2147
  %v2149 = vpop.f32.mrf.mxu0
  %v2150 = vadd.f32 %v1853, %v2149
  %v2151 = vpop.f32.mrf.mxu0
  %2152 = vmatprep.mubr.f32.mxu0 0.0
  %v2153 = vand.u32 %v132, 4294901760
  %2154 = vmatmul.mubr.f32.gmra.mxu0 %v2153
  %v2155 = vpop.f32.mrf.mxu0
  %v2156 = vadd.f32 %v1859, %v2155
  %v2157 = vpop.f32.mrf.mxu0
  %2158 = vmatprep.mubr.f32.mxu0 0.0
  %v2159 = vand.u32 %v135, 4294901760
  %2160 = vmatmul.mubr.f32.gmra.mxu0 %v2159
  %v2161 = vpop.f32.mrf.mxu0
  %v2162 = vadd.f32 %v1865, %v2161
  %v2163 = vpop.f32.mrf.mxu0
  %2164 = vmatprep.mubr.f32.mxu0 0.0
  %v2165 = vand.u32 %v138, 4294901760
  %2166 = vmatmul.mubr.f32.gmra.mxu0 %v2165
  %v2167 = vpop.f32.mrf.mxu0
  %v2168 = vadd.f32 %v1871, %v2167
  %v2169 = vpop.f32.mrf.mxu0
  %2170 = vmatprep.mubr.f32.mxu0 0.0
  %v2171 = vand.u32 %v141, 4294901760
  %2172 = vmatmul.mubr.f32.gmra.mxu0 %v2171
  %v2173 = vpop.f32.mrf.mxu0
  %v2174 = vadd.f32 %v1877, %v2173
  %v2175 = vpop.f32.mrf.mxu0
  %2176 = vmatprep.mubr.f32.mxu0 0.0
  %v2177 = vand.u32 %v144, 4294901760
  %2178 = vmatmul.mubr.f32.gmra.mxu0 %v2177
  %v2179 = vpop.f32.mrf.mxu0
  %v2180 = vadd.f32 %v1883, %v2179
  %v2181 = vpop.f32.mrf.mxu0
  %2182 = vmatprep.mubr.f32.mxu0 0.0
  %v2183 = vand.u32 %v147, 4294901760
  %2184 = vmatmul.mubr.f32.gmra.mxu0 %v2183
  %v2185 = vpop.f32.mrf.mxu0
  %v2186 = vadd.f32 %v1889, %v2185
  %v2187 = vpop.f32.mrf.mxu0
  %2188 = vmatprep.mubr.f32.mxu0 0.0
  %v2189 = vand.u32 %v150, 4294901760
  %2190 = vmatmul.mubr.f32.gmra.mxu0 %v2189
  %v2191 = vpop.f32.mrf.mxu0
  %v2192 = vadd.f32 %v1895, %v2191
  %v2193 = vpop.f32.mrf.mxu0
  %2194 = vmatprep.mubr.f32.mxu0 0.0
  %v2195 = vand.u32 %v153, 4294901760
  %2196 = vmatmul.mubr.f32.gmra.mxu0 %v2195
  %v2197 = vpop.f32.mrf.mxu0
  %v2198 = vadd.f32 %v1901, %v2197
  %v2199 = vpop.f32.mrf.mxu0
  %2200 = vmatprep.mubr.f32.mxu0 0.0
  %v2201 = vand.u32 %v156, 4294901760
  %2202 = vmatmul.mubr.f32.gmra.mxu0 %v2201
  %v2203 = vpop.f32.mrf.mxu0
  %v2204 = vadd.f32 %v1907, %v2203
  %v2205 = vpop.f32.mrf.mxu0
  %2206 = vmatprep.mubr.f32.mxu0 0.0
  %v2207 = vand.u32 %v159, 4294901760
  %2208 = vmatmul.mubr.f32.gmra.mxu0 %v2207
  %v2209 = vpop.f32.mrf.mxu0
  %v2210 = vadd.f32 %v1913, %v2209
  %v2211 = vpop.f32.mrf.mxu0
  %2212 = vmatprep.mubr.f32.mxu0 0.0
  %v2213 = vand.u32 %v162, 4294901760
  %2214 = vmatmul.mubr.f32.gmra.mxu0 %v2213
  %v2215 = vpop.f32.mrf.mxu0
  %v2216 = vadd.f32 %v1919, %v2215
  %v2217 = vpop.f32.mrf.mxu0
  %2218 = vmatprep.mubr.f32.mxu0 0.0
  %v2219 = vand.u32 %v165, 4294901760
  %2220 = vmatmul.mubr.f32.gmra.mxu0 %v2219
  %v2221 = vpop.f32.mrf.mxu0
  %v2222 = vadd.f32 %v1925, %v2221
  %v2223 = vpop.f32.mrf.mxu0
  %2224 = vmatprep.mubr.f32.mxu0 0.0
  %v2225 = vand.u32 %v168, 4294901760
  %2226 = vmatmul.mubr.f32.gmra.mxu0 %v2225
  %v2227 = vpop.f32.mrf.mxu0
  %v2228 = vadd.f32 %v1931, %v2227
  %v2229 = vpop.f32.mrf.mxu0
  %2230 = vmatprep.mubr.f32.mxu0 0.0
  %v2231 = vand.u32 %v171, 4294901760
  %2232 = vmatmul.mubr.f32.gmra.mxu0 %v2231
  %v2233 = vpop.f32.mrf.mxu0
  %v2234 = vadd.f32 %v1937, %v2233
  %v2235 = vpop.f32.mrf.mxu0
  %2236 = vmatprep.mubr.f32.mxu0 0.0
  %v2237 = vand.u32 %v174, 4294901760
  %2238 = vmatmul.mubr.f32.gmra.mxu0 %v2237
  %v2239 = vpop.f32.mrf.mxu0
  %v2240 = vadd.f32 %v1943, %v2239
  %v2241 = vpop.f32.mrf.mxu0
  %2242 = vmatprep.mubr.f32.mxu0 0.0
  %v2243 = vand.u32 %v177, 4294901760
  %2244 = vmatmul.mubr.f32.gmra.mxu0 %v2243
  %v2245 = vpop.f32.mrf.mxu0
  %v2246 = vadd.f32 %v1949, %v2245
  %v2247 = vpop.f32.mrf.mxu0
  %2248 = vmatprep.mubr.f32.mxu0 0.0
  %v2249 = vand.u32 %v180, 4294901760
  %2250 = vmatmul.mubr.f32.gmra.mxu0 %v2249
  %v2251 = vpop.f32.mrf.mxu0
  %v2252 = vadd.f32 %v1955, %v2251
  %v2253 = vpop.f32.mrf.mxu0
  %2254 = vmatprep.mubr.f32.mxu0 0.0
  %v2255 = vand.u32 %v183, 4294901760
  %2256 = vmatmul.mubr.f32.gmra.mxu0 %v2255
  %v2257 = vpop.f32.mrf.mxu0
  %v2258 = vadd.f32 %v1961, %v2257
  %v2259 = vpop.f32.mrf.mxu0
  %2260 = vdwg.mxu0
  %v2261 = vmul.f32 %v28, %v28
  %v2262 = vmul.f32 %v29, %v29
  %v2263 = vmul.f32 %v30, %v30
  %v2264 = vmul.f32 %v31, %v31
  %v2265 = vmul.f32 %v32, %v32
  %v2266 = vmul.f32 %v33, %v33
  %v2267 = vmul.f32 %v34, %v34
  %v2268 = vmul.f32 %v35, %v35
  %v2269 = vmul.f32 %v36, %v36
  %v2270 = vmul.f32 %v37, %v37
  %v2271 = vmul.f32 %v38, %v38
  %v2272 = vmul.f32 %v39, %v39
  %v2273 = vmul.f32 %v40, %v40
  %v2274 = vmul.f32 %v41, %v41
  %v2275 = vmul.f32 %v42, %v42
  %v2276 = vmul.f32 %v43, %v43
  %v2277 = vmul.f32 %v44, %v44
  %v2278 = vmul.f32 %v45, %v45
  %v2279 = vmul.f32 %v46, %v46
  %v2280 = vmul.f32 %v47, %v47
  %v2281 = vmul.f32 %v48, %v48
  %v2282 = vmul.f32 %v49, %v49
  %v2283 = vmul.f32 %v50, %v50
  %v2284 = vmul.f32 %v51, %v51
  %v2285 = vmul.f32 %v52, %v52
  %v2286 = vmul.f32 %v53, %v53
  %v2287 = vmul.f32 %v54, %v54
  %v2288 = vmul.f32 %v55, %v55
  %v2289 = vmul.f32 %v56, %v56
  %v2290 = vmul.f32 %v57, %v57
  %v2291 = vmul.f32 %v58, %v58
  %v2292 = vmul.f32 %v59, %v59
  %v2293 = vmul.f32 %v60, %v60
  %v2294 = vmul.f32 %v61, %v61
  %v2295 = vmul.f32 %v62, %v62
  %v2296 = vmul.f32 %v63, %v63
  %v2297 = vmul.f32 %v64, %v64
  %v2298 = vmul.f32 %v65, %v65
  %v2300 = vsel %vm70, %v2261, 0
  %v2303 = vsel %vm70, %v2262, 0
  %v2306 = vsel %vm70, %v2263, 0
  %v2309 = vsel %vm70, %v2264, 0
  %v2312 = vsel %vm70, %v2265, 0
  %v2315 = vsel %vm70, %v2266, 0
  %v2318 = vsel %vm70, %v2267, 0
  %v2321 = vsel %vm70, %v2268, 0
  %v2324 = vsel %vm70, %v2269, 0
  %v2327 = vsel %vm70, %v2270, 0
  %v2330 = vsel %vm70, %v2271, 0
  %v2333 = vsel %vm70, %v2272, 0
  %v2336 = vsel %vm70, %v2273, 0
  %v2339 = vsel %vm70, %v2274, 0
  %v2342 = vsel %vm70, %v2275, 0
  %v2345 = vsel %vm70, %v2276, 0
  %v2348 = vsel %vm70, %v2277, 0
  %v2351 = vsel %vm70, %v2278, 0
  %v2354 = vsel %vm70, %v2279, 0
  %v2357 = vsel %vm70, %v2280, 0
  %v2360 = vsel %vm70, %v2281, 0
  %v2363 = vsel %vm70, %v2282, 0
  %v2366 = vsel %vm70, %v2283, 0
  %v2369 = vsel %vm70, %v2284, 0
  %v2372 = vsel %vm70, %v2285, 0
  %v2375 = vsel %vm70, %v2286, 0
  %v2378 = vsel %vm70, %v2287, 0
  %v2381 = vsel %vm70, %v2288, 0
  %v2384 = vsel %vm70, %v2289, 0
  %v2387 = vsel %vm70, %v2290, 0
  %v2390 = vsel %vm70, %v2291, 0
  %v2393 = vsel %vm70, %v2292, 0
  %v2396 = vsel %vm70, %v2293, 0
  %v2399 = vsel %vm70, %v2294, 0
  %v2402 = vsel %vm70, %v2295, 0
  %v2405 = vsel %vm70, %v2296, 0
  %v2408 = vsel %vm70, %v2297, 0
  %v2411 = vsel %vm70, %v2298, 0
  %2413 = vmatprep.subr.mxu0 0.0
  %2414 = vmatpush1.msra.mxu0 0.0
  %2415 = vmatprep.subr.mxu0 0.0
  %2416 = vmatpush1.msra.mxu0 0.0
  %2417 = vmatprep.subr.mxu0 0.0
  %2418 = vmatpush1.msra.mxu0 0.0
  %2419 = vmatprep.subr.mxu0 0.0
  %2420 = vmatpush1.msra.mxu0 0.0
  %2421 = vmatprep.subr.mxu0 0.0
  %2422 = vmatpush1.msra.mxu0 0.0
  %2423 = vmatprep.subr.mxu0 0.0
  %2424 = vmatpush1.msra.mxu0 0.0
  %2425 = vmatprep.subr.mxu0 0.0
  %2426 = vmatpush1.msra.mxu0 0.0
  %2427 = vmatprep.subr.mxu0 0.0
  %2428 = vmatpush1.msra.mxu0 0.0
  %2429 = vmatprep.subr.mxu0 0.0
  %2430 = vmatpush1.msra.mxu0 0.0
  %2431 = vmatprep.subr.mxu0 0.0
  %2432 = vmatpush1.msra.mxu0 0.0
  %2433 = vmatprep.subr.mxu0 0.0
  %2434 = vmatpush1.msra.mxu0 0.0
  %2435 = vmatprep.subr.mxu0 0.0
  %2436 = vmatpush1.msra.mxu0 0.0
  %2437 = vmatprep.subr.mxu0 0.0
  %v2438 = vand.u32 %v69, 4294901760
  %2439 = vmatpush1.msra.mxu0 %v2438
  %2440 = vmatprep.subr.mxu0 0.0
  %v2441 = vand.u32 %v68, 4294901760
  %2442 = vmatpush1.msra.mxu0 %v2441
  %2443 = vmatprep.subr.mxu0 0.0
  %v2444 = vand.u32 %v67, 4294901760
  %2445 = vmatpush1.msra.mxu0 %v2444
  %2446 = vmatprep.subr.mxu0 0.0
  %v2447 = vand.u32 %v66, 4294901760
  %2448 = vmatpush1.msra.mxu0 %v2447
  %2449 = vmatprep.subr.mxu0 0.0
  %2450 = vmatpush2.msra.mxu0 0.0
  %2451 = vmatprep.subr.mxu0 0.0
  %2452 = vmatpush2.msra.mxu0 0.0
  %2453 = vmatprep.subr.mxu0 0.0
  %2454 = vmatpush2.msra.mxu0 0.0
  %2455 = vmatprep.subr.mxu0 0.0
  %2456 = vmatpush2.msra.mxu0 0.0
  %2457 = vmatprep.subr.mxu0 0.0
  %2458 = vmatpush2.msra.mxu0 0.0
  %2459 = vmatprep.subr.mxu0 0.0
  %2460 = vmatpush2.msra.mxu0 0.0
  %2461 = vmatprep.subr.mxu0 0.0
  %2462 = vmatpush2.msra.mxu0 0.0
  %2463 = vmatprep.subr.mxu0 0.0
  %2464 = vmatpush2.msra.mxu0 0.0
  %2465 = vmatprep.subr.mxu0 0.0
  %2466 = vmatpush2.msra.mxu0 0.0
  %2467 = vmatprep.subr.mxu0 0.0
  %2468 = vmatpush2.msra.mxu0 0.0
  %2469 = vmatprep.subr.mxu0 0.0
  %2470 = vmatpush2.msra.mxu0 0.0
  %2471 = vmatprep.subr.mxu0 0.0
  %2472 = vmatpush2.msra.mxu0 0.0
  %2473 = vmatprep.subr.mxu0 0.0
  %2474 = vmatpush2.msra.mxu0 0.0
  %2475 = vmatprep.subr.mxu0 0.0
  %2476 = vmatpush2.msra.mxu0 0.0
  %2477 = vmatprep.subr.mxu0 0.0
  %2478 = vmatpush2.msra.mxu0 0.0
  %2479 = vmatprep.subr.mxu0 0.0
  %2480 = vmatpush2.msra.mxu0 0.0
  %2481 = vmatprep.mubr.f32.mxu0 0.0
  %v2482 = vand.u32 %v2300, 4294901760
  %v2483 = vsub.f32 %v2300, %v2482
  %v2484 = vand.u32 %v2483, 4294901760
  %v2485 = vsub.f32 %v2483, %v2484
  %v2486 = vand.u32 %v2485, 4294901760
  %2487 = vmatmul.mubr.f32.gmra.mxu0 %v2486
  %v2488 = vpop.f32.mrf.mxu0
  %v2489 = vadd.f32 0.0, %v2488
  %v2490 = vpop.f32.mrf.mxu0
  %2491 = vmatprep.mubr.f32.mxu0 0.0
  %v2492 = vand.u32 %v2303, 4294901760
  %v2493 = vsub.f32 %v2303, %v2492
  %v2494 = vand.u32 %v2493, 4294901760
  %v2495 = vsub.f32 %v2493, %v2494
  %v2496 = vand.u32 %v2495, 4294901760
  %2497 = vmatmul.mubr.f32.gmra.mxu0 %v2496
  %v2498 = vpop.f32.mrf.mxu0
  %v2499 = vadd.f32 0.0, %v2498
  %v2500 = vpop.f32.mrf.mxu0
  %2501 = vmatprep.mubr.f32.mxu0 0.0
  %v2502 = vand.u32 %v2306, 4294901760
  %v2503 = vsub.f32 %v2306, %v2502
  %v2504 = vand.u32 %v2503, 4294901760
  %v2505 = vsub.f32 %v2503, %v2504
  %v2506 = vand.u32 %v2505, 4294901760
  %2507 = vmatmul.mubr.f32.gmra.mxu0 %v2506
  %v2508 = vpop.f32.mrf.mxu0
  %v2509 = vadd.f32 0.0, %v2508
  %v2510 = vpop.f32.mrf.mxu0
  %2511 = vmatprep.mubr.f32.mxu0 0.0
  %v2512 = vand.u32 %v2309, 4294901760
  %v2513 = vsub.f32 %v2309, %v2512
  %v2514 = vand.u32 %v2513, 4294901760
  %v2515 = vsub.f32 %v2513, %v2514
  %v2516 = vand.u32 %v2515, 4294901760
  %2517 = vmatmul.mubr.f32.gmra.mxu0 %v2516
  %v2518 = vpop.f32.mrf.mxu0
  %v2519 = vadd.f32 0.0, %v2518
  %v2520 = vpop.f32.mrf.mxu0
  %2521 = vmatprep.mubr.f32.mxu0 0.0
  %v2522 = vand.u32 %v2312, 4294901760
  %v2523 = vsub.f32 %v2312, %v2522
  %v2524 = vand.u32 %v2523, 4294901760
  %v2525 = vsub.f32 %v2523, %v2524
  %v2526 = vand.u32 %v2525, 4294901760
  %2527 = vmatmul.mubr.f32.gmra.mxu0 %v2526
  %v2528 = vpop.f32.mrf.mxu0
  %v2529 = vadd.f32 0.0, %v2528
  %v2530 = vpop.f32.mrf.mxu0
  %2531 = vmatprep.mubr.f32.mxu0 0.0
  %v2532 = vand.u32 %v2315, 4294901760
  %v2533 = vsub.f32 %v2315, %v2532
  %v2534 = vand.u32 %v2533, 4294901760
  %v2535 = vsub.f32 %v2533, %v2534
  %v2536 = vand.u32 %v2535, 4294901760
  %2537 = vmatmul.mubr.f32.gmra.mxu0 %v2536
  %v2538 = vpop.f32.mrf.mxu0
  %v2539 = vadd.f32 0.0, %v2538
  %v2540 = vpop.f32.mrf.mxu0
  %2541 = vmatprep.mubr.f32.mxu0 0.0
  %v2542 = vand.u32 %v2318, 4294901760
  %v2543 = vsub.f32 %v2318, %v2542
  %v2544 = vand.u32 %v2543, 4294901760
  %v2545 = vsub.f32 %v2543, %v2544
  %v2546 = vand.u32 %v2545, 4294901760
  %2547 = vmatmul.mubr.f32.gmra.mxu0 %v2546
  %v2548 = vpop.f32.mrf.mxu0
  %v2549 = vadd.f32 0.0, %v2548
  %v2550 = vpop.f32.mrf.mxu0
  %2551 = vmatprep.mubr.f32.mxu0 0.0
  %v2552 = vand.u32 %v2321, 4294901760
  %v2553 = vsub.f32 %v2321, %v2552
  %v2554 = vand.u32 %v2553, 4294901760
  %v2555 = vsub.f32 %v2553, %v2554
  %v2556 = vand.u32 %v2555, 4294901760
  %2557 = vmatmul.mubr.f32.gmra.mxu0 %v2556
  %v2558 = vpop.f32.mrf.mxu0
  %v2559 = vadd.f32 0.0, %v2558
  %v2560 = vpop.f32.mrf.mxu0
  %2561 = vmatprep.mubr.f32.mxu0 0.0
  %v2562 = vand.u32 %v2324, 4294901760
  %v2563 = vsub.f32 %v2324, %v2562
  %v2564 = vand.u32 %v2563, 4294901760
  %v2565 = vsub.f32 %v2563, %v2564
  %v2566 = vand.u32 %v2565, 4294901760
  %2567 = vmatmul.mubr.f32.gmra.mxu0 %v2566
  %v2568 = vpop.f32.mrf.mxu0
  %v2569 = vadd.f32 0.0, %v2568
  %v2570 = vpop.f32.mrf.mxu0
  %2571 = vmatprep.mubr.f32.mxu0 0.0
  %v2572 = vand.u32 %v2327, 4294901760
  %v2573 = vsub.f32 %v2327, %v2572
  %v2574 = vand.u32 %v2573, 4294901760
  %v2575 = vsub.f32 %v2573, %v2574
  %v2576 = vand.u32 %v2575, 4294901760
  %2577 = vmatmul.mubr.f32.gmra.mxu0 %v2576
  %v2578 = vpop.f32.mrf.mxu0
  %v2579 = vadd.f32 0.0, %v2578
  %v2580 = vpop.f32.mrf.mxu0
  %2581 = vmatprep.mubr.f32.mxu0 0.0
  %v2582 = vand.u32 %v2330, 4294901760
  %v2583 = vsub.f32 %v2330, %v2582
  %v2584 = vand.u32 %v2583, 4294901760
  %v2585 = vsub.f32 %v2583, %v2584
  %v2586 = vand.u32 %v2585, 4294901760
  %2587 = vmatmul.mubr.f32.gmra.mxu0 %v2586
  %v2588 = vpop.f32.mrf.mxu0
  %v2589 = vadd.f32 0.0, %v2588
  %v2590 = vpop.f32.mrf.mxu0
  %2591 = vmatprep.mubr.f32.mxu0 0.0
  %v2592 = vand.u32 %v2333, 4294901760
  %v2593 = vsub.f32 %v2333, %v2592
  %v2594 = vand.u32 %v2593, 4294901760
  %v2595 = vsub.f32 %v2593, %v2594
  %v2596 = vand.u32 %v2595, 4294901760
  %2597 = vmatmul.mubr.f32.gmra.mxu0 %v2596
  %v2598 = vpop.f32.mrf.mxu0
  %v2599 = vadd.f32 0.0, %v2598
  %v2600 = vpop.f32.mrf.mxu0
  %2601 = vmatprep.mubr.f32.mxu0 0.0
  %v2602 = vand.u32 %v2336, 4294901760
  %v2603 = vsub.f32 %v2336, %v2602
  %v2604 = vand.u32 %v2603, 4294901760
  %v2605 = vsub.f32 %v2603, %v2604
  %v2606 = vand.u32 %v2605, 4294901760
  %2607 = vmatmul.mubr.f32.gmra.mxu0 %v2606
  %v2608 = vpop.f32.mrf.mxu0
  %v2609 = vadd.f32 0.0, %v2608
  %v2610 = vpop.f32.mrf.mxu0
  %2611 = vmatprep.mubr.f32.mxu0 0.0
  %v2612 = vand.u32 %v2339, 4294901760
  %v2613 = vsub.f32 %v2339, %v2612
  %v2614 = vand.u32 %v2613, 4294901760
  %v2615 = vsub.f32 %v2613, %v2614
  %v2616 = vand.u32 %v2615, 4294901760
  %2617 = vmatmul.mubr.f32.gmra.mxu0 %v2616
  %v2618 = vpop.f32.mrf.mxu0
  %v2619 = vadd.f32 0.0, %v2618
  %v2620 = vpop.f32.mrf.mxu0
  %2621 = vmatprep.mubr.f32.mxu0 0.0
  %v2622 = vand.u32 %v2342, 4294901760
  %v2623 = vsub.f32 %v2342, %v2622
  %v2624 = vand.u32 %v2623, 4294901760
  %v2625 = vsub.f32 %v2623, %v2624
  %v2626 = vand.u32 %v2625, 4294901760
  %2627 = vmatmul.mubr.f32.gmra.mxu0 %v2626
  %v2628 = vpop.f32.mrf.mxu0
  %v2629 = vadd.f32 0.0, %v2628
  %v2630 = vpop.f32.mrf.mxu0
  %2631 = vmatprep.mubr.f32.mxu0 0.0
  %v2632 = vand.u32 %v2345, 4294901760
  %v2633 = vsub.f32 %v2345, %v2632
  %v2634 = vand.u32 %v2633, 4294901760
  %v2635 = vsub.f32 %v2633, %v2634
  %v2636 = vand.u32 %v2635, 4294901760
  %2637 = vmatmul.mubr.f32.gmra.mxu0 %v2636
  %v2638 = vpop.f32.mrf.mxu0
  %v2639 = vadd.f32 0.0, %v2638
  %v2640 = vpop.f32.mrf.mxu0
  %2641 = vmatprep.mubr.f32.mxu0 0.0
  %v2642 = vand.u32 %v2348, 4294901760
  %v2643 = vsub.f32 %v2348, %v2642
  %v2644 = vand.u32 %v2643, 4294901760
  %v2645 = vsub.f32 %v2643, %v2644
  %v2646 = vand.u32 %v2645, 4294901760
  %2647 = vmatmul.mubr.f32.gmra.mxu0 %v2646
  %v2648 = vpop.f32.mrf.mxu0
  %v2649 = vadd.f32 0.0, %v2648
  %v2650 = vpop.f32.mrf.mxu0
  %2651 = vmatprep.mubr.f32.mxu0 0.0
  %v2652 = vand.u32 %v2351, 4294901760
  %v2653 = vsub.f32 %v2351, %v2652
  %v2654 = vand.u32 %v2653, 4294901760
  %v2655 = vsub.f32 %v2653, %v2654
  %v2656 = vand.u32 %v2655, 4294901760
  %2657 = vmatmul.mubr.f32.gmra.mxu0 %v2656
  %v2658 = vpop.f32.mrf.mxu0
  %v2659 = vadd.f32 0.0, %v2658
  %v2660 = vpop.f32.mrf.mxu0
  %2661 = vmatprep.mubr.f32.mxu0 0.0
  %v2662 = vand.u32 %v2354, 4294901760
  %v2663 = vsub.f32 %v2354, %v2662
  %v2664 = vand.u32 %v2663, 4294901760
  %v2665 = vsub.f32 %v2663, %v2664
  %v2666 = vand.u32 %v2665, 4294901760
  %2667 = vmatmul.mubr.f32.gmra.mxu0 %v2666
  %v2668 = vpop.f32.mrf.mxu0
  %v2669 = vadd.f32 0.0, %v2668
  %v2670 = vpop.f32.mrf.mxu0
  %2671 = vmatprep.mubr.f32.mxu0 0.0
  %v2672 = vand.u32 %v2357, 4294901760
  %v2673 = vsub.f32 %v2357, %v2672
  %v2674 = vand.u32 %v2673, 4294901760
  %v2675 = vsub.f32 %v2673, %v2674
  %v2676 = vand.u32 %v2675, 4294901760
  %2677 = vmatmul.mubr.f32.gmra.mxu0 %v2676
  %v2678 = vpop.f32.mrf.mxu0
  %v2679 = vadd.f32 0.0, %v2678
  %v2680 = vpop.f32.mrf.mxu0
  %2681 = vmatprep.mubr.f32.mxu0 0.0
  %v2682 = vand.u32 %v2360, 4294901760
  %v2683 = vsub.f32 %v2360, %v2682
  %v2684 = vand.u32 %v2683, 4294901760
  %v2685 = vsub.f32 %v2683, %v2684
  %v2686 = vand.u32 %v2685, 4294901760
  %2687 = vmatmul.mubr.f32.gmra.mxu0 %v2686
  %v2688 = vpop.f32.mrf.mxu0
  %v2689 = vadd.f32 0.0, %v2688
  %v2690 = vpop.f32.mrf.mxu0
  %2691 = vmatprep.mubr.f32.mxu0 0.0
  %v2692 = vand.u32 %v2363, 4294901760
  %v2693 = vsub.f32 %v2363, %v2692
  %v2694 = vand.u32 %v2693, 4294901760
  %v2695 = vsub.f32 %v2693, %v2694
  %v2696 = vand.u32 %v2695, 4294901760
  %2697 = vmatmul.mubr.f32.gmra.mxu0 %v2696
  %v2698 = vpop.f32.mrf.mxu0
  %v2699 = vadd.f32 0.0, %v2698
  %v2700 = vpop.f32.mrf.mxu0
  %2701 = vmatprep.mubr.f32.mxu0 0.0
  %v2702 = vand.u32 %v2366, 4294901760
  %v2703 = vsub.f32 %v2366, %v2702
  %v2704 = vand.u32 %v2703, 4294901760
  %v2705 = vsub.f32 %v2703, %v2704
  %v2706 = vand.u32 %v2705, 4294901760
  %2707 = vmatmul.mubr.f32.gmra.mxu0 %v2706
  %v2708 = vpop.f32.mrf.mxu0
  %v2709 = vadd.f32 0.0, %v2708
  %v2710 = vpop.f32.mrf.mxu0
  %2711 = vmatprep.mubr.f32.mxu0 0.0
  %v2712 = vand.u32 %v2369, 4294901760
  %v2713 = vsub.f32 %v2369, %v2712
  %v2714 = vand.u32 %v2713, 4294901760
  %v2715 = vsub.f32 %v2713, %v2714
  %v2716 = vand.u32 %v2715, 4294901760
  %2717 = vmatmul.mubr.f32.gmra.mxu0 %v2716
  %v2718 = vpop.f32.mrf.mxu0
  %v2719 = vadd.f32 0.0, %v2718
  %v2720 = vpop.f32.mrf.mxu0
  %2721 = vmatprep.mubr.f32.mxu0 0.0
  %v2722 = vand.u32 %v2372, 4294901760
  %v2723 = vsub.f32 %v2372, %v2722
  %v2724 = vand.u32 %v2723, 4294901760
  %v2725 = vsub.f32 %v2723, %v2724
  %v2726 = vand.u32 %v2725, 4294901760
  %2727 = vmatmul.mubr.f32.gmra.mxu0 %v2726
  %v2728 = vpop.f32.mrf.mxu0
  %v2729 = vadd.f32 0.0, %v2728
  %v2730 = vpop.f32.mrf.mxu0
  %2731 = vmatprep.mubr.f32.mxu0 0.0
  %v2732 = vand.u32 %v2375, 4294901760
  %v2733 = vsub.f32 %v2375, %v2732
  %v2734 = vand.u32 %v2733, 4294901760
  %v2735 = vsub.f32 %v2733, %v2734
  %v2736 = vand.u32 %v2735, 4294901760
  %2737 = vmatmul.mubr.f32.gmra.mxu0 %v2736
  %v2738 = vpop.f32.mrf.mxu0
  %v2739 = vadd.f32 0.0, %v2738
  %v2740 = vpop.f32.mrf.mxu0
  %2741 = vmatprep.mubr.f32.mxu0 0.0
  %v2742 = vand.u32 %v2378, 4294901760
  %v2743 = vsub.f32 %v2378, %v2742
  %v2744 = vand.u32 %v2743, 4294901760
  %v2745 = vsub.f32 %v2743, %v2744
  %v2746 = vand.u32 %v2745, 4294901760
  %2747 = vmatmul.mubr.f32.gmra.mxu0 %v2746
  %v2748 = vpop.f32.mrf.mxu0
  %v2749 = vadd.f32 0.0, %v2748
  %v2750 = vpop.f32.mrf.mxu0
  %2751 = vmatprep.mubr.f32.mxu0 0.0
  %v2752 = vand.u32 %v2381, 4294901760
  %v2753 = vsub.f32 %v2381, %v2752
  %v2754 = vand.u32 %v2753, 4294901760
  %v2755 = vsub.f32 %v2753, %v2754
  %v2756 = vand.u32 %v2755, 4294901760
  %2757 = vmatmul.mubr.f32.gmra.mxu0 %v2756
  %v2758 = vpop.f32.mrf.mxu0
  %v2759 = vadd.f32 0.0, %v2758
  %v2760 = vpop.f32.mrf.mxu0
  %2761 = vmatprep.mubr.f32.mxu0 0.0
  %v2762 = vand.u32 %v2384, 4294901760
  %v2763 = vsub.f32 %v2384, %v2762
  %v2764 = vand.u32 %v2763, 4294901760
  %v2765 = vsub.f32 %v2763, %v2764
  %v2766 = vand.u32 %v2765, 4294901760
  %2767 = vmatmul.mubr.f32.gmra.mxu0 %v2766
  %v2768 = vpop.f32.mrf.mxu0
  %v2769 = vadd.f32 0.0, %v2768
  %v2770 = vpop.f32.mrf.mxu0
  %2771 = vmatprep.mubr.f32.mxu0 0.0
  %v2772 = vand.u32 %v2387, 4294901760
  %v2773 = vsub.f32 %v2387, %v2772
  %v2774 = vand.u32 %v2773, 4294901760
  %v2775 = vsub.f32 %v2773, %v2774
  %v2776 = vand.u32 %v2775, 4294901760
  %2777 = vmatmul.mubr.f32.gmra.mxu0 %v2776
  %v2778 = vpop.f32.mrf.mxu0
  %v2779 = vadd.f32 0.0, %v2778
  %v2780 = vpop.f32.mrf.mxu0
  %2781 = vmatprep.mubr.f32.mxu0 0.0
  %v2782 = vand.u32 %v2390, 4294901760
  %v2783 = vsub.f32 %v2390, %v2782
  %v2784 = vand.u32 %v2783, 4294901760
  %v2785 = vsub.f32 %v2783, %v2784
  %v2786 = vand.u32 %v2785, 4294901760
  %2787 = vmatmul.mubr.f32.gmra.mxu0 %v2786
  %v2788 = vpop.f32.mrf.mxu0
  %v2789 = vadd.f32 0.0, %v2788
  %v2790 = vpop.f32.mrf.mxu0
  %2791 = vmatprep.mubr.f32.mxu0 0.0
  %v2792 = vand.u32 %v2393, 4294901760
  %v2793 = vsub.f32 %v2393, %v2792
  %v2794 = vand.u32 %v2793, 4294901760
  %v2795 = vsub.f32 %v2793, %v2794
  %v2796 = vand.u32 %v2795, 4294901760
  %2797 = vmatmul.mubr.f32.gmra.mxu0 %v2796
  %v2798 = vpop.f32.mrf.mxu0
  %v2799 = vadd.f32 0.0, %v2798
  %v2800 = vpop.f32.mrf.mxu0
  %2801 = vmatprep.mubr.f32.mxu0 0.0
  %v2802 = vand.u32 %v2396, 4294901760
  %v2803 = vsub.f32 %v2396, %v2802
  %v2804 = vand.u32 %v2803, 4294901760
  %v2805 = vsub.f32 %v2803, %v2804
  %v2806 = vand.u32 %v2805, 4294901760
  %2807 = vmatmul.mubr.f32.gmra.mxu0 %v2806
  %v2808 = vpop.f32.mrf.mxu0
  %v2809 = vadd.f32 0.0, %v2808
  %v2810 = vpop.f32.mrf.mxu0
  %2811 = vmatprep.mubr.f32.mxu0 0.0
  %v2812 = vand.u32 %v2399, 4294901760
  %v2813 = vsub.f32 %v2399, %v2812
  %v2814 = vand.u32 %v2813, 4294901760
  %v2815 = vsub.f32 %v2813, %v2814
  %v2816 = vand.u32 %v2815, 4294901760
  %2817 = vmatmul.mubr.f32.gmra.mxu0 %v2816
  %v2818 = vpop.f32.mrf.mxu0
  %v2819 = vadd.f32 0.0, %v2818
  %v2820 = vpop.f32.mrf.mxu0
  %2821 = vmatprep.mubr.f32.mxu0 0.0
  %v2822 = vand.u32 %v2402, 4294901760
  %v2823 = vsub.f32 %v2402, %v2822
  %v2824 = vand.u32 %v2823, 4294901760
  %v2825 = vsub.f32 %v2823, %v2824
  %v2826 = vand.u32 %v2825, 4294901760
  %2827 = vmatmul.mubr.f32.gmra.mxu0 %v2826
  %v2828 = vpop.f32.mrf.mxu0
  %v2829 = vadd.f32 0.0, %v2828
  %v2830 = vpop.f32.mrf.mxu0
  %2831 = vmatprep.mubr.f32.mxu0 0.0
  %v2832 = vand.u32 %v2405, 4294901760
  %v2833 = vsub.f32 %v2405, %v2832
  %v2834 = vand.u32 %v2833, 4294901760
  %v2835 = vsub.f32 %v2833, %v2834
  %v2836 = vand.u32 %v2835, 4294901760
  %2837 = vmatmul.mubr.f32.gmra.mxu0 %v2836
  %v2838 = vpop.f32.mrf.mxu0
  %v2839 = vadd.f32 0.0, %v2838
  %v2840 = vpop.f32.mrf.mxu0
  %2841 = vmatprep.mubr.f32.mxu0 0.0
  %v2842 = vand.u32 %v2408, 4294901760
  %v2843 = vsub.f32 %v2408, %v2842
  %v2844 = vand.u32 %v2843, 4294901760
  %v2845 = vsub.f32 %v2843, %v2844
  %v2846 = vand.u32 %v2845, 4294901760
  %2847 = vmatmul.mubr.f32.gmra.mxu0 %v2846
  %v2848 = vpop.f32.mrf.mxu0
  %v2849 = vadd.f32 0.0, %v2848
  %v2850 = vpop.f32.mrf.mxu0
  %2851 = vmatprep.mubr.f32.mxu0 0.0
  %v2852 = vand.u32 %v2411, 4294901760
  %v2853 = vsub.f32 %v2411, %v2852
  %v2854 = vand.u32 %v2853, 4294901760
  %v2855 = vsub.f32 %v2853, %v2854
  %v2856 = vand.u32 %v2855, 4294901760
  %2857 = vmatmul.mubr.f32.gmra.mxu0 %v2856
  %v2858 = vpop.f32.mrf.mxu0
  %v2859 = vadd.f32 0.0, %v2858
  %v2860 = vpop.f32.mrf.mxu0
  %2861 = vdwg.mxu0
  %2862 = vmatprep.subr.mxu0 0.0
  %2863 = vmatpush1.msra.mxu0 0.0
  %2864 = vmatprep.subr.mxu0 0.0
  %2865 = vmatpush1.msra.mxu0 0.0
  %2866 = vmatprep.subr.mxu0 0.0
  %2867 = vmatpush1.msra.mxu0 0.0
  %2868 = vmatprep.subr.mxu0 0.0
  %2869 = vmatpush1.msra.mxu0 0.0
  %2870 = vmatprep.subr.mxu0 0.0
  %2871 = vmatpush1.msra.mxu0 0.0
  %2872 = vmatprep.subr.mxu0 0.0
  %2873 = vmatpush1.msra.mxu0 0.0
  %2874 = vmatprep.subr.mxu0 0.0
  %2875 = vmatpush1.msra.mxu0 0.0
  %2876 = vmatprep.subr.mxu0 0.0
  %2877 = vmatpush1.msra.mxu0 0.0
  %2878 = vmatprep.subr.mxu0 0.0
  %2879 = vmatpush1.msra.mxu0 0.0
  %2880 = vmatprep.subr.mxu0 0.0
  %2881 = vmatpush1.msra.mxu0 0.0
  %2882 = vmatprep.subr.mxu0 0.0
  %2883 = vmatpush1.msra.mxu0 0.0
  %2884 = vmatprep.subr.mxu0 0.0
  %2885 = vmatpush1.msra.mxu0 0.0
  %2886 = vmatprep.subr.mxu0 0.0
  %v2887 = vand.u32 %v69, 4294901760
  %v2888 = vsub.f32 %v69, %v2887
  %v2889 = vand.u32 %v2888, 4294901760
  %v2890 = vsub.f32 %v2888, %v2889
  %v2891 = vand.u32 %v2890, 4294901760
  %2892 = vmatpush1.msra.mxu0 %v2891
  %2893 = vmatprep.subr.mxu0 0.0
  %v2894 = vand.u32 %v68, 4294901760
  %v2895 = vsub.f32 %v68, %v2894
  %v2896 = vand.u32 %v2895, 4294901760
  %v2897 = vsub.f32 %v2895, %v2896
  %v2898 = vand.u32 %v2897, 4294901760
  %2899 = vmatpush1.msra.mxu0 %v2898
  %2900 = vmatprep.subr.mxu0 0.0
  %v2901 = vand.u32 %v67, 4294901760
  %v2902 = vsub.f32 %v67, %v2901
  %v2903 = vand.u32 %v2902, 4294901760
  %v2904 = vsub.f32 %v2902, %v2903
  %v2905 = vand.u32 %v2904, 4294901760
  %2906 = vmatpush1.msra.mxu0 %v2905
  %2907 = vmatprep.subr.mxu0 0.0
  %v2908 = vand.u32 %v66, 4294901760
  %v2909 = vsub.f32 %v66, %v2908
  %v2910 = vand.u32 %v2909, 4294901760
  %v2911 = vsub.f32 %v2909, %v2910
  %v2912 = vand.u32 %v2911, 4294901760
  %2913 = vmatpush1.msra.mxu0 %v2912
  %2914 = vmatprep.subr.mxu0 0.0
  %2915 = vmatpush2.msra.mxu0 0.0
  %2916 = vmatprep.subr.mxu0 0.0
  %2917 = vmatpush2.msra.mxu0 0.0
  %2918 = vmatprep.subr.mxu0 0.0
  %2919 = vmatpush2.msra.mxu0 0.0
  %2920 = vmatprep.subr.mxu0 0.0
  %2921 = vmatpush2.msra.mxu0 0.0
  %2922 = vmatprep.subr.mxu0 0.0
  %2923 = vmatpush2.msra.mxu0 0.0
  %2924 = vmatprep.subr.mxu0 0.0
  %2925 = vmatpush2.msra.mxu0 0.0
  %2926 = vmatprep.subr.mxu0 0.0
  %2927 = vmatpush2.msra.mxu0 0.0
  %2928 = vmatprep.subr.mxu0 0.0
  %2929 = vmatpush2.msra.mxu0 0.0
  %2930 = vmatprep.subr.mxu0 0.0
  %2931 = vmatpush2.msra.mxu0 0.0
  %2932 = vmatprep.subr.mxu0 0.0
  %2933 = vmatpush2.msra.mxu0 0.0
  %2934 = vmatprep.subr.mxu0 0.0
  %2935 = vmatpush2.msra.mxu0 0.0
  %2936 = vmatprep.subr.mxu0 0.0
  %2937 = vmatpush2.msra.mxu0 0.0
  %2938 = vmatprep.subr.mxu0 0.0
  %2939 = vmatpush2.msra.mxu0 0.0
  %2940 = vmatprep.subr.mxu0 0.0
  %2941 = vmatpush2.msra.mxu0 0.0
  %2942 = vmatprep.subr.mxu0 0.0
  %2943 = vmatpush2.msra.mxu0 0.0
  %2944 = vmatprep.subr.mxu0 0.0
  %2945 = vmatpush2.msra.mxu0 0.0
  %2946 = vmatprep.mubr.f32.mxu0 0.0
  %v2947 = vand.u32 %v2300, 4294901760
  %2948 = vmatmul.mubr.f32.gmra.mxu0 %v2947
  %v2949 = vpop.f32.mrf.mxu0
  %v2950 = vadd.f32 %v2489, %v2949
  %v2951 = vpop.f32.mrf.mxu0
  %2952 = vmatprep.mubr.f32.mxu0 0.0
  %v2953 = vand.u32 %v2303, 4294901760
  %2954 = vmatmul.mubr.f32.gmra.mxu0 %v2953
  %v2955 = vpop.f32.mrf.mxu0
  %v2956 = vadd.f32 %v2499, %v2955
  %v2957 = vpop.f32.mrf.mxu0
  %2958 = vmatprep.mubr.f32.mxu0 0.0
  %v2959 = vand.u32 %v2306, 4294901760
  %2960 = vmatmul.mubr.f32.gmra.mxu0 %v2959
  %v2961 = vpop.f32.mrf.mxu0
  %v2962 = vadd.f32 %v2509, %v2961
  %v2963 = vpop.f32.mrf.mxu0
  %2964 = vmatprep.mubr.f32.mxu0 0.0
  %v2965 = vand.u32 %v2309, 4294901760
  %2966 = vmatmul.mubr.f32.gmra.mxu0 %v2965
  %v2967 = vpop.f32.mrf.mxu0
  %v2968 = vadd.f32 %v2519, %v2967
  %v2969 = vpop.f32.mrf.mxu0
  %2970 = vmatprep.mubr.f32.mxu0 0.0
  %v2971 = vand.u32 %v2312, 4294901760
  %2972 = vmatmul.mubr.f32.gmra.mxu0 %v2971
  %v2973 = vpop.f32.mrf.mxu0
  %v2974 = vadd.f32 %v2529, %v2973
  %v2975 = vpop.f32.mrf.mxu0
  %2976 = vmatprep.mubr.f32.mxu0 0.0
  %v2977 = vand.u32 %v2315, 4294901760
  %2978 = vmatmul.mubr.f32.gmra.mxu0 %v2977
  %v2979 = vpop.f32.mrf.mxu0
  %v2980 = vadd.f32 %v2539, %v2979
  %v2981 = vpop.f32.mrf.mxu0
  %2982 = vmatprep.mubr.f32.mxu0 0.0
  %v2983 = vand.u32 %v2318, 4294901760
  %2984 = vmatmul.mubr.f32.gmra.mxu0 %v2983
  %v2985 = vpop.f32.mrf.mxu0
  %v2986 = vadd.f32 %v2549, %v2985
  %v2987 = vpop.f32.mrf.mxu0
  %2988 = vmatprep.mubr.f32.mxu0 0.0
  %v2989 = vand.u32 %v2321, 4294901760
  %2990 = vmatmul.mubr.f32.gmra.mxu0 %v2989
  %v2991 = vpop.f32.mrf.mxu0
  %v2992 = vadd.f32 %v2559, %v2991
  %v2993 = vpop.f32.mrf.mxu0
  %2994 = vmatprep.mubr.f32.mxu0 0.0
  %v2995 = vand.u32 %v2324, 4294901760
  %2996 = vmatmul.mubr.f32.gmra.mxu0 %v2995
  %v2997 = vpop.f32.mrf.mxu0
  %v2998 = vadd.f32 %v2569, %v2997
  %v2999 = vpop.f32.mrf.mxu0
  %3000 = vmatprep.mubr.f32.mxu0 0.0
  %v3001 = vand.u32 %v2327, 4294901760
  %3002 = vmatmul.mubr.f32.gmra.mxu0 %v3001
  %v3003 = vpop.f32.mrf.mxu0
  %v3004 = vadd.f32 %v2579, %v3003
  %v3005 = vpop.f32.mrf.mxu0
  %3006 = vmatprep.mubr.f32.mxu0 0.0
  %v3007 = vand.u32 %v2330, 4294901760
  %3008 = vmatmul.mubr.f32.gmra.mxu0 %v3007
  %v3009 = vpop.f32.mrf.mxu0
  %v3010 = vadd.f32 %v2589, %v3009
  %v3011 = vpop.f32.mrf.mxu0
  %3012 = vmatprep.mubr.f32.mxu0 0.0
  %v3013 = vand.u32 %v2333, 4294901760
  %3014 = vmatmul.mubr.f32.gmra.mxu0 %v3013
  %v3015 = vpop.f32.mrf.mxu0
  %v3016 = vadd.f32 %v2599, %v3015
  %v3017 = vpop.f32.mrf.mxu0
  %3018 = vmatprep.mubr.f32.mxu0 0.0
  %v3019 = vand.u32 %v2336, 4294901760
  %3020 = vmatmul.mubr.f32.gmra.mxu0 %v3019
  %v3021 = vpop.f32.mrf.mxu0
  %v3022 = vadd.f32 %v2609, %v3021
  %v3023 = vpop.f32.mrf.mxu0
  %3024 = vmatprep.mubr.f32.mxu0 0.0
  %v3025 = vand.u32 %v2339, 4294901760
  %3026 = vmatmul.mubr.f32.gmra.mxu0 %v3025
  %v3027 = vpop.f32.mrf.mxu0
  %v3028 = vadd.f32 %v2619, %v3027
  %v3029 = vpop.f32.mrf.mxu0
  %3030 = vmatprep.mubr.f32.mxu0 0.0
  %v3031 = vand.u32 %v2342, 4294901760
  %3032 = vmatmul.mubr.f32.gmra.mxu0 %v3031
  %v3033 = vpop.f32.mrf.mxu0
  %v3034 = vadd.f32 %v2629, %v3033
  %v3035 = vpop.f32.mrf.mxu0
  %3036 = vmatprep.mubr.f32.mxu0 0.0
  %v3037 = vand.u32 %v2345, 4294901760
  %3038 = vmatmul.mubr.f32.gmra.mxu0 %v3037
  %v3039 = vpop.f32.mrf.mxu0
  %v3040 = vadd.f32 %v2639, %v3039
  %v3041 = vpop.f32.mrf.mxu0
  %3042 = vmatprep.mubr.f32.mxu0 0.0
  %v3043 = vand.u32 %v2348, 4294901760
  %3044 = vmatmul.mubr.f32.gmra.mxu0 %v3043
  %v3045 = vpop.f32.mrf.mxu0
  %v3046 = vadd.f32 %v2649, %v3045
  %v3047 = vpop.f32.mrf.mxu0
  %3048 = vmatprep.mubr.f32.mxu0 0.0
  %v3049 = vand.u32 %v2351, 4294901760
  %3050 = vmatmul.mubr.f32.gmra.mxu0 %v3049
  %v3051 = vpop.f32.mrf.mxu0
  %v3052 = vadd.f32 %v2659, %v3051
  %v3053 = vpop.f32.mrf.mxu0
  %3054 = vmatprep.mubr.f32.mxu0 0.0
  %v3055 = vand.u32 %v2354, 4294901760
  %3056 = vmatmul.mubr.f32.gmra.mxu0 %v3055
  %v3057 = vpop.f32.mrf.mxu0
  %v3058 = vadd.f32 %v2669, %v3057
  %v3059 = vpop.f32.mrf.mxu0
  %3060 = vmatprep.mubr.f32.mxu0 0.0
  %v3061 = vand.u32 %v2357, 4294901760
  %3062 = vmatmul.mubr.f32.gmra.mxu0 %v3061
  %v3063 = vpop.f32.mrf.mxu0
  %v3064 = vadd.f32 %v2679, %v3063
  %v3065 = vpop.f32.mrf.mxu0
  %3066 = vmatprep.mubr.f32.mxu0 0.0
  %v3067 = vand.u32 %v2360, 4294901760
  %3068 = vmatmul.mubr.f32.gmra.mxu0 %v3067
  %v3069 = vpop.f32.mrf.mxu0
  %v3070 = vadd.f32 %v2689, %v3069
  %v3071 = vpop.f32.mrf.mxu0
  %3072 = vmatprep.mubr.f32.mxu0 0.0
  %v3073 = vand.u32 %v2363, 4294901760
  %3074 = vmatmul.mubr.f32.gmra.mxu0 %v3073
  %v3075 = vpop.f32.mrf.mxu0
  %v3076 = vadd.f32 %v2699, %v3075
  %v3077 = vpop.f32.mrf.mxu0
  %3078 = vmatprep.mubr.f32.mxu0 0.0
  %v3079 = vand.u32 %v2366, 4294901760
  %3080 = vmatmul.mubr.f32.gmra.mxu0 %v3079
  %v3081 = vpop.f32.mrf.mxu0
  %v3082 = vadd.f32 %v2709, %v3081
  %v3083 = vpop.f32.mrf.mxu0
  %3084 = vmatprep.mubr.f32.mxu0 0.0
  %v3085 = vand.u32 %v2369, 4294901760
  %3086 = vmatmul.mubr.f32.gmra.mxu0 %v3085
  %v3087 = vpop.f32.mrf.mxu0
  %v3088 = vadd.f32 %v2719, %v3087
  %v3089 = vpop.f32.mrf.mxu0
  %3090 = vmatprep.mubr.f32.mxu0 0.0
  %v3091 = vand.u32 %v2372, 4294901760
  %3092 = vmatmul.mubr.f32.gmra.mxu0 %v3091
  %v3093 = vpop.f32.mrf.mxu0
  %v3094 = vadd.f32 %v2729, %v3093
  %v3095 = vpop.f32.mrf.mxu0
  %3096 = vmatprep.mubr.f32.mxu0 0.0
  %v3097 = vand.u32 %v2375, 4294901760
  %3098 = vmatmul.mubr.f32.gmra.mxu0 %v3097
  %v3099 = vpop.f32.mrf.mxu0
  %v3100 = vadd.f32 %v2739, %v3099
  %v3101 = vpop.f32.mrf.mxu0
  %3102 = vmatprep.mubr.f32.mxu0 0.0
  %v3103 = vand.u32 %v2378, 4294901760
  %3104 = vmatmul.mubr.f32.gmra.mxu0 %v3103
  %v3105 = vpop.f32.mrf.mxu0
  %v3106 = vadd.f32 %v2749, %v3105
  %v3107 = vpop.f32.mrf.mxu0
  %3108 = vmatprep.mubr.f32.mxu0 0.0
  %v3109 = vand.u32 %v2381, 4294901760
  %3110 = vmatmul.mubr.f32.gmra.mxu0 %v3109
  %v3111 = vpop.f32.mrf.mxu0
  %v3112 = vadd.f32 %v2759, %v3111
  %v3113 = vpop.f32.mrf.mxu0
  %3114 = vmatprep.mubr.f32.mxu0 0.0
  %v3115 = vand.u32 %v2384, 4294901760
  %3116 = vmatmul.mubr.f32.gmra.mxu0 %v3115
  %v3117 = vpop.f32.mrf.mxu0
  %v3118 = vadd.f32 %v2769, %v3117
  %v3119 = vpop.f32.mrf.mxu0
  %3120 = vmatprep.mubr.f32.mxu0 0.0
  %v3121 = vand.u32 %v2387, 4294901760
  %3122 = vmatmul.mubr.f32.gmra.mxu0 %v3121
  %v3123 = vpop.f32.mrf.mxu0
  %v3124 = vadd.f32 %v2779, %v3123
  %v3125 = vpop.f32.mrf.mxu0
  %3126 = vmatprep.mubr.f32.mxu0 0.0
  %v3127 = vand.u32 %v2390, 4294901760
  %3128 = vmatmul.mubr.f32.gmra.mxu0 %v3127
  %v3129 = vpop.f32.mrf.mxu0
  %v3130 = vadd.f32 %v2789, %v3129
  %v3131 = vpop.f32.mrf.mxu0
  %3132 = vmatprep.mubr.f32.mxu0 0.0
  %v3133 = vand.u32 %v2393, 4294901760
  %3134 = vmatmul.mubr.f32.gmra.mxu0 %v3133
  %v3135 = vpop.f32.mrf.mxu0
  %v3136 = vadd.f32 %v2799, %v3135
  %v3137 = vpop.f32.mrf.mxu0
  %3138 = vmatprep.mubr.f32.mxu0 0.0
  %v3139 = vand.u32 %v2396, 4294901760
  %3140 = vmatmul.mubr.f32.gmra.mxu0 %v3139
  %v3141 = vpop.f32.mrf.mxu0
  %v3142 = vadd.f32 %v2809, %v3141
  %v3143 = vpop.f32.mrf.mxu0
  %3144 = vmatprep.mubr.f32.mxu0 0.0
  %v3145 = vand.u32 %v2399, 4294901760
  %3146 = vmatmul.mubr.f32.gmra.mxu0 %v3145
  %v3147 = vpop.f32.mrf.mxu0
  %v3148 = vadd.f32 %v2819, %v3147
  %v3149 = vpop.f32.mrf.mxu0
  %3150 = vmatprep.mubr.f32.mxu0 0.0
  %v3151 = vand.u32 %v2402, 4294901760
  %3152 = vmatmul.mubr.f32.gmra.mxu0 %v3151
  %v3153 = vpop.f32.mrf.mxu0
  %v3154 = vadd.f32 %v2829, %v3153
  %v3155 = vpop.f32.mrf.mxu0
  %3156 = vmatprep.mubr.f32.mxu0 0.0
  %v3157 = vand.u32 %v2405, 4294901760
  %3158 = vmatmul.mubr.f32.gmra.mxu0 %v3157
  %v3159 = vpop.f32.mrf.mxu0
  %v3160 = vadd.f32 %v2839, %v3159
  %v3161 = vpop.f32.mrf.mxu0
  %3162 = vmatprep.mubr.f32.mxu0 0.0
  %v3163 = vand.u32 %v2408, 4294901760
  %3164 = vmatmul.mubr.f32.gmra.mxu0 %v3163
  %v3165 = vpop.f32.mrf.mxu0
  %v3166 = vadd.f32 %v2849, %v3165
  %v3167 = vpop.f32.mrf.mxu0
  %3168 = vmatprep.mubr.f32.mxu0 0.0
  %v3169 = vand.u32 %v2411, 4294901760
  %3170 = vmatmul.mubr.f32.gmra.mxu0 %v3169
  %v3171 = vpop.f32.mrf.mxu0
  %v3172 = vadd.f32 %v2859, %v3171
  %v3173 = vpop.f32.mrf.mxu0
  %3174 = vdwg.mxu0
  %3175 = vmatprep.subr.mxu0 0.0
  %3176 = vmatpush1.msra.mxu0 0.0
  %3177 = vmatprep.subr.mxu0 0.0
  %3178 = vmatpush1.msra.mxu0 0.0
  %3179 = vmatprep.subr.mxu0 0.0
  %3180 = vmatpush1.msra.mxu0 0.0
  %3181 = vmatprep.subr.mxu0 0.0
  %3182 = vmatpush1.msra.mxu0 0.0
  %3183 = vmatprep.subr.mxu0 0.0
  %3184 = vmatpush1.msra.mxu0 0.0
  %3185 = vmatprep.subr.mxu0 0.0
  %3186 = vmatpush1.msra.mxu0 0.0
  %3187 = vmatprep.subr.mxu0 0.0
  %3188 = vmatpush1.msra.mxu0 0.0
  %3189 = vmatprep.subr.mxu0 0.0
  %3190 = vmatpush1.msra.mxu0 0.0
  %3191 = vmatprep.subr.mxu0 0.0
  %3192 = vmatpush1.msra.mxu0 0.0
  %3193 = vmatprep.subr.mxu0 0.0
  %3194 = vmatpush1.msra.mxu0 0.0
  %3195 = vmatprep.subr.mxu0 0.0
  %3196 = vmatpush1.msra.mxu0 0.0
  %3197 = vmatprep.subr.mxu0 0.0
  %3198 = vmatpush1.msra.mxu0 0.0
  %3199 = vmatprep.subr.mxu0 0.0
  %v3200 = vand.u32 %v69, 4294901760
  %v3201 = vsub.f32 %v69, %v3200
  %3202 = vmatpush1.msra.mxu0 %v3201
  %3203 = vmatprep.subr.mxu0 0.0
  %v3204 = vand.u32 %v68, 4294901760
  %v3205 = vsub.f32 %v68, %v3204
  %3206 = vmatpush1.msra.mxu0 %v3205
  %3207 = vmatprep.subr.mxu0 0.0
  %v3208 = vand.u32 %v67, 4294901760
  %v3209 = vsub.f32 %v67, %v3208
  %3210 = vmatpush1.msra.mxu0 %v3209
  %3211 = vmatprep.subr.mxu0 0.0
  %v3212 = vand.u32 %v66, 4294901760
  %v3213 = vsub.f32 %v66, %v3212
  %3214 = vmatpush1.msra.mxu0 %v3213
  %3215 = vmatprep.subr.mxu0 0.0
  %3216 = vmatpush2.msra.mxu0 0.0
  %3217 = vmatprep.subr.mxu0 0.0
  %3218 = vmatpush2.msra.mxu0 0.0
  %3219 = vmatprep.subr.mxu0 0.0
  %3220 = vmatpush2.msra.mxu0 0.0
  %3221 = vmatprep.subr.mxu0 0.0
  %3222 = vmatpush2.msra.mxu0 0.0
  %3223 = vmatprep.subr.mxu0 0.0
  %3224 = vmatpush2.msra.mxu0 0.0
  %3225 = vmatprep.subr.mxu0 0.0
  %3226 = vmatpush2.msra.mxu0 0.0
  %3227 = vmatprep.subr.mxu0 0.0
  %3228 = vmatpush2.msra.mxu0 0.0
  %3229 = vmatprep.subr.mxu0 0.0
  %3230 = vmatpush2.msra.mxu0 0.0
  %3231 = vmatprep.subr.mxu0 0.0
  %3232 = vmatpush2.msra.mxu0 0.0
  %3233 = vmatprep.subr.mxu0 0.0
  %3234 = vmatpush2.msra.mxu0 0.0
  %3235 = vmatprep.subr.mxu0 0.0
  %3236 = vmatpush2.msra.mxu0 0.0
  %3237 = vmatprep.subr.mxu0 0.0
  %3238 = vmatpush2.msra.mxu0 0.0
  %3239 = vmatprep.subr.mxu0 0.0
  %3240 = vmatpush2.msra.mxu0 0.0
  %3241 = vmatprep.subr.mxu0 0.0
  %3242 = vmatpush2.msra.mxu0 0.0
  %3243 = vmatprep.subr.mxu0 0.0
  %3244 = vmatpush2.msra.mxu0 0.0
  %3245 = vmatprep.subr.mxu0 0.0
  %3246 = vmatpush2.msra.mxu0 0.0
  %3247 = vmatprep.mubr.f32.mxu0 0.0
  %v3248 = vand.u32 %v2300, 4294901760
  %v3249 = vsub.f32 %v2300, %v3248
  %3250 = vmatmul.mubr.f32.gmra.mxu0 %v3249
  %v3251 = vpop.f32.mrf.mxu0
  %v3252 = vadd.f32 %v2950, %v3251
  %v3253 = vpop.f32.mrf.mxu0
  %3254 = vmatprep.mubr.f32.mxu0 0.0
  %v3255 = vand.u32 %v2303, 4294901760
  %v3256 = vsub.f32 %v2303, %v3255
  %3257 = vmatmul.mubr.f32.gmra.mxu0 %v3256
  %v3258 = vpop.f32.mrf.mxu0
  %v3259 = vadd.f32 %v2956, %v3258
  %v3260 = vpop.f32.mrf.mxu0
  %3261 = vmatprep.mubr.f32.mxu0 0.0
  %v3262 = vand.u32 %v2306, 4294901760
  %v3263 = vsub.f32 %v2306, %v3262
  %3264 = vmatmul.mubr.f32.gmra.mxu0 %v3263
  %v3265 = vpop.f32.mrf.mxu0
  %v3266 = vadd.f32 %v2962, %v3265
  %v3267 = vpop.f32.mrf.mxu0
  %3268 = vmatprep.mubr.f32.mxu0 0.0
  %v3269 = vand.u32 %v2309, 4294901760
  %v3270 = vsub.f32 %v2309, %v3269
  %3271 = vmatmul.mubr.f32.gmra.mxu0 %v3270
  %v3272 = vpop.f32.mrf.mxu0
  %v3273 = vadd.f32 %v2968, %v3272
  %v3274 = vpop.f32.mrf.mxu0
  %3275 = vmatprep.mubr.f32.mxu0 0.0
  %v3276 = vand.u32 %v2312, 4294901760
  %v3277 = vsub.f32 %v2312, %v3276
  %3278 = vmatmul.mubr.f32.gmra.mxu0 %v3277
  %v3279 = vpop.f32.mrf.mxu0
  %v3280 = vadd.f32 %v2974, %v3279
  %v3281 = vpop.f32.mrf.mxu0
  %3282 = vmatprep.mubr.f32.mxu0 0.0
  %v3283 = vand.u32 %v2315, 4294901760
  %v3284 = vsub.f32 %v2315, %v3283
  %3285 = vmatmul.mubr.f32.gmra.mxu0 %v3284
  %v3286 = vpop.f32.mrf.mxu0
  %v3287 = vadd.f32 %v2980, %v3286
  %v3288 = vpop.f32.mrf.mxu0
  %3289 = vmatprep.mubr.f32.mxu0 0.0
  %v3290 = vand.u32 %v2318, 4294901760
  %v3291 = vsub.f32 %v2318, %v3290
  %3292 = vmatmul.mubr.f32.gmra.mxu0 %v3291
  %v3293 = vpop.f32.mrf.mxu0
  %v3294 = vadd.f32 %v2986, %v3293
  %v3295 = vpop.f32.mrf.mxu0
  %3296 = vmatprep.mubr.f32.mxu0 0.0
  %v3297 = vand.u32 %v2321, 4294901760
  %v3298 = vsub.f32 %v2321, %v3297
  %3299 = vmatmul.mubr.f32.gmra.mxu0 %v3298
  %v3300 = vpop.f32.mrf.mxu0
  %v3301 = vadd.f32 %v2992, %v3300
  %v3302 = vpop.f32.mrf.mxu0
  %3303 = vmatprep.mubr.f32.mxu0 0.0
  %v3304 = vand.u32 %v2324, 4294901760
  %v3305 = vsub.f32 %v2324, %v3304
  %3306 = vmatmul.mubr.f32.gmra.mxu0 %v3305
  %v3307 = vpop.f32.mrf.mxu0
  %v3308 = vadd.f32 %v2998, %v3307
  %v3309 = vpop.f32.mrf.mxu0
  %3310 = vmatprep.mubr.f32.mxu0 0.0
  %v3311 = vand.u32 %v2327, 4294901760
  %v3312 = vsub.f32 %v2327, %v3311
  %3313 = vmatmul.mubr.f32.gmra.mxu0 %v3312
  %v3314 = vpop.f32.mrf.mxu0
  %v3315 = vadd.f32 %v3004, %v3314
  %v3316 = vpop.f32.mrf.mxu0
  %3317 = vmatprep.mubr.f32.mxu0 0.0
  %v3318 = vand.u32 %v2330, 4294901760
  %v3319 = vsub.f32 %v2330, %v3318
  %3320 = vmatmul.mubr.f32.gmra.mxu0 %v3319
  %v3321 = vpop.f32.mrf.mxu0
  %v3322 = vadd.f32 %v3010, %v3321
  %v3323 = vpop.f32.mrf.mxu0
  %3324 = vmatprep.mubr.f32.mxu0 0.0
  %v3325 = vand.u32 %v2333, 4294901760
  %v3326 = vsub.f32 %v2333, %v3325
  %3327 = vmatmul.mubr.f32.gmra.mxu0 %v3326
  %v3328 = vpop.f32.mrf.mxu0
  %v3329 = vadd.f32 %v3016, %v3328
  %v3330 = vpop.f32.mrf.mxu0
  %3331 = vmatprep.mubr.f32.mxu0 0.0
  %v3332 = vand.u32 %v2336, 4294901760
  %v3333 = vsub.f32 %v2336, %v3332
  %3334 = vmatmul.mubr.f32.gmra.mxu0 %v3333
  %v3335 = vpop.f32.mrf.mxu0
  %v3336 = vadd.f32 %v3022, %v3335
  %v3337 = vpop.f32.mrf.mxu0
  %3338 = vmatprep.mubr.f32.mxu0 0.0
  %v3339 = vand.u32 %v2339, 4294901760
  %v3340 = vsub.f32 %v2339, %v3339
  %3341 = vmatmul.mubr.f32.gmra.mxu0 %v3340
  %v3342 = vpop.f32.mrf.mxu0
  %v3343 = vadd.f32 %v3028, %v3342
  %v3344 = vpop.f32.mrf.mxu0
  %3345 = vmatprep.mubr.f32.mxu0 0.0
  %v3346 = vand.u32 %v2342, 4294901760
  %v3347 = vsub.f32 %v2342, %v3346
  %3348 = vmatmul.mubr.f32.gmra.mxu0 %v3347
  %v3349 = vpop.f32.mrf.mxu0
  %v3350 = vadd.f32 %v3034, %v3349
  %v3351 = vpop.f32.mrf.mxu0
  %3352 = vmatprep.mubr.f32.mxu0 0.0
  %v3353 = vand.u32 %v2345, 4294901760
  %v3354 = vsub.f32 %v2345, %v3353
  %3355 = vmatmul.mubr.f32.gmra.mxu0 %v3354
  %v3356 = vpop.f32.mrf.mxu0
  %v3357 = vadd.f32 %v3040, %v3356
  %v3358 = vpop.f32.mrf.mxu0
  %3359 = vmatprep.mubr.f32.mxu0 0.0
  %v3360 = vand.u32 %v2348, 4294901760
  %v3361 = vsub.f32 %v2348, %v3360
  %3362 = vmatmul.mubr.f32.gmra.mxu0 %v3361
  %v3363 = vpop.f32.mrf.mxu0
  %v3364 = vadd.f32 %v3046, %v3363
  %v3365 = vpop.f32.mrf.mxu0
  %3366 = vmatprep.mubr.f32.mxu0 0.0
  %v3367 = vand.u32 %v2351, 4294901760
  %v3368 = vsub.f32 %v2351, %v3367
  %3369 = vmatmul.mubr.f32.gmra.mxu0 %v3368
  %v3370 = vpop.f32.mrf.mxu0
  %v3371 = vadd.f32 %v3052, %v3370
  %v3372 = vpop.f32.mrf.mxu0
  %3373 = vmatprep.mubr.f32.mxu0 0.0
  %v3374 = vand.u32 %v2354, 4294901760
  %v3375 = vsub.f32 %v2354, %v3374
  %3376 = vmatmul.mubr.f32.gmra.mxu0 %v3375
  %v3377 = vpop.f32.mrf.mxu0
  %v3378 = vadd.f32 %v3058, %v3377
  %v3379 = vpop.f32.mrf.mxu0
  %3380 = vmatprep.mubr.f32.mxu0 0.0
  %v3381 = vand.u32 %v2357, 4294901760
  %v3382 = vsub.f32 %v2357, %v3381
  %3383 = vmatmul.mubr.f32.gmra.mxu0 %v3382
  %v3384 = vpop.f32.mrf.mxu0
  %v3385 = vadd.f32 %v3064, %v3384
  %v3386 = vpop.f32.mrf.mxu0
  %3387 = vmatprep.mubr.f32.mxu0 0.0
  %v3388 = vand.u32 %v2360, 4294901760
  %v3389 = vsub.f32 %v2360, %v3388
  %3390 = vmatmul.mubr.f32.gmra.mxu0 %v3389
  %v3391 = vpop.f32.mrf.mxu0
  %v3392 = vadd.f32 %v3070, %v3391
  %v3393 = vpop.f32.mrf.mxu0
  %3394 = vmatprep.mubr.f32.mxu0 0.0
  %v3395 = vand.u32 %v2363, 4294901760
  %v3396 = vsub.f32 %v2363, %v3395
  %3397 = vmatmul.mubr.f32.gmra.mxu0 %v3396
  %v3398 = vpop.f32.mrf.mxu0
  %v3399 = vadd.f32 %v3076, %v3398
  %v3400 = vpop.f32.mrf.mxu0
  %3401 = vmatprep.mubr.f32.mxu0 0.0
  %v3402 = vand.u32 %v2366, 4294901760
  %v3403 = vsub.f32 %v2366, %v3402
  %3404 = vmatmul.mubr.f32.gmra.mxu0 %v3403
  %v3405 = vpop.f32.mrf.mxu0
  %v3406 = vadd.f32 %v3082, %v3405
  %v3407 = vpop.f32.mrf.mxu0
  %3408 = vmatprep.mubr.f32.mxu0 0.0
  %v3409 = vand.u32 %v2369, 4294901760
  %v3410 = vsub.f32 %v2369, %v3409
  %3411 = vmatmul.mubr.f32.gmra.mxu0 %v3410
  %v3412 = vpop.f32.mrf.mxu0
  %v3413 = vadd.f32 %v3088, %v3412
  %v3414 = vpop.f32.mrf.mxu0
  %3415 = vmatprep.mubr.f32.mxu0 0.0
  %v3416 = vand.u32 %v2372, 4294901760
  %v3417 = vsub.f32 %v2372, %v3416
  %3418 = vmatmul.mubr.f32.gmra.mxu0 %v3417
  %v3419 = vpop.f32.mrf.mxu0
  %v3420 = vadd.f32 %v3094, %v3419
  %v3421 = vpop.f32.mrf.mxu0
  %3422 = vmatprep.mubr.f32.mxu0 0.0
  %v3423 = vand.u32 %v2375, 4294901760
  %v3424 = vsub.f32 %v2375, %v3423
  %3425 = vmatmul.mubr.f32.gmra.mxu0 %v3424
  %v3426 = vpop.f32.mrf.mxu0
  %v3427 = vadd.f32 %v3100, %v3426
  %v3428 = vpop.f32.mrf.mxu0
  %3429 = vmatprep.mubr.f32.mxu0 0.0
  %v3430 = vand.u32 %v2378, 4294901760
  %v3431 = vsub.f32 %v2378, %v3430
  %3432 = vmatmul.mubr.f32.gmra.mxu0 %v3431
  %v3433 = vpop.f32.mrf.mxu0
  %v3434 = vadd.f32 %v3106, %v3433
  %v3435 = vpop.f32.mrf.mxu0
  %3436 = vmatprep.mubr.f32.mxu0 0.0
  %v3437 = vand.u32 %v2381, 4294901760
  %v3438 = vsub.f32 %v2381, %v3437
  %3439 = vmatmul.mubr.f32.gmra.mxu0 %v3438
  %v3440 = vpop.f32.mrf.mxu0
  %v3441 = vadd.f32 %v3112, %v3440
  %v3442 = vpop.f32.mrf.mxu0
  %3443 = vmatprep.mubr.f32.mxu0 0.0
  %v3444 = vand.u32 %v2384, 4294901760
  %v3445 = vsub.f32 %v2384, %v3444
  %3446 = vmatmul.mubr.f32.gmra.mxu0 %v3445
  %v3447 = vpop.f32.mrf.mxu0
  %v3448 = vadd.f32 %v3118, %v3447
  %v3449 = vpop.f32.mrf.mxu0
  %3450 = vmatprep.mubr.f32.mxu0 0.0
  %v3451 = vand.u32 %v2387, 4294901760
  %v3452 = vsub.f32 %v2387, %v3451
  %3453 = vmatmul.mubr.f32.gmra.mxu0 %v3452
  %v3454 = vpop.f32.mrf.mxu0
  %v3455 = vadd.f32 %v3124, %v3454
  %v3456 = vpop.f32.mrf.mxu0
  %3457 = vmatprep.mubr.f32.mxu0 0.0
  %v3458 = vand.u32 %v2390, 4294901760
  %v3459 = vsub.f32 %v2390, %v3458
  %3460 = vmatmul.mubr.f32.gmra.mxu0 %v3459
  %v3461 = vpop.f32.mrf.mxu0
  %v3462 = vadd.f32 %v3130, %v3461
  %v3463 = vpop.f32.mrf.mxu0
  %3464 = vmatprep.mubr.f32.mxu0 0.0
  %v3465 = vand.u32 %v2393, 4294901760
  %v3466 = vsub.f32 %v2393, %v3465
  %3467 = vmatmul.mubr.f32.gmra.mxu0 %v3466
  %v3468 = vpop.f32.mrf.mxu0
  %v3469 = vadd.f32 %v3136, %v3468
  %v3470 = vpop.f32.mrf.mxu0
  %3471 = vmatprep.mubr.f32.mxu0 0.0
  %v3472 = vand.u32 %v2396, 4294901760
  %v3473 = vsub.f32 %v2396, %v3472
  %3474 = vmatmul.mubr.f32.gmra.mxu0 %v3473
  %v3475 = vpop.f32.mrf.mxu0
  %v3476 = vadd.f32 %v3142, %v3475
  %v3477 = vpop.f32.mrf.mxu0
  %3478 = vmatprep.mubr.f32.mxu0 0.0
  %v3479 = vand.u32 %v2399, 4294901760
  %v3480 = vsub.f32 %v2399, %v3479
  %3481 = vmatmul.mubr.f32.gmra.mxu0 %v3480
  %v3482 = vpop.f32.mrf.mxu0
  %v3483 = vadd.f32 %v3148, %v3482
  %v3484 = vpop.f32.mrf.mxu0
  %3485 = vmatprep.mubr.f32.mxu0 0.0
  %v3486 = vand.u32 %v2402, 4294901760
  %v3487 = vsub.f32 %v2402, %v3486
  %3488 = vmatmul.mubr.f32.gmra.mxu0 %v3487
  %v3489 = vpop.f32.mrf.mxu0
  %v3490 = vadd.f32 %v3154, %v3489
  %v3491 = vpop.f32.mrf.mxu0
  %3492 = vmatprep.mubr.f32.mxu0 0.0
  %v3493 = vand.u32 %v2405, 4294901760
  %v3494 = vsub.f32 %v2405, %v3493
  %3495 = vmatmul.mubr.f32.gmra.mxu0 %v3494
  %v3496 = vpop.f32.mrf.mxu0
  %v3497 = vadd.f32 %v3160, %v3496
  %v3498 = vpop.f32.mrf.mxu0
  %3499 = vmatprep.mubr.f32.mxu0 0.0
  %v3500 = vand.u32 %v2408, 4294901760
  %v3501 = vsub.f32 %v2408, %v3500
  %3502 = vmatmul.mubr.f32.gmra.mxu0 %v3501
  %v3503 = vpop.f32.mrf.mxu0
  %v3504 = vadd.f32 %v3166, %v3503
  %v3505 = vpop.f32.mrf.mxu0
  %3506 = vmatprep.mubr.f32.mxu0 0.0
  %v3507 = vand.u32 %v2411, 4294901760
  %v3508 = vsub.f32 %v2411, %v3507
  %3509 = vmatmul.mubr.f32.gmra.mxu0 %v3508
  %v3510 = vpop.f32.mrf.mxu0
  %v3511 = vadd.f32 %v3172, %v3510
  %v3512 = vpop.f32.mrf.mxu0
  %3513 = vdwg.mxu0
  %3514 = vmatprep.subr.mxu0 0.0
  %3515 = vmatpush1.msra.mxu0 0.0
  %3516 = vmatprep.subr.mxu0 0.0
  %3517 = vmatpush1.msra.mxu0 0.0
  %3518 = vmatprep.subr.mxu0 0.0
  %3519 = vmatpush1.msra.mxu0 0.0
  %3520 = vmatprep.subr.mxu0 0.0
  %3521 = vmatpush1.msra.mxu0 0.0
  %3522 = vmatprep.subr.mxu0 0.0
  %3523 = vmatpush1.msra.mxu0 0.0
  %3524 = vmatprep.subr.mxu0 0.0
  %3525 = vmatpush1.msra.mxu0 0.0
  %3526 = vmatprep.subr.mxu0 0.0
  %3527 = vmatpush1.msra.mxu0 0.0
  %3528 = vmatprep.subr.mxu0 0.0
  %3529 = vmatpush1.msra.mxu0 0.0
  %3530 = vmatprep.subr.mxu0 0.0
  %3531 = vmatpush1.msra.mxu0 0.0
  %3532 = vmatprep.subr.mxu0 0.0
  %3533 = vmatpush1.msra.mxu0 0.0
  %3534 = vmatprep.subr.mxu0 0.0
  %3535 = vmatpush1.msra.mxu0 0.0
  %3536 = vmatprep.subr.mxu0 0.0
  %3537 = vmatpush1.msra.mxu0 0.0
  %3538 = vmatprep.subr.mxu0 0.0
  %v3539 = vand.u32 %v69, 4294901760
  %3540 = vmatpush1.msra.mxu0 %v3539
  %3541 = vmatprep.subr.mxu0 0.0
  %v3542 = vand.u32 %v68, 4294901760
  %3543 = vmatpush1.msra.mxu0 %v3542
  %3544 = vmatprep.subr.mxu0 0.0
  %v3545 = vand.u32 %v67, 4294901760
  %3546 = vmatpush1.msra.mxu0 %v3545
  %3547 = vmatprep.subr.mxu0 0.0
  %v3548 = vand.u32 %v66, 4294901760
  %3549 = vmatpush1.msra.mxu0 %v3548
  %3550 = vmatprep.subr.mxu0 0.0
  %3551 = vmatpush2.msra.mxu0 0.0
  %3552 = vmatprep.subr.mxu0 0.0
  %3553 = vmatpush2.msra.mxu0 0.0
  %3554 = vmatprep.subr.mxu0 0.0
  %3555 = vmatpush2.msra.mxu0 0.0
  %3556 = vmatprep.subr.mxu0 0.0
  %3557 = vmatpush2.msra.mxu0 0.0
  %3558 = vmatprep.subr.mxu0 0.0
  %3559 = vmatpush2.msra.mxu0 0.0
  %3560 = vmatprep.subr.mxu0 0.0
  %3561 = vmatpush2.msra.mxu0 0.0
  %3562 = vmatprep.subr.mxu0 0.0
  %3563 = vmatpush2.msra.mxu0 0.0
  %3564 = vmatprep.subr.mxu0 0.0
  %3565 = vmatpush2.msra.mxu0 0.0
  %3566 = vmatprep.subr.mxu0 0.0
  %3567 = vmatpush2.msra.mxu0 0.0
  %3568 = vmatprep.subr.mxu0 0.0
  %3569 = vmatpush2.msra.mxu0 0.0
  %3570 = vmatprep.subr.mxu0 0.0
  %3571 = vmatpush2.msra.mxu0 0.0
  %3572 = vmatprep.subr.mxu0 0.0
  %3573 = vmatpush2.msra.mxu0 0.0
  %3574 = vmatprep.subr.mxu0 0.0
  %3575 = vmatpush2.msra.mxu0 0.0
  %3576 = vmatprep.subr.mxu0 0.0
  %3577 = vmatpush2.msra.mxu0 0.0
  %3578 = vmatprep.subr.mxu0 0.0
  %3579 = vmatpush2.msra.mxu0 0.0
  %3580 = vmatprep.subr.mxu0 0.0
  %3581 = vmatpush2.msra.mxu0 0.0
  %3582 = vmatprep.mubr.f32.mxu0 0.0
  %v3583 = vand.u32 %v2300, 4294901760
  %v3584 = vsub.f32 %v2300, %v3583
  %v3585 = vand.u32 %v3584, 4294901760
  %3586 = vmatmul.mubr.f32.gmra.mxu0 %v3585
  %v3587 = vpop.f32.mrf.mxu0
  %v3588 = vadd.f32 %v3252, %v3587
  %v3589 = vpop.f32.mrf.mxu0
  %3590 = vmatprep.mubr.f32.mxu0 0.0
  %v3591 = vand.u32 %v2303, 4294901760
  %v3592 = vsub.f32 %v2303, %v3591
  %v3593 = vand.u32 %v3592, 4294901760
  %3594 = vmatmul.mubr.f32.gmra.mxu0 %v3593
  %v3595 = vpop.f32.mrf.mxu0
  %v3596 = vadd.f32 %v3259, %v3595
  %v3597 = vpop.f32.mrf.mxu0
  %3598 = vmatprep.mubr.f32.mxu0 0.0
  %v3599 = vand.u32 %v2306, 4294901760
  %v3600 = vsub.f32 %v2306, %v3599
  %v3601 = vand.u32 %v3600, 4294901760
  %3602 = vmatmul.mubr.f32.gmra.mxu0 %v3601
  %v3603 = vpop.f32.mrf.mxu0
  %v3604 = vadd.f32 %v3266, %v3603
  %v3605 = vpop.f32.mrf.mxu0
  %3606 = vmatprep.mubr.f32.mxu0 0.0
  %v3607 = vand.u32 %v2309, 4294901760
  %v3608 = vsub.f32 %v2309, %v3607
  %v3609 = vand.u32 %v3608, 4294901760
  %3610 = vmatmul.mubr.f32.gmra.mxu0 %v3609
  %v3611 = vpop.f32.mrf.mxu0
  %v3612 = vadd.f32 %v3273, %v3611
  %v3613 = vpop.f32.mrf.mxu0
  %3614 = vmatprep.mubr.f32.mxu0 0.0
  %v3615 = vand.u32 %v2312, 4294901760
  %v3616 = vsub.f32 %v2312, %v3615
  %v3617 = vand.u32 %v3616, 4294901760
  %3618 = vmatmul.mubr.f32.gmra.mxu0 %v3617
  %v3619 = vpop.f32.mrf.mxu0
  %v3620 = vadd.f32 %v3280, %v3619
  %v3621 = vpop.f32.mrf.mxu0
  %3622 = vmatprep.mubr.f32.mxu0 0.0
  %v3623 = vand.u32 %v2315, 4294901760
  %v3624 = vsub.f32 %v2315, %v3623
  %v3625 = vand.u32 %v3624, 4294901760
  %3626 = vmatmul.mubr.f32.gmra.mxu0 %v3625
  %v3627 = vpop.f32.mrf.mxu0
  %v3628 = vadd.f32 %v3287, %v3627
  %v3629 = vpop.f32.mrf.mxu0
  %3630 = vmatprep.mubr.f32.mxu0 0.0
  %v3631 = vand.u32 %v2318, 4294901760
  %v3632 = vsub.f32 %v2318, %v3631
  %v3633 = vand.u32 %v3632, 4294901760
  %3634 = vmatmul.mubr.f32.gmra.mxu0 %v3633
  %v3635 = vpop.f32.mrf.mxu0
  %v3636 = vadd.f32 %v3294, %v3635
  %v3637 = vpop.f32.mrf.mxu0
  %3638 = vmatprep.mubr.f32.mxu0 0.0
  %v3639 = vand.u32 %v2321, 4294901760
  %v3640 = vsub.f32 %v2321, %v3639
  %v3641 = vand.u32 %v3640, 4294901760
  %3642 = vmatmul.mubr.f32.gmra.mxu0 %v3641
  %v3643 = vpop.f32.mrf.mxu0
  %v3644 = vadd.f32 %v3301, %v3643
  %v3645 = vpop.f32.mrf.mxu0
  %3646 = vmatprep.mubr.f32.mxu0 0.0
  %v3647 = vand.u32 %v2324, 4294901760
  %v3648 = vsub.f32 %v2324, %v3647
  %v3649 = vand.u32 %v3648, 4294901760
  %3650 = vmatmul.mubr.f32.gmra.mxu0 %v3649
  %v3651 = vpop.f32.mrf.mxu0
  %v3652 = vadd.f32 %v3308, %v3651
  %v3653 = vpop.f32.mrf.mxu0
  %3654 = vmatprep.mubr.f32.mxu0 0.0
  %v3655 = vand.u32 %v2327, 4294901760
  %v3656 = vsub.f32 %v2327, %v3655
  %v3657 = vand.u32 %v3656, 4294901760
  %3658 = vmatmul.mubr.f32.gmra.mxu0 %v3657
  %v3659 = vpop.f32.mrf.mxu0
  %v3660 = vadd.f32 %v3315, %v3659
  %v3661 = vpop.f32.mrf.mxu0
  %3662 = vmatprep.mubr.f32.mxu0 0.0
  %v3663 = vand.u32 %v2330, 4294901760
  %v3664 = vsub.f32 %v2330, %v3663
  %v3665 = vand.u32 %v3664, 4294901760
  %3666 = vmatmul.mubr.f32.gmra.mxu0 %v3665
  %v3667 = vpop.f32.mrf.mxu0
  %v3668 = vadd.f32 %v3322, %v3667
  %v3669 = vpop.f32.mrf.mxu0
  %3670 = vmatprep.mubr.f32.mxu0 0.0
  %v3671 = vand.u32 %v2333, 4294901760
  %v3672 = vsub.f32 %v2333, %v3671
  %v3673 = vand.u32 %v3672, 4294901760
  %3674 = vmatmul.mubr.f32.gmra.mxu0 %v3673
  %v3675 = vpop.f32.mrf.mxu0
  %v3676 = vadd.f32 %v3329, %v3675
  %v3677 = vpop.f32.mrf.mxu0
  %3678 = vmatprep.mubr.f32.mxu0 0.0
  %v3679 = vand.u32 %v2336, 4294901760
  %v3680 = vsub.f32 %v2336, %v3679
  %v3681 = vand.u32 %v3680, 4294901760
  %3682 = vmatmul.mubr.f32.gmra.mxu0 %v3681
  %v3683 = vpop.f32.mrf.mxu0
  %v3684 = vadd.f32 %v3336, %v3683
  %v3685 = vpop.f32.mrf.mxu0
  %3686 = vmatprep.mubr.f32.mxu0 0.0
  %v3687 = vand.u32 %v2339, 4294901760
  %v3688 = vsub.f32 %v2339, %v3687
  %v3689 = vand.u32 %v3688, 4294901760
  %3690 = vmatmul.mubr.f32.gmra.mxu0 %v3689
  %v3691 = vpop.f32.mrf.mxu0
  %v3692 = vadd.f32 %v3343, %v3691
  %v3693 = vpop.f32.mrf.mxu0
  %3694 = vmatprep.mubr.f32.mxu0 0.0
  %v3695 = vand.u32 %v2342, 4294901760
  %v3696 = vsub.f32 %v2342, %v3695
  %v3697 = vand.u32 %v3696, 4294901760
  %3698 = vmatmul.mubr.f32.gmra.mxu0 %v3697
  %v3699 = vpop.f32.mrf.mxu0
  %v3700 = vadd.f32 %v3350, %v3699
  %v3701 = vpop.f32.mrf.mxu0
  %3702 = vmatprep.mubr.f32.mxu0 0.0
  %v3703 = vand.u32 %v2345, 4294901760
  %v3704 = vsub.f32 %v2345, %v3703
  %v3705 = vand.u32 %v3704, 4294901760
  %3706 = vmatmul.mubr.f32.gmra.mxu0 %v3705
  %v3707 = vpop.f32.mrf.mxu0
  %v3708 = vadd.f32 %v3357, %v3707
  %v3709 = vpop.f32.mrf.mxu0
  %3710 = vmatprep.mubr.f32.mxu0 0.0
  %v3711 = vand.u32 %v2348, 4294901760
  %v3712 = vsub.f32 %v2348, %v3711
  %v3713 = vand.u32 %v3712, 4294901760
  %3714 = vmatmul.mubr.f32.gmra.mxu0 %v3713
  %v3715 = vpop.f32.mrf.mxu0
  %v3716 = vadd.f32 %v3364, %v3715
  %v3717 = vpop.f32.mrf.mxu0
  %3718 = vmatprep.mubr.f32.mxu0 0.0
  %v3719 = vand.u32 %v2351, 4294901760
  %v3720 = vsub.f32 %v2351, %v3719
  %v3721 = vand.u32 %v3720, 4294901760
  %3722 = vmatmul.mubr.f32.gmra.mxu0 %v3721
  %v3723 = vpop.f32.mrf.mxu0
  %v3724 = vadd.f32 %v3371, %v3723
  %v3725 = vpop.f32.mrf.mxu0
  %3726 = vmatprep.mubr.f32.mxu0 0.0
  %v3727 = vand.u32 %v2354, 4294901760
  %v3728 = vsub.f32 %v2354, %v3727
  %v3729 = vand.u32 %v3728, 4294901760
  %3730 = vmatmul.mubr.f32.gmra.mxu0 %v3729
  %v3731 = vpop.f32.mrf.mxu0
  %v3732 = vadd.f32 %v3378, %v3731
  %v3733 = vpop.f32.mrf.mxu0
  %3734 = vmatprep.mubr.f32.mxu0 0.0
  %v3735 = vand.u32 %v2357, 4294901760
  %v3736 = vsub.f32 %v2357, %v3735
  %v3737 = vand.u32 %v3736, 4294901760
  %3738 = vmatmul.mubr.f32.gmra.mxu0 %v3737
  %v3739 = vpop.f32.mrf.mxu0
  %v3740 = vadd.f32 %v3385, %v3739
  %v3741 = vpop.f32.mrf.mxu0
  %3742 = vmatprep.mubr.f32.mxu0 0.0
  %v3743 = vand.u32 %v2360, 4294901760
  %v3744 = vsub.f32 %v2360, %v3743
  %v3745 = vand.u32 %v3744, 4294901760
  %3746 = vmatmul.mubr.f32.gmra.mxu0 %v3745
  %v3747 = vpop.f32.mrf.mxu0
  %v3748 = vadd.f32 %v3392, %v3747
  %v3749 = vpop.f32.mrf.mxu0
  %3750 = vmatprep.mubr.f32.mxu0 0.0
  %v3751 = vand.u32 %v2363, 4294901760
  %v3752 = vsub.f32 %v2363, %v3751
  %v3753 = vand.u32 %v3752, 4294901760
  %3754 = vmatmul.mubr.f32.gmra.mxu0 %v3753
  %v3755 = vpop.f32.mrf.mxu0
  %v3756 = vadd.f32 %v3399, %v3755
  %v3757 = vpop.f32.mrf.mxu0
  %3758 = vmatprep.mubr.f32.mxu0 0.0
  %v3759 = vand.u32 %v2366, 4294901760
  %v3760 = vsub.f32 %v2366, %v3759
  %v3761 = vand.u32 %v3760, 4294901760
  %3762 = vmatmul.mubr.f32.gmra.mxu0 %v3761
  %v3763 = vpop.f32.mrf.mxu0
  %v3764 = vadd.f32 %v3406, %v3763
  %v3765 = vpop.f32.mrf.mxu0
  %3766 = vmatprep.mubr.f32.mxu0 0.0
  %v3767 = vand.u32 %v2369, 4294901760
  %v3768 = vsub.f32 %v2369, %v3767
  %v3769 = vand.u32 %v3768, 4294901760
  %3770 = vmatmul.mubr.f32.gmra.mxu0 %v3769
  %v3771 = vpop.f32.mrf.mxu0
  %v3772 = vadd.f32 %v3413, %v3771
  %v3773 = vpop.f32.mrf.mxu0
  %3774 = vmatprep.mubr.f32.mxu0 0.0
  %v3775 = vand.u32 %v2372, 4294901760
  %v3776 = vsub.f32 %v2372, %v3775
  %v3777 = vand.u32 %v3776, 4294901760
  %3778 = vmatmul.mubr.f32.gmra.mxu0 %v3777
  %v3779 = vpop.f32.mrf.mxu0
  %v3780 = vadd.f32 %v3420, %v3779
  %v3781 = vpop.f32.mrf.mxu0
  %3782 = vmatprep.mubr.f32.mxu0 0.0
  %v3783 = vand.u32 %v2375, 4294901760
  %v3784 = vsub.f32 %v2375, %v3783
  %v3785 = vand.u32 %v3784, 4294901760
  %3786 = vmatmul.mubr.f32.gmra.mxu0 %v3785
  %v3787 = vpop.f32.mrf.mxu0
  %v3788 = vadd.f32 %v3427, %v3787
  %v3789 = vpop.f32.mrf.mxu0
  %3790 = vmatprep.mubr.f32.mxu0 0.0
  %v3791 = vand.u32 %v2378, 4294901760
  %v3792 = vsub.f32 %v2378, %v3791
  %v3793 = vand.u32 %v3792, 4294901760
  %3794 = vmatmul.mubr.f32.gmra.mxu0 %v3793
  %v3795 = vpop.f32.mrf.mxu0
  %v3796 = vadd.f32 %v3434, %v3795
  %v3797 = vpop.f32.mrf.mxu0
  %3798 = vmatprep.mubr.f32.mxu0 0.0
  %v3799 = vand.u32 %v2381, 4294901760
  %v3800 = vsub.f32 %v2381, %v3799
  %v3801 = vand.u32 %v3800, 4294901760
  %3802 = vmatmul.mubr.f32.gmra.mxu0 %v3801
  %v3803 = vpop.f32.mrf.mxu0
  %v3804 = vadd.f32 %v3441, %v3803
  %v3805 = vpop.f32.mrf.mxu0
  %3806 = vmatprep.mubr.f32.mxu0 0.0
  %v3807 = vand.u32 %v2384, 4294901760
  %v3808 = vsub.f32 %v2384, %v3807
  %v3809 = vand.u32 %v3808, 4294901760
  %3810 = vmatmul.mubr.f32.gmra.mxu0 %v3809
  %v3811 = vpop.f32.mrf.mxu0
  %v3812 = vadd.f32 %v3448, %v3811
  %v3813 = vpop.f32.mrf.mxu0
  %3814 = vmatprep.mubr.f32.mxu0 0.0
  %v3815 = vand.u32 %v2387, 4294901760
  %v3816 = vsub.f32 %v2387, %v3815
  %v3817 = vand.u32 %v3816, 4294901760
  %3818 = vmatmul.mubr.f32.gmra.mxu0 %v3817
  %v3819 = vpop.f32.mrf.mxu0
  %v3820 = vadd.f32 %v3455, %v3819
  %v3821 = vpop.f32.mrf.mxu0
  %3822 = vmatprep.mubr.f32.mxu0 0.0
  %v3823 = vand.u32 %v2390, 4294901760
  %v3824 = vsub.f32 %v2390, %v3823
  %v3825 = vand.u32 %v3824, 4294901760
  %3826 = vmatmul.mubr.f32.gmra.mxu0 %v3825
  %v3827 = vpop.f32.mrf.mxu0
  %v3828 = vadd.f32 %v3462, %v3827
  %v3829 = vpop.f32.mrf.mxu0
  %3830 = vmatprep.mubr.f32.mxu0 0.0
  %v3831 = vand.u32 %v2393, 4294901760
  %v3832 = vsub.f32 %v2393, %v3831
  %v3833 = vand.u32 %v3832, 4294901760
  %3834 = vmatmul.mubr.f32.gmra.mxu0 %v3833
  %v3835 = vpop.f32.mrf.mxu0
  %v3836 = vadd.f32 %v3469, %v3835
  %v3837 = vpop.f32.mrf.mxu0
  %3838 = vmatprep.mubr.f32.mxu0 0.0
  %v3839 = vand.u32 %v2396, 4294901760
  %v3840 = vsub.f32 %v2396, %v3839
  %v3841 = vand.u32 %v3840, 4294901760
  %3842 = vmatmul.mubr.f32.gmra.mxu0 %v3841
  %v3843 = vpop.f32.mrf.mxu0
  %v3844 = vadd.f32 %v3476, %v3843
  %v3845 = vpop.f32.mrf.mxu0
  %3846 = vmatprep.mubr.f32.mxu0 0.0
  %v3847 = vand.u32 %v2399, 4294901760
  %v3848 = vsub.f32 %v2399, %v3847
  %v3849 = vand.u32 %v3848, 4294901760
  %3850 = vmatmul.mubr.f32.gmra.mxu0 %v3849
  %v3851 = vpop.f32.mrf.mxu0
  %v3852 = vadd.f32 %v3483, %v3851
  %v3853 = vpop.f32.mrf.mxu0
  %3854 = vmatprep.mubr.f32.mxu0 0.0
  %v3855 = vand.u32 %v2402, 4294901760
  %v3856 = vsub.f32 %v2402, %v3855
  %v3857 = vand.u32 %v3856, 4294901760
  %3858 = vmatmul.mubr.f32.gmra.mxu0 %v3857
  %v3859 = vpop.f32.mrf.mxu0
  %v3860 = vadd.f32 %v3490, %v3859
  %v3861 = vpop.f32.mrf.mxu0
  %3862 = vmatprep.mubr.f32.mxu0 0.0
  %v3863 = vand.u32 %v2405, 4294901760
  %v3864 = vsub.f32 %v2405, %v3863
  %v3865 = vand.u32 %v3864, 4294901760
  %3866 = vmatmul.mubr.f32.gmra.mxu0 %v3865
  %v3867 = vpop.f32.mrf.mxu0
  %v3868 = vadd.f32 %v3497, %v3867
  %v3869 = vpop.f32.mrf.mxu0
  %3870 = vmatprep.mubr.f32.mxu0 0.0
  %v3871 = vand.u32 %v2408, 4294901760
  %v3872 = vsub.f32 %v2408, %v3871
  %v3873 = vand.u32 %v3872, 4294901760
  %3874 = vmatmul.mubr.f32.gmra.mxu0 %v3873
  %v3875 = vpop.f32.mrf.mxu0
  %v3876 = vadd.f32 %v3504, %v3875
  %v3877 = vpop.f32.mrf.mxu0
  %3878 = vmatprep.mubr.f32.mxu0 0.0
  %v3879 = vand.u32 %v2411, 4294901760
  %v3880 = vsub.f32 %v2411, %v3879
  %v3881 = vand.u32 %v3880, 4294901760
  %3882 = vmatmul.mubr.f32.gmra.mxu0 %v3881
  %v3883 = vpop.f32.mrf.mxu0
  %v3884 = vadd.f32 %v3511, %v3883
  %v3885 = vpop.f32.mrf.mxu0
  %3886 = vdwg.mxu0
  %3887 = vmatprep.subr.mxu0 0.0
  %3888 = vmatpush1.msra.mxu0 0.0
  %3889 = vmatprep.subr.mxu0 0.0
  %3890 = vmatpush1.msra.mxu0 0.0
  %3891 = vmatprep.subr.mxu0 0.0
  %3892 = vmatpush1.msra.mxu0 0.0
  %3893 = vmatprep.subr.mxu0 0.0
  %3894 = vmatpush1.msra.mxu0 0.0
  %3895 = vmatprep.subr.mxu0 0.0
  %3896 = vmatpush1.msra.mxu0 0.0
  %3897 = vmatprep.subr.mxu0 0.0
  %3898 = vmatpush1.msra.mxu0 0.0
  %3899 = vmatprep.subr.mxu0 0.0
  %3900 = vmatpush1.msra.mxu0 0.0
  %3901 = vmatprep.subr.mxu0 0.0
  %3902 = vmatpush1.msra.mxu0 0.0
  %3903 = vmatprep.subr.mxu0 0.0
  %3904 = vmatpush1.msra.mxu0 0.0
  %3905 = vmatprep.subr.mxu0 0.0
  %3906 = vmatpush1.msra.mxu0 0.0
  %3907 = vmatprep.subr.mxu0 0.0
  %3908 = vmatpush1.msra.mxu0 0.0
  %3909 = vmatprep.subr.mxu0 0.0
  %3910 = vmatpush1.msra.mxu0 0.0
  %3911 = vmatprep.subr.mxu0 0.0
  %v3912 = vand.u32 %v69, 4294901760
  %v3913 = vsub.f32 %v69, %v3912
  %v3914 = vand.u32 %v3913, 4294901760
  %3915 = vmatpush1.msra.mxu0 %v3914
  %3916 = vmatprep.subr.mxu0 0.0
  %v3917 = vand.u32 %v68, 4294901760
  %v3918 = vsub.f32 %v68, %v3917
  %v3919 = vand.u32 %v3918, 4294901760
  %3920 = vmatpush1.msra.mxu0 %v3919
  %3921 = vmatprep.subr.mxu0 0.0
  %v3922 = vand.u32 %v67, 4294901760
  %v3923 = vsub.f32 %v67, %v3922
  %v3924 = vand.u32 %v3923, 4294901760
  %3925 = vmatpush1.msra.mxu0 %v3924
  %3926 = vmatprep.subr.mxu0 0.0
  %v3927 = vand.u32 %v66, 4294901760
  %v3928 = vsub.f32 %v66, %v3927
  %v3929 = vand.u32 %v3928, 4294901760
  %3930 = vmatpush1.msra.mxu0 %v3929
  %3931 = vmatprep.subr.mxu0 0.0
  %3932 = vmatpush2.msra.mxu0 0.0
  %3933 = vmatprep.subr.mxu0 0.0
  %3934 = vmatpush2.msra.mxu0 0.0
  %3935 = vmatprep.subr.mxu0 0.0
  %3936 = vmatpush2.msra.mxu0 0.0
  %3937 = vmatprep.subr.mxu0 0.0
  %3938 = vmatpush2.msra.mxu0 0.0
  %3939 = vmatprep.subr.mxu0 0.0
  %3940 = vmatpush2.msra.mxu0 0.0
  %3941 = vmatprep.subr.mxu0 0.0
  %3942 = vmatpush2.msra.mxu0 0.0
  %3943 = vmatprep.subr.mxu0 0.0
  %3944 = vmatpush2.msra.mxu0 0.0
  %3945 = vmatprep.subr.mxu0 0.0
  %3946 = vmatpush2.msra.mxu0 0.0
  %3947 = vmatprep.subr.mxu0 0.0
  %3948 = vmatpush2.msra.mxu0 0.0
  %3949 = vmatprep.subr.mxu0 0.0
  %3950 = vmatpush2.msra.mxu0 0.0
  %3951 = vmatprep.subr.mxu0 0.0
  %3952 = vmatpush2.msra.mxu0 0.0
  %3953 = vmatprep.subr.mxu0 0.0
  %3954 = vmatpush2.msra.mxu0 0.0
  %3955 = vmatprep.subr.mxu0 0.0
  %3956 = vmatpush2.msra.mxu0 0.0
  %3957 = vmatprep.subr.mxu0 0.0
  %3958 = vmatpush2.msra.mxu0 0.0
  %3959 = vmatprep.subr.mxu0 0.0
  %3960 = vmatpush2.msra.mxu0 0.0
  %3961 = vmatprep.subr.mxu0 0.0
  %3962 = vmatpush2.msra.mxu0 0.0
  %3963 = vmatprep.mubr.f32.mxu0 0.0
  %v3964 = vand.u32 %v2300, 4294901760
  %3965 = vmatmul.mubr.f32.gmra.mxu0 %v3964
  %v3966 = vpop.f32.mrf.mxu0
  %v3967 = vadd.f32 %v3588, %v3966
  %v3968 = vpop.f32.mrf.mxu0
  %3969 = vmatprep.mubr.f32.mxu0 0.0
  %v3970 = vand.u32 %v2303, 4294901760
  %3971 = vmatmul.mubr.f32.gmra.mxu0 %v3970
  %v3972 = vpop.f32.mrf.mxu0
  %v3973 = vadd.f32 %v3596, %v3972
  %v3974 = vpop.f32.mrf.mxu0
  %3975 = vmatprep.mubr.f32.mxu0 0.0
  %v3976 = vand.u32 %v2306, 4294901760
  %3977 = vmatmul.mubr.f32.gmra.mxu0 %v3976
  %v3978 = vpop.f32.mrf.mxu0
  %v3979 = vadd.f32 %v3604, %v3978
  %v3980 = vpop.f32.mrf.mxu0
  %3981 = vmatprep.mubr.f32.mxu0 0.0
  %v3982 = vand.u32 %v2309, 4294901760
  %3983 = vmatmul.mubr.f32.gmra.mxu0 %v3982
  %v3984 = vpop.f32.mrf.mxu0
  %v3985 = vadd.f32 %v3612, %v3984
  %v3986 = vpop.f32.mrf.mxu0
  %3987 = vmatprep.mubr.f32.mxu0 0.0
  %v3988 = vand.u32 %v2312, 4294901760
  %3989 = vmatmul.mubr.f32.gmra.mxu0 %v3988
  %v3990 = vpop.f32.mrf.mxu0
  %v3991 = vadd.f32 %v3620, %v3990
  %v3992 = vpop.f32.mrf.mxu0
  %3993 = vmatprep.mubr.f32.mxu0 0.0
  %v3994 = vand.u32 %v2315, 4294901760
  %3995 = vmatmul.mubr.f32.gmra.mxu0 %v3994
  %v3996 = vpop.f32.mrf.mxu0
  %v3997 = vadd.f32 %v3628, %v3996
  %v3998 = vpop.f32.mrf.mxu0
  %3999 = vmatprep.mubr.f32.mxu0 0.0
  %v4000 = vand.u32 %v2318, 4294901760
  %4001 = vmatmul.mubr.f32.gmra.mxu0 %v4000
  %v4002 = vpop.f32.mrf.mxu0
  %v4003 = vadd.f32 %v3636, %v4002
  %v4004 = vpop.f32.mrf.mxu0
  %4005 = vmatprep.mubr.f32.mxu0 0.0
  %v4006 = vand.u32 %v2321, 4294901760
  %4007 = vmatmul.mubr.f32.gmra.mxu0 %v4006
  %v4008 = vpop.f32.mrf.mxu0
  %v4009 = vadd.f32 %v3644, %v4008
  %v4010 = vpop.f32.mrf.mxu0
  %4011 = vmatprep.mubr.f32.mxu0 0.0
  %v4012 = vand.u32 %v2324, 4294901760
  %4013 = vmatmul.mubr.f32.gmra.mxu0 %v4012
  %v4014 = vpop.f32.mrf.mxu0
  %v4015 = vadd.f32 %v3652, %v4014
  %v4016 = vpop.f32.mrf.mxu0
  %4017 = vmatprep.mubr.f32.mxu0 0.0
  %v4018 = vand.u32 %v2327, 4294901760
  %4019 = vmatmul.mubr.f32.gmra.mxu0 %v4018
  %v4020 = vpop.f32.mrf.mxu0
  %v4021 = vadd.f32 %v3660, %v4020
  %v4022 = vpop.f32.mrf.mxu0
  %4023 = vmatprep.mubr.f32.mxu0 0.0
  %v4024 = vand.u32 %v2330, 4294901760
  %4025 = vmatmul.mubr.f32.gmra.mxu0 %v4024
  %v4026 = vpop.f32.mrf.mxu0
  %v4027 = vadd.f32 %v3668, %v4026
  %v4028 = vpop.f32.mrf.mxu0
  %4029 = vmatprep.mubr.f32.mxu0 0.0
  %v4030 = vand.u32 %v2333, 4294901760
  %4031 = vmatmul.mubr.f32.gmra.mxu0 %v4030
  %v4032 = vpop.f32.mrf.mxu0
  %v4033 = vadd.f32 %v3676, %v4032
  %v4034 = vpop.f32.mrf.mxu0
  %4035 = vmatprep.mubr.f32.mxu0 0.0
  %v4036 = vand.u32 %v2336, 4294901760
  %4037 = vmatmul.mubr.f32.gmra.mxu0 %v4036
  %v4038 = vpop.f32.mrf.mxu0
  %v4039 = vadd.f32 %v3684, %v4038
  %v4040 = vpop.f32.mrf.mxu0
  %4041 = vmatprep.mubr.f32.mxu0 0.0
  %v4042 = vand.u32 %v2339, 4294901760
  %4043 = vmatmul.mubr.f32.gmra.mxu0 %v4042
  %v4044 = vpop.f32.mrf.mxu0
  %v4045 = vadd.f32 %v3692, %v4044
  %v4046 = vpop.f32.mrf.mxu0
  %4047 = vmatprep.mubr.f32.mxu0 0.0
  %v4048 = vand.u32 %v2342, 4294901760
  %4049 = vmatmul.mubr.f32.gmra.mxu0 %v4048
  %v4050 = vpop.f32.mrf.mxu0
  %v4051 = vadd.f32 %v3700, %v4050
  %v4052 = vpop.f32.mrf.mxu0
  %4053 = vmatprep.mubr.f32.mxu0 0.0
  %v4054 = vand.u32 %v2345, 4294901760
  %4055 = vmatmul.mubr.f32.gmra.mxu0 %v4054
  %v4056 = vpop.f32.mrf.mxu0
  %v4057 = vadd.f32 %v3708, %v4056
  %v4058 = vpop.f32.mrf.mxu0
  %4059 = vmatprep.mubr.f32.mxu0 0.0
  %v4060 = vand.u32 %v2348, 4294901760
  %4061 = vmatmul.mubr.f32.gmra.mxu0 %v4060
  %v4062 = vpop.f32.mrf.mxu0
  %v4063 = vadd.f32 %v3716, %v4062
  %v4064 = vpop.f32.mrf.mxu0
  %4065 = vmatprep.mubr.f32.mxu0 0.0
  %v4066 = vand.u32 %v2351, 4294901760
  %4067 = vmatmul.mubr.f32.gmra.mxu0 %v4066
  %v4068 = vpop.f32.mrf.mxu0
  %v4069 = vadd.f32 %v3724, %v4068
  %v4070 = vpop.f32.mrf.mxu0
  %4071 = vmatprep.mubr.f32.mxu0 0.0
  %v4072 = vand.u32 %v2354, 4294901760
  %4073 = vmatmul.mubr.f32.gmra.mxu0 %v4072
  %v4074 = vpop.f32.mrf.mxu0
  %v4075 = vadd.f32 %v3732, %v4074
  %v4076 = vpop.f32.mrf.mxu0
  %4077 = vmatprep.mubr.f32.mxu0 0.0
  %v4078 = vand.u32 %v2357, 4294901760
  %4079 = vmatmul.mubr.f32.gmra.mxu0 %v4078
  %v4080 = vpop.f32.mrf.mxu0
  %v4081 = vadd.f32 %v3740, %v4080
  %v4082 = vpop.f32.mrf.mxu0
  %4083 = vmatprep.mubr.f32.mxu0 0.0
  %v4084 = vand.u32 %v2360, 4294901760
  %4085 = vmatmul.mubr.f32.gmra.mxu0 %v4084
  %v4086 = vpop.f32.mrf.mxu0
  %v4087 = vadd.f32 %v3748, %v4086
  %v4088 = vpop.f32.mrf.mxu0
  %4089 = vmatprep.mubr.f32.mxu0 0.0
  %v4090 = vand.u32 %v2363, 4294901760
  %4091 = vmatmul.mubr.f32.gmra.mxu0 %v4090
  %v4092 = vpop.f32.mrf.mxu0
  %v4093 = vadd.f32 %v3756, %v4092
  %v4094 = vpop.f32.mrf.mxu0
  %4095 = vmatprep.mubr.f32.mxu0 0.0
  %v4096 = vand.u32 %v2366, 4294901760
  %4097 = vmatmul.mubr.f32.gmra.mxu0 %v4096
  %v4098 = vpop.f32.mrf.mxu0
  %v4099 = vadd.f32 %v3764, %v4098
  %v4100 = vpop.f32.mrf.mxu0
  %4101 = vmatprep.mubr.f32.mxu0 0.0
  %v4102 = vand.u32 %v2369, 4294901760
  %4103 = vmatmul.mubr.f32.gmra.mxu0 %v4102
  %v4104 = vpop.f32.mrf.mxu0
  %v4105 = vadd.f32 %v3772, %v4104
  %v4106 = vpop.f32.mrf.mxu0
  %4107 = vmatprep.mubr.f32.mxu0 0.0
  %v4108 = vand.u32 %v2372, 4294901760
  %4109 = vmatmul.mubr.f32.gmra.mxu0 %v4108
  %v4110 = vpop.f32.mrf.mxu0
  %v4111 = vadd.f32 %v3780, %v4110
  %v4112 = vpop.f32.mrf.mxu0
  %4113 = vmatprep.mubr.f32.mxu0 0.0
  %v4114 = vand.u32 %v2375, 4294901760
  %4115 = vmatmul.mubr.f32.gmra.mxu0 %v4114
  %v4116 = vpop.f32.mrf.mxu0
  %v4117 = vadd.f32 %v3788, %v4116
  %v4118 = vpop.f32.mrf.mxu0
  %4119 = vmatprep.mubr.f32.mxu0 0.0
  %v4120 = vand.u32 %v2378, 4294901760
  %4121 = vmatmul.mubr.f32.gmra.mxu0 %v4120
  %v4122 = vpop.f32.mrf.mxu0
  %v4123 = vadd.f32 %v3796, %v4122
  %v4124 = vpop.f32.mrf.mxu0
  %4125 = vmatprep.mubr.f32.mxu0 0.0
  %v4126 = vand.u32 %v2381, 4294901760
  %4127 = vmatmul.mubr.f32.gmra.mxu0 %v4126
  %v4128 = vpop.f32.mrf.mxu0
  %v4129 = vadd.f32 %v3804, %v4128
  %v4130 = vpop.f32.mrf.mxu0
  %4131 = vmatprep.mubr.f32.mxu0 0.0
  %v4132 = vand.u32 %v2384, 4294901760
  %4133 = vmatmul.mubr.f32.gmra.mxu0 %v4132
  %v4134 = vpop.f32.mrf.mxu0
  %v4135 = vadd.f32 %v3812, %v4134
  %v4136 = vpop.f32.mrf.mxu0
  %4137 = vmatprep.mubr.f32.mxu0 0.0
  %v4138 = vand.u32 %v2387, 4294901760
  %4139 = vmatmul.mubr.f32.gmra.mxu0 %v4138
  %v4140 = vpop.f32.mrf.mxu0
  %v4141 = vadd.f32 %v3820, %v4140
  %v4142 = vpop.f32.mrf.mxu0
  %4143 = vmatprep.mubr.f32.mxu0 0.0
  %v4144 = vand.u32 %v2390, 4294901760
  %4145 = vmatmul.mubr.f32.gmra.mxu0 %v4144
  %v4146 = vpop.f32.mrf.mxu0
  %v4147 = vadd.f32 %v3828, %v4146
  %v4148 = vpop.f32.mrf.mxu0
  %4149 = vmatprep.mubr.f32.mxu0 0.0
  %v4150 = vand.u32 %v2393, 4294901760
  %4151 = vmatmul.mubr.f32.gmra.mxu0 %v4150
  %v4152 = vpop.f32.mrf.mxu0
  %v4153 = vadd.f32 %v3836, %v4152
  %v4154 = vpop.f32.mrf.mxu0
  %4155 = vmatprep.mubr.f32.mxu0 0.0
  %v4156 = vand.u32 %v2396, 4294901760
  %4157 = vmatmul.mubr.f32.gmra.mxu0 %v4156
  %v4158 = vpop.f32.mrf.mxu0
  %v4159 = vadd.f32 %v3844, %v4158
  %v4160 = vpop.f32.mrf.mxu0
  %4161 = vmatprep.mubr.f32.mxu0 0.0
  %v4162 = vand.u32 %v2399, 4294901760
  %4163 = vmatmul.mubr.f32.gmra.mxu0 %v4162
  %v4164 = vpop.f32.mrf.mxu0
  %v4165 = vadd.f32 %v3852, %v4164
  %v4166 = vpop.f32.mrf.mxu0
  %4167 = vmatprep.mubr.f32.mxu0 0.0
  %v4168 = vand.u32 %v2402, 4294901760
  %4169 = vmatmul.mubr.f32.gmra.mxu0 %v4168
  %v4170 = vpop.f32.mrf.mxu0
  %v4171 = vadd.f32 %v3860, %v4170
  %v4172 = vpop.f32.mrf.mxu0
  %4173 = vmatprep.mubr.f32.mxu0 0.0
  %v4174 = vand.u32 %v2405, 4294901760
  %4175 = vmatmul.mubr.f32.gmra.mxu0 %v4174
  %v4176 = vpop.f32.mrf.mxu0
  %v4177 = vadd.f32 %v3868, %v4176
  %v4178 = vpop.f32.mrf.mxu0
  %4179 = vmatprep.mubr.f32.mxu0 0.0
  %v4180 = vand.u32 %v2408, 4294901760
  %4181 = vmatmul.mubr.f32.gmra.mxu0 %v4180
  %v4182 = vpop.f32.mrf.mxu0
  %v4183 = vadd.f32 %v3876, %v4182
  %v4184 = vpop.f32.mrf.mxu0
  %4185 = vmatprep.mubr.f32.mxu0 0.0
  %v4186 = vand.u32 %v2411, 4294901760
  %4187 = vmatmul.mubr.f32.gmra.mxu0 %v4186
  %v4188 = vpop.f32.mrf.mxu0
  %v4189 = vadd.f32 %v3884, %v4188
  %v4190 = vpop.f32.mrf.mxu0
  %4191 = vdwg.mxu0
  %4192 = vmatprep.subr.mxu0 0.0
  %4193 = vmatpush1.msra.mxu0 0.0
  %4194 = vmatprep.subr.mxu0 0.0
  %4195 = vmatpush1.msra.mxu0 0.0
  %4196 = vmatprep.subr.mxu0 0.0
  %4197 = vmatpush1.msra.mxu0 0.0
  %4198 = vmatprep.subr.mxu0 0.0
  %4199 = vmatpush1.msra.mxu0 0.0
  %4200 = vmatprep.subr.mxu0 0.0
  %4201 = vmatpush1.msra.mxu0 0.0
  %4202 = vmatprep.subr.mxu0 0.0
  %4203 = vmatpush1.msra.mxu0 0.0
  %4204 = vmatprep.subr.mxu0 0.0
  %4205 = vmatpush1.msra.mxu0 0.0
  %4206 = vmatprep.subr.mxu0 0.0
  %4207 = vmatpush1.msra.mxu0 0.0
  %4208 = vmatprep.subr.mxu0 0.0
  %4209 = vmatpush1.msra.mxu0 0.0
  %4210 = vmatprep.subr.mxu0 0.0
  %4211 = vmatpush1.msra.mxu0 0.0
  %4212 = vmatprep.subr.mxu0 0.0
  %4213 = vmatpush1.msra.mxu0 0.0
  %4214 = vmatprep.subr.mxu0 0.0
  %4215 = vmatpush1.msra.mxu0 0.0
  %4216 = vmatprep.subr.mxu0 0.0
  %v4217 = vand.u32 %v69, 4294901760
  %4218 = vmatpush1.msra.mxu0 %v4217
  %4219 = vmatprep.subr.mxu0 0.0
  %v4220 = vand.u32 %v68, 4294901760
  %4221 = vmatpush1.msra.mxu0 %v4220
  %4222 = vmatprep.subr.mxu0 0.0
  %v4223 = vand.u32 %v67, 4294901760
  %4224 = vmatpush1.msra.mxu0 %v4223
  %4225 = vmatprep.subr.mxu0 0.0
  %v4226 = vand.u32 %v66, 4294901760
  %4227 = vmatpush1.msra.mxu0 %v4226
  %4228 = vmatprep.subr.mxu0 0.0
  %4229 = vmatpush2.msra.mxu0 0.0
  %4230 = vmatprep.subr.mxu0 0.0
  %4231 = vmatpush2.msra.mxu0 0.0
  %4232 = vmatprep.subr.mxu0 0.0
  %4233 = vmatpush2.msra.mxu0 0.0
  %4234 = vmatprep.subr.mxu0 0.0
  %4235 = vmatpush2.msra.mxu0 0.0
  %4236 = vmatprep.subr.mxu0 0.0
  %4237 = vmatpush2.msra.mxu0 0.0
  %4238 = vmatprep.subr.mxu0 0.0
  %4239 = vmatpush2.msra.mxu0 0.0
  %4240 = vmatprep.subr.mxu0 0.0
  %4241 = vmatpush2.msra.mxu0 0.0
  %4242 = vmatprep.subr.mxu0 0.0
  %4243 = vmatpush2.msra.mxu0 0.0
  %4244 = vmatprep.subr.mxu0 0.0
  %4245 = vmatpush2.msra.mxu0 0.0
  %4246 = vmatprep.subr.mxu0 0.0
  %4247 = vmatpush2.msra.mxu0 0.0
  %4248 = vmatprep.subr.mxu0 0.0
  %4249 = vmatpush2.msra.mxu0 0.0
  %4250 = vmatprep.subr.mxu0 0.0
  %4251 = vmatpush2.msra.mxu0 0.0
  %4252 = vmatprep.subr.mxu0 0.0
  %4253 = vmatpush2.msra.mxu0 0.0
  %4254 = vmatprep.subr.mxu0 0.0
  %4255 = vmatpush2.msra.mxu0 0.0
  %4256 = vmatprep.subr.mxu0 0.0
  %4257 = vmatpush2.msra.mxu0 0.0
  %4258 = vmatprep.subr.mxu0 0.0
  %4259 = vmatpush2.msra.mxu0 0.0
  %4260 = vmatprep.mubr.f32.mxu0 0.0
  %v4261 = vand.u32 %v2300, 4294901760
  %4262 = vmatmul.mubr.f32.gmra.mxu0 %v4261
  %v4263 = vpop.f32.mrf.mxu0
  %v4264 = vadd.f32 %v3967, %v4263
  %v4265 = vpop.f32.mrf.mxu0
  %4266 = vmatprep.mubr.f32.mxu0 0.0
  %v4267 = vand.u32 %v2303, 4294901760
  %4268 = vmatmul.mubr.f32.gmra.mxu0 %v4267
  %v4269 = vpop.f32.mrf.mxu0
  %v4270 = vadd.f32 %v3973, %v4269
  %v4271 = vpop.f32.mrf.mxu0
  %4272 = vmatprep.mubr.f32.mxu0 0.0
  %v4273 = vand.u32 %v2306, 4294901760
  %4274 = vmatmul.mubr.f32.gmra.mxu0 %v4273
  %v4275 = vpop.f32.mrf.mxu0
  %v4276 = vadd.f32 %v3979, %v4275
  %v4277 = vpop.f32.mrf.mxu0
  %4278 = vmatprep.mubr.f32.mxu0 0.0
  %v4279 = vand.u32 %v2309, 4294901760
  %4280 = vmatmul.mubr.f32.gmra.mxu0 %v4279
  %v4281 = vpop.f32.mrf.mxu0
  %v4282 = vadd.f32 %v3985, %v4281
  %v4283 = vpop.f32.mrf.mxu0
  %4284 = vmatprep.mubr.f32.mxu0 0.0
  %v4285 = vand.u32 %v2312, 4294901760
  %4286 = vmatmul.mubr.f32.gmra.mxu0 %v4285
  %v4287 = vpop.f32.mrf.mxu0
  %v4288 = vadd.f32 %v3991, %v4287
  %v4289 = vpop.f32.mrf.mxu0
  %4290 = vmatprep.mubr.f32.mxu0 0.0
  %v4291 = vand.u32 %v2315, 4294901760
  %4292 = vmatmul.mubr.f32.gmra.mxu0 %v4291
  %v4293 = vpop.f32.mrf.mxu0
  %v4294 = vadd.f32 %v3997, %v4293
  %v4295 = vpop.f32.mrf.mxu0
  %4296 = vmatprep.mubr.f32.mxu0 0.0
  %v4297 = vand.u32 %v2318, 4294901760
  %4298 = vmatmul.mubr.f32.gmra.mxu0 %v4297
  %v4299 = vpop.f32.mrf.mxu0
  %v4300 = vadd.f32 %v4003, %v4299
  %v4301 = vpop.f32.mrf.mxu0
  %4302 = vmatprep.mubr.f32.mxu0 0.0
  %v4303 = vand.u32 %v2321, 4294901760
  %4304 = vmatmul.mubr.f32.gmra.mxu0 %v4303
  %v4305 = vpop.f32.mrf.mxu0
  %v4306 = vadd.f32 %v4009, %v4305
  %v4307 = vpop.f32.mrf.mxu0
  %4308 = vmatprep.mubr.f32.mxu0 0.0
  %v4309 = vand.u32 %v2324, 4294901760
  %4310 = vmatmul.mubr.f32.gmra.mxu0 %v4309
  %v4311 = vpop.f32.mrf.mxu0
  %v4312 = vadd.f32 %v4015, %v4311
  %v4313 = vpop.f32.mrf.mxu0
  %4314 = vmatprep.mubr.f32.mxu0 0.0
  %v4315 = vand.u32 %v2327, 4294901760
  %4316 = vmatmul.mubr.f32.gmra.mxu0 %v4315
  %v4317 = vpop.f32.mrf.mxu0
  %v4318 = vadd.f32 %v4021, %v4317
  %v4319 = vpop.f32.mrf.mxu0
  %4320 = vmatprep.mubr.f32.mxu0 0.0
  %v4321 = vand.u32 %v2330, 4294901760
  %4322 = vmatmul.mubr.f32.gmra.mxu0 %v4321
  %v4323 = vpop.f32.mrf.mxu0
  %v4324 = vadd.f32 %v4027, %v4323
  %v4325 = vpop.f32.mrf.mxu0
  %4326 = vmatprep.mubr.f32.mxu0 0.0
  %v4327 = vand.u32 %v2333, 4294901760
  %4328 = vmatmul.mubr.f32.gmra.mxu0 %v4327
  %v4329 = vpop.f32.mrf.mxu0
  %v4330 = vadd.f32 %v4033, %v4329
  %v4331 = vpop.f32.mrf.mxu0
  %4332 = vmatprep.mubr.f32.mxu0 0.0
  %v4333 = vand.u32 %v2336, 4294901760
  %4334 = vmatmul.mubr.f32.gmra.mxu0 %v4333
  %v4335 = vpop.f32.mrf.mxu0
  %v4336 = vadd.f32 %v4039, %v4335
  %v4337 = vpop.f32.mrf.mxu0
  %4338 = vmatprep.mubr.f32.mxu0 0.0
  %v4339 = vand.u32 %v2339, 4294901760
  %4340 = vmatmul.mubr.f32.gmra.mxu0 %v4339
  %v4341 = vpop.f32.mrf.mxu0
  %v4342 = vadd.f32 %v4045, %v4341
  %v4343 = vpop.f32.mrf.mxu0
  %4344 = vmatprep.mubr.f32.mxu0 0.0
  %v4345 = vand.u32 %v2342, 4294901760
  %4346 = vmatmul.mubr.f32.gmra.mxu0 %v4345
  %v4347 = vpop.f32.mrf.mxu0
  %v4348 = vadd.f32 %v4051, %v4347
  %v4349 = vpop.f32.mrf.mxu0
  %4350 = vmatprep.mubr.f32.mxu0 0.0
  %v4351 = vand.u32 %v2345, 4294901760
  %4352 = vmatmul.mubr.f32.gmra.mxu0 %v4351
  %v4353 = vpop.f32.mrf.mxu0
  %v4354 = vadd.f32 %v4057, %v4353
  %v4355 = vpop.f32.mrf.mxu0
  %4356 = vmatprep.mubr.f32.mxu0 0.0
  %v4357 = vand.u32 %v2348, 4294901760
  %4358 = vmatmul.mubr.f32.gmra.mxu0 %v4357
  %v4359 = vpop.f32.mrf.mxu0
  %v4360 = vadd.f32 %v4063, %v4359
  %v4361 = vpop.f32.mrf.mxu0
  %4362 = vmatprep.mubr.f32.mxu0 0.0
  %v4363 = vand.u32 %v2351, 4294901760
  %4364 = vmatmul.mubr.f32.gmra.mxu0 %v4363
  %v4365 = vpop.f32.mrf.mxu0
  %v4366 = vadd.f32 %v4069, %v4365
  %v4367 = vpop.f32.mrf.mxu0
  %4368 = vmatprep.mubr.f32.mxu0 0.0
  %v4369 = vand.u32 %v2354, 4294901760
  %4370 = vmatmul.mubr.f32.gmra.mxu0 %v4369
  %v4371 = vpop.f32.mrf.mxu0
  %v4372 = vadd.f32 %v4075, %v4371
  %v4373 = vpop.f32.mrf.mxu0
  %4374 = vmatprep.mubr.f32.mxu0 0.0
  %v4375 = vand.u32 %v2357, 4294901760
  %4376 = vmatmul.mubr.f32.gmra.mxu0 %v4375
  %v4377 = vpop.f32.mrf.mxu0
  %v4378 = vadd.f32 %v4081, %v4377
  %v4379 = vpop.f32.mrf.mxu0
  %4380 = vmatprep.mubr.f32.mxu0 0.0
  %v4381 = vand.u32 %v2360, 4294901760
  %4382 = vmatmul.mubr.f32.gmra.mxu0 %v4381
  %v4383 = vpop.f32.mrf.mxu0
  %v4384 = vadd.f32 %v4087, %v4383
  %v4385 = vpop.f32.mrf.mxu0
  %4386 = vmatprep.mubr.f32.mxu0 0.0
  %v4387 = vand.u32 %v2363, 4294901760
  %4388 = vmatmul.mubr.f32.gmra.mxu0 %v4387
  %v4389 = vpop.f32.mrf.mxu0
  %v4390 = vadd.f32 %v4093, %v4389
  %v4391 = vpop.f32.mrf.mxu0
  %4392 = vmatprep.mubr.f32.mxu0 0.0
  %v4393 = vand.u32 %v2366, 4294901760
  %4394 = vmatmul.mubr.f32.gmra.mxu0 %v4393
  %v4395 = vpop.f32.mrf.mxu0
  %v4396 = vadd.f32 %v4099, %v4395
  %v4397 = vpop.f32.mrf.mxu0
  %4398 = vmatprep.mubr.f32.mxu0 0.0
  %v4399 = vand.u32 %v2369, 4294901760
  %4400 = vmatmul.mubr.f32.gmra.mxu0 %v4399
  %v4401 = vpop.f32.mrf.mxu0
  %v4402 = vadd.f32 %v4105, %v4401
  %v4403 = vpop.f32.mrf.mxu0
  %4404 = vmatprep.mubr.f32.mxu0 0.0
  %v4405 = vand.u32 %v2372, 4294901760
  %4406 = vmatmul.mubr.f32.gmra.mxu0 %v4405
  %v4407 = vpop.f32.mrf.mxu0
  %v4408 = vadd.f32 %v4111, %v4407
  %v4409 = vpop.f32.mrf.mxu0
  %4410 = vmatprep.mubr.f32.mxu0 0.0
  %v4411 = vand.u32 %v2375, 4294901760
  %4412 = vmatmul.mubr.f32.gmra.mxu0 %v4411
  %v4413 = vpop.f32.mrf.mxu0
  %v4414 = vadd.f32 %v4117, %v4413
  %v4415 = vpop.f32.mrf.mxu0
  %4416 = vmatprep.mubr.f32.mxu0 0.0
  %v4417 = vand.u32 %v2378, 4294901760
  %4418 = vmatmul.mubr.f32.gmra.mxu0 %v4417
  %v4419 = vpop.f32.mrf.mxu0
  %v4420 = vadd.f32 %v4123, %v4419
  %v4421 = vpop.f32.mrf.mxu0
  %4422 = vmatprep.mubr.f32.mxu0 0.0
  %v4423 = vand.u32 %v2381, 4294901760
  %4424 = vmatmul.mubr.f32.gmra.mxu0 %v4423
  %v4425 = vpop.f32.mrf.mxu0
  %v4426 = vadd.f32 %v4129, %v4425
  %v4427 = vpop.f32.mrf.mxu0
  %4428 = vmatprep.mubr.f32.mxu0 0.0
  %v4429 = vand.u32 %v2384, 4294901760
  %4430 = vmatmul.mubr.f32.gmra.mxu0 %v4429
  %v4431 = vpop.f32.mrf.mxu0
  %v4432 = vadd.f32 %v4135, %v4431
  %v4433 = vpop.f32.mrf.mxu0
  %4434 = vmatprep.mubr.f32.mxu0 0.0
  %v4435 = vand.u32 %v2387, 4294901760
  %4436 = vmatmul.mubr.f32.gmra.mxu0 %v4435
  %v4437 = vpop.f32.mrf.mxu0
  %v4438 = vadd.f32 %v4141, %v4437
  %v4439 = vpop.f32.mrf.mxu0
  %4440 = vmatprep.mubr.f32.mxu0 0.0
  %v4441 = vand.u32 %v2390, 4294901760
  %4442 = vmatmul.mubr.f32.gmra.mxu0 %v4441
  %v4443 = vpop.f32.mrf.mxu0
  %v4444 = vadd.f32 %v4147, %v4443
  %v4445 = vpop.f32.mrf.mxu0
  %4446 = vmatprep.mubr.f32.mxu0 0.0
  %v4447 = vand.u32 %v2393, 4294901760
  %4448 = vmatmul.mubr.f32.gmra.mxu0 %v4447
  %v4449 = vpop.f32.mrf.mxu0
  %v4450 = vadd.f32 %v4153, %v4449
  %v4451 = vpop.f32.mrf.mxu0
  %4452 = vmatprep.mubr.f32.mxu0 0.0
  %v4453 = vand.u32 %v2396, 4294901760
  %4454 = vmatmul.mubr.f32.gmra.mxu0 %v4453
  %v4455 = vpop.f32.mrf.mxu0
  %v4456 = vadd.f32 %v4159, %v4455
  %v4457 = vpop.f32.mrf.mxu0
  %4458 = vmatprep.mubr.f32.mxu0 0.0
  %v4459 = vand.u32 %v2399, 4294901760
  %4460 = vmatmul.mubr.f32.gmra.mxu0 %v4459
  %v4461 = vpop.f32.mrf.mxu0
  %v4462 = vadd.f32 %v4165, %v4461
  %v4463 = vpop.f32.mrf.mxu0
  %4464 = vmatprep.mubr.f32.mxu0 0.0
  %v4465 = vand.u32 %v2402, 4294901760
  %4466 = vmatmul.mubr.f32.gmra.mxu0 %v4465
  %v4467 = vpop.f32.mrf.mxu0
  %v4468 = vadd.f32 %v4171, %v4467
  %v4469 = vpop.f32.mrf.mxu0
  %4470 = vmatprep.mubr.f32.mxu0 0.0
  %v4471 = vand.u32 %v2405, 4294901760
  %4472 = vmatmul.mubr.f32.gmra.mxu0 %v4471
  %v4473 = vpop.f32.mrf.mxu0
  %v4474 = vadd.f32 %v4177, %v4473
  %v4475 = vpop.f32.mrf.mxu0
  %4476 = vmatprep.mubr.f32.mxu0 0.0
  %v4477 = vand.u32 %v2408, 4294901760
  %4478 = vmatmul.mubr.f32.gmra.mxu0 %v4477
  %v4479 = vpop.f32.mrf.mxu0
  %v4480 = vadd.f32 %v4183, %v4479
  %v4481 = vpop.f32.mrf.mxu0
  %4482 = vmatprep.mubr.f32.mxu0 0.0
  %v4483 = vand.u32 %v2411, 4294901760
  %4484 = vmatmul.mubr.f32.gmra.mxu0 %v4483
  %v4485 = vpop.f32.mrf.mxu0
  %v4486 = vadd.f32 %v4189, %v4485
  %v4487 = vpop.f32.mrf.mxu0
  %4488 = vdwg.mxu0
  %v4489 = vmul.f32 %v2036, 0.03125
  %v4490 = vmul.f32 %v2042, 0.03125
  %v4491 = vmul.f32 %v2048, 0.03125
  %v4492 = vmul.f32 %v2054, 0.03125
  %v4493 = vmul.f32 %v2060, 0.03125
  %v4494 = vmul.f32 %v2066, 0.03125
  %v4495 = vmul.f32 %v2072, 0.03125
  %v4496 = vmul.f32 %v2078, 0.03125
  %v4497 = vmul.f32 %v2084, 0.03125
  %v4498 = vmul.f32 %v2090, 0.03125
  %v4499 = vmul.f32 %v2096, 0.03125
  %v4500 = vmul.f32 %v2102, 0.03125
  %v4501 = vmul.f32 %v2108, 0.03125
  %v4502 = vmul.f32 %v2114, 0.03125
  %v4503 = vmul.f32 %v2120, 0.03125
  %v4504 = vmul.f32 %v2126, 0.03125
  %v4505 = vmul.f32 %v2132, 0.03125
  %v4506 = vmul.f32 %v2138, 0.03125
  %v4507 = vmul.f32 %v2144, 0.03125
  %v4508 = vmul.f32 %v2150, 0.03125
  %v4509 = vmul.f32 %v2156, 0.03125
  %v4510 = vmul.f32 %v2162, 0.03125
  %v4511 = vmul.f32 %v2168, 0.03125
  %v4512 = vmul.f32 %v2174, 0.03125
  %v4513 = vmul.f32 %v2180, 0.03125
  %v4514 = vmul.f32 %v2186, 0.03125
  %v4515 = vmul.f32 %v2192, 0.03125
  %v4516 = vmul.f32 %v2198, 0.03125
  %v4517 = vmul.f32 %v2204, 0.03125
  %v4518 = vmul.f32 %v2210, 0.03125
  %v4519 = vmul.f32 %v2216, 0.03125
  %v4520 = vmul.f32 %v2222, 0.03125
  %v4521 = vmul.f32 %v2228, 0.03125
  %v4522 = vmul.f32 %v2234, 0.03125
  %v4523 = vmul.f32 %v2240, 0.03125
  %v4524 = vmul.f32 %v2246, 0.03125
  %v4525 = vmul.f32 %v2252, 0.03125
  %v4526 = vmul.f32 %v2258, 0.03125
  %v4527 = vmul.f32 %v4264, 0.03125
  %v4528 = vmul.f32 %v4270, 0.03125
  %v4529 = vmul.f32 %v4276, 0.03125
  %v4530 = vmul.f32 %v4282, 0.03125
  %v4531 = vmul.f32 %v4288, 0.03125
  %v4532 = vmul.f32 %v4294, 0.03125
  %v4533 = vmul.f32 %v4300, 0.03125
  %v4534 = vmul.f32 %v4306, 0.03125
  %v4535 = vmul.f32 %v4312, 0.03125
  %v4536 = vmul.f32 %v4318, 0.03125
  %v4537 = vmul.f32 %v4324, 0.03125
  %v4538 = vmul.f32 %v4330, 0.03125
  %v4539 = vmul.f32 %v4336, 0.03125
  %v4540 = vmul.f32 %v4342, 0.03125
  %v4541 = vmul.f32 %v4348, 0.03125
  %v4542 = vmul.f32 %v4354, 0.03125
  %v4543 = vmul.f32 %v4360, 0.03125
  %v4544 = vmul.f32 %v4366, 0.03125
  %v4545 = vmul.f32 %v4372, 0.03125
  %v4546 = vmul.f32 %v4378, 0.03125
  %v4547 = vmul.f32 %v4384, 0.03125
  %v4548 = vmul.f32 %v4390, 0.03125
  %v4549 = vmul.f32 %v4396, 0.03125
  %v4550 = vmul.f32 %v4402, 0.03125
  %v4551 = vmul.f32 %v4408, 0.03125
  %v4552 = vmul.f32 %v4414, 0.03125
  %v4553 = vmul.f32 %v4420, 0.03125
  %v4554 = vmul.f32 %v4426, 0.03125
  %v4555 = vmul.f32 %v4432, 0.03125
  %v4556 = vmul.f32 %v4438, 0.03125
  %v4557 = vmul.f32 %v4444, 0.03125
  %v4558 = vmul.f32 %v4450, 0.03125
  %v4559 = vmul.f32 %v4456, 0.03125
  %v4560 = vmul.f32 %v4462, 0.03125
  %v4561 = vmul.f32 %v4468, 0.03125
  %v4562 = vmul.f32 %v4474, 0.03125
  %v4563 = vmul.f32 %v4480, 0.03125
  %v4564 = vmul.f32 %v4486, 0.03125
  %v4565 = vmul.f32 %v4489, %v4489
  %v4566 = vmul.f32 %v4490, %v4490
  %v4567 = vmul.f32 %v4491, %v4491
  %v4568 = vmul.f32 %v4492, %v4492
  %v4569 = vmul.f32 %v4493, %v4493
  %v4570 = vmul.f32 %v4494, %v4494
  %v4571 = vmul.f32 %v4495, %v4495
  %v4572 = vmul.f32 %v4496, %v4496
  %v4573 = vmul.f32 %v4497, %v4497
  %v4574 = vmul.f32 %v4498, %v4498
  %v4575 = vmul.f32 %v4499, %v4499
  %v4576 = vmul.f32 %v4500, %v4500
  %v4577 = vmul.f32 %v4501, %v4501
  %v4578 = vmul.f32 %v4502, %v4502
  %v4579 = vmul.f32 %v4503, %v4503
  %v4580 = vmul.f32 %v4504, %v4504
  %v4581 = vmul.f32 %v4505, %v4505
  %v4582 = vmul.f32 %v4506, %v4506
  %v4583 = vmul.f32 %v4507, %v4507
  %v4584 = vmul.f32 %v4508, %v4508
  %v4585 = vmul.f32 %v4509, %v4509
  %v4586 = vmul.f32 %v4510, %v4510
  %v4587 = vmul.f32 %v4511, %v4511
  %v4588 = vmul.f32 %v4512, %v4512
  %v4589 = vmul.f32 %v4513, %v4513
  %v4590 = vmul.f32 %v4514, %v4514
  %v4591 = vmul.f32 %v4515, %v4515
  %v4592 = vmul.f32 %v4516, %v4516
  %v4593 = vmul.f32 %v4517, %v4517
  %v4594 = vmul.f32 %v4518, %v4518
  %v4595 = vmul.f32 %v4519, %v4519
  %v4596 = vmul.f32 %v4520, %v4520
  %v4597 = vmul.f32 %v4521, %v4521
  %v4598 = vmul.f32 %v4522, %v4522
  %v4599 = vmul.f32 %v4523, %v4523
  %v4600 = vmul.f32 %v4524, %v4524
  %v4601 = vmul.f32 %v4525, %v4525
  %v4602 = vmul.f32 %v4526, %v4526
  %v4603 = vsub.f32 %v4527, %v4565
  %v4604 = vsub.f32 %v4528, %v4566
  %v4605 = vsub.f32 %v4529, %v4567
  %v4606 = vsub.f32 %v4530, %v4568
  %v4607 = vsub.f32 %v4531, %v4569
  %v4608 = vsub.f32 %v4532, %v4570
  %v4609 = vsub.f32 %v4533, %v4571
  %v4610 = vsub.f32 %v4534, %v4572
  %v4611 = vsub.f32 %v4535, %v4573
  %v4612 = vsub.f32 %v4536, %v4574
  %v4613 = vsub.f32 %v4537, %v4575
  %v4614 = vsub.f32 %v4538, %v4576
  %v4615 = vsub.f32 %v4539, %v4577
  %v4616 = vsub.f32 %v4540, %v4578
  %v4617 = vsub.f32 %v4541, %v4579
  %v4618 = vsub.f32 %v4542, %v4580
  %v4619 = vsub.f32 %v4543, %v4581
  %v4620 = vsub.f32 %v4544, %v4582
  %v4621 = vsub.f32 %v4545, %v4583
  %v4622 = vsub.f32 %v4546, %v4584
  %v4623 = vsub.f32 %v4547, %v4585
  %v4624 = vsub.f32 %v4548, %v4586
  %v4625 = vsub.f32 %v4549, %v4587
  %v4626 = vsub.f32 %v4550, %v4588
  %v4627 = vsub.f32 %v4551, %v4589
  %v4628 = vsub.f32 %v4552, %v4590
  %v4629 = vsub.f32 %v4553, %v4591
  %v4630 = vsub.f32 %v4554, %v4592
  %v4631 = vsub.f32 %v4555, %v4593
  %v4632 = vsub.f32 %v4556, %v4594
  %v4633 = vsub.f32 %v4557, %v4595
  %v4634 = vsub.f32 %v4558, %v4596
  %v4635 = vsub.f32 %v4559, %v4597
  %v4636 = vsub.f32 %v4560, %v4598
  %v4637 = vsub.f32 %v4561, %v4599
  %v4638 = vsub.f32 %v4562, %v4600
  %v4639 = vsub.f32 %v4563, %v4601
  %v4640 = vsub.f32 %v4564, %v4602
  %v4641 = vmax.f32 %v4603, 0.0
  %v4642 = vmax.f32 %v4604, 0.0
  %v4643 = vmax.f32 %v4605, 0.0
  %v4644 = vmax.f32 %v4606, 0.0
  %v4645 = vmax.f32 %v4607, 0.0
  %v4646 = vmax.f32 %v4608, 0.0
  %v4647 = vmax.f32 %v4609, 0.0
  %v4648 = vmax.f32 %v4610, 0.0
  %v4649 = vmax.f32 %v4611, 0.0
  %v4650 = vmax.f32 %v4612, 0.0
  %v4651 = vmax.f32 %v4613, 0.0
  %v4652 = vmax.f32 %v4614, 0.0
  %v4653 = vmax.f32 %v4615, 0.0
  %v4654 = vmax.f32 %v4616, 0.0
  %v4655 = vmax.f32 %v4617, 0.0
  %v4656 = vmax.f32 %v4618, 0.0
  %v4657 = vmax.f32 %v4619, 0.0
  %v4658 = vmax.f32 %v4620, 0.0
  %v4659 = vmax.f32 %v4621, 0.0
  %v4660 = vmax.f32 %v4622, 0.0
  %v4661 = vmax.f32 %v4623, 0.0
  %v4662 = vmax.f32 %v4624, 0.0
  %v4663 = vmax.f32 %v4625, 0.0
  %v4664 = vmax.f32 %v4626, 0.0
  %v4665 = vmax.f32 %v4627, 0.0
  %v4666 = vmax.f32 %v4628, 0.0
  %v4667 = vmax.f32 %v4629, 0.0
  %v4668 = vmax.f32 %v4630, 0.0
  %v4669 = vmax.f32 %v4631, 0.0
  %v4670 = vmax.f32 %v4632, 0.0
  %v4671 = vmax.f32 %v4633, 0.0
  %v4672 = vmax.f32 %v4634, 0.0
  %v4673 = vmax.f32 %v4635, 0.0
  %v4674 = vmax.f32 %v4636, 0.0
  %v4675 = vmax.f32 %v4637, 0.0
  %v4676 = vmax.f32 %v4638, 0.0
  %v4677 = vmax.f32 %v4639, 0.0
  %v4678 = vmax.f32 %v4640, 0.0
  %v4679 = vadd.f32 %v4641, 1e-05
  %v4680 = vadd.f32 %v4642, 1e-05
  %v4681 = vadd.f32 %v4643, 1e-05
  %v4682 = vadd.f32 %v4644, 1e-05
  %v4683 = vadd.f32 %v4645, 1e-05
  %v4684 = vadd.f32 %v4646, 1e-05
  %v4685 = vadd.f32 %v4647, 1e-05
  %v4686 = vadd.f32 %v4648, 1e-05
  %v4687 = vadd.f32 %v4649, 1e-05
  %v4688 = vadd.f32 %v4650, 1e-05
  %v4689 = vadd.f32 %v4651, 1e-05
  %v4690 = vadd.f32 %v4652, 1e-05
  %v4691 = vadd.f32 %v4653, 1e-05
  %v4692 = vadd.f32 %v4654, 1e-05
  %v4693 = vadd.f32 %v4655, 1e-05
  %v4694 = vadd.f32 %v4656, 1e-05
  %v4695 = vadd.f32 %v4657, 1e-05
  %v4696 = vadd.f32 %v4658, 1e-05
  %v4697 = vadd.f32 %v4659, 1e-05
  %v4698 = vadd.f32 %v4660, 1e-05
  %v4699 = vadd.f32 %v4661, 1e-05
  %v4700 = vadd.f32 %v4662, 1e-05
  %v4701 = vadd.f32 %v4663, 1e-05
  %v4702 = vadd.f32 %v4664, 1e-05
  %v4703 = vadd.f32 %v4665, 1e-05
  %v4704 = vadd.f32 %v4666, 1e-05
  %v4705 = vadd.f32 %v4667, 1e-05
  %v4706 = vadd.f32 %v4668, 1e-05
  %v4707 = vadd.f32 %v4669, 1e-05
  %v4708 = vadd.f32 %v4670, 1e-05
  %v4709 = vadd.f32 %v4671, 1e-05
  %v4710 = vadd.f32 %v4672, 1e-05
  %v4711 = vadd.f32 %v4673, 1e-05
  %v4712 = vadd.f32 %v4674, 1e-05
  %v4713 = vadd.f32 %v4675, 1e-05
  %v4714 = vadd.f32 %v4676, 1e-05
  %v4715 = vadd.f32 %v4677, 1e-05
  %v4716 = vadd.f32 %v4678, 1e-05
  %v4717 = vrsqrt.pop %v4679
  %v4718 = vrsqrt.pop %v4680
  %v4719 = vrsqrt.pop %v4681
  %v4720 = vrsqrt.pop %v4682
  %v4721 = vrsqrt.pop %v4683
  %v4722 = vrsqrt.pop %v4684
  %v4723 = vrsqrt.pop %v4685
  %v4724 = vrsqrt.pop %v4686
  %v4725 = vrsqrt.pop %v4687
  %v4726 = vrsqrt.pop %v4688
  %v4727 = vrsqrt.pop %v4689
  %v4728 = vrsqrt.pop %v4690
  %v4729 = vrsqrt.pop %v4691
  %v4730 = vrsqrt.pop %v4692
  %v4731 = vrsqrt.pop %v4693
  %v4732 = vrsqrt.pop %v4694
  %v4733 = vrsqrt.pop %v4695
  %v4734 = vrsqrt.pop %v4696
  %v4735 = vrsqrt.pop %v4697
  %v4736 = vrsqrt.pop %v4698
  %v4737 = vrsqrt.pop %v4699
  %v4738 = vrsqrt.pop %v4700
  %v4739 = vrsqrt.pop %v4701
  %v4740 = vrsqrt.pop %v4702
  %v4741 = vrsqrt.pop %v4703
  %v4742 = vrsqrt.pop %v4704
  %v4743 = vrsqrt.pop %v4705
  %v4744 = vrsqrt.pop %v4706
  %v4745 = vrsqrt.pop %v4707
  %v4746 = vrsqrt.pop %v4708
  %v4747 = vrsqrt.pop %v4709
  %v4748 = vrsqrt.pop %v4710
  %v4749 = vrsqrt.pop %v4711
  %v4750 = vrsqrt.pop %v4712
  %v4751 = vrsqrt.pop %v4713
  %v4752 = vrsqrt.pop %v4714
  %v4753 = vrsqrt.pop %v4715
  %v4754 = vrsqrt.pop %v4716
  %v4755 = vld [vmem:[%s2] sm:$0x1]
  %v4756 = vld [vmem:[%s3] sm:$0x1]
  %v4757 = vsub.f32 %v28, %v4489
  %v4758 = vsub.f32 %v29, %v4490
  %v4759 = vsub.f32 %v30, %v4491
  %v4760 = vsub.f32 %v31, %v4492
  %v4761 = vsub.f32 %v32, %v4493
  %v4762 = vsub.f32 %v33, %v4494
  %v4763 = vsub.f32 %v34, %v4495
  %v4764 = vsub.f32 %v35, %v4496
  %v4765 = vsub.f32 %v36, %v4497
  %v4766 = vsub.f32 %v37, %v4498
  %v4767 = vsub.f32 %v38, %v4499
  %v4768 = vsub.f32 %v39, %v4500
  %v4769 = vsub.f32 %v40, %v4501
  %v4770 = vsub.f32 %v41, %v4502
  %v4771 = vsub.f32 %v42, %v4503
  %v4772 = vsub.f32 %v43, %v4504
  %v4773 = vsub.f32 %v44, %v4505
  %v4774 = vsub.f32 %v45, %v4506
  %v4775 = vsub.f32 %v46, %v4507
  %v4776 = vsub.f32 %v47, %v4508
  %v4777 = vsub.f32 %v48, %v4509
  %v4778 = vsub.f32 %v49, %v4510
  %v4779 = vsub.f32 %v50, %v4511
  %v4780 = vsub.f32 %v51, %v4512
  %v4781 = vsub.f32 %v52, %v4513
  %v4782 = vsub.f32 %v53, %v4514
  %v4783 = vsub.f32 %v54, %v4515
  %v4784 = vsub.f32 %v55, %v4516
  %v4785 = vsub.f32 %v56, %v4517
  %v4786 = vsub.f32 %v57, %v4518
  %v4787 = vsub.f32 %v58, %v4519
  %v4788 = vsub.f32 %v59, %v4520
  %v4789 = vsub.f32 %v60, %v4521
  %v4790 = vsub.f32 %v61, %v4522
  %v4791 = vsub.f32 %v62, %v4523
  %v4792 = vsub.f32 %v63, %v4524
  %v4793 = vsub.f32 %v64, %v4525
  %v4794 = vsub.f32 %v65, %v4526
  %v4795 = vmul.f32 %v4757, %v4717
  %v4796 = vmul.f32 %v4758, %v4718
  %v4797 = vmul.f32 %v4759, %v4719
  %v4798 = vmul.f32 %v4760, %v4720
  %v4799 = vmul.f32 %v4761, %v4721
  %v4800 = vmul.f32 %v4762, %v4722
  %v4801 = vmul.f32 %v4763, %v4723
  %v4802 = vmul.f32 %v4764, %v4724
  %v4803 = vmul.f32 %v4765, %v4725
  %v4804 = vmul.f32 %v4766, %v4726
  %v4805 = vmul.f32 %v4767, %v4727
  %v4806 = vmul.f32 %v4768, %v4728
  %v4807 = vmul.f32 %v4769, %v4729
  %v4808 = vmul.f32 %v4770, %v4730
  %v4809 = vmul.f32 %v4771, %v4731
  %v4810 = vmul.f32 %v4772, %v4732
  %v4811 = vmul.f32 %v4773, %v4733
  %v4812 = vmul.f32 %v4774, %v4734
  %v4813 = vmul.f32 %v4775, %v4735
  %v4814 = vmul.f32 %v4776, %v4736
  %v4815 = vmul.f32 %v4777, %v4737
  %v4816 = vmul.f32 %v4778, %v4738
  %v4817 = vmul.f32 %v4779, %v4739
  %v4818 = vmul.f32 %v4780, %v4740
  %v4819 = vmul.f32 %v4781, %v4741
  %v4820 = vmul.f32 %v4782, %v4742
  %v4821 = vmul.f32 %v4783, %v4743
  %v4822 = vmul.f32 %v4784, %v4744
  %v4823 = vmul.f32 %v4785, %v4745
  %v4824 = vmul.f32 %v4786, %v4746
  %v4825 = vmul.f32 %v4787, %v4747
  %v4826 = vmul.f32 %v4788, %v4748
  %v4827 = vmul.f32 %v4789, %v4749
  %v4828 = vmul.f32 %v4790, %v4750
  %v4829 = vmul.f32 %v4791, %v4751
  %v4830 = vmul.f32 %v4792, %v4752
  %v4831 = vmul.f32 %v4793, %v4753
  %v4832 = vmul.f32 %v4794, %v4754
  %v4834 = vlaneseq
  %v4835 = vshrl.u32 %v4834, 7
  %v4836 = vsub.s32 0, %v4835
  %v4837 = vrot.slane %v4755, %v4836
  %v4839 = vmul.f32 %v4795, %v4837
  %v4840 = vmul.f32 %v4796, %v4837
  %v4841 = vmul.f32 %v4797, %v4837
  %v4842 = vmul.f32 %v4798, %v4837
  %v4843 = vmul.f32 %v4799, %v4837
  %v4844 = vmul.f32 %v4800, %v4837
  %v4845 = vmul.f32 %v4801, %v4837
  %v4846 = vmul.f32 %v4802, %v4837
  %v4847 = vmul.f32 %v4803, %v4837
  %v4848 = vmul.f32 %v4804, %v4837
  %v4849 = vmul.f32 %v4805, %v4837
  %v4850 = vmul.f32 %v4806, %v4837
  %v4851 = vmul.f32 %v4807, %v4837
  %v4852 = vmul.f32 %v4808, %v4837
  %v4853 = vmul.f32 %v4809, %v4837
  %v4854 = vmul.f32 %v4810, %v4837
  %v4855 = vmul.f32 %v4811, %v4837
  %v4856 = vmul.f32 %v4812, %v4837
  %v4857 = vmul.f32 %v4813, %v4837
  %v4858 = vmul.f32 %v4814, %v4837
  %v4859 = vmul.f32 %v4815, %v4837
  %v4860 = vmul.f32 %v4816, %v4837
  %v4861 = vmul.f32 %v4817, %v4837
  %v4862 = vmul.f32 %v4818, %v4837
  %v4863 = vmul.f32 %v4819, %v4837
  %v4864 = vmul.f32 %v4820, %v4837
  %v4865 = vmul.f32 %v4821, %v4837
  %v4866 = vmul.f32 %v4822, %v4837
  %v4867 = vmul.f32 %v4823, %v4837
  %v4868 = vmul.f32 %v4824, %v4837
  %v4869 = vmul.f32 %v4825, %v4837
  %v4870 = vmul.f32 %v4826, %v4837
  %v4871 = vmul.f32 %v4827, %v4837
  %v4872 = vmul.f32 %v4828, %v4837
  %v4873 = vmul.f32 %v4829, %v4837
  %v4874 = vmul.f32 %v4830, %v4837
  %v4875 = vmul.f32 %v4831, %v4837
  %v4876 = vmul.f32 %v4832, %v4837
  %v4878 = vlaneseq
  %v4879 = vshrl.u32 %v4878, 7
  %v4880 = vsub.s32 0, %v4879
  %v4881 = vrot.slane %v4756, %v4880
  %v4883 = vadd.f32 %v4839, %v4881
  %v4884 = vadd.f32 %v4840, %v4881
  %v4885 = vadd.f32 %v4841, %v4881
  %v4886 = vadd.f32 %v4842, %v4881
  %v4887 = vadd.f32 %v4843, %v4881
  %v4888 = vadd.f32 %v4844, %v4881
  %v4889 = vadd.f32 %v4845, %v4881
  %v4890 = vadd.f32 %v4846, %v4881
  %v4891 = vadd.f32 %v4847, %v4881
  %v4892 = vadd.f32 %v4848, %v4881
  %v4893 = vadd.f32 %v4849, %v4881
  %v4894 = vadd.f32 %v4850, %v4881
  %v4895 = vadd.f32 %v4851, %v4881
  %v4896 = vadd.f32 %v4852, %v4881
  %v4897 = vadd.f32 %v4853, %v4881
  %v4898 = vadd.f32 %v4854, %v4881
  %v4899 = vadd.f32 %v4855, %v4881
  %v4900 = vadd.f32 %v4856, %v4881
  %v4901 = vadd.f32 %v4857, %v4881
  %v4902 = vadd.f32 %v4858, %v4881
  %v4903 = vadd.f32 %v4859, %v4881
  %v4904 = vadd.f32 %v4860, %v4881
  %v4905 = vadd.f32 %v4861, %v4881
  %v4906 = vadd.f32 %v4862, %v4881
  %v4907 = vadd.f32 %v4863, %v4881
  %v4908 = vadd.f32 %v4864, %v4881
  %v4909 = vadd.f32 %v4865, %v4881
  %v4910 = vadd.f32 %v4866, %v4881
  %v4911 = vadd.f32 %v4867, %v4881
  %v4912 = vadd.f32 %v4868, %v4881
  %v4913 = vadd.f32 %v4869, %v4881
  %v4914 = vadd.f32 %v4870, %v4881
  %v4915 = vadd.f32 %v4871, %v4881
  %v4916 = vadd.f32 %v4872, %v4881
  %v4917 = vadd.f32 %v4873, %v4881
  %v4918 = vadd.f32 %v4874, %v4881
  %v4919 = vadd.f32 %v4875, %v4881
  %v4920 = vadd.f32 %v4876, %v4881
  %4921 = vst.msk [vmem:[%s7] sm:$0xff] %vm70, %v4883
  %4922 = vst.msk [vmem:[%s7 + $0x8] sm:$0xff] %vm70, %v4884
  %4923 = vst.msk [vmem:[%s7 + $0x10] sm:$0xff] %vm70, %v4885
  %4924 = vst.msk [vmem:[%s7 + $0x18] sm:$0xff] %vm70, %v4886
  %4925 = vst.msk [vmem:[%s7 + $0x20] sm:$0xff] %vm70, %v4887
  %4926 = vst.msk [vmem:[%s7 + $0x28] sm:$0xff] %vm70, %v4888
  %4927 = vst.msk [vmem:[%s7 + $0x30] sm:$0xff] %vm70, %v4889
  %4928 = vst.msk [vmem:[%s7 + $0x38] sm:$0xff] %vm70, %v4890
  %4929 = vst.msk [vmem:[%s7 + $0x40] sm:$0xff] %vm70, %v4891
  %4930 = vst.msk [vmem:[%s7 + $0x48] sm:$0xff] %vm70, %v4892
  %4931 = vst.msk [vmem:[%s7 + $0x50] sm:$0xff] %vm70, %v4893
  %4932 = vst.msk [vmem:[%s7 + $0x58] sm:$0xff] %vm70, %v4894
  %4933 = vst.msk [vmem:[%s7 + $0x60] sm:$0xff] %vm70, %v4895
  %4934 = vst.msk [vmem:[%s7 + $0x68] sm:$0xff] %vm70, %v4896
  %4935 = vst.msk [vmem:[%s7 + $0x70] sm:$0xff] %vm70, %v4897
  %4936 = vst.msk [vmem:[%s7 + $0x78] sm:$0xff] %vm70, %v4898
  %4937 = vst.msk [vmem:[%s7 + $0x80] sm:$0xff] %vm70, %v4899
  %4938 = vst.msk [vmem:[%s7 + $0x88] sm:$0xff] %vm70, %v4900
  %4939 = vst.msk [vmem:[%s7 + $0x90] sm:$0xff] %vm70, %v4901
  %4940 = vst.msk [vmem:[%s7 + $0x98] sm:$0xff] %vm70, %v4902
  %4941 = vst.msk [vmem:[%s7 + $0xa0] sm:$0xff] %vm70, %v4903
  %4942 = vst.msk [vmem:[%s7 + $0xa8] sm:$0xff] %vm70, %v4904
  %4943 = vst.msk [vmem:[%s7 + $0xb0] sm:$0xff] %vm70, %v4905
  %4944 = vst.msk [vmem:[%s7 + $0xb8] sm:$0xff] %vm70, %v4906
  %4945 = vst.msk [vmem:[%s7 + $0xc0] sm:$0xff] %vm70, %v4907
  %4946 = vst.msk [vmem:[%s7 + $0xc8] sm:$0xff] %vm70, %v4908
  %4947 = vst.msk [vmem:[%s7 + $0xd0] sm:$0xff] %vm70, %v4909
  %4948 = vst.msk [vmem:[%s7 + $0xd8] sm:$0xff] %vm70, %v4910
  %4949 = vst.msk [vmem:[%s7 + $0xe0] sm:$0xff] %vm70, %v4911
  %4950 = vst.msk [vmem:[%s7 + $0xe8] sm:$0xff] %vm70, %v4912
  %4951 = vst.msk [vmem:[%s7 + $0xf0] sm:$0xff] %vm70, %v4913
  %4952 = vst.msk [vmem:[%s7 + $0xf8] sm:$0xff] %vm70, %v4914
  %4953 = vst.msk [vmem:[%s7 + $0x100] sm:$0xff] %vm70, %v4915
  %4954 = vst.msk [vmem:[%s7 + $0x108] sm:$0xff] %vm70, %v4916
  %4955 = vst.msk [vmem:[%s7 + $0x110] sm:$0xff] %vm70, %v4917
  %4956 = vst.msk [vmem:[%s7 + $0x118] sm:$0xff] %vm70, %v4918
  %4957 = vst.msk [vmem:[%s7 + $0x120] sm:$0xff] %vm70, %v4919
  %4958 = vst.msk [vmem:[%s7 + $0x128] sm:$0xff] %vm70, %v4920
  %v4959 = vld [vmem:[%s1] sm:$0xff]
  %v4960 = vld [vmem:[%s1 + $0x8] sm:$0xff]
  %v4961 = vld [vmem:[%s1 + $0x10] sm:$0xff]
  %v4962 = vld [vmem:[%s1 + $0x18] sm:$0xff]
  %v4963 = vld [vmem:[%s1 + $0x20] sm:$0xff]
  %v4964 = vld [vmem:[%s1 + $0x28] sm:$0xff]
  %v4965 = vld [vmem:[%s1 + $0x30] sm:$0xff]
  %v4966 = vld [vmem:[%s1 + $0x38] sm:$0xff]
  %v4967 = vld [vmem:[%s1 + $0x40] sm:$0xff]
  %v4968 = vld [vmem:[%s1 + $0x48] sm:$0xff]
  %v4969 = vld [vmem:[%s1 + $0x50] sm:$0xff]
  %v4970 = vld [vmem:[%s1 + $0x58] sm:$0xff]
  %v4971 = vld [vmem:[%s1 + $0x60] sm:$0xff]
  %v4972 = vld [vmem:[%s1 + $0x68] sm:$0xff]
  %v4973 = vld [vmem:[%s1 + $0x70] sm:$0xff]
  %v4974 = vld [vmem:[%s1 + $0x78] sm:$0xff]
  %v4975 = vld [vmem:[%s1 + $0x80] sm:$0xff]
  %v4976 = vld [vmem:[%s1 + $0x88] sm:$0xff]
  %v4977 = vld [vmem:[%s1 + $0x90] sm:$0xff]
  %v4978 = vld [vmem:[%s1 + $0x98] sm:$0xff]
  %v4979 = vld [vmem:[%s1 + $0xa0] sm:$0xff]
  %v4980 = vld [vmem:[%s1 + $0xa8] sm:$0xff]
  %v4981 = vld [vmem:[%s1 + $0xb0] sm:$0xff]
  %v4982 = vld [vmem:[%s1 + $0xb8] sm:$0xff]
  %v4983 = vld [vmem:[%s1 + $0xc0] sm:$0xff]
  %v4984 = vld [vmem:[%s1 + $0xc8] sm:$0xff]
  %v4985 = vld [vmem:[%s1 + $0xd0] sm:$0xff]
  %v4986 = vld [vmem:[%s1 + $0xd8] sm:$0xff]
  %v4987 = vld [vmem:[%s1 + $0xe0] sm:$0xff]
  %v4988 = vld [vmem:[%s1 + $0xe8] sm:$0xff]
  %v4989 = vld [vmem:[%s1 + $0xf0] sm:$0xff]
  %v4990 = vld [vmem:[%s1 + $0xf8] sm:$0xff]
  %v4991 = vld [vmem:[%s1 + $0x100] sm:$0xff]
  %v4992 = vld [vmem:[%s1 + $0x108] sm:$0xff]
  %v4993 = vld [vmem:[%s1 + $0x110] sm:$0xff]
  %v4994 = vld [vmem:[%s1 + $0x118] sm:$0xff]
  %v4995 = vld [vmem:[%s1 + $0x120] sm:$0xff]
  %v4996 = vld [vmem:[%s1 + $0x128] sm:$0xff]
  %v4997 = vmul.f32 %v4959, %v4959
  %v4998 = vmul.f32 %v4960, %v4960
  %v4999 = vmul.f32 %v4961, %v4961
  %v5000 = vmul.f32 %v4962, %v4962
  %v5001 = vmul.f32 %v4963, %v4963
  %v5002 = vmul.f32 %v4964, %v4964
  %v5003 = vmul.f32 %v4965, %v4965
  %v5004 = vmul.f32 %v4966, %v4966
  %v5005 = vmul.f32 %v4967, %v4967
  %v5006 = vmul.f32 %v4968, %v4968
  %v5007 = vmul.f32 %v4969, %v4969
  %v5008 = vmul.f32 %v4970, %v4970
  %v5009 = vmul.f32 %v4971, %v4971
  %v5010 = vmul.f32 %v4972, %v4972
  %v5011 = vmul.f32 %v4973, %v4973
  %v5012 = vmul.f32 %v4974, %v4974
  %v5013 = vmul.f32 %v4975, %v4975
  %v5014 = vmul.f32 %v4976, %v4976
  %v5015 = vmul.f32 %v4977, %v4977
  %v5016 = vmul.f32 %v4978, %v4978
  %v5017 = vmul.f32 %v4979, %v4979
  %v5018 = vmul.f32 %v4980, %v4980
  %v5019 = vmul.f32 %v4981, %v4981
  %v5020 = vmul.f32 %v4982, %v4982
  %v5021 = vmul.f32 %v4983, %v4983
  %v5022 = vmul.f32 %v4984, %v4984
  %v5023 = vmul.f32 %v4985, %v4985
  %v5024 = vmul.f32 %v4986, %v4986
  %v5025 = vmul.f32 %v4987, %v4987
  %v5026 = vmul.f32 %v4988, %v4988
  %v5027 = vmul.f32 %v4989, %v4989
  %v5028 = vmul.f32 %v4990, %v4990
  %v5029 = vmul.f32 %v4991, %v4991
  %v5030 = vmul.f32 %v4992, %v4992
  %v5031 = vmul.f32 %v4993, %v4993
  %v5032 = vmul.f32 %v4994, %v4994
  %v5033 = vmul.f32 %v4995, %v4995
  %v5034 = vmul.f32 %v4996, %v4996
  %v5035 = vld [vmem:[%s5] sm:$0xff]
  %v5036 = vld [vmem:[%s5 + $0x8] sm:$0xf]
  %vm5037 = vcmask 97280
  %v5039 = vsel %vm5037, %v4997, 0
  %v5042 = vsel %vm5037, %v4998, 0
  %v5045 = vsel %vm5037, %v4999, 0
  %v5048 = vsel %vm5037, %v5000, 0
  %v5051 = vsel %vm5037, %v5001, 0
  %v5054 = vsel %vm5037, %v5002, 0
  %v5057 = vsel %vm5037, %v5003, 0
  %v5060 = vsel %vm5037, %v5004, 0
  %v5063 = vsel %vm5037, %v5005, 0
  %v5066 = vsel %vm5037, %v5006, 0
  %v5069 = vsel %vm5037, %v5007, 0
  %v5072 = vsel %vm5037, %v5008, 0
  %v5075 = vsel %vm5037, %v5009, 0
  %v5078 = vsel %vm5037, %v5010, 0
  %v5081 = vsel %vm5037, %v5011, 0
  %v5084 = vsel %vm5037, %v5012, 0
  %v5087 = vsel %vm5037, %v5013, 0
  %v5090 = vsel %vm5037, %v5014, 0
  %v5093 = vsel %vm5037, %v5015, 0
  %v5096 = vsel %vm5037, %v5016, 0
  %v5099 = vsel %vm5037, %v5017, 0
  %v5102 = vsel %vm5037, %v5018, 0
  %v5105 = vsel %vm5037, %v5019, 0
  %v5108 = vsel %vm5037, %v5020, 0
  %v5111 = vsel %vm5037, %v5021, 0
  %v5114 = vsel %vm5037, %v5022, 0
  %v5117 = vsel %vm5037, %v5023, 0
  %v5120 = vsel %vm5037, %v5024, 0
  %v5123 = vsel %vm5037, %v5025, 0
  %v5126 = vsel %vm5037, %v5026, 0
  %v5129 = vsel %vm5037, %v5027, 0
  %v5132 = vsel %vm5037, %v5028, 0
  %v5135 = vsel %vm5037, %v5029, 0
  %v5138 = vsel %vm5037, %v5030, 0
  %v5141 = vsel %vm5037, %v5031, 0
  %v5144 = vsel %vm5037, %v5032, 0
  %v5147 = vsel %vm5037, %v5033, 0
  %v5150 = vsel %vm5037, %v5034, 0
  %vm5152 = vcmask 1043456
  %v5154 = vsel %vm5152, %v5036, 0
  %5156 = vmatprep.subr.mxu0 0.0
  %5157 = vmatpush1.msra.mxu0 0.0
  %5158 = vmatprep.subr.mxu0 0.0
  %5159 = vmatpush1.msra.mxu0 0.0
  %5160 = vmatprep.subr.mxu0 0.0
  %5161 = vmatpush1.msra.mxu0 0.0
  %5162 = vmatprep.subr.mxu0 0.0
  %5163 = vmatpush1.msra.mxu0 0.0
  %5164 = vmatprep.subr.mxu0 0.0
  %5165 = vmatpush1.msra.mxu0 0.0
  %5166 = vmatprep.subr.mxu0 0.0
  %5167 = vmatpush1.msra.mxu0 0.0
  %5168 = vmatprep.subr.mxu0 0.0
  %5169 = vmatpush1.msra.mxu0 0.0
  %5170 = vmatprep.subr.mxu0 0.0
  %5171 = vmatpush1.msra.mxu0 0.0
  %5172 = vmatprep.subr.mxu0 0.0
  %5173 = vmatpush1.msra.mxu0 0.0
  %5174 = vmatprep.subr.mxu0 0.0
  %5175 = vmatpush1.msra.mxu0 0.0
  %5176 = vmatprep.subr.mxu0 0.0
  %5177 = vmatpush1.msra.mxu0 0.0
  %5178 = vmatprep.subr.mxu0 0.0
  %5179 = vmatpush1.msra.mxu0 0.0
  %5180 = vmatprep.subr.mxu0 0.0
  %5181 = vmatpush1.msra.mxu0 0.0
  %5182 = vmatprep.subr.mxu0 0.0
  %5183 = vmatpush1.msra.mxu0 0.0
  %5184 = vmatprep.subr.mxu0 0.0
  %v5185 = vand.u32 %v5154, 4294901760
  %5186 = vmatpush1.msra.mxu0 %v5185
  %5187 = vmatprep.subr.mxu0 0.0
  %v5188 = vand.u32 %v5035, 4294901760
  %5189 = vmatpush1.msra.mxu0 %v5188
  %5190 = vmatprep.subr.mxu0 0.0
  %5191 = vmatpush2.msra.mxu0 0.0
  %5192 = vmatprep.subr.mxu0 0.0
  %5193 = vmatpush2.msra.mxu0 0.0
  %5194 = vmatprep.subr.mxu0 0.0
  %5195 = vmatpush2.msra.mxu0 0.0
  %5196 = vmatprep.subr.mxu0 0.0
  %5197 = vmatpush2.msra.mxu0 0.0
  %5198 = vmatprep.subr.mxu0 0.0
  %5199 = vmatpush2.msra.mxu0 0.0
  %5200 = vmatprep.subr.mxu0 0.0
  %5201 = vmatpush2.msra.mxu0 0.0
  %5202 = vmatprep.subr.mxu0 0.0
  %5203 = vmatpush2.msra.mxu0 0.0
  %5204 = vmatprep.subr.mxu0 0.0
  %5205 = vmatpush2.msra.mxu0 0.0
  %5206 = vmatprep.subr.mxu0 0.0
  %5207 = vmatpush2.msra.mxu0 0.0
  %5208 = vmatprep.subr.mxu0 0.0
  %5209 = vmatpush2.msra.mxu0 0.0
  %5210 = vmatprep.subr.mxu0 0.0
  %5211 = vmatpush2.msra.mxu0 0.0
  %5212 = vmatprep.subr.mxu0 0.0
  %5213 = vmatpush2.msra.mxu0 0.0
  %5214 = vmatprep.subr.mxu0 0.0
  %5215 = vmatpush2.msra.mxu0 0.0
  %5216 = vmatprep.subr.mxu0 0.0
  %5217 = vmatpush2.msra.mxu0 0.0
  %5218 = vmatprep.subr.mxu0 0.0
  %5219 = vmatpush2.msra.mxu0 0.0
  %5220 = vmatprep.subr.mxu0 0.0
  %5221 = vmatpush2.msra.mxu0 0.0
  %5222 = vmatprep.mubr.f32.mxu0 0.0
  %v5223 = vand.u32 %v5039, 4294901760
  %v5224 = vsub.f32 %v5039, %v5223
  %v5225 = vand.u32 %v5224, 4294901760
  %v5226 = vsub.f32 %v5224, %v5225
  %v5227 = vand.u32 %v5226, 4294901760
  %5228 = vmatmul.mubr.f32.gmra.mxu0 %v5227
  %v5229 = vpop.f32.mrf.mxu0
  %v5230 = vadd.f32 0.0, %v5229
  %v5231 = vpop.f32.mrf.mxu0
  %5232 = vmatprep.mubr.f32.mxu0 0.0
  %v5233 = vand.u32 %v5042, 4294901760
  %v5234 = vsub.f32 %v5042, %v5233
  %v5235 = vand.u32 %v5234, 4294901760
  %v5236 = vsub.f32 %v5234, %v5235
  %v5237 = vand.u32 %v5236, 4294901760
  %5238 = vmatmul.mubr.f32.gmra.mxu0 %v5237
  %v5239 = vpop.f32.mrf.mxu0
  %v5240 = vadd.f32 0.0, %v5239
  %v5241 = vpop.f32.mrf.mxu0
  %5242 = vmatprep.mubr.f32.mxu0 0.0
  %v5243 = vand.u32 %v5045, 4294901760
  %v5244 = vsub.f32 %v5045, %v5243
  %v5245 = vand.u32 %v5244, 4294901760
  %v5246 = vsub.f32 %v5244, %v5245
  %v5247 = vand.u32 %v5246, 4294901760
  %5248 = vmatmul.mubr.f32.gmra.mxu0 %v5247
  %v5249 = vpop.f32.mrf.mxu0
  %v5250 = vadd.f32 0.0, %v5249
  %v5251 = vpop.f32.mrf.mxu0
  %5252 = vmatprep.mubr.f32.mxu0 0.0
  %v5253 = vand.u32 %v5048, 4294901760
  %v5254 = vsub.f32 %v5048, %v5253
  %v5255 = vand.u32 %v5254, 4294901760
  %v5256 = vsub.f32 %v5254, %v5255
  %v5257 = vand.u32 %v5256, 4294901760
  %5258 = vmatmul.mubr.f32.gmra.mxu0 %v5257
  %v5259 = vpop.f32.mrf.mxu0
  %v5260 = vadd.f32 0.0, %v5259
  %v5261 = vpop.f32.mrf.mxu0
  %5262 = vmatprep.mubr.f32.mxu0 0.0
  %v5263 = vand.u32 %v5051, 4294901760
  %v5264 = vsub.f32 %v5051, %v5263
  %v5265 = vand.u32 %v5264, 4294901760
  %v5266 = vsub.f32 %v5264, %v5265
  %v5267 = vand.u32 %v5266, 4294901760
  %5268 = vmatmul.mubr.f32.gmra.mxu0 %v5267
  %v5269 = vpop.f32.mrf.mxu0
  %v5270 = vadd.f32 0.0, %v5269
  %v5271 = vpop.f32.mrf.mxu0
  %5272 = vmatprep.mubr.f32.mxu0 0.0
  %v5273 = vand.u32 %v5054, 4294901760
  %v5274 = vsub.f32 %v5054, %v5273
  %v5275 = vand.u32 %v5274, 4294901760
  %v5276 = vsub.f32 %v5274, %v5275
  %v5277 = vand.u32 %v5276, 4294901760
  %5278 = vmatmul.mubr.f32.gmra.mxu0 %v5277
  %v5279 = vpop.f32.mrf.mxu0
  %v5280 = vadd.f32 0.0, %v5279
  %v5281 = vpop.f32.mrf.mxu0
  %5282 = vmatprep.mubr.f32.mxu0 0.0
  %v5283 = vand.u32 %v5057, 4294901760
  %v5284 = vsub.f32 %v5057, %v5283
  %v5285 = vand.u32 %v5284, 4294901760
  %v5286 = vsub.f32 %v5284, %v5285
  %v5287 = vand.u32 %v5286, 4294901760
  %5288 = vmatmul.mubr.f32.gmra.mxu0 %v5287
  %v5289 = vpop.f32.mrf.mxu0
  %v5290 = vadd.f32 0.0, %v5289
  %v5291 = vpop.f32.mrf.mxu0
  %5292 = vmatprep.mubr.f32.mxu0 0.0
  %v5293 = vand.u32 %v5060, 4294901760
  %v5294 = vsub.f32 %v5060, %v5293
  %v5295 = vand.u32 %v5294, 4294901760
  %v5296 = vsub.f32 %v5294, %v5295
  %v5297 = vand.u32 %v5296, 4294901760
  %5298 = vmatmul.mubr.f32.gmra.mxu0 %v5297
  %v5299 = vpop.f32.mrf.mxu0
  %v5300 = vadd.f32 0.0, %v5299
  %v5301 = vpop.f32.mrf.mxu0
  %5302 = vmatprep.mubr.f32.mxu0 0.0
  %v5303 = vand.u32 %v5063, 4294901760
  %v5304 = vsub.f32 %v5063, %v5303
  %v5305 = vand.u32 %v5304, 4294901760
  %v5306 = vsub.f32 %v5304, %v5305
  %v5307 = vand.u32 %v5306, 4294901760
  %5308 = vmatmul.mubr.f32.gmra.mxu0 %v5307
  %v5309 = vpop.f32.mrf.mxu0
  %v5310 = vadd.f32 0.0, %v5309
  %v5311 = vpop.f32.mrf.mxu0
  %5312 = vmatprep.mubr.f32.mxu0 0.0
  %v5313 = vand.u32 %v5066, 4294901760
  %v5314 = vsub.f32 %v5066, %v5313
  %v5315 = vand.u32 %v5314, 4294901760
  %v5316 = vsub.f32 %v5314, %v5315
  %v5317 = vand.u32 %v5316, 4294901760
  %5318 = vmatmul.mubr.f32.gmra.mxu0 %v5317
  %v5319 = vpop.f32.mrf.mxu0
  %v5320 = vadd.f32 0.0, %v5319
  %v5321 = vpop.f32.mrf.mxu0
  %5322 = vmatprep.mubr.f32.mxu0 0.0
  %v5323 = vand.u32 %v5069, 4294901760
  %v5324 = vsub.f32 %v5069, %v5323
  %v5325 = vand.u32 %v5324, 4294901760
  %v5326 = vsub.f32 %v5324, %v5325
  %v5327 = vand.u32 %v5326, 4294901760
  %5328 = vmatmul.mubr.f32.gmra.mxu0 %v5327
  %v5329 = vpop.f32.mrf.mxu0
  %v5330 = vadd.f32 0.0, %v5329
  %v5331 = vpop.f32.mrf.mxu0
  %5332 = vmatprep.mubr.f32.mxu0 0.0
  %v5333 = vand.u32 %v5072, 4294901760
  %v5334 = vsub.f32 %v5072, %v5333
  %v5335 = vand.u32 %v5334, 4294901760
  %v5336 = vsub.f32 %v5334, %v5335
  %v5337 = vand.u32 %v5336, 4294901760
  %5338 = vmatmul.mubr.f32.gmra.mxu0 %v5337
  %v5339 = vpop.f32.mrf.mxu0
  %v5340 = vadd.f32 0.0, %v5339
  %v5341 = vpop.f32.mrf.mxu0
  %5342 = vmatprep.mubr.f32.mxu0 0.0
  %v5343 = vand.u32 %v5075, 4294901760
  %v5344 = vsub.f32 %v5075, %v5343
  %v5345 = vand.u32 %v5344, 4294901760
  %v5346 = vsub.f32 %v5344, %v5345
  %v5347 = vand.u32 %v5346, 4294901760
  %5348 = vmatmul.mubr.f32.gmra.mxu0 %v5347
  %v5349 = vpop.f32.mrf.mxu0
  %v5350 = vadd.f32 0.0, %v5349
  %v5351 = vpop.f32.mrf.mxu0
  %5352 = vmatprep.mubr.f32.mxu0 0.0
  %v5353 = vand.u32 %v5078, 4294901760
  %v5354 = vsub.f32 %v5078, %v5353
  %v5355 = vand.u32 %v5354, 4294901760
  %v5356 = vsub.f32 %v5354, %v5355
  %v5357 = vand.u32 %v5356, 4294901760
  %5358 = vmatmul.mubr.f32.gmra.mxu0 %v5357
  %v5359 = vpop.f32.mrf.mxu0
  %v5360 = vadd.f32 0.0, %v5359
  %v5361 = vpop.f32.mrf.mxu0
  %5362 = vmatprep.mubr.f32.mxu0 0.0
  %v5363 = vand.u32 %v5081, 4294901760
  %v5364 = vsub.f32 %v5081, %v5363
  %v5365 = vand.u32 %v5364, 4294901760
  %v5366 = vsub.f32 %v5364, %v5365
  %v5367 = vand.u32 %v5366, 4294901760
  %5368 = vmatmul.mubr.f32.gmra.mxu0 %v5367
  %v5369 = vpop.f32.mrf.mxu0
  %v5370 = vadd.f32 0.0, %v5369
  %v5371 = vpop.f32.mrf.mxu0
  %5372 = vmatprep.mubr.f32.mxu0 0.0
  %v5373 = vand.u32 %v5084, 4294901760
  %v5374 = vsub.f32 %v5084, %v5373
  %v5375 = vand.u32 %v5374, 4294901760
  %v5376 = vsub.f32 %v5374, %v5375
  %v5377 = vand.u32 %v5376, 4294901760
  %5378 = vmatmul.mubr.f32.gmra.mxu0 %v5377
  %v5379 = vpop.f32.mrf.mxu0
  %v5380 = vadd.f32 0.0, %v5379
  %v5381 = vpop.f32.mrf.mxu0
  %5382 = vmatprep.mubr.f32.mxu0 0.0
  %v5383 = vand.u32 %v5087, 4294901760
  %v5384 = vsub.f32 %v5087, %v5383
  %v5385 = vand.u32 %v5384, 4294901760
  %v5386 = vsub.f32 %v5384, %v5385
  %v5387 = vand.u32 %v5386, 4294901760
  %5388 = vmatmul.mubr.f32.gmra.mxu0 %v5387
  %v5389 = vpop.f32.mrf.mxu0
  %v5390 = vadd.f32 0.0, %v5389
  %v5391 = vpop.f32.mrf.mxu0
  %5392 = vmatprep.mubr.f32.mxu0 0.0
  %v5393 = vand.u32 %v5090, 4294901760
  %v5394 = vsub.f32 %v5090, %v5393
  %v5395 = vand.u32 %v5394, 4294901760
  %v5396 = vsub.f32 %v5394, %v5395
  %v5397 = vand.u32 %v5396, 4294901760
  %5398 = vmatmul.mubr.f32.gmra.mxu0 %v5397
  %v5399 = vpop.f32.mrf.mxu0
  %v5400 = vadd.f32 0.0, %v5399
  %v5401 = vpop.f32.mrf.mxu0
  %5402 = vmatprep.mubr.f32.mxu0 0.0
  %v5403 = vand.u32 %v5093, 4294901760
  %v5404 = vsub.f32 %v5093, %v5403
  %v5405 = vand.u32 %v5404, 4294901760
  %v5406 = vsub.f32 %v5404, %v5405
  %v5407 = vand.u32 %v5406, 4294901760
  %5408 = vmatmul.mubr.f32.gmra.mxu0 %v5407
  %v5409 = vpop.f32.mrf.mxu0
  %v5410 = vadd.f32 0.0, %v5409
  %v5411 = vpop.f32.mrf.mxu0
  %5412 = vmatprep.mubr.f32.mxu0 0.0
  %v5413 = vand.u32 %v5096, 4294901760
  %v5414 = vsub.f32 %v5096, %v5413
  %v5415 = vand.u32 %v5414, 4294901760
  %v5416 = vsub.f32 %v5414, %v5415
  %v5417 = vand.u32 %v5416, 4294901760
  %5418 = vmatmul.mubr.f32.gmra.mxu0 %v5417
  %v5419 = vpop.f32.mrf.mxu0
  %v5420 = vadd.f32 0.0, %v5419
  %v5421 = vpop.f32.mrf.mxu0
  %5422 = vmatprep.mubr.f32.mxu0 0.0
  %v5423 = vand.u32 %v5099, 4294901760
  %v5424 = vsub.f32 %v5099, %v5423
  %v5425 = vand.u32 %v5424, 4294901760
  %v5426 = vsub.f32 %v5424, %v5425
  %v5427 = vand.u32 %v5426, 4294901760
  %5428 = vmatmul.mubr.f32.gmra.mxu0 %v5427
  %v5429 = vpop.f32.mrf.mxu0
  %v5430 = vadd.f32 0.0, %v5429
  %v5431 = vpop.f32.mrf.mxu0
  %5432 = vmatprep.mubr.f32.mxu0 0.0
  %v5433 = vand.u32 %v5102, 4294901760
  %v5434 = vsub.f32 %v5102, %v5433
  %v5435 = vand.u32 %v5434, 4294901760
  %v5436 = vsub.f32 %v5434, %v5435
  %v5437 = vand.u32 %v5436, 4294901760
  %5438 = vmatmul.mubr.f32.gmra.mxu0 %v5437
  %v5439 = vpop.f32.mrf.mxu0
  %v5440 = vadd.f32 0.0, %v5439
  %v5441 = vpop.f32.mrf.mxu0
  %5442 = vmatprep.mubr.f32.mxu0 0.0
  %v5443 = vand.u32 %v5105, 4294901760
  %v5444 = vsub.f32 %v5105, %v5443
  %v5445 = vand.u32 %v5444, 4294901760
  %v5446 = vsub.f32 %v5444, %v5445
  %v5447 = vand.u32 %v5446, 4294901760
  %5448 = vmatmul.mubr.f32.gmra.mxu0 %v5447
  %v5449 = vpop.f32.mrf.mxu0
  %v5450 = vadd.f32 0.0, %v5449
  %v5451 = vpop.f32.mrf.mxu0
  %5452 = vmatprep.mubr.f32.mxu0 0.0
  %v5453 = vand.u32 %v5108, 4294901760
  %v5454 = vsub.f32 %v5108, %v5453
  %v5455 = vand.u32 %v5454, 4294901760
  %v5456 = vsub.f32 %v5454, %v5455
  %v5457 = vand.u32 %v5456, 4294901760
  %5458 = vmatmul.mubr.f32.gmra.mxu0 %v5457
  %v5459 = vpop.f32.mrf.mxu0
  %v5460 = vadd.f32 0.0, %v5459
  %v5461 = vpop.f32.mrf.mxu0
  %5462 = vmatprep.mubr.f32.mxu0 0.0
  %v5463 = vand.u32 %v5111, 4294901760
  %v5464 = vsub.f32 %v5111, %v5463
  %v5465 = vand.u32 %v5464, 4294901760
  %v5466 = vsub.f32 %v5464, %v5465
  %v5467 = vand.u32 %v5466, 4294901760
  %5468 = vmatmul.mubr.f32.gmra.mxu0 %v5467
  %v5469 = vpop.f32.mrf.mxu0
  %v5470 = vadd.f32 0.0, %v5469
  %v5471 = vpop.f32.mrf.mxu0
  %5472 = vmatprep.mubr.f32.mxu0 0.0
  %v5473 = vand.u32 %v5114, 4294901760
  %v5474 = vsub.f32 %v5114, %v5473
  %v5475 = vand.u32 %v5474, 4294901760
  %v5476 = vsub.f32 %v5474, %v5475
  %v5477 = vand.u32 %v5476, 4294901760
  %5478 = vmatmul.mubr.f32.gmra.mxu0 %v5477
  %v5479 = vpop.f32.mrf.mxu0
  %v5480 = vadd.f32 0.0, %v5479
  %v5481 = vpop.f32.mrf.mxu0
  %5482 = vmatprep.mubr.f32.mxu0 0.0
  %v5483 = vand.u32 %v5117, 4294901760
  %v5484 = vsub.f32 %v5117, %v5483
  %v5485 = vand.u32 %v5484, 4294901760
  %v5486 = vsub.f32 %v5484, %v5485
  %v5487 = vand.u32 %v5486, 4294901760
  %5488 = vmatmul.mubr.f32.gmra.mxu0 %v5487
  %v5489 = vpop.f32.mrf.mxu0
  %v5490 = vadd.f32 0.0, %v5489
  %v5491 = vpop.f32.mrf.mxu0
  %5492 = vmatprep.mubr.f32.mxu0 0.0
  %v5493 = vand.u32 %v5120, 4294901760
  %v5494 = vsub.f32 %v5120, %v5493
  %v5495 = vand.u32 %v5494, 4294901760
  %v5496 = vsub.f32 %v5494, %v5495
  %v5497 = vand.u32 %v5496, 4294901760
  %5498 = vmatmul.mubr.f32.gmra.mxu0 %v5497
  %v5499 = vpop.f32.mrf.mxu0
  %v5500 = vadd.f32 0.0, %v5499
  %v5501 = vpop.f32.mrf.mxu0
  %5502 = vmatprep.mubr.f32.mxu0 0.0
  %v5503 = vand.u32 %v5123, 4294901760
  %v5504 = vsub.f32 %v5123, %v5503
  %v5505 = vand.u32 %v5504, 4294901760
  %v5506 = vsub.f32 %v5504, %v5505
  %v5507 = vand.u32 %v5506, 4294901760
  %5508 = vmatmul.mubr.f32.gmra.mxu0 %v5507
  %v5509 = vpop.f32.mrf.mxu0
  %v5510 = vadd.f32 0.0, %v5509
  %v5511 = vpop.f32.mrf.mxu0
  %5512 = vmatprep.mubr.f32.mxu0 0.0
  %v5513 = vand.u32 %v5126, 4294901760
  %v5514 = vsub.f32 %v5126, %v5513
  %v5515 = vand.u32 %v5514, 4294901760
  %v5516 = vsub.f32 %v5514, %v5515
  %v5517 = vand.u32 %v5516, 4294901760
  %5518 = vmatmul.mubr.f32.gmra.mxu0 %v5517
  %v5519 = vpop.f32.mrf.mxu0
  %v5520 = vadd.f32 0.0, %v5519
  %v5521 = vpop.f32.mrf.mxu0
  %5522 = vmatprep.mubr.f32.mxu0 0.0
  %v5523 = vand.u32 %v5129, 4294901760
  %v5524 = vsub.f32 %v5129, %v5523
  %v5525 = vand.u32 %v5524, 4294901760
  %v5526 = vsub.f32 %v5524, %v5525
  %v5527 = vand.u32 %v5526, 4294901760
  %5528 = vmatmul.mubr.f32.gmra.mxu0 %v5527
  %v5529 = vpop.f32.mrf.mxu0
  %v5530 = vadd.f32 0.0, %v5529
  %v5531 = vpop.f32.mrf.mxu0
  %5532 = vmatprep.mubr.f32.mxu0 0.0
  %v5533 = vand.u32 %v5132, 4294901760
  %v5534 = vsub.f32 %v5132, %v5533
  %v5535 = vand.u32 %v5534, 4294901760
  %v5536 = vsub.f32 %v5534, %v5535
  %v5537 = vand.u32 %v5536, 4294901760
  %5538 = vmatmul.mubr.f32.gmra.mxu0 %v5537
  %v5539 = vpop.f32.mrf.mxu0
  %v5540 = vadd.f32 0.0, %v5539
  %v5541 = vpop.f32.mrf.mxu0
  %5542 = vmatprep.mubr.f32.mxu0 0.0
  %v5543 = vand.u32 %v5135, 4294901760
  %v5544 = vsub.f32 %v5135, %v5543
  %v5545 = vand.u32 %v5544, 4294901760
  %v5546 = vsub.f32 %v5544, %v5545
  %v5547 = vand.u32 %v5546, 4294901760
  %5548 = vmatmul.mubr.f32.gmra.mxu0 %v5547
  %v5549 = vpop.f32.mrf.mxu0
  %v5550 = vadd.f32 0.0, %v5549
  %v5551 = vpop.f32.mrf.mxu0
  %5552 = vmatprep.mubr.f32.mxu0 0.0
  %v5553 = vand.u32 %v5138, 4294901760
  %v5554 = vsub.f32 %v5138, %v5553
  %v5555 = vand.u32 %v5554, 4294901760
  %v5556 = vsub.f32 %v5554, %v5555
  %v5557 = vand.u32 %v5556, 4294901760
  %5558 = vmatmul.mubr.f32.gmra.mxu0 %v5557
  %v5559 = vpop.f32.mrf.mxu0
  %v5560 = vadd.f32 0.0, %v5559
  %v5561 = vpop.f32.mrf.mxu0
  %5562 = vmatprep.mubr.f32.mxu0 0.0
  %v5563 = vand.u32 %v5141, 4294901760
  %v5564 = vsub.f32 %v5141, %v5563
  %v5565 = vand.u32 %v5564, 4294901760
  %v5566 = vsub.f32 %v5564, %v5565
  %v5567 = vand.u32 %v5566, 4294901760
  %5568 = vmatmul.mubr.f32.gmra.mxu0 %v5567
  %v5569 = vpop.f32.mrf.mxu0
  %v5570 = vadd.f32 0.0, %v5569
  %v5571 = vpop.f32.mrf.mxu0
  %5572 = vmatprep.mubr.f32.mxu0 0.0
  %v5573 = vand.u32 %v5144, 4294901760
  %v5574 = vsub.f32 %v5144, %v5573
  %v5575 = vand.u32 %v5574, 4294901760
  %v5576 = vsub.f32 %v5574, %v5575
  %v5577 = vand.u32 %v5576, 4294901760
  %5578 = vmatmul.mubr.f32.gmra.mxu0 %v5577
  %v5579 = vpop.f32.mrf.mxu0
  %v5580 = vadd.f32 0.0, %v5579
  %v5581 = vpop.f32.mrf.mxu0
  %5582 = vmatprep.mubr.f32.mxu0 0.0
  %v5583 = vand.u32 %v5147, 4294901760
  %v5584 = vsub.f32 %v5147, %v5583
  %v5585 = vand.u32 %v5584, 4294901760
  %v5586 = vsub.f32 %v5584, %v5585
  %v5587 = vand.u32 %v5586, 4294901760
  %5588 = vmatmul.mubr.f32.gmra.mxu0 %v5587
  %v5589 = vpop.f32.mrf.mxu0
  %v5590 = vadd.f32 0.0, %v5589
  %v5591 = vpop.f32.mrf.mxu0
  %5592 = vmatprep.mubr.f32.mxu0 0.0
  %v5593 = vand.u32 %v5150, 4294901760
  %v5594 = vsub.f32 %v5150, %v5593
  %v5595 = vand.u32 %v5594, 4294901760
  %v5596 = vsub.f32 %v5594, %v5595
  %v5597 = vand.u32 %v5596, 4294901760
  %5598 = vmatmul.mubr.f32.gmra.mxu0 %v5597
  %v5599 = vpop.f32.mrf.mxu0
  %v5600 = vadd.f32 0.0, %v5599
  %v5601 = vpop.f32.mrf.mxu0
  %5602 = vdwg.mxu0
  %5603 = vmatprep.subr.mxu0 0.0
  %5604 = vmatpush1.msra.mxu0 0.0
  %5605 = vmatprep.subr.mxu0 0.0
  %5606 = vmatpush1.msra.mxu0 0.0
  %5607 = vmatprep.subr.mxu0 0.0
  %5608 = vmatpush1.msra.mxu0 0.0
  %5609 = vmatprep.subr.mxu0 0.0
  %5610 = vmatpush1.msra.mxu0 0.0
  %5611 = vmatprep.subr.mxu0 0.0
  %5612 = vmatpush1.msra.mxu0 0.0
  %5613 = vmatprep.subr.mxu0 0.0
  %5614 = vmatpush1.msra.mxu0 0.0
  %5615 = vmatprep.subr.mxu0 0.0
  %5616 = vmatpush1.msra.mxu0 0.0
  %5617 = vmatprep.subr.mxu0 0.0
  %5618 = vmatpush1.msra.mxu0 0.0
  %5619 = vmatprep.subr.mxu0 0.0
  %5620 = vmatpush1.msra.mxu0 0.0
  %5621 = vmatprep.subr.mxu0 0.0
  %5622 = vmatpush1.msra.mxu0 0.0
  %5623 = vmatprep.subr.mxu0 0.0
  %5624 = vmatpush1.msra.mxu0 0.0
  %5625 = vmatprep.subr.mxu0 0.0
  %5626 = vmatpush1.msra.mxu0 0.0
  %5627 = vmatprep.subr.mxu0 0.0
  %5628 = vmatpush1.msra.mxu0 0.0
  %5629 = vmatprep.subr.mxu0 0.0
  %5630 = vmatpush1.msra.mxu0 0.0
  %5631 = vmatprep.subr.mxu0 0.0
  %v5632 = vand.u32 %v5154, 4294901760
  %v5633 = vsub.f32 %v5154, %v5632
  %v5634 = vand.u32 %v5633, 4294901760
  %v5635 = vsub.f32 %v5633, %v5634
  %v5636 = vand.u32 %v5635, 4294901760
  %5637 = vmatpush1.msra.mxu0 %v5636
  %5638 = vmatprep.subr.mxu0 0.0
  %v5639 = vand.u32 %v5035, 4294901760
  %v5640 = vsub.f32 %v5035, %v5639
  %v5641 = vand.u32 %v5640, 4294901760
  %v5642 = vsub.f32 %v5640, %v5641
  %v5643 = vand.u32 %v5642, 4294901760
  %5644 = vmatpush1.msra.mxu0 %v5643
  %5645 = vmatprep.subr.mxu0 0.0
  %5646 = vmatpush2.msra.mxu0 0.0
  %5647 = vmatprep.subr.mxu0 0.0
  %5648 = vmatpush2.msra.mxu0 0.0
  %5649 = vmatprep.subr.mxu0 0.0
  %5650 = vmatpush2.msra.mxu0 0.0
  %5651 = vmatprep.subr.mxu0 0.0
  %5652 = vmatpush2.msra.mxu0 0.0
  %5653 = vmatprep.subr.mxu0 0.0
  %5654 = vmatpush2.msra.mxu0 0.0
  %5655 = vmatprep.subr.mxu0 0.0
  %5656 = vmatpush2.msra.mxu0 0.0
  %5657 = vmatprep.subr.mxu0 0.0
  %5658 = vmatpush2.msra.mxu0 0.0
  %5659 = vmatprep.subr.mxu0 0.0
  %5660 = vmatpush2.msra.mxu0 0.0
  %5661 = vmatprep.subr.mxu0 0.0
  %5662 = vmatpush2.msra.mxu0 0.0
  %5663 = vmatprep.subr.mxu0 0.0
  %5664 = vmatpush2.msra.mxu0 0.0
  %5665 = vmatprep.subr.mxu0 0.0
  %5666 = vmatpush2.msra.mxu0 0.0
  %5667 = vmatprep.subr.mxu0 0.0
  %5668 = vmatpush2.msra.mxu0 0.0
  %5669 = vmatprep.subr.mxu0 0.0
  %5670 = vmatpush2.msra.mxu0 0.0
  %5671 = vmatprep.subr.mxu0 0.0
  %5672 = vmatpush2.msra.mxu0 0.0
  %5673 = vmatprep.subr.mxu0 0.0
  %5674 = vmatpush2.msra.mxu0 0.0
  %5675 = vmatprep.subr.mxu0 0.0
  %5676 = vmatpush2.msra.mxu0 0.0
  %5677 = vmatprep.mubr.f32.mxu0 0.0
  %v5678 = vand.u32 %v5039, 4294901760
  %5679 = vmatmul.mubr.f32.gmra.mxu0 %v5678
  %v5680 = vpop.f32.mrf.mxu0
  %v5681 = vadd.f32 %v5230, %v5680
  %v5682 = vpop.f32.mrf.mxu0
  %5683 = vmatprep.mubr.f32.mxu0 0.0
  %v5684 = vand.u32 %v5042, 4294901760
  %5685 = vmatmul.mubr.f32.gmra.mxu0 %v5684
  %v5686 = vpop.f32.mrf.mxu0
  %v5687 = vadd.f32 %v5240, %v5686
  %v5688 = vpop.f32.mrf.mxu0
  %5689 = vmatprep.mubr.f32.mxu0 0.0
  %v5690 = vand.u32 %v5045, 4294901760
  %5691 = vmatmul.mubr.f32.gmra.mxu0 %v5690
  %v5692 = vpop.f32.mrf.mxu0
  %v5693 = vadd.f32 %v5250, %v5692
  %v5694 = vpop.f32.mrf.mxu0
  %5695 = vmatprep.mubr.f32.mxu0 0.0
  %v5696 = vand.u32 %v5048, 4294901760
  %5697 = vmatmul.mubr.f32.gmra.mxu0 %v5696
  %v5698 = vpop.f32.mrf.mxu0
  %v5699 = vadd.f32 %v5260, %v5698
  %v5700 = vpop.f32.mrf.mxu0
  %5701 = vmatprep.mubr.f32.mxu0 0.0
  %v5702 = vand.u32 %v5051, 4294901760
  %5703 = vmatmul.mubr.f32.gmra.mxu0 %v5702
  %v5704 = vpop.f32.mrf.mxu0
  %v5705 = vadd.f32 %v5270, %v5704
  %v5706 = vpop.f32.mrf.mxu0
  %5707 = vmatprep.mubr.f32.mxu0 0.0
  %v5708 = vand.u32 %v5054, 4294901760
  %5709 = vmatmul.mubr.f32.gmra.mxu0 %v5708
  %v5710 = vpop.f32.mrf.mxu0
  %v5711 = vadd.f32 %v5280, %v5710
  %v5712 = vpop.f32.mrf.mxu0
  %5713 = vmatprep.mubr.f32.mxu0 0.0
  %v5714 = vand.u32 %v5057, 4294901760
  %5715 = vmatmul.mubr.f32.gmra.mxu0 %v5714
  %v5716 = vpop.f32.mrf.mxu0
  %v5717 = vadd.f32 %v5290, %v5716
  %v5718 = vpop.f32.mrf.mxu0
  %5719 = vmatprep.mubr.f32.mxu0 0.0
  %v5720 = vand.u32 %v5060, 4294901760
  %5721 = vmatmul.mubr.f32.gmra.mxu0 %v5720
  %v5722 = vpop.f32.mrf.mxu0
  %v5723 = vadd.f32 %v5300, %v5722
  %v5724 = vpop.f32.mrf.mxu0
  %5725 = vmatprep.mubr.f32.mxu0 0.0
  %v5726 = vand.u32 %v5063, 4294901760
  %5727 = vmatmul.mubr.f32.gmra.mxu0 %v5726
  %v5728 = vpop.f32.mrf.mxu0
  %v5729 = vadd.f32 %v5310, %v5728
  %v5730 = vpop.f32.mrf.mxu0
  %5731 = vmatprep.mubr.f32.mxu0 0.0
  %v5732 = vand.u32 %v5066, 4294901760
  %5733 = vmatmul.mubr.f32.gmra.mxu0 %v5732
  %v5734 = vpop.f32.mrf.mxu0
  %v5735 = vadd.f32 %v5320, %v5734
  %v5736 = vpop.f32.mrf.mxu0
  %5737 = vmatprep.mubr.f32.mxu0 0.0
  %v5738 = vand.u32 %v5069, 4294901760
  %5739 = vmatmul.mubr.f32.gmra.mxu0 %v5738
  %v5740 = vpop.f32.mrf.mxu0
  %v5741 = vadd.f32 %v5330, %v5740
  %v5742 = vpop.f32.mrf.mxu0
  %5743 = vmatprep.mubr.f32.mxu0 0.0
  %v5744 = vand.u32 %v5072, 4294901760
  %5745 = vmatmul.mubr.f32.gmra.mxu0 %v5744
  %v5746 = vpop.f32.mrf.mxu0
  %v5747 = vadd.f32 %v5340, %v5746
  %v5748 = vpop.f32.mrf.mxu0
  %5749 = vmatprep.mubr.f32.mxu0 0.0
  %v5750 = vand.u32 %v5075, 4294901760
  %5751 = vmatmul.mubr.f32.gmra.mxu0 %v5750
  %v5752 = vpop.f32.mrf.mxu0
  %v5753 = vadd.f32 %v5350, %v5752
  %v5754 = vpop.f32.mrf.mxu0
  %5755 = vmatprep.mubr.f32.mxu0 0.0
  %v5756 = vand.u32 %v5078, 4294901760
  %5757 = vmatmul.mubr.f32.gmra.mxu0 %v5756
  %v5758 = vpop.f32.mrf.mxu0
  %v5759 = vadd.f32 %v5360, %v5758
  %v5760 = vpop.f32.mrf.mxu0
  %5761 = vmatprep.mubr.f32.mxu0 0.0
  %v5762 = vand.u32 %v5081, 4294901760
  %5763 = vmatmul.mubr.f32.gmra.mxu0 %v5762
  %v5764 = vpop.f32.mrf.mxu0
  %v5765 = vadd.f32 %v5370, %v5764
  %v5766 = vpop.f32.mrf.mxu0
  %5767 = vmatprep.mubr.f32.mxu0 0.0
  %v5768 = vand.u32 %v5084, 4294901760
  %5769 = vmatmul.mubr.f32.gmra.mxu0 %v5768
  %v5770 = vpop.f32.mrf.mxu0
  %v5771 = vadd.f32 %v5380, %v5770
  %v5772 = vpop.f32.mrf.mxu0
  %5773 = vmatprep.mubr.f32.mxu0 0.0
  %v5774 = vand.u32 %v5087, 4294901760
  %5775 = vmatmul.mubr.f32.gmra.mxu0 %v5774
  %v5776 = vpop.f32.mrf.mxu0
  %v5777 = vadd.f32 %v5390, %v5776
  %v5778 = vpop.f32.mrf.mxu0
  %5779 = vmatprep.mubr.f32.mxu0 0.0
  %v5780 = vand.u32 %v5090, 4294901760
  %5781 = vmatmul.mubr.f32.gmra.mxu0 %v5780
  %v5782 = vpop.f32.mrf.mxu0
  %v5783 = vadd.f32 %v5400, %v5782
  %v5784 = vpop.f32.mrf.mxu0
  %5785 = vmatprep.mubr.f32.mxu0 0.0
  %v5786 = vand.u32 %v5093, 4294901760
  %5787 = vmatmul.mubr.f32.gmra.mxu0 %v5786
  %v5788 = vpop.f32.mrf.mxu0
  %v5789 = vadd.f32 %v5410, %v5788
  %v5790 = vpop.f32.mrf.mxu0
  %5791 = vmatprep.mubr.f32.mxu0 0.0
  %v5792 = vand.u32 %v5096, 4294901760
  %5793 = vmatmul.mubr.f32.gmra.mxu0 %v5792
  %v5794 = vpop.f32.mrf.mxu0
  %v5795 = vadd.f32 %v5420, %v5794
  %v5796 = vpop.f32.mrf.mxu0
  %5797 = vmatprep.mubr.f32.mxu0 0.0
  %v5798 = vand.u32 %v5099, 4294901760
  %5799 = vmatmul.mubr.f32.gmra.mxu0 %v5798
  %v5800 = vpop.f32.mrf.mxu0
  %v5801 = vadd.f32 %v5430, %v5800
  %v5802 = vpop.f32.mrf.mxu0
  %5803 = vmatprep.mubr.f32.mxu0 0.0
  %v5804 = vand.u32 %v5102, 4294901760
  %5805 = vmatmul.mubr.f32.gmra.mxu0 %v5804
  %v5806 = vpop.f32.mrf.mxu0
  %v5807 = vadd.f32 %v5440, %v5806
  %v5808 = vpop.f32.mrf.mxu0
  %5809 = vmatprep.mubr.f32.mxu0 0.0
  %v5810 = vand.u32 %v5105, 4294901760
  %5811 = vmatmul.mubr.f32.gmra.mxu0 %v5810
  %v5812 = vpop.f32.mrf.mxu0
  %v5813 = vadd.f32 %v5450, %v5812
  %v5814 = vpop.f32.mrf.mxu0
  %5815 = vmatprep.mubr.f32.mxu0 0.0
  %v5816 = vand.u32 %v5108, 4294901760
  %5817 = vmatmul.mubr.f32.gmra.mxu0 %v5816
  %v5818 = vpop.f32.mrf.mxu0
  %v5819 = vadd.f32 %v5460, %v5818
  %v5820 = vpop.f32.mrf.mxu0
  %5821 = vmatprep.mubr.f32.mxu0 0.0
  %v5822 = vand.u32 %v5111, 4294901760
  %5823 = vmatmul.mubr.f32.gmra.mxu0 %v5822
  %v5824 = vpop.f32.mrf.mxu0
  %v5825 = vadd.f32 %v5470, %v5824
  %v5826 = vpop.f32.mrf.mxu0
  %5827 = vmatprep.mubr.f32.mxu0 0.0
  %v5828 = vand.u32 %v5114, 4294901760
  %5829 = vmatmul.mubr.f32.gmra.mxu0 %v5828
  %v5830 = vpop.f32.mrf.mxu0
  %v5831 = vadd.f32 %v5480, %v5830
  %v5832 = vpop.f32.mrf.mxu0
  %5833 = vmatprep.mubr.f32.mxu0 0.0
  %v5834 = vand.u32 %v5117, 4294901760
  %5835 = vmatmul.mubr.f32.gmra.mxu0 %v5834
  %v5836 = vpop.f32.mrf.mxu0
  %v5837 = vadd.f32 %v5490, %v5836
  %v5838 = vpop.f32.mrf.mxu0
  %5839 = vmatprep.mubr.f32.mxu0 0.0
  %v5840 = vand.u32 %v5120, 4294901760
  %5841 = vmatmul.mubr.f32.gmra.mxu0 %v5840
  %v5842 = vpop.f32.mrf.mxu0
  %v5843 = vadd.f32 %v5500, %v5842
  %v5844 = vpop.f32.mrf.mxu0
  %5845 = vmatprep.mubr.f32.mxu0 0.0
  %v5846 = vand.u32 %v5123, 4294901760
  %5847 = vmatmul.mubr.f32.gmra.mxu0 %v5846
  %v5848 = vpop.f32.mrf.mxu0
  %v5849 = vadd.f32 %v5510, %v5848
  %v5850 = vpop.f32.mrf.mxu0
  %5851 = vmatprep.mubr.f32.mxu0 0.0
  %v5852 = vand.u32 %v5126, 4294901760
  %5853 = vmatmul.mubr.f32.gmra.mxu0 %v5852
  %v5854 = vpop.f32.mrf.mxu0
  %v5855 = vadd.f32 %v5520, %v5854
  %v5856 = vpop.f32.mrf.mxu0
  %5857 = vmatprep.mubr.f32.mxu0 0.0
  %v5858 = vand.u32 %v5129, 4294901760
  %5859 = vmatmul.mubr.f32.gmra.mxu0 %v5858
  %v5860 = vpop.f32.mrf.mxu0
  %v5861 = vadd.f32 %v5530, %v5860
  %v5862 = vpop.f32.mrf.mxu0
  %5863 = vmatprep.mubr.f32.mxu0 0.0
  %v5864 = vand.u32 %v5132, 4294901760
  %5865 = vmatmul.mubr.f32.gmra.mxu0 %v5864
  %v5866 = vpop.f32.mrf.mxu0
  %v5867 = vadd.f32 %v5540, %v5866
  %v5868 = vpop.f32.mrf.mxu0
  %5869 = vmatprep.mubr.f32.mxu0 0.0
  %v5870 = vand.u32 %v5135, 4294901760
  %5871 = vmatmul.mubr.f32.gmra.mxu0 %v5870
  %v5872 = vpop.f32.mrf.mxu0
  %v5873 = vadd.f32 %v5550, %v5872
  %v5874 = vpop.f32.mrf.mxu0
  %5875 = vmatprep.mubr.f32.mxu0 0.0
  %v5876 = vand.u32 %v5138, 4294901760
  %5877 = vmatmul.mubr.f32.gmra.mxu0 %v5876
  %v5878 = vpop.f32.mrf.mxu0
  %v5879 = vadd.f32 %v5560, %v5878
  %v5880 = vpop.f32.mrf.mxu0
  %5881 = vmatprep.mubr.f32.mxu0 0.0
  %v5882 = vand.u32 %v5141, 4294901760
  %5883 = vmatmul.mubr.f32.gmra.mxu0 %v5882
  %v5884 = vpop.f32.mrf.mxu0
  %v5885 = vadd.f32 %v5570, %v5884
  %v5886 = vpop.f32.mrf.mxu0
  %5887 = vmatprep.mubr.f32.mxu0 0.0
  %v5888 = vand.u32 %v5144, 4294901760
  %5889 = vmatmul.mubr.f32.gmra.mxu0 %v5888
  %v5890 = vpop.f32.mrf.mxu0
  %v5891 = vadd.f32 %v5580, %v5890
  %v5892 = vpop.f32.mrf.mxu0
  %5893 = vmatprep.mubr.f32.mxu0 0.0
  %v5894 = vand.u32 %v5147, 4294901760
  %5895 = vmatmul.mubr.f32.gmra.mxu0 %v5894
  %v5896 = vpop.f32.mrf.mxu0
  %v5897 = vadd.f32 %v5590, %v5896
  %v5898 = vpop.f32.mrf.mxu0
  %5899 = vmatprep.mubr.f32.mxu0 0.0
  %v5900 = vand.u32 %v5150, 4294901760
  %5901 = vmatmul.mubr.f32.gmra.mxu0 %v5900
  %v5902 = vpop.f32.mrf.mxu0
  %v5903 = vadd.f32 %v5600, %v5902
  %v5904 = vpop.f32.mrf.mxu0
  %5905 = vdwg.mxu0
  %5906 = vmatprep.subr.mxu0 0.0
  %5907 = vmatpush1.msra.mxu0 0.0
  %5908 = vmatprep.subr.mxu0 0.0
  %5909 = vmatpush1.msra.mxu0 0.0
  %5910 = vmatprep.subr.mxu0 0.0
  %5911 = vmatpush1.msra.mxu0 0.0
  %5912 = vmatprep.subr.mxu0 0.0
  %5913 = vmatpush1.msra.mxu0 0.0
  %5914 = vmatprep.subr.mxu0 0.0
  %5915 = vmatpush1.msra.mxu0 0.0
  %5916 = vmatprep.subr.mxu0 0.0
  %5917 = vmatpush1.msra.mxu0 0.0
  %5918 = vmatprep.subr.mxu0 0.0
  %5919 = vmatpush1.msra.mxu0 0.0
  %5920 = vmatprep.subr.mxu0 0.0
  %5921 = vmatpush1.msra.mxu0 0.0
  %5922 = vmatprep.subr.mxu0 0.0
  %5923 = vmatpush1.msra.mxu0 0.0
  %5924 = vmatprep.subr.mxu0 0.0
  %5925 = vmatpush1.msra.mxu0 0.0
  %5926 = vmatprep.subr.mxu0 0.0
  %5927 = vmatpush1.msra.mxu0 0.0
  %5928 = vmatprep.subr.mxu0 0.0
  %5929 = vmatpush1.msra.mxu0 0.0
  %5930 = vmatprep.subr.mxu0 0.0
  %5931 = vmatpush1.msra.mxu0 0.0
  %5932 = vmatprep.subr.mxu0 0.0
  %5933 = vmatpush1.msra.mxu0 0.0
  %5934 = vmatprep.subr.mxu0 0.0
  %v5935 = vand.u32 %v5154, 4294901760
  %v5936 = vsub.f32 %v5154, %v5935
  %5937 = vmatpush1.msra.mxu0 %v5936
  %5938 = vmatprep.subr.mxu0 0.0
  %v5939 = vand.u32 %v5035, 4294901760
  %v5940 = vsub.f32 %v5035, %v5939
  %5941 = vmatpush1.msra.mxu0 %v5940
  %5942 = vmatprep.subr.mxu0 0.0
  %5943 = vmatpush2.msra.mxu0 0.0
  %5944 = vmatprep.subr.mxu0 0.0
  %5945 = vmatpush2.msra.mxu0 0.0
  %5946 = vmatprep.subr.mxu0 0.0
  %5947 = vmatpush2.msra.mxu0 0.0
  %5948 = vmatprep.subr.mxu0 0.0
  %5949 = vmatpush2.msra.mxu0 0.0
  %5950 = vmatprep.subr.mxu0 0.0
  %5951 = vmatpush2.msra.mxu0 0.0
  %5952 = vmatprep.subr.mxu0 0.0
  %5953 = vmatpush2.msra.mxu0 0.0
  %5954 = vmatprep.subr.mxu0 0.0
  %5955 = vmatpush2.msra.mxu0 0.0
  %5956 = vmatprep.subr.mxu0 0.0
  %5957 = vmatpush2.msra.mxu0 0.0
  %5958 = vmatprep.subr.mxu0 0.0
  %5959 = vmatpush2.msra.mxu0 0.0
  %5960 = vmatprep.subr.mxu0 0.0
  %5961 = vmatpush2.msra.mxu0 0.0
  %5962 = vmatprep.subr.mxu0 0.0
  %5963 = vmatpush2.msra.mxu0 0.0
  %5964 = vmatprep.subr.mxu0 0.0
  %5965 = vmatpush2.msra.mxu0 0.0
  %5966 = vmatprep.subr.mxu0 0.0
  %5967 = vmatpush2.msra.mxu0 0.0
  %5968 = vmatprep.subr.mxu0 0.0
  %5969 = vmatpush2.msra.mxu0 0.0
  %5970 = vmatprep.subr.mxu0 0.0
  %5971 = vmatpush2.msra.mxu0 0.0
  %5972 = vmatprep.subr.mxu0 0.0
  %5973 = vmatpush2.msra.mxu0 0.0
  %5974 = vmatprep.mubr.f32.mxu0 0.0
  %v5975 = vand.u32 %v5039, 4294901760
  %v5976 = vsub.f32 %v5039, %v5975
  %5977 = vmatmul.mubr.f32.gmra.mxu0 %v5976
  %v5978 = vpop.f32.mrf.mxu0
  %v5979 = vadd.f32 %v5681, %v5978
  %v5980 = vpop.f32.mrf.mxu0
  %5981 = vmatprep.mubr.f32.mxu0 0.0
  %v5982 = vand.u32 %v5042, 4294901760
  %v5983 = vsub.f32 %v5042, %v5982
  %5984 = vmatmul.mubr.f32.gmra.mxu0 %v5983
  %v5985 = vpop.f32.mrf.mxu0
  %v5986 = vadd.f32 %v5687, %v5985
  %v5987 = vpop.f32.mrf.mxu0
  %5988 = vmatprep.mubr.f32.mxu0 0.0
  %v5989 = vand.u32 %v5045, 4294901760
  %v5990 = vsub.f32 %v5045, %v5989
  %5991 = vmatmul.mubr.f32.gmra.mxu0 %v5990
  %v5992 = vpop.f32.mrf.mxu0
  %v5993 = vadd.f32 %v5693, %v5992
  %v5994 = vpop.f32.mrf.mxu0
  %5995 = vmatprep.mubr.f32.mxu0 0.0
  %v5996 = vand.u32 %v5048, 4294901760
  %v5997 = vsub.f32 %v5048, %v5996
  %5998 = vmatmul.mubr.f32.gmra.mxu0 %v5997
  %v5999 = vpop.f32.mrf.mxu0
  %v6000 = vadd.f32 %v5699, %v5999
  %v6001 = vpop.f32.mrf.mxu0
  %6002 = vmatprep.mubr.f32.mxu0 0.0
  %v6003 = vand.u32 %v5051, 4294901760
  %v6004 = vsub.f32 %v5051, %v6003
  %6005 = vmatmul.mubr.f32.gmra.mxu0 %v6004
  %v6006 = vpop.f32.mrf.mxu0
  %v6007 = vadd.f32 %v5705, %v6006
  %v6008 = vpop.f32.mrf.mxu0
  %6009 = vmatprep.mubr.f32.mxu0 0.0
  %v6010 = vand.u32 %v5054, 4294901760
  %v6011 = vsub.f32 %v5054, %v6010
  %6012 = vmatmul.mubr.f32.gmra.mxu0 %v6011
  %v6013 = vpop.f32.mrf.mxu0
  %v6014 = vadd.f32 %v5711, %v6013
  %v6015 = vpop.f32.mrf.mxu0
  %6016 = vmatprep.mubr.f32.mxu0 0.0
  %v6017 = vand.u32 %v5057, 4294901760
  %v6018 = vsub.f32 %v5057, %v6017
  %6019 = vmatmul.mubr.f32.gmra.mxu0 %v6018
  %v6020 = vpop.f32.mrf.mxu0
  %v6021 = vadd.f32 %v5717, %v6020
  %v6022 = vpop.f32.mrf.mxu0
  %6023 = vmatprep.mubr.f32.mxu0 0.0
  %v6024 = vand.u32 %v5060, 4294901760
  %v6025 = vsub.f32 %v5060, %v6024
  %6026 = vmatmul.mubr.f32.gmra.mxu0 %v6025
  %v6027 = vpop.f32.mrf.mxu0
  %v6028 = vadd.f32 %v5723, %v6027
  %v6029 = vpop.f32.mrf.mxu0
  %6030 = vmatprep.mubr.f32.mxu0 0.0
  %v6031 = vand.u32 %v5063, 4294901760
  %v6032 = vsub.f32 %v5063, %v6031
  %6033 = vmatmul.mubr.f32.gmra.mxu0 %v6032
  %v6034 = vpop.f32.mrf.mxu0
  %v6035 = vadd.f32 %v5729, %v6034
  %v6036 = vpop.f32.mrf.mxu0
  %6037 = vmatprep.mubr.f32.mxu0 0.0
  %v6038 = vand.u32 %v5066, 4294901760
  %v6039 = vsub.f32 %v5066, %v6038
  %6040 = vmatmul.mubr.f32.gmra.mxu0 %v6039
  %v6041 = vpop.f32.mrf.mxu0
  %v6042 = vadd.f32 %v5735, %v6041
  %v6043 = vpop.f32.mrf.mxu0
  %6044 = vmatprep.mubr.f32.mxu0 0.0
  %v6045 = vand.u32 %v5069, 4294901760
  %v6046 = vsub.f32 %v5069, %v6045
  %6047 = vmatmul.mubr.f32.gmra.mxu0 %v6046
  %v6048 = vpop.f32.mrf.mxu0
  %v6049 = vadd.f32 %v5741, %v6048
  %v6050 = vpop.f32.mrf.mxu0
  %6051 = vmatprep.mubr.f32.mxu0 0.0
  %v6052 = vand.u32 %v5072, 4294901760
  %v6053 = vsub.f32 %v5072, %v6052
  %6054 = vmatmul.mubr.f32.gmra.mxu0 %v6053
  %v6055 = vpop.f32.mrf.mxu0
  %v6056 = vadd.f32 %v5747, %v6055
  %v6057 = vpop.f32.mrf.mxu0
  %6058 = vmatprep.mubr.f32.mxu0 0.0
  %v6059 = vand.u32 %v5075, 4294901760
  %v6060 = vsub.f32 %v5075, %v6059
  %6061 = vmatmul.mubr.f32.gmra.mxu0 %v6060
  %v6062 = vpop.f32.mrf.mxu0
  %v6063 = vadd.f32 %v5753, %v6062
  %v6064 = vpop.f32.mrf.mxu0
  %6065 = vmatprep.mubr.f32.mxu0 0.0
  %v6066 = vand.u32 %v5078, 4294901760
  %v6067 = vsub.f32 %v5078, %v6066
  %6068 = vmatmul.mubr.f32.gmra.mxu0 %v6067
  %v6069 = vpop.f32.mrf.mxu0
  %v6070 = vadd.f32 %v5759, %v6069
  %v6071 = vpop.f32.mrf.mxu0
  %6072 = vmatprep.mubr.f32.mxu0 0.0
  %v6073 = vand.u32 %v5081, 4294901760
  %v6074 = vsub.f32 %v5081, %v6073
  %6075 = vmatmul.mubr.f32.gmra.mxu0 %v6074
  %v6076 = vpop.f32.mrf.mxu0
  %v6077 = vadd.f32 %v5765, %v6076
  %v6078 = vpop.f32.mrf.mxu0
  %6079 = vmatprep.mubr.f32.mxu0 0.0
  %v6080 = vand.u32 %v5084, 4294901760
  %v6081 = vsub.f32 %v5084, %v6080
  %6082 = vmatmul.mubr.f32.gmra.mxu0 %v6081
  %v6083 = vpop.f32.mrf.mxu0
  %v6084 = vadd.f32 %v5771, %v6083
  %v6085 = vpop.f32.mrf.mxu0
  %6086 = vmatprep.mubr.f32.mxu0 0.0
  %v6087 = vand.u32 %v5087, 4294901760
  %v6088 = vsub.f32 %v5087, %v6087
  %6089 = vmatmul.mubr.f32.gmra.mxu0 %v6088
  %v6090 = vpop.f32.mrf.mxu0
  %v6091 = vadd.f32 %v5777, %v6090
  %v6092 = vpop.f32.mrf.mxu0
  %6093 = vmatprep.mubr.f32.mxu0 0.0
  %v6094 = vand.u32 %v5090, 4294901760
  %v6095 = vsub.f32 %v5090, %v6094
  %6096 = vmatmul.mubr.f32.gmra.mxu0 %v6095
  %v6097 = vpop.f32.mrf.mxu0
  %v6098 = vadd.f32 %v5783, %v6097
  %v6099 = vpop.f32.mrf.mxu0
  %6100 = vmatprep.mubr.f32.mxu0 0.0
  %v6101 = vand.u32 %v5093, 4294901760
  %v6102 = vsub.f32 %v5093, %v6101
  %6103 = vmatmul.mubr.f32.gmra.mxu0 %v6102
  %v6104 = vpop.f32.mrf.mxu0
  %v6105 = vadd.f32 %v5789, %v6104
  %v6106 = vpop.f32.mrf.mxu0
  %6107 = vmatprep.mubr.f32.mxu0 0.0
  %v6108 = vand.u32 %v5096, 4294901760
  %v6109 = vsub.f32 %v5096, %v6108
  %6110 = vmatmul.mubr.f32.gmra.mxu0 %v6109
  %v6111 = vpop.f32.mrf.mxu0
  %v6112 = vadd.f32 %v5795, %v6111
  %v6113 = vpop.f32.mrf.mxu0
  %6114 = vmatprep.mubr.f32.mxu0 0.0
  %v6115 = vand.u32 %v5099, 4294901760
  %v6116 = vsub.f32 %v5099, %v6115
  %6117 = vmatmul.mubr.f32.gmra.mxu0 %v6116
  %v6118 = vpop.f32.mrf.mxu0
  %v6119 = vadd.f32 %v5801, %v6118
  %v6120 = vpop.f32.mrf.mxu0
  %6121 = vmatprep.mubr.f32.mxu0 0.0
  %v6122 = vand.u32 %v5102, 4294901760
  %v6123 = vsub.f32 %v5102, %v6122
  %6124 = vmatmul.mubr.f32.gmra.mxu0 %v6123
  %v6125 = vpop.f32.mrf.mxu0
  %v6126 = vadd.f32 %v5807, %v6125
  %v6127 = vpop.f32.mrf.mxu0
  %6128 = vmatprep.mubr.f32.mxu0 0.0
  %v6129 = vand.u32 %v5105, 4294901760
  %v6130 = vsub.f32 %v5105, %v6129
  %6131 = vmatmul.mubr.f32.gmra.mxu0 %v6130
  %v6132 = vpop.f32.mrf.mxu0
  %v6133 = vadd.f32 %v5813, %v6132
  %v6134 = vpop.f32.mrf.mxu0
  %6135 = vmatprep.mubr.f32.mxu0 0.0
  %v6136 = vand.u32 %v5108, 4294901760
  %v6137 = vsub.f32 %v5108, %v6136
  %6138 = vmatmul.mubr.f32.gmra.mxu0 %v6137
  %v6139 = vpop.f32.mrf.mxu0
  %v6140 = vadd.f32 %v5819, %v6139
  %v6141 = vpop.f32.mrf.mxu0
  %6142 = vmatprep.mubr.f32.mxu0 0.0
  %v6143 = vand.u32 %v5111, 4294901760
  %v6144 = vsub.f32 %v5111, %v6143
  %6145 = vmatmul.mubr.f32.gmra.mxu0 %v6144
  %v6146 = vpop.f32.mrf.mxu0
  %v6147 = vadd.f32 %v5825, %v6146
  %v6148 = vpop.f32.mrf.mxu0
  %6149 = vmatprep.mubr.f32.mxu0 0.0
  %v6150 = vand.u32 %v5114, 4294901760
  %v6151 = vsub.f32 %v5114, %v6150
  %6152 = vmatmul.mubr.f32.gmra.mxu0 %v6151
  %v6153 = vpop.f32.mrf.mxu0
  %v6154 = vadd.f32 %v5831, %v6153
  %v6155 = vpop.f32.mrf.mxu0
  %6156 = vmatprep.mubr.f32.mxu0 0.0
  %v6157 = vand.u32 %v5117, 4294901760
  %v6158 = vsub.f32 %v5117, %v6157
  %6159 = vmatmul.mubr.f32.gmra.mxu0 %v6158
  %v6160 = vpop.f32.mrf.mxu0
  %v6161 = vadd.f32 %v5837, %v6160
  %v6162 = vpop.f32.mrf.mxu0
  %6163 = vmatprep.mubr.f32.mxu0 0.0
  %v6164 = vand.u32 %v5120, 4294901760
  %v6165 = vsub.f32 %v5120, %v6164
  %6166 = vmatmul.mubr.f32.gmra.mxu0 %v6165
  %v6167 = vpop.f32.mrf.mxu0
  %v6168 = vadd.f32 %v5843, %v6167
  %v6169 = vpop.f32.mrf.mxu0
  %6170 = vmatprep.mubr.f32.mxu0 0.0
  %v6171 = vand.u32 %v5123, 4294901760
  %v6172 = vsub.f32 %v5123, %v6171
  %6173 = vmatmul.mubr.f32.gmra.mxu0 %v6172
  %v6174 = vpop.f32.mrf.mxu0
  %v6175 = vadd.f32 %v5849, %v6174
  %v6176 = vpop.f32.mrf.mxu0
  %6177 = vmatprep.mubr.f32.mxu0 0.0
  %v6178 = vand.u32 %v5126, 4294901760
  %v6179 = vsub.f32 %v5126, %v6178
  %6180 = vmatmul.mubr.f32.gmra.mxu0 %v6179
  %v6181 = vpop.f32.mrf.mxu0
  %v6182 = vadd.f32 %v5855, %v6181
  %v6183 = vpop.f32.mrf.mxu0
  %6184 = vmatprep.mubr.f32.mxu0 0.0
  %v6185 = vand.u32 %v5129, 4294901760
  %v6186 = vsub.f32 %v5129, %v6185
  %6187 = vmatmul.mubr.f32.gmra.mxu0 %v6186
  %v6188 = vpop.f32.mrf.mxu0
  %v6189 = vadd.f32 %v5861, %v6188
  %v6190 = vpop.f32.mrf.mxu0
  %6191 = vmatprep.mubr.f32.mxu0 0.0
  %v6192 = vand.u32 %v5132, 4294901760
  %v6193 = vsub.f32 %v5132, %v6192
  %6194 = vmatmul.mubr.f32.gmra.mxu0 %v6193
  %v6195 = vpop.f32.mrf.mxu0
  %v6196 = vadd.f32 %v5867, %v6195
  %v6197 = vpop.f32.mrf.mxu0
  %6198 = vmatprep.mubr.f32.mxu0 0.0
  %v6199 = vand.u32 %v5135, 4294901760
  %v6200 = vsub.f32 %v5135, %v6199
  %6201 = vmatmul.mubr.f32.gmra.mxu0 %v6200
  %v6202 = vpop.f32.mrf.mxu0
  %v6203 = vadd.f32 %v5873, %v6202
  %v6204 = vpop.f32.mrf.mxu0
  %6205 = vmatprep.mubr.f32.mxu0 0.0
  %v6206 = vand.u32 %v5138, 4294901760
  %v6207 = vsub.f32 %v5138, %v6206
  %6208 = vmatmul.mubr.f32.gmra.mxu0 %v6207
  %v6209 = vpop.f32.mrf.mxu0
  %v6210 = vadd.f32 %v5879, %v6209
  %v6211 = vpop.f32.mrf.mxu0
  %6212 = vmatprep.mubr.f32.mxu0 0.0
  %v6213 = vand.u32 %v5141, 4294901760
  %v6214 = vsub.f32 %v5141, %v6213
  %6215 = vmatmul.mubr.f32.gmra.mxu0 %v6214
  %v6216 = vpop.f32.mrf.mxu0
  %v6217 = vadd.f32 %v5885, %v6216
  %v6218 = vpop.f32.mrf.mxu0
  %6219 = vmatprep.mubr.f32.mxu0 0.0
  %v6220 = vand.u32 %v5144, 4294901760
  %v6221 = vsub.f32 %v5144, %v6220
  %6222 = vmatmul.mubr.f32.gmra.mxu0 %v6221
  %v6223 = vpop.f32.mrf.mxu0
  %v6224 = vadd.f32 %v5891, %v6223
  %v6225 = vpop.f32.mrf.mxu0
  %6226 = vmatprep.mubr.f32.mxu0 0.0
  %v6227 = vand.u32 %v5147, 4294901760
  %v6228 = vsub.f32 %v5147, %v6227
  %6229 = vmatmul.mubr.f32.gmra.mxu0 %v6228
  %v6230 = vpop.f32.mrf.mxu0
  %v6231 = vadd.f32 %v5897, %v6230
  %v6232 = vpop.f32.mrf.mxu0
  %6233 = vmatprep.mubr.f32.mxu0 0.0
  %v6234 = vand.u32 %v5150, 4294901760
  %v6235 = vsub.f32 %v5150, %v6234
  %6236 = vmatmul.mubr.f32.gmra.mxu0 %v6235
  %v6237 = vpop.f32.mrf.mxu0
  %v6238 = vadd.f32 %v5903, %v6237
  %v6239 = vpop.f32.mrf.mxu0
  %6240 = vdwg.mxu0
  %6241 = vmatprep.subr.mxu0 0.0
  %6242 = vmatpush1.msra.mxu0 0.0
  %6243 = vmatprep.subr.mxu0 0.0
  %6244 = vmatpush1.msra.mxu0 0.0
  %6245 = vmatprep.subr.mxu0 0.0
  %6246 = vmatpush1.msra.mxu0 0.0
  %6247 = vmatprep.subr.mxu0 0.0
  %6248 = vmatpush1.msra.mxu0 0.0
  %6249 = vmatprep.subr.mxu0 0.0
  %6250 = vmatpush1.msra.mxu0 0.0
  %6251 = vmatprep.subr.mxu0 0.0
  %6252 = vmatpush1.msra.mxu0 0.0
  %6253 = vmatprep.subr.mxu0 0.0
  %6254 = vmatpush1.msra.mxu0 0.0
  %6255 = vmatprep.subr.mxu0 0.0
  %6256 = vmatpush1.msra.mxu0 0.0
  %6257 = vmatprep.subr.mxu0 0.0
  %6258 = vmatpush1.msra.mxu0 0.0
  %6259 = vmatprep.subr.mxu0 0.0
  %6260 = vmatpush1.msra.mxu0 0.0
  %6261 = vmatprep.subr.mxu0 0.0
  %6262 = vmatpush1.msra.mxu0 0.0
  %6263 = vmatprep.subr.mxu0 0.0
  %6264 = vmatpush1.msra.mxu0 0.0
  %6265 = vmatprep.subr.mxu0 0.0
  %6266 = vmatpush1.msra.mxu0 0.0
  %6267 = vmatprep.subr.mxu0 0.0
  %6268 = vmatpush1.msra.mxu0 0.0
  %6269 = vmatprep.subr.mxu0 0.0
  %v6270 = vand.u32 %v5154, 4294901760
  %6271 = vmatpush1.msra.mxu0 %v6270
  %6272 = vmatprep.subr.mxu0 0.0
  %v6273 = vand.u32 %v5035, 4294901760
  %6274 = vmatpush1.msra.mxu0 %v6273
  %6275 = vmatprep.subr.mxu0 0.0
  %6276 = vmatpush2.msra.mxu0 0.0
  %6277 = vmatprep.subr.mxu0 0.0
  %6278 = vmatpush2.msra.mxu0 0.0
  %6279 = vmatprep.subr.mxu0 0.0
  %6280 = vmatpush2.msra.mxu0 0.0
  %6281 = vmatprep.subr.mxu0 0.0
  %6282 = vmatpush2.msra.mxu0 0.0
  %6283 = vmatprep.subr.mxu0 0.0
  %6284 = vmatpush2.msra.mxu0 0.0
  %6285 = vmatprep.subr.mxu0 0.0
  %6286 = vmatpush2.msra.mxu0 0.0
  %6287 = vmatprep.subr.mxu0 0.0
  %6288 = vmatpush2.msra.mxu0 0.0
  %6289 = vmatprep.subr.mxu0 0.0
  %6290 = vmatpush2.msra.mxu0 0.0
  %6291 = vmatprep.subr.mxu0 0.0
  %6292 = vmatpush2.msra.mxu0 0.0
  %6293 = vmatprep.subr.mxu0 0.0
  %6294 = vmatpush2.msra.mxu0 0.0
  %6295 = vmatprep.subr.mxu0 0.0
  %6296 = vmatpush2.msra.mxu0 0.0
  %6297 = vmatprep.subr.mxu0 0.0
  %6298 = vmatpush2.msra.mxu0 0.0
  %6299 = vmatprep.subr.mxu0 0.0
  %6300 = vmatpush2.msra.mxu0 0.0
  %6301 = vmatprep.subr.mxu0 0.0
  %6302 = vmatpush2.msra.mxu0 0.0
  %6303 = vmatprep.subr.mxu0 0.0
  %6304 = vmatpush2.msra.mxu0 0.0
  %6305 = vmatprep.subr.mxu0 0.0
  %6306 = vmatpush2.msra.mxu0 0.0
  %6307 = vmatprep.mubr.f32.mxu0 0.0
  %v6308 = vand.u32 %v5039, 4294901760
  %v6309 = vsub.f32 %v5039, %v6308
  %v6310 = vand.u32 %v6309, 4294901760
  %6311 = vmatmul.mubr.f32.gmra.mxu0 %v6310
  %v6312 = vpop.f32.mrf.mxu0
  %v6313 = vadd.f32 %v5979, %v6312
  %v6314 = vpop.f32.mrf.mxu0
  %6315 = vmatprep.mubr.f32.mxu0 0.0
  %v6316 = vand.u32 %v5042, 4294901760
  %v6317 = vsub.f32 %v5042, %v6316
  %v6318 = vand.u32 %v6317, 4294901760
  %6319 = vmatmul.mubr.f32.gmra.mxu0 %v6318
  %v6320 = vpop.f32.mrf.mxu0
  %v6321 = vadd.f32 %v5986, %v6320
  %v6322 = vpop.f32.mrf.mxu0
  %6323 = vmatprep.mubr.f32.mxu0 0.0
  %v6324 = vand.u32 %v5045, 4294901760
  %v6325 = vsub.f32 %v5045, %v6324
  %v6326 = vand.u32 %v6325, 4294901760
  %6327 = vmatmul.mubr.f32.gmra.mxu0 %v6326
  %v6328 = vpop.f32.mrf.mxu0
  %v6329 = vadd.f32 %v5993, %v6328
  %v6330 = vpop.f32.mrf.mxu0
  %6331 = vmatprep.mubr.f32.mxu0 0.0
  %v6332 = vand.u32 %v5048, 4294901760
  %v6333 = vsub.f32 %v5048, %v6332
  %v6334 = vand.u32 %v6333, 4294901760
  %6335 = vmatmul.mubr.f32.gmra.mxu0 %v6334
  %v6336 = vpop.f32.mrf.mxu0
  %v6337 = vadd.f32 %v6000, %v6336
  %v6338 = vpop.f32.mrf.mxu0
  %6339 = vmatprep.mubr.f32.mxu0 0.0
  %v6340 = vand.u32 %v5051, 4294901760
  %v6341 = vsub.f32 %v5051, %v6340
  %v6342 = vand.u32 %v6341, 4294901760
  %6343 = vmatmul.mubr.f32.gmra.mxu0 %v6342
  %v6344 = vpop.f32.mrf.mxu0
  %v6345 = vadd.f32 %v6007, %v6344
  %v6346 = vpop.f32.mrf.mxu0
  %6347 = vmatprep.mubr.f32.mxu0 0.0
  %v6348 = vand.u32 %v5054, 4294901760
  %v6349 = vsub.f32 %v5054, %v6348
  %v6350 = vand.u32 %v6349, 4294901760
  %6351 = vmatmul.mubr.f32.gmra.mxu0 %v6350
  %v6352 = vpop.f32.mrf.mxu0
  %v6353 = vadd.f32 %v6014, %v6352
  %v6354 = vpop.f32.mrf.mxu0
  %6355 = vmatprep.mubr.f32.mxu0 0.0
  %v6356 = vand.u32 %v5057, 4294901760
  %v6357 = vsub.f32 %v5057, %v6356
  %v6358 = vand.u32 %v6357, 4294901760
  %6359 = vmatmul.mubr.f32.gmra.mxu0 %v6358
  %v6360 = vpop.f32.mrf.mxu0
  %v6361 = vadd.f32 %v6021, %v6360
  %v6362 = vpop.f32.mrf.mxu0
  %6363 = vmatprep.mubr.f32.mxu0 0.0
  %v6364 = vand.u32 %v5060, 4294901760
  %v6365 = vsub.f32 %v5060, %v6364
  %v6366 = vand.u32 %v6365, 4294901760
  %6367 = vmatmul.mubr.f32.gmra.mxu0 %v6366
  %v6368 = vpop.f32.mrf.mxu0
  %v6369 = vadd.f32 %v6028, %v6368
  %v6370 = vpop.f32.mrf.mxu0
  %6371 = vmatprep.mubr.f32.mxu0 0.0
  %v6372 = vand.u32 %v5063, 4294901760
  %v6373 = vsub.f32 %v5063, %v6372
  %v6374 = vand.u32 %v6373, 4294901760
  %6375 = vmatmul.mubr.f32.gmra.mxu0 %v6374
  %v6376 = vpop.f32.mrf.mxu0
  %v6377 = vadd.f32 %v6035, %v6376
  %v6378 = vpop.f32.mrf.mxu0
  %6379 = vmatprep.mubr.f32.mxu0 0.0
  %v6380 = vand.u32 %v5066, 4294901760
  %v6381 = vsub.f32 %v5066, %v6380
  %v6382 = vand.u32 %v6381, 4294901760
  %6383 = vmatmul.mubr.f32.gmra.mxu0 %v6382
  %v6384 = vpop.f32.mrf.mxu0
  %v6385 = vadd.f32 %v6042, %v6384
  %v6386 = vpop.f32.mrf.mxu0
  %6387 = vmatprep.mubr.f32.mxu0 0.0
  %v6388 = vand.u32 %v5069, 4294901760
  %v6389 = vsub.f32 %v5069, %v6388
  %v6390 = vand.u32 %v6389, 4294901760
  %6391 = vmatmul.mubr.f32.gmra.mxu0 %v6390
  %v6392 = vpop.f32.mrf.mxu0
  %v6393 = vadd.f32 %v6049, %v6392
  %v6394 = vpop.f32.mrf.mxu0
  %6395 = vmatprep.mubr.f32.mxu0 0.0
  %v6396 = vand.u32 %v5072, 4294901760
  %v6397 = vsub.f32 %v5072, %v6396
  %v6398 = vand.u32 %v6397, 4294901760
  %6399 = vmatmul.mubr.f32.gmra.mxu0 %v6398
  %v6400 = vpop.f32.mrf.mxu0
  %v6401 = vadd.f32 %v6056, %v6400
  %v6402 = vpop.f32.mrf.mxu0
  %6403 = vmatprep.mubr.f32.mxu0 0.0
  %v6404 = vand.u32 %v5075, 4294901760
  %v6405 = vsub.f32 %v5075, %v6404
  %v6406 = vand.u32 %v6405, 4294901760
  %6407 = vmatmul.mubr.f32.gmra.mxu0 %v6406
  %v6408 = vpop.f32.mrf.mxu0
  %v6409 = vadd.f32 %v6063, %v6408
  %v6410 = vpop.f32.mrf.mxu0
  %6411 = vmatprep.mubr.f32.mxu0 0.0
  %v6412 = vand.u32 %v5078, 4294901760
  %v6413 = vsub.f32 %v5078, %v6412
  %v6414 = vand.u32 %v6413, 4294901760
  %6415 = vmatmul.mubr.f32.gmra.mxu0 %v6414
  %v6416 = vpop.f32.mrf.mxu0
  %v6417 = vadd.f32 %v6070, %v6416
  %v6418 = vpop.f32.mrf.mxu0
  %6419 = vmatprep.mubr.f32.mxu0 0.0
  %v6420 = vand.u32 %v5081, 4294901760
  %v6421 = vsub.f32 %v5081, %v6420
  %v6422 = vand.u32 %v6421, 4294901760
  %6423 = vmatmul.mubr.f32.gmra.mxu0 %v6422
  %v6424 = vpop.f32.mrf.mxu0
  %v6425 = vadd.f32 %v6077, %v6424
  %v6426 = vpop.f32.mrf.mxu0
  %6427 = vmatprep.mubr.f32.mxu0 0.0
  %v6428 = vand.u32 %v5084, 4294901760
  %v6429 = vsub.f32 %v5084, %v6428
  %v6430 = vand.u32 %v6429, 4294901760
  %6431 = vmatmul.mubr.f32.gmra.mxu0 %v6430
  %v6432 = vpop.f32.mrf.mxu0
  %v6433 = vadd.f32 %v6084, %v6432
  %v6434 = vpop.f32.mrf.mxu0
  %6435 = vmatprep.mubr.f32.mxu0 0.0
  %v6436 = vand.u32 %v5087, 4294901760
  %v6437 = vsub.f32 %v5087, %v6436
  %v6438 = vand.u32 %v6437, 4294901760
  %6439 = vmatmul.mubr.f32.gmra.mxu0 %v6438
  %v6440 = vpop.f32.mrf.mxu0
  %v6441 = vadd.f32 %v6091, %v6440
  %v6442 = vpop.f32.mrf.mxu0
  %6443 = vmatprep.mubr.f32.mxu0 0.0
  %v6444 = vand.u32 %v5090, 4294901760
  %v6445 = vsub.f32 %v5090, %v6444
  %v6446 = vand.u32 %v6445, 4294901760
  %6447 = vmatmul.mubr.f32.gmra.mxu0 %v6446
  %v6448 = vpop.f32.mrf.mxu0
  %v6449 = vadd.f32 %v6098, %v6448
  %v6450 = vpop.f32.mrf.mxu0
  %6451 = vmatprep.mubr.f32.mxu0 0.0
  %v6452 = vand.u32 %v5093, 4294901760
  %v6453 = vsub.f32 %v5093, %v6452
  %v6454 = vand.u32 %v6453, 4294901760
  %6455 = vmatmul.mubr.f32.gmra.mxu0 %v6454
  %v6456 = vpop.f32.mrf.mxu0
  %v6457 = vadd.f32 %v6105, %v6456
  %v6458 = vpop.f32.mrf.mxu0
  %6459 = vmatprep.mubr.f32.mxu0 0.0
  %v6460 = vand.u32 %v5096, 4294901760
  %v6461 = vsub.f32 %v5096, %v6460
  %v6462 = vand.u32 %v6461, 4294901760
  %6463 = vmatmul.mubr.f32.gmra.mxu0 %v6462
  %v6464 = vpop.f32.mrf.mxu0
  %v6465 = vadd.f32 %v6112, %v6464
  %v6466 = vpop.f32.mrf.mxu0
  %6467 = vmatprep.mubr.f32.mxu0 0.0
  %v6468 = vand.u32 %v5099, 4294901760
  %v6469 = vsub.f32 %v5099, %v6468
  %v6470 = vand.u32 %v6469, 4294901760
  %6471 = vmatmul.mubr.f32.gmra.mxu0 %v6470
  %v6472 = vpop.f32.mrf.mxu0
  %v6473 = vadd.f32 %v6119, %v6472
  %v6474 = vpop.f32.mrf.mxu0
  %6475 = vmatprep.mubr.f32.mxu0 0.0
  %v6476 = vand.u32 %v5102, 4294901760
  %v6477 = vsub.f32 %v5102, %v6476
  %v6478 = vand.u32 %v6477, 4294901760
  %6479 = vmatmul.mubr.f32.gmra.mxu0 %v6478
  %v6480 = vpop.f32.mrf.mxu0
  %v6481 = vadd.f32 %v6126, %v6480
  %v6482 = vpop.f32.mrf.mxu0
  %6483 = vmatprep.mubr.f32.mxu0 0.0
  %v6484 = vand.u32 %v5105, 4294901760
  %v6485 = vsub.f32 %v5105, %v6484
  %v6486 = vand.u32 %v6485, 4294901760
  %6487 = vmatmul.mubr.f32.gmra.mxu0 %v6486
  %v6488 = vpop.f32.mrf.mxu0
  %v6489 = vadd.f32 %v6133, %v6488
  %v6490 = vpop.f32.mrf.mxu0
  %6491 = vmatprep.mubr.f32.mxu0 0.0
  %v6492 = vand.u32 %v5108, 4294901760
  %v6493 = vsub.f32 %v5108, %v6492
  %v6494 = vand.u32 %v6493, 4294901760
  %6495 = vmatmul.mubr.f32.gmra.mxu0 %v6494
  %v6496 = vpop.f32.mrf.mxu0
  %v6497 = vadd.f32 %v6140, %v6496
  %v6498 = vpop.f32.mrf.mxu0
  %6499 = vmatprep.mubr.f32.mxu0 0.0
  %v6500 = vand.u32 %v5111, 4294901760
  %v6501 = vsub.f32 %v5111, %v6500
  %v6502 = vand.u32 %v6501, 4294901760
  %6503 = vmatmul.mubr.f32.gmra.mxu0 %v6502
  %v6504 = vpop.f32.mrf.mxu0
  %v6505 = vadd.f32 %v6147, %v6504
  %v6506 = vpop.f32.mrf.mxu0
  %6507 = vmatprep.mubr.f32.mxu0 0.0
  %v6508 = vand.u32 %v5114, 4294901760
  %v6509 = vsub.f32 %v5114, %v6508
  %v6510 = vand.u32 %v6509, 4294901760
  %6511 = vmatmul.mubr.f32.gmra.mxu0 %v6510
  %v6512 = vpop.f32.mrf.mxu0
  %v6513 = vadd.f32 %v6154, %v6512
  %v6514 = vpop.f32.mrf.mxu0
  %6515 = vmatprep.mubr.f32.mxu0 0.0
  %v6516 = vand.u32 %v5117, 4294901760
  %v6517 = vsub.f32 %v5117, %v6516
  %v6518 = vand.u32 %v6517, 4294901760
  %6519 = vmatmul.mubr.f32.gmra.mxu0 %v6518
  %v6520 = vpop.f32.mrf.mxu0
  %v6521 = vadd.f32 %v6161, %v6520
  %v6522 = vpop.f32.mrf.mxu0
  %6523 = vmatprep.mubr.f32.mxu0 0.0
  %v6524 = vand.u32 %v5120, 4294901760
  %v6525 = vsub.f32 %v5120, %v6524
  %v6526 = vand.u32 %v6525, 4294901760
  %6527 = vmatmul.mubr.f32.gmra.mxu0 %v6526
  %v6528 = vpop.f32.mrf.mxu0
  %v6529 = vadd.f32 %v6168, %v6528
  %v6530 = vpop.f32.mrf.mxu0
  %6531 = vmatprep.mubr.f32.mxu0 0.0
  %v6532 = vand.u32 %v5123, 4294901760
  %v6533 = vsub.f32 %v5123, %v6532
  %v6534 = vand.u32 %v6533, 4294901760
  %6535 = vmatmul.mubr.f32.gmra.mxu0 %v6534
  %v6536 = vpop.f32.mrf.mxu0
  %v6537 = vadd.f32 %v6175, %v6536
  %v6538 = vpop.f32.mrf.mxu0
  %6539 = vmatprep.mubr.f32.mxu0 0.0
  %v6540 = vand.u32 %v5126, 4294901760
  %v6541 = vsub.f32 %v5126, %v6540
  %v6542 = vand.u32 %v6541, 4294901760
  %6543 = vmatmul.mubr.f32.gmra.mxu0 %v6542
  %v6544 = vpop.f32.mrf.mxu0
  %v6545 = vadd.f32 %v6182, %v6544
  %v6546 = vpop.f32.mrf.mxu0
  %6547 = vmatprep.mubr.f32.mxu0 0.0
  %v6548 = vand.u32 %v5129, 4294901760
  %v6549 = vsub.f32 %v5129, %v6548
  %v6550 = vand.u32 %v6549, 4294901760
  %6551 = vmatmul.mubr.f32.gmra.mxu0 %v6550
  %v6552 = vpop.f32.mrf.mxu0
  %v6553 = vadd.f32 %v6189, %v6552
  %v6554 = vpop.f32.mrf.mxu0
  %6555 = vmatprep.mubr.f32.mxu0 0.0
  %v6556 = vand.u32 %v5132, 4294901760
  %v6557 = vsub.f32 %v5132, %v6556
  %v6558 = vand.u32 %v6557, 4294901760
  %6559 = vmatmul.mubr.f32.gmra.mxu0 %v6558
  %v6560 = vpop.f32.mrf.mxu0
  %v6561 = vadd.f32 %v6196, %v6560
  %v6562 = vpop.f32.mrf.mxu0
  %6563 = vmatprep.mubr.f32.mxu0 0.0
  %v6564 = vand.u32 %v5135, 4294901760
  %v6565 = vsub.f32 %v5135, %v6564
  %v6566 = vand.u32 %v6565, 4294901760
  %6567 = vmatmul.mubr.f32.gmra.mxu0 %v6566
  %v6568 = vpop.f32.mrf.mxu0
  %v6569 = vadd.f32 %v6203, %v6568
  %v6570 = vpop.f32.mrf.mxu0
  %6571 = vmatprep.mubr.f32.mxu0 0.0
  %v6572 = vand.u32 %v5138, 4294901760
  %v6573 = vsub.f32 %v5138, %v6572
  %v6574 = vand.u32 %v6573, 4294901760
  %6575 = vmatmul.mubr.f32.gmra.mxu0 %v6574
  %v6576 = vpop.f32.mrf.mxu0
  %v6577 = vadd.f32 %v6210, %v6576
  %v6578 = vpop.f32.mrf.mxu0
  %6579 = vmatprep.mubr.f32.mxu0 0.0
  %v6580 = vand.u32 %v5141, 4294901760
  %v6581 = vsub.f32 %v5141, %v6580
  %v6582 = vand.u32 %v6581, 4294901760
  %6583 = vmatmul.mubr.f32.gmra.mxu0 %v6582
  %v6584 = vpop.f32.mrf.mxu0
  %v6585 = vadd.f32 %v6217, %v6584
  %v6586 = vpop.f32.mrf.mxu0
  %6587 = vmatprep.mubr.f32.mxu0 0.0
  %v6588 = vand.u32 %v5144, 4294901760
  %v6589 = vsub.f32 %v5144, %v6588
  %v6590 = vand.u32 %v6589, 4294901760
  %6591 = vmatmul.mubr.f32.gmra.mxu0 %v6590
  %v6592 = vpop.f32.mrf.mxu0
  %v6593 = vadd.f32 %v6224, %v6592
  %v6594 = vpop.f32.mrf.mxu0
  %6595 = vmatprep.mubr.f32.mxu0 0.0
  %v6596 = vand.u32 %v5147, 4294901760
  %v6597 = vsub.f32 %v5147, %v6596
  %v6598 = vand.u32 %v6597, 4294901760
  %6599 = vmatmul.mubr.f32.gmra.mxu0 %v6598
  %v6600 = vpop.f32.mrf.mxu0
  %v6601 = vadd.f32 %v6231, %v6600
  %v6602 = vpop.f32.mrf.mxu0
  %6603 = vmatprep.mubr.f32.mxu0 0.0
  %v6604 = vand.u32 %v5150, 4294901760
  %v6605 = vsub.f32 %v5150, %v6604
  %v6606 = vand.u32 %v6605, 4294901760
  %6607 = vmatmul.mubr.f32.gmra.mxu0 %v6606
  %v6608 = vpop.f32.mrf.mxu0
  %v6609 = vadd.f32 %v6238, %v6608
  %v6610 = vpop.f32.mrf.mxu0
  %6611 = vdwg.mxu0
  %6612 = vmatprep.subr.mxu0 0.0
  %6613 = vmatpush1.msra.mxu0 0.0
  %6614 = vmatprep.subr.mxu0 0.0
  %6615 = vmatpush1.msra.mxu0 0.0
  %6616 = vmatprep.subr.mxu0 0.0
  %6617 = vmatpush1.msra.mxu0 0.0
  %6618 = vmatprep.subr.mxu0 0.0
  %6619 = vmatpush1.msra.mxu0 0.0
  %6620 = vmatprep.subr.mxu0 0.0
  %6621 = vmatpush1.msra.mxu0 0.0
  %6622 = vmatprep.subr.mxu0 0.0
  %6623 = vmatpush1.msra.mxu0 0.0
  %6624 = vmatprep.subr.mxu0 0.0
  %6625 = vmatpush1.msra.mxu0 0.0
  %6626 = vmatprep.subr.mxu0 0.0
  %6627 = vmatpush1.msra.mxu0 0.0
  %6628 = vmatprep.subr.mxu0 0.0
  %6629 = vmatpush1.msra.mxu0 0.0
  %6630 = vmatprep.subr.mxu0 0.0
  %6631 = vmatpush1.msra.mxu0 0.0
  %6632 = vmatprep.subr.mxu0 0.0
  %6633 = vmatpush1.msra.mxu0 0.0
  %6634 = vmatprep.subr.mxu0 0.0
  %6635 = vmatpush1.msra.mxu0 0.0
  %6636 = vmatprep.subr.mxu0 0.0
  %6637 = vmatpush1.msra.mxu0 0.0
  %6638 = vmatprep.subr.mxu0 0.0
  %6639 = vmatpush1.msra.mxu0 0.0
  %6640 = vmatprep.subr.mxu0 0.0
  %v6641 = vand.u32 %v5154, 4294901760
  %v6642 = vsub.f32 %v5154, %v6641
  %v6643 = vand.u32 %v6642, 4294901760
  %6644 = vmatpush1.msra.mxu0 %v6643
  %6645 = vmatprep.subr.mxu0 0.0
  %v6646 = vand.u32 %v5035, 4294901760
  %v6647 = vsub.f32 %v5035, %v6646
  %v6648 = vand.u32 %v6647, 4294901760
  %6649 = vmatpush1.msra.mxu0 %v6648
  %6650 = vmatprep.subr.mxu0 0.0
  %6651 = vmatpush2.msra.mxu0 0.0
  %6652 = vmatprep.subr.mxu0 0.0
  %6653 = vmatpush2.msra.mxu0 0.0
  %6654 = vmatprep.subr.mxu0 0.0
  %6655 = vmatpush2.msra.mxu0 0.0
  %6656 = vmatprep.subr.mxu0 0.0
  %6657 = vmatpush2.msra.mxu0 0.0
  %6658 = vmatprep.subr.mxu0 0.0
  %6659 = vmatpush2.msra.mxu0 0.0
  %6660 = vmatprep.subr.mxu0 0.0
  %6661 = vmatpush2.msra.mxu0 0.0
  %6662 = vmatprep.subr.mxu0 0.0
  %6663 = vmatpush2.msra.mxu0 0.0
  %6664 = vmatprep.subr.mxu0 0.0
  %6665 = vmatpush2.msra.mxu0 0.0
  %6666 = vmatprep.subr.mxu0 0.0
  %6667 = vmatpush2.msra.mxu0 0.0
  %6668 = vmatprep.subr.mxu0 0.0
  %6669 = vmatpush2.msra.mxu0 0.0
  %6670 = vmatprep.subr.mxu0 0.0
  %6671 = vmatpush2.msra.mxu0 0.0
  %6672 = vmatprep.subr.mxu0 0.0
  %6673 = vmatpush2.msra.mxu0 0.0
  %6674 = vmatprep.subr.mxu0 0.0
  %6675 = vmatpush2.msra.mxu0 0.0
  %6676 = vmatprep.subr.mxu0 0.0
  %6677 = vmatpush2.msra.mxu0 0.0
  %6678 = vmatprep.subr.mxu0 0.0
  %6679 = vmatpush2.msra.mxu0 0.0
  %6680 = vmatprep.subr.mxu0 0.0
  %6681 = vmatpush2.msra.mxu0 0.0
  %6682 = vmatprep.mubr.f32.mxu0 0.0
  %v6683 = vand.u32 %v5039, 4294901760
  %6684 = vmatmul.mubr.f32.gmra.mxu0 %v6683
  %v6685 = vpop.f32.mrf.mxu0
  %v6686 = vadd.f32 %v6313, %v6685
  %v6687 = vpop.f32.mrf.mxu0
  %6688 = vmatprep.mubr.f32.mxu0 0.0
  %v6689 = vand.u32 %v5042, 4294901760
  %6690 = vmatmul.mubr.f32.gmra.mxu0 %v6689
  %v6691 = vpop.f32.mrf.mxu0
  %v6692 = vadd.f32 %v6321, %v6691
  %v6693 = vpop.f32.mrf.mxu0
  %6694 = vmatprep.mubr.f32.mxu0 0.0
  %v6695 = vand.u32 %v5045, 4294901760
  %6696 = vmatmul.mubr.f32.gmra.mxu0 %v6695
  %v6697 = vpop.f32.mrf.mxu0
  %v6698 = vadd.f32 %v6329, %v6697
  %v6699 = vpop.f32.mrf.mxu0
  %6700 = vmatprep.mubr.f32.mxu0 0.0
  %v6701 = vand.u32 %v5048, 4294901760
  %6702 = vmatmul.mubr.f32.gmra.mxu0 %v6701
  %v6703 = vpop.f32.mrf.mxu0
  %v6704 = vadd.f32 %v6337, %v6703
  %v6705 = vpop.f32.mrf.mxu0
  %6706 = vmatprep.mubr.f32.mxu0 0.0
  %v6707 = vand.u32 %v5051, 4294901760
  %6708 = vmatmul.mubr.f32.gmra.mxu0 %v6707
  %v6709 = vpop.f32.mrf.mxu0
  %v6710 = vadd.f32 %v6345, %v6709
  %v6711 = vpop.f32.mrf.mxu0
  %6712 = vmatprep.mubr.f32.mxu0 0.0
  %v6713 = vand.u32 %v5054, 4294901760
  %6714 = vmatmul.mubr.f32.gmra.mxu0 %v6713
  %v6715 = vpop.f32.mrf.mxu0
  %v6716 = vadd.f32 %v6353, %v6715
  %v6717 = vpop.f32.mrf.mxu0
  %6718 = vmatprep.mubr.f32.mxu0 0.0
  %v6719 = vand.u32 %v5057, 4294901760
  %6720 = vmatmul.mubr.f32.gmra.mxu0 %v6719
  %v6721 = vpop.f32.mrf.mxu0
  %v6722 = vadd.f32 %v6361, %v6721
  %v6723 = vpop.f32.mrf.mxu0
  %6724 = vmatprep.mubr.f32.mxu0 0.0
  %v6725 = vand.u32 %v5060, 4294901760
  %6726 = vmatmul.mubr.f32.gmra.mxu0 %v6725
  %v6727 = vpop.f32.mrf.mxu0
  %v6728 = vadd.f32 %v6369, %v6727
  %v6729 = vpop.f32.mrf.mxu0
  %6730 = vmatprep.mubr.f32.mxu0 0.0
  %v6731 = vand.u32 %v5063, 4294901760
  %6732 = vmatmul.mubr.f32.gmra.mxu0 %v6731
  %v6733 = vpop.f32.mrf.mxu0
  %v6734 = vadd.f32 %v6377, %v6733
  %v6735 = vpop.f32.mrf.mxu0
  %6736 = vmatprep.mubr.f32.mxu0 0.0
  %v6737 = vand.u32 %v5066, 4294901760
  %6738 = vmatmul.mubr.f32.gmra.mxu0 %v6737
  %v6739 = vpop.f32.mrf.mxu0
  %v6740 = vadd.f32 %v6385, %v6739
  %v6741 = vpop.f32.mrf.mxu0
  %6742 = vmatprep.mubr.f32.mxu0 0.0
  %v6743 = vand.u32 %v5069, 4294901760
  %6744 = vmatmul.mubr.f32.gmra.mxu0 %v6743
  %v6745 = vpop.f32.mrf.mxu0
  %v6746 = vadd.f32 %v6393, %v6745
  %v6747 = vpop.f32.mrf.mxu0
  %6748 = vmatprep.mubr.f32.mxu0 0.0
  %v6749 = vand.u32 %v5072, 4294901760
  %6750 = vmatmul.mubr.f32.gmra.mxu0 %v6749
  %v6751 = vpop.f32.mrf.mxu0
  %v6752 = vadd.f32 %v6401, %v6751
  %v6753 = vpop.f32.mrf.mxu0
  %6754 = vmatprep.mubr.f32.mxu0 0.0
  %v6755 = vand.u32 %v5075, 4294901760
  %6756 = vmatmul.mubr.f32.gmra.mxu0 %v6755
  %v6757 = vpop.f32.mrf.mxu0
  %v6758 = vadd.f32 %v6409, %v6757
  %v6759 = vpop.f32.mrf.mxu0
  %6760 = vmatprep.mubr.f32.mxu0 0.0
  %v6761 = vand.u32 %v5078, 4294901760
  %6762 = vmatmul.mubr.f32.gmra.mxu0 %v6761
  %v6763 = vpop.f32.mrf.mxu0
  %v6764 = vadd.f32 %v6417, %v6763
  %v6765 = vpop.f32.mrf.mxu0
  %6766 = vmatprep.mubr.f32.mxu0 0.0
  %v6767 = vand.u32 %v5081, 4294901760
  %6768 = vmatmul.mubr.f32.gmra.mxu0 %v6767
  %v6769 = vpop.f32.mrf.mxu0
  %v6770 = vadd.f32 %v6425, %v6769
  %v6771 = vpop.f32.mrf.mxu0
  %6772 = vmatprep.mubr.f32.mxu0 0.0
  %v6773 = vand.u32 %v5084, 4294901760
  %6774 = vmatmul.mubr.f32.gmra.mxu0 %v6773
  %v6775 = vpop.f32.mrf.mxu0
  %v6776 = vadd.f32 %v6433, %v6775
  %v6777 = vpop.f32.mrf.mxu0
  %6778 = vmatprep.mubr.f32.mxu0 0.0
  %v6779 = vand.u32 %v5087, 4294901760
  %6780 = vmatmul.mubr.f32.gmra.mxu0 %v6779
  %v6781 = vpop.f32.mrf.mxu0
  %v6782 = vadd.f32 %v6441, %v6781
  %v6783 = vpop.f32.mrf.mxu0
  %6784 = vmatprep.mubr.f32.mxu0 0.0
  %v6785 = vand.u32 %v5090, 4294901760
  %6786 = vmatmul.mubr.f32.gmra.mxu0 %v6785
  %v6787 = vpop.f32.mrf.mxu0
  %v6788 = vadd.f32 %v6449, %v6787
  %v6789 = vpop.f32.mrf.mxu0
  %6790 = vmatprep.mubr.f32.mxu0 0.0
  %v6791 = vand.u32 %v5093, 4294901760
  %6792 = vmatmul.mubr.f32.gmra.mxu0 %v6791
  %v6793 = vpop.f32.mrf.mxu0
  %v6794 = vadd.f32 %v6457, %v6793
  %v6795 = vpop.f32.mrf.mxu0
  %6796 = vmatprep.mubr.f32.mxu0 0.0
  %v6797 = vand.u32 %v5096, 4294901760
  %6798 = vmatmul.mubr.f32.gmra.mxu0 %v6797
  %v6799 = vpop.f32.mrf.mxu0
  %v6800 = vadd.f32 %v6465, %v6799
  %v6801 = vpop.f32.mrf.mxu0
  %6802 = vmatprep.mubr.f32.mxu0 0.0
  %v6803 = vand.u32 %v5099, 4294901760
  %6804 = vmatmul.mubr.f32.gmra.mxu0 %v6803
  %v6805 = vpop.f32.mrf.mxu0
  %v6806 = vadd.f32 %v6473, %v6805
  %v6807 = vpop.f32.mrf.mxu0
  %6808 = vmatprep.mubr.f32.mxu0 0.0
  %v6809 = vand.u32 %v5102, 4294901760
  %6810 = vmatmul.mubr.f32.gmra.mxu0 %v6809
  %v6811 = vpop.f32.mrf.mxu0
  %v6812 = vadd.f32 %v6481, %v6811
  %v6813 = vpop.f32.mrf.mxu0
  %6814 = vmatprep.mubr.f32.mxu0 0.0
  %v6815 = vand.u32 %v5105, 4294901760
  %6816 = vmatmul.mubr.f32.gmra.mxu0 %v6815
  %v6817 = vpop.f32.mrf.mxu0
  %v6818 = vadd.f32 %v6489, %v6817
  %v6819 = vpop.f32.mrf.mxu0
  %6820 = vmatprep.mubr.f32.mxu0 0.0
  %v6821 = vand.u32 %v5108, 4294901760
  %6822 = vmatmul.mubr.f32.gmra.mxu0 %v6821
  %v6823 = vpop.f32.mrf.mxu0
  %v6824 = vadd.f32 %v6497, %v6823
  %v6825 = vpop.f32.mrf.mxu0
  %6826 = vmatprep.mubr.f32.mxu0 0.0
  %v6827 = vand.u32 %v5111, 4294901760
  %6828 = vmatmul.mubr.f32.gmra.mxu0 %v6827
  %v6829 = vpop.f32.mrf.mxu0
  %v6830 = vadd.f32 %v6505, %v6829
  %v6831 = vpop.f32.mrf.mxu0
  %6832 = vmatprep.mubr.f32.mxu0 0.0
  %v6833 = vand.u32 %v5114, 4294901760
  %6834 = vmatmul.mubr.f32.gmra.mxu0 %v6833
  %v6835 = vpop.f32.mrf.mxu0
  %v6836 = vadd.f32 %v6513, %v6835
  %v6837 = vpop.f32.mrf.mxu0
  %6838 = vmatprep.mubr.f32.mxu0 0.0
  %v6839 = vand.u32 %v5117, 4294901760
  %6840 = vmatmul.mubr.f32.gmra.mxu0 %v6839
  %v6841 = vpop.f32.mrf.mxu0
  %v6842 = vadd.f32 %v6521, %v6841
  %v6843 = vpop.f32.mrf.mxu0
  %6844 = vmatprep.mubr.f32.mxu0 0.0
  %v6845 = vand.u32 %v5120, 4294901760
  %6846 = vmatmul.mubr.f32.gmra.mxu0 %v6845
  %v6847 = vpop.f32.mrf.mxu0
  %v6848 = vadd.f32 %v6529, %v6847
  %v6849 = vpop.f32.mrf.mxu0
  %6850 = vmatprep.mubr.f32.mxu0 0.0
  %v6851 = vand.u32 %v5123, 4294901760
  %6852 = vmatmul.mubr.f32.gmra.mxu0 %v6851
  %v6853 = vpop.f32.mrf.mxu0
  %v6854 = vadd.f32 %v6537, %v6853
  %v6855 = vpop.f32.mrf.mxu0
  %6856 = vmatprep.mubr.f32.mxu0 0.0
  %v6857 = vand.u32 %v5126, 4294901760
  %6858 = vmatmul.mubr.f32.gmra.mxu0 %v6857
  %v6859 = vpop.f32.mrf.mxu0
  %v6860 = vadd.f32 %v6545, %v6859
  %v6861 = vpop.f32.mrf.mxu0
  %6862 = vmatprep.mubr.f32.mxu0 0.0
  %v6863 = vand.u32 %v5129, 4294901760
  %6864 = vmatmul.mubr.f32.gmra.mxu0 %v6863
  %v6865 = vpop.f32.mrf.mxu0
  %v6866 = vadd.f32 %v6553, %v6865
  %v6867 = vpop.f32.mrf.mxu0
  %6868 = vmatprep.mubr.f32.mxu0 0.0
  %v6869 = vand.u32 %v5132, 4294901760
  %6870 = vmatmul.mubr.f32.gmra.mxu0 %v6869
  %v6871 = vpop.f32.mrf.mxu0
  %v6872 = vadd.f32 %v6561, %v6871
  %v6873 = vpop.f32.mrf.mxu0
  %6874 = vmatprep.mubr.f32.mxu0 0.0
  %v6875 = vand.u32 %v5135, 4294901760
  %6876 = vmatmul.mubr.f32.gmra.mxu0 %v6875
  %v6877 = vpop.f32.mrf.mxu0
  %v6878 = vadd.f32 %v6569, %v6877
  %v6879 = vpop.f32.mrf.mxu0
  %6880 = vmatprep.mubr.f32.mxu0 0.0
  %v6881 = vand.u32 %v5138, 4294901760
  %6882 = vmatmul.mubr.f32.gmra.mxu0 %v6881
  %v6883 = vpop.f32.mrf.mxu0
  %v6884 = vadd.f32 %v6577, %v6883
  %v6885 = vpop.f32.mrf.mxu0
  %6886 = vmatprep.mubr.f32.mxu0 0.0
  %v6887 = vand.u32 %v5141, 4294901760
  %6888 = vmatmul.mubr.f32.gmra.mxu0 %v6887
  %v6889 = vpop.f32.mrf.mxu0
  %v6890 = vadd.f32 %v6585, %v6889
  %v6891 = vpop.f32.mrf.mxu0
  %6892 = vmatprep.mubr.f32.mxu0 0.0
  %v6893 = vand.u32 %v5144, 4294901760
  %6894 = vmatmul.mubr.f32.gmra.mxu0 %v6893
  %v6895 = vpop.f32.mrf.mxu0
  %v6896 = vadd.f32 %v6593, %v6895
  %v6897 = vpop.f32.mrf.mxu0
  %6898 = vmatprep.mubr.f32.mxu0 0.0
  %v6899 = vand.u32 %v5147, 4294901760
  %6900 = vmatmul.mubr.f32.gmra.mxu0 %v6899
  %v6901 = vpop.f32.mrf.mxu0
  %v6902 = vadd.f32 %v6601, %v6901
  %v6903 = vpop.f32.mrf.mxu0
  %6904 = vmatprep.mubr.f32.mxu0 0.0
  %v6905 = vand.u32 %v5150, 4294901760
  %6906 = vmatmul.mubr.f32.gmra.mxu0 %v6905
  %v6907 = vpop.f32.mrf.mxu0
  %v6908 = vadd.f32 %v6609, %v6907
  %v6909 = vpop.f32.mrf.mxu0
  %6910 = vdwg.mxu0
  %6911 = vmatprep.subr.mxu0 0.0
  %6912 = vmatpush1.msra.mxu0 0.0
  %6913 = vmatprep.subr.mxu0 0.0
  %6914 = vmatpush1.msra.mxu0 0.0
  %6915 = vmatprep.subr.mxu0 0.0
  %6916 = vmatpush1.msra.mxu0 0.0
  %6917 = vmatprep.subr.mxu0 0.0
  %6918 = vmatpush1.msra.mxu0 0.0
  %6919 = vmatprep.subr.mxu0 0.0
  %6920 = vmatpush1.msra.mxu0 0.0
  %6921 = vmatprep.subr.mxu0 0.0
  %6922 = vmatpush1.msra.mxu0 0.0
  %6923 = vmatprep.subr.mxu0 0.0
  %6924 = vmatpush1.msra.mxu0 0.0
  %6925 = vmatprep.subr.mxu0 0.0
  %6926 = vmatpush1.msra.mxu0 0.0
  %6927 = vmatprep.subr.mxu0 0.0
  %6928 = vmatpush1.msra.mxu0 0.0
  %6929 = vmatprep.subr.mxu0 0.0
  %6930 = vmatpush1.msra.mxu0 0.0
  %6931 = vmatprep.subr.mxu0 0.0
  %6932 = vmatpush1.msra.mxu0 0.0
  %6933 = vmatprep.subr.mxu0 0.0
  %6934 = vmatpush1.msra.mxu0 0.0
  %6935 = vmatprep.subr.mxu0 0.0
  %6936 = vmatpush1.msra.mxu0 0.0
  %6937 = vmatprep.subr.mxu0 0.0
  %6938 = vmatpush1.msra.mxu0 0.0
  %6939 = vmatprep.subr.mxu0 0.0
  %v6940 = vand.u32 %v5154, 4294901760
  %6941 = vmatpush1.msra.mxu0 %v6940
  %6942 = vmatprep.subr.mxu0 0.0
  %v6943 = vand.u32 %v5035, 4294901760
  %6944 = vmatpush1.msra.mxu0 %v6943
  %6945 = vmatprep.subr.mxu0 0.0
  %6946 = vmatpush2.msra.mxu0 0.0
  %6947 = vmatprep.subr.mxu0 0.0
  %6948 = vmatpush2.msra.mxu0 0.0
  %6949 = vmatprep.subr.mxu0 0.0
  %6950 = vmatpush2.msra.mxu0 0.0
  %6951 = vmatprep.subr.mxu0 0.0
  %6952 = vmatpush2.msra.mxu0 0.0
  %6953 = vmatprep.subr.mxu0 0.0
  %6954 = vmatpush2.msra.mxu0 0.0
  %6955 = vmatprep.subr.mxu0 0.0
  %6956 = vmatpush2.msra.mxu0 0.0
  %6957 = vmatprep.subr.mxu0 0.0
  %6958 = vmatpush2.msra.mxu0 0.0
  %6959 = vmatprep.subr.mxu0 0.0
  %6960 = vmatpush2.msra.mxu0 0.0
  %6961 = vmatprep.subr.mxu0 0.0
  %6962 = vmatpush2.msra.mxu0 0.0
  %6963 = vmatprep.subr.mxu0 0.0
  %6964 = vmatpush2.msra.mxu0 0.0
  %6965 = vmatprep.subr.mxu0 0.0
  %6966 = vmatpush2.msra.mxu0 0.0
  %6967 = vmatprep.subr.mxu0 0.0
  %6968 = vmatpush2.msra.mxu0 0.0
  %6969 = vmatprep.subr.mxu0 0.0
  %6970 = vmatpush2.msra.mxu0 0.0
  %6971 = vmatprep.subr.mxu0 0.0
  %6972 = vmatpush2.msra.mxu0 0.0
  %6973 = vmatprep.subr.mxu0 0.0
  %6974 = vmatpush2.msra.mxu0 0.0
  %6975 = vmatprep.subr.mxu0 0.0
  %6976 = vmatpush2.msra.mxu0 0.0
  %6977 = vmatprep.mubr.f32.mxu0 0.0
  %v6978 = vand.u32 %v5039, 4294901760
  %6979 = vmatmul.mubr.f32.gmra.mxu0 %v6978
  %v6980 = vpop.f32.mrf.mxu0
  %v6981 = vadd.f32 %v6686, %v6980
  %v6982 = vpop.f32.mrf.mxu0
  %6983 = vmatprep.mubr.f32.mxu0 0.0
  %v6984 = vand.u32 %v5042, 4294901760
  %6985 = vmatmul.mubr.f32.gmra.mxu0 %v6984
  %v6986 = vpop.f32.mrf.mxu0
  %v6987 = vadd.f32 %v6692, %v6986
  %v6988 = vpop.f32.mrf.mxu0
  %6989 = vmatprep.mubr.f32.mxu0 0.0
  %v6990 = vand.u32 %v5045, 4294901760
  %6991 = vmatmul.mubr.f32.gmra.mxu0 %v6990
  %v6992 = vpop.f32.mrf.mxu0
  %v6993 = vadd.f32 %v6698, %v6992
  %v6994 = vpop.f32.mrf.mxu0
  %6995 = vmatprep.mubr.f32.mxu0 0.0
  %v6996 = vand.u32 %v5048, 4294901760
  %6997 = vmatmul.mubr.f32.gmra.mxu0 %v6996
  %v6998 = vpop.f32.mrf.mxu0
  %v6999 = vadd.f32 %v6704, %v6998
  %v7000 = vpop.f32.mrf.mxu0
  %7001 = vmatprep.mubr.f32.mxu0 0.0
  %v7002 = vand.u32 %v5051, 4294901760
  %7003 = vmatmul.mubr.f32.gmra.mxu0 %v7002
  %v7004 = vpop.f32.mrf.mxu0
  %v7005 = vadd.f32 %v6710, %v7004
  %v7006 = vpop.f32.mrf.mxu0
  %7007 = vmatprep.mubr.f32.mxu0 0.0
  %v7008 = vand.u32 %v5054, 4294901760
  %7009 = vmatmul.mubr.f32.gmra.mxu0 %v7008
  %v7010 = vpop.f32.mrf.mxu0
  %v7011 = vadd.f32 %v6716, %v7010
  %v7012 = vpop.f32.mrf.mxu0
  %7013 = vmatprep.mubr.f32.mxu0 0.0
  %v7014 = vand.u32 %v5057, 4294901760
  %7015 = vmatmul.mubr.f32.gmra.mxu0 %v7014
  %v7016 = vpop.f32.mrf.mxu0
  %v7017 = vadd.f32 %v6722, %v7016
  %v7018 = vpop.f32.mrf.mxu0
  %7019 = vmatprep.mubr.f32.mxu0 0.0
  %v7020 = vand.u32 %v5060, 4294901760
  %7021 = vmatmul.mubr.f32.gmra.mxu0 %v7020
  %v7022 = vpop.f32.mrf.mxu0
  %v7023 = vadd.f32 %v6728, %v7022
  %v7024 = vpop.f32.mrf.mxu0
  %7025 = vmatprep.mubr.f32.mxu0 0.0
  %v7026 = vand.u32 %v5063, 4294901760
  %7027 = vmatmul.mubr.f32.gmra.mxu0 %v7026
  %v7028 = vpop.f32.mrf.mxu0
  %v7029 = vadd.f32 %v6734, %v7028
  %v7030 = vpop.f32.mrf.mxu0
  %7031 = vmatprep.mubr.f32.mxu0 0.0
  %v7032 = vand.u32 %v5066, 4294901760
  %7033 = vmatmul.mubr.f32.gmra.mxu0 %v7032
  %v7034 = vpop.f32.mrf.mxu0
  %v7035 = vadd.f32 %v6740, %v7034
  %v7036 = vpop.f32.mrf.mxu0
  %7037 = vmatprep.mubr.f32.mxu0 0.0
  %v7038 = vand.u32 %v5069, 4294901760
  %7039 = vmatmul.mubr.f32.gmra.mxu0 %v7038
  %v7040 = vpop.f32.mrf.mxu0
  %v7041 = vadd.f32 %v6746, %v7040
  %v7042 = vpop.f32.mrf.mxu0
  %7043 = vmatprep.mubr.f32.mxu0 0.0
  %v7044 = vand.u32 %v5072, 4294901760
  %7045 = vmatmul.mubr.f32.gmra.mxu0 %v7044
  %v7046 = vpop.f32.mrf.mxu0
  %v7047 = vadd.f32 %v6752, %v7046
  %v7048 = vpop.f32.mrf.mxu0
  %7049 = vmatprep.mubr.f32.mxu0 0.0
  %v7050 = vand.u32 %v5075, 4294901760
  %7051 = vmatmul.mubr.f32.gmra.mxu0 %v7050
  %v7052 = vpop.f32.mrf.mxu0
  %v7053 = vadd.f32 %v6758, %v7052
  %v7054 = vpop.f32.mrf.mxu0
  %7055 = vmatprep.mubr.f32.mxu0 0.0
  %v7056 = vand.u32 %v5078, 4294901760
  %7057 = vmatmul.mubr.f32.gmra.mxu0 %v7056
  %v7058 = vpop.f32.mrf.mxu0
  %v7059 = vadd.f32 %v6764, %v7058
  %v7060 = vpop.f32.mrf.mxu0
  %7061 = vmatprep.mubr.f32.mxu0 0.0
  %v7062 = vand.u32 %v5081, 4294901760
  %7063 = vmatmul.mubr.f32.gmra.mxu0 %v7062
  %v7064 = vpop.f32.mrf.mxu0
  %v7065 = vadd.f32 %v6770, %v7064
  %v7066 = vpop.f32.mrf.mxu0
  %7067 = vmatprep.mubr.f32.mxu0 0.0
  %v7068 = vand.u32 %v5084, 4294901760
  %7069 = vmatmul.mubr.f32.gmra.mxu0 %v7068
  %v7070 = vpop.f32.mrf.mxu0
  %v7071 = vadd.f32 %v6776, %v7070
  %v7072 = vpop.f32.mrf.mxu0
  %7073 = vmatprep.mubr.f32.mxu0 0.0
  %v7074 = vand.u32 %v5087, 4294901760
  %7075 = vmatmul.mubr.f32.gmra.mxu0 %v7074
  %v7076 = vpop.f32.mrf.mxu0
  %v7077 = vadd.f32 %v6782, %v7076
  %v7078 = vpop.f32.mrf.mxu0
  %7079 = vmatprep.mubr.f32.mxu0 0.0
  %v7080 = vand.u32 %v5090, 4294901760
  %7081 = vmatmul.mubr.f32.gmra.mxu0 %v7080
  %v7082 = vpop.f32.mrf.mxu0
  %v7083 = vadd.f32 %v6788, %v7082
  %v7084 = vpop.f32.mrf.mxu0
  %7085 = vmatprep.mubr.f32.mxu0 0.0
  %v7086 = vand.u32 %v5093, 4294901760
  %7087 = vmatmul.mubr.f32.gmra.mxu0 %v7086
  %v7088 = vpop.f32.mrf.mxu0
  %v7089 = vadd.f32 %v6794, %v7088
  %v7090 = vpop.f32.mrf.mxu0
  %7091 = vmatprep.mubr.f32.mxu0 0.0
  %v7092 = vand.u32 %v5096, 4294901760
  %7093 = vmatmul.mubr.f32.gmra.mxu0 %v7092
  %v7094 = vpop.f32.mrf.mxu0
  %v7095 = vadd.f32 %v6800, %v7094
  %v7096 = vpop.f32.mrf.mxu0
  %7097 = vmatprep.mubr.f32.mxu0 0.0
  %v7098 = vand.u32 %v5099, 4294901760
  %7099 = vmatmul.mubr.f32.gmra.mxu0 %v7098
  %v7100 = vpop.f32.mrf.mxu0
  %v7101 = vadd.f32 %v6806, %v7100
  %v7102 = vpop.f32.mrf.mxu0
  %7103 = vmatprep.mubr.f32.mxu0 0.0
  %v7104 = vand.u32 %v5102, 4294901760
  %7105 = vmatmul.mubr.f32.gmra.mxu0 %v7104
  %v7106 = vpop.f32.mrf.mxu0
  %v7107 = vadd.f32 %v6812, %v7106
  %v7108 = vpop.f32.mrf.mxu0
  %7109 = vmatprep.mubr.f32.mxu0 0.0
  %v7110 = vand.u32 %v5105, 4294901760
  %7111 = vmatmul.mubr.f32.gmra.mxu0 %v7110
  %v7112 = vpop.f32.mrf.mxu0
  %v7113 = vadd.f32 %v6818, %v7112
  %v7114 = vpop.f32.mrf.mxu0
  %7115 = vmatprep.mubr.f32.mxu0 0.0
  %v7116 = vand.u32 %v5108, 4294901760
  %7117 = vmatmul.mubr.f32.gmra.mxu0 %v7116
  %v7118 = vpop.f32.mrf.mxu0
  %v7119 = vadd.f32 %v6824, %v7118
  %v7120 = vpop.f32.mrf.mxu0
  %7121 = vmatprep.mubr.f32.mxu0 0.0
  %v7122 = vand.u32 %v5111, 4294901760
  %7123 = vmatmul.mubr.f32.gmra.mxu0 %v7122
  %v7124 = vpop.f32.mrf.mxu0
  %v7125 = vadd.f32 %v6830, %v7124
  %v7126 = vpop.f32.mrf.mxu0
  %7127 = vmatprep.mubr.f32.mxu0 0.0
  %v7128 = vand.u32 %v5114, 4294901760
  %7129 = vmatmul.mubr.f32.gmra.mxu0 %v7128
  %v7130 = vpop.f32.mrf.mxu0
  %v7131 = vadd.f32 %v6836, %v7130
  %v7132 = vpop.f32.mrf.mxu0
  %7133 = vmatprep.mubr.f32.mxu0 0.0
  %v7134 = vand.u32 %v5117, 4294901760
  %7135 = vmatmul.mubr.f32.gmra.mxu0 %v7134
  %v7136 = vpop.f32.mrf.mxu0
  %v7137 = vadd.f32 %v6842, %v7136
  %v7138 = vpop.f32.mrf.mxu0
  %7139 = vmatprep.mubr.f32.mxu0 0.0
  %v7140 = vand.u32 %v5120, 4294901760
  %7141 = vmatmul.mubr.f32.gmra.mxu0 %v7140
  %v7142 = vpop.f32.mrf.mxu0
  %v7143 = vadd.f32 %v6848, %v7142
  %v7144 = vpop.f32.mrf.mxu0
  %7145 = vmatprep.mubr.f32.mxu0 0.0
  %v7146 = vand.u32 %v5123, 4294901760
  %7147 = vmatmul.mubr.f32.gmra.mxu0 %v7146
  %v7148 = vpop.f32.mrf.mxu0
  %v7149 = vadd.f32 %v6854, %v7148
  %v7150 = vpop.f32.mrf.mxu0
  %7151 = vmatprep.mubr.f32.mxu0 0.0
  %v7152 = vand.u32 %v5126, 4294901760
  %7153 = vmatmul.mubr.f32.gmra.mxu0 %v7152
  %v7154 = vpop.f32.mrf.mxu0
  %v7155 = vadd.f32 %v6860, %v7154
  %v7156 = vpop.f32.mrf.mxu0
  %7157 = vmatprep.mubr.f32.mxu0 0.0
  %v7158 = vand.u32 %v5129, 4294901760
  %7159 = vmatmul.mubr.f32.gmra.mxu0 %v7158
  %v7160 = vpop.f32.mrf.mxu0
  %v7161 = vadd.f32 %v6866, %v7160
  %v7162 = vpop.f32.mrf.mxu0
  %7163 = vmatprep.mubr.f32.mxu0 0.0
  %v7164 = vand.u32 %v5132, 4294901760
  %7165 = vmatmul.mubr.f32.gmra.mxu0 %v7164
  %v7166 = vpop.f32.mrf.mxu0
  %v7167 = vadd.f32 %v6872, %v7166
  %v7168 = vpop.f32.mrf.mxu0
  %7169 = vmatprep.mubr.f32.mxu0 0.0
  %v7170 = vand.u32 %v5135, 4294901760
  %7171 = vmatmul.mubr.f32.gmra.mxu0 %v7170
  %v7172 = vpop.f32.mrf.mxu0
  %v7173 = vadd.f32 %v6878, %v7172
  %v7174 = vpop.f32.mrf.mxu0
  %7175 = vmatprep.mubr.f32.mxu0 0.0
  %v7176 = vand.u32 %v5138, 4294901760
  %7177 = vmatmul.mubr.f32.gmra.mxu0 %v7176
  %v7178 = vpop.f32.mrf.mxu0
  %v7179 = vadd.f32 %v6884, %v7178
  %v7180 = vpop.f32.mrf.mxu0
  %7181 = vmatprep.mubr.f32.mxu0 0.0
  %v7182 = vand.u32 %v5141, 4294901760
  %7183 = vmatmul.mubr.f32.gmra.mxu0 %v7182
  %v7184 = vpop.f32.mrf.mxu0
  %v7185 = vadd.f32 %v6890, %v7184
  %v7186 = vpop.f32.mrf.mxu0
  %7187 = vmatprep.mubr.f32.mxu0 0.0
  %v7188 = vand.u32 %v5144, 4294901760
  %7189 = vmatmul.mubr.f32.gmra.mxu0 %v7188
  %v7190 = vpop.f32.mrf.mxu0
  %v7191 = vadd.f32 %v6896, %v7190
  %v7192 = vpop.f32.mrf.mxu0
  %7193 = vmatprep.mubr.f32.mxu0 0.0
  %v7194 = vand.u32 %v5147, 4294901760
  %7195 = vmatmul.mubr.f32.gmra.mxu0 %v7194
  %v7196 = vpop.f32.mrf.mxu0
  %v7197 = vadd.f32 %v6902, %v7196
  %v7198 = vpop.f32.mrf.mxu0
  %7199 = vmatprep.mubr.f32.mxu0 0.0
  %v7200 = vand.u32 %v5150, 4294901760
  %7201 = vmatmul.mubr.f32.gmra.mxu0 %v7200
  %v7202 = vpop.f32.mrf.mxu0
  %v7203 = vadd.f32 %v6908, %v7202
  %v7204 = vpop.f32.mrf.mxu0
  %7205 = vdwg.mxu0
  %v7206 = vmax.f32 %v6981, 1e-08
  %v7207 = vmax.f32 %v6987, 1e-08
  %v7208 = vmax.f32 %v6993, 1e-08
  %v7209 = vmax.f32 %v6999, 1e-08
  %v7210 = vmax.f32 %v7005, 1e-08
  %v7211 = vmax.f32 %v7011, 1e-08
  %v7212 = vmax.f32 %v7017, 1e-08
  %v7213 = vmax.f32 %v7023, 1e-08
  %v7214 = vmax.f32 %v7029, 1e-08
  %v7215 = vmax.f32 %v7035, 1e-08
  %v7216 = vmax.f32 %v7041, 1e-08
  %v7217 = vmax.f32 %v7047, 1e-08
  %v7218 = vmax.f32 %v7053, 1e-08
  %v7219 = vmax.f32 %v7059, 1e-08
  %v7220 = vmax.f32 %v7065, 1e-08
  %v7221 = vmax.f32 %v7071, 1e-08
  %v7222 = vmax.f32 %v7077, 1e-08
  %v7223 = vmax.f32 %v7083, 1e-08
  %v7224 = vmax.f32 %v7089, 1e-08
  %v7225 = vmax.f32 %v7095, 1e-08
  %v7226 = vmax.f32 %v7101, 1e-08
  %v7227 = vmax.f32 %v7107, 1e-08
  %v7228 = vmax.f32 %v7113, 1e-08
  %v7229 = vmax.f32 %v7119, 1e-08
  %v7230 = vmax.f32 %v7125, 1e-08
  %v7231 = vmax.f32 %v7131, 1e-08
  %v7232 = vmax.f32 %v7137, 1e-08
  %v7233 = vmax.f32 %v7143, 1e-08
  %v7234 = vmax.f32 %v7149, 1e-08
  %v7235 = vmax.f32 %v7155, 1e-08
  %v7236 = vmax.f32 %v7161, 1e-08
  %v7237 = vmax.f32 %v7167, 1e-08
  %v7238 = vmax.f32 %v7173, 1e-08
  %v7239 = vmax.f32 %v7179, 1e-08
  %v7240 = vmax.f32 %v7185, 1e-08
  %v7241 = vmax.f32 %v7191, 1e-08
  %v7242 = vmax.f32 %v7197, 1e-08
  %v7243 = vmax.f32 %v7203, 1e-08
  %v7244 = vld [vmem:[%s6] sm:$0xff]
  %v7245 = vld [vmem:[%s6 + $0x8] sm:$0xf]
  %v7247 = vsel %vm5037, %v7206, 0
  %v7250 = vsel %vm5037, %v7207, 0
  %v7253 = vsel %vm5037, %v7208, 0
  %v7256 = vsel %vm5037, %v7209, 0
  %v7259 = vsel %vm5037, %v7210, 0
  %v7262 = vsel %vm5037, %v7211, 0
  %v7265 = vsel %vm5037, %v7212, 0
  %v7268 = vsel %vm5037, %v7213, 0
  %v7271 = vsel %vm5037, %v7214, 0
  %v7274 = vsel %vm5037, %v7215, 0
  %v7277 = vsel %vm5037, %v7216, 0
  %v7280 = vsel %vm5037, %v7217, 0
  %v7283 = vsel %vm5037, %v7218, 0
  %v7286 = vsel %vm5037, %v7219, 0
  %v7289 = vsel %vm5037, %v7220, 0
  %v7292 = vsel %vm5037, %v7221, 0
  %v7295 = vsel %vm5037, %v7222, 0
  %v7298 = vsel %vm5037, %v7223, 0
  %v7301 = vsel %vm5037, %v7224, 0
  %v7304 = vsel %vm5037, %v7225, 0
  %v7307 = vsel %vm5037, %v7226, 0
  %v7310 = vsel %vm5037, %v7227, 0
  %v7313 = vsel %vm5037, %v7228, 0
  %v7316 = vsel %vm5037, %v7229, 0
  %v7319 = vsel %vm5037, %v7230, 0
  %v7322 = vsel %vm5037, %v7231, 0
  %v7325 = vsel %vm5037, %v7232, 0
  %v7328 = vsel %vm5037, %v7233, 0
  %v7331 = vsel %vm5037, %v7234, 0
  %v7334 = vsel %vm5037, %v7235, 0
  %v7337 = vsel %vm5037, %v7236, 0
  %v7340 = vsel %vm5037, %v7237, 0
  %v7343 = vsel %vm5037, %v7238, 0
  %v7346 = vsel %vm5037, %v7239, 0
  %v7349 = vsel %vm5037, %v7240, 0
  %v7352 = vsel %vm5037, %v7241, 0
  %v7355 = vsel %vm5037, %v7242, 0
  %v7358 = vsel %vm5037, %v7243, 0
  %v7361 = vsel %vm5152, %v7245, 0
  %7363 = vmatprep.subr.mxu0 0.0
  %7364 = vmatpush1.msra.mxu0 0.0
  %7365 = vmatprep.subr.mxu0 0.0
  %7366 = vmatpush1.msra.mxu0 0.0
  %7367 = vmatprep.subr.mxu0 0.0
  %7368 = vmatpush1.msra.mxu0 0.0
  %7369 = vmatprep.subr.mxu0 0.0
  %7370 = vmatpush1.msra.mxu0 0.0
  %7371 = vmatprep.subr.mxu0 0.0
  %7372 = vmatpush1.msra.mxu0 0.0
  %7373 = vmatprep.subr.mxu0 0.0
  %7374 = vmatpush1.msra.mxu0 0.0
  %7375 = vmatprep.subr.mxu0 0.0
  %7376 = vmatpush1.msra.mxu0 0.0
  %7377 = vmatprep.subr.mxu0 0.0
  %7378 = vmatpush1.msra.mxu0 0.0
  %7379 = vmatprep.subr.mxu0 0.0
  %7380 = vmatpush1.msra.mxu0 0.0
  %7381 = vmatprep.subr.mxu0 0.0
  %7382 = vmatpush1.msra.mxu0 0.0
  %7383 = vmatprep.subr.mxu0 0.0
  %7384 = vmatpush1.msra.mxu0 0.0
  %7385 = vmatprep.subr.mxu0 0.0
  %7386 = vmatpush1.msra.mxu0 0.0
  %7387 = vmatprep.subr.mxu0 0.0
  %7388 = vmatpush1.msra.mxu0 0.0
  %7389 = vmatprep.subr.mxu0 0.0
  %7390 = vmatpush1.msra.mxu0 0.0
  %7391 = vmatprep.subr.mxu0 0.0
  %v7392 = vand.u32 %v7361, 4294901760
  %7393 = vmatpush1.msra.mxu0 %v7392
  %7394 = vmatprep.subr.mxu0 0.0
  %v7395 = vand.u32 %v7244, 4294901760
  %7396 = vmatpush1.msra.mxu0 %v7395
  %7397 = vmatprep.subr.mxu0 0.0
  %7398 = vmatpush2.msra.mxu0 0.0
  %7399 = vmatprep.subr.mxu0 0.0
  %7400 = vmatpush2.msra.mxu0 0.0
  %7401 = vmatprep.subr.mxu0 0.0
  %7402 = vmatpush2.msra.mxu0 0.0
  %7403 = vmatprep.subr.mxu0 0.0
  %7404 = vmatpush2.msra.mxu0 0.0
  %7405 = vmatprep.subr.mxu0 0.0
  %7406 = vmatpush2.msra.mxu0 0.0
  %7407 = vmatprep.subr.mxu0 0.0
  %7408 = vmatpush2.msra.mxu0 0.0
  %7409 = vmatprep.subr.mxu0 0.0
  %7410 = vmatpush2.msra.mxu0 0.0
  %7411 = vmatprep.subr.mxu0 0.0
  %7412 = vmatpush2.msra.mxu0 0.0
  %7413 = vmatprep.subr.mxu0 0.0
  %7414 = vmatpush2.msra.mxu0 0.0
  %7415 = vmatprep.subr.mxu0 0.0
  %7416 = vmatpush2.msra.mxu0 0.0
  %7417 = vmatprep.subr.mxu0 0.0
  %7418 = vmatpush2.msra.mxu0 0.0
  %7419 = vmatprep.subr.mxu0 0.0
  %7420 = vmatpush2.msra.mxu0 0.0
  %7421 = vmatprep.subr.mxu0 0.0
  %7422 = vmatpush2.msra.mxu0 0.0
  %7423 = vmatprep.subr.mxu0 0.0
  %7424 = vmatpush2.msra.mxu0 0.0
  %7425 = vmatprep.subr.mxu0 0.0
  %7426 = vmatpush2.msra.mxu0 0.0
  %7427 = vmatprep.subr.mxu0 0.0
  %7428 = vmatpush2.msra.mxu0 0.0
  %7429 = vmatprep.mubr.f32.mxu0 0.0
  %v7430 = vand.u32 %v7247, 4294901760
  %v7431 = vsub.f32 %v7247, %v7430
  %v7432 = vand.u32 %v7431, 4294901760
  %v7433 = vsub.f32 %v7431, %v7432
  %v7434 = vand.u32 %v7433, 4294901760
  %7435 = vmatmul.mubr.f32.gmra.mxu0 %v7434
  %v7436 = vpop.f32.mrf.mxu0
  %v7437 = vadd.f32 0.0, %v7436
  %v7438 = vpop.f32.mrf.mxu0
  %7439 = vmatprep.mubr.f32.mxu0 0.0
  %v7440 = vand.u32 %v7250, 4294901760
  %v7441 = vsub.f32 %v7250, %v7440
  %v7442 = vand.u32 %v7441, 4294901760
  %v7443 = vsub.f32 %v7441, %v7442
  %v7444 = vand.u32 %v7443, 4294901760
  %7445 = vmatmul.mubr.f32.gmra.mxu0 %v7444
  %v7446 = vpop.f32.mrf.mxu0
  %v7447 = vadd.f32 0.0, %v7446
  %v7448 = vpop.f32.mrf.mxu0
  %7449 = vmatprep.mubr.f32.mxu0 0.0
  %v7450 = vand.u32 %v7253, 4294901760
  %v7451 = vsub.f32 %v7253, %v7450
  %v7452 = vand.u32 %v7451, 4294901760
  %v7453 = vsub.f32 %v7451, %v7452
  %v7454 = vand.u32 %v7453, 4294901760
  %7455 = vmatmul.mubr.f32.gmra.mxu0 %v7454
  %v7456 = vpop.f32.mrf.mxu0
  %v7457 = vadd.f32 0.0, %v7456
  %v7458 = vpop.f32.mrf.mxu0
  %7459 = vmatprep.mubr.f32.mxu0 0.0
  %v7460 = vand.u32 %v7256, 4294901760
  %v7461 = vsub.f32 %v7256, %v7460
  %v7462 = vand.u32 %v7461, 4294901760
  %v7463 = vsub.f32 %v7461, %v7462
  %v7464 = vand.u32 %v7463, 4294901760
  %7465 = vmatmul.mubr.f32.gmra.mxu0 %v7464
  %v7466 = vpop.f32.mrf.mxu0
  %v7467 = vadd.f32 0.0, %v7466
  %v7468 = vpop.f32.mrf.mxu0
  %7469 = vmatprep.mubr.f32.mxu0 0.0
  %v7470 = vand.u32 %v7259, 4294901760
  %v7471 = vsub.f32 %v7259, %v7470
  %v7472 = vand.u32 %v7471, 4294901760
  %v7473 = vsub.f32 %v7471, %v7472
  %v7474 = vand.u32 %v7473, 4294901760
  %7475 = vmatmul.mubr.f32.gmra.mxu0 %v7474
  %v7476 = vpop.f32.mrf.mxu0
  %v7477 = vadd.f32 0.0, %v7476
  %v7478 = vpop.f32.mrf.mxu0
  %7479 = vmatprep.mubr.f32.mxu0 0.0
  %v7480 = vand.u32 %v7262, 4294901760
  %v7481 = vsub.f32 %v7262, %v7480
  %v7482 = vand.u32 %v7481, 4294901760
  %v7483 = vsub.f32 %v7481, %v7482
  %v7484 = vand.u32 %v7483, 4294901760
  %7485 = vmatmul.mubr.f32.gmra.mxu0 %v7484
  %v7486 = vpop.f32.mrf.mxu0
  %v7487 = vadd.f32 0.0, %v7486
  %v7488 = vpop.f32.mrf.mxu0
  %7489 = vmatprep.mubr.f32.mxu0 0.0
  %v7490 = vand.u32 %v7265, 4294901760
  %v7491 = vsub.f32 %v7265, %v7490
  %v7492 = vand.u32 %v7491, 4294901760
  %v7493 = vsub.f32 %v7491, %v7492
  %v7494 = vand.u32 %v7493, 4294901760
  %7495 = vmatmul.mubr.f32.gmra.mxu0 %v7494
  %v7496 = vpop.f32.mrf.mxu0
  %v7497 = vadd.f32 0.0, %v7496
  %v7498 = vpop.f32.mrf.mxu0
  %7499 = vmatprep.mubr.f32.mxu0 0.0
  %v7500 = vand.u32 %v7268, 4294901760
  %v7501 = vsub.f32 %v7268, %v7500
  %v7502 = vand.u32 %v7501, 4294901760
  %v7503 = vsub.f32 %v7501, %v7502
  %v7504 = vand.u32 %v7503, 4294901760
  %7505 = vmatmul.mubr.f32.gmra.mxu0 %v7504
  %v7506 = vpop.f32.mrf.mxu0
  %v7507 = vadd.f32 0.0, %v7506
  %v7508 = vpop.f32.mrf.mxu0
  %7509 = vmatprep.mubr.f32.mxu0 0.0
  %v7510 = vand.u32 %v7271, 4294901760
  %v7511 = vsub.f32 %v7271, %v7510
  %v7512 = vand.u32 %v7511, 4294901760
  %v7513 = vsub.f32 %v7511, %v7512
  %v7514 = vand.u32 %v7513, 4294901760
  %7515 = vmatmul.mubr.f32.gmra.mxu0 %v7514
  %v7516 = vpop.f32.mrf.mxu0
  %v7517 = vadd.f32 0.0, %v7516
  %v7518 = vpop.f32.mrf.mxu0
  %7519 = vmatprep.mubr.f32.mxu0 0.0
  %v7520 = vand.u32 %v7274, 4294901760
  %v7521 = vsub.f32 %v7274, %v7520
  %v7522 = vand.u32 %v7521, 4294901760
  %v7523 = vsub.f32 %v7521, %v7522
  %v7524 = vand.u32 %v7523, 4294901760
  %7525 = vmatmul.mubr.f32.gmra.mxu0 %v7524
  %v7526 = vpop.f32.mrf.mxu0
  %v7527 = vadd.f32 0.0, %v7526
  %v7528 = vpop.f32.mrf.mxu0
  %7529 = vmatprep.mubr.f32.mxu0 0.0
  %v7530 = vand.u32 %v7277, 4294901760
  %v7531 = vsub.f32 %v7277, %v7530
  %v7532 = vand.u32 %v7531, 4294901760
  %v7533 = vsub.f32 %v7531, %v7532
  %v7534 = vand.u32 %v7533, 4294901760
  %7535 = vmatmul.mubr.f32.gmra.mxu0 %v7534
  %v7536 = vpop.f32.mrf.mxu0
  %v7537 = vadd.f32 0.0, %v7536
  %v7538 = vpop.f32.mrf.mxu0
  %7539 = vmatprep.mubr.f32.mxu0 0.0
  %v7540 = vand.u32 %v7280, 4294901760
  %v7541 = vsub.f32 %v7280, %v7540
  %v7542 = vand.u32 %v7541, 4294901760
  %v7543 = vsub.f32 %v7541, %v7542
  %v7544 = vand.u32 %v7543, 4294901760
  %7545 = vmatmul.mubr.f32.gmra.mxu0 %v7544
  %v7546 = vpop.f32.mrf.mxu0
  %v7547 = vadd.f32 0.0, %v7546
  %v7548 = vpop.f32.mrf.mxu0
  %7549 = vmatprep.mubr.f32.mxu0 0.0
  %v7550 = vand.u32 %v7283, 4294901760
  %v7551 = vsub.f32 %v7283, %v7550
  %v7552 = vand.u32 %v7551, 4294901760
  %v7553 = vsub.f32 %v7551, %v7552
  %v7554 = vand.u32 %v7553, 4294901760
  %7555 = vmatmul.mubr.f32.gmra.mxu0 %v7554
  %v7556 = vpop.f32.mrf.mxu0
  %v7557 = vadd.f32 0.0, %v7556
  %v7558 = vpop.f32.mrf.mxu0
  %7559 = vmatprep.mubr.f32.mxu0 0.0
  %v7560 = vand.u32 %v7286, 4294901760
  %v7561 = vsub.f32 %v7286, %v7560
  %v7562 = vand.u32 %v7561, 4294901760
  %v7563 = vsub.f32 %v7561, %v7562
  %v7564 = vand.u32 %v7563, 4294901760
  %7565 = vmatmul.mubr.f32.gmra.mxu0 %v7564
  %v7566 = vpop.f32.mrf.mxu0
  %v7567 = vadd.f32 0.0, %v7566
  %v7568 = vpop.f32.mrf.mxu0
  %7569 = vmatprep.mubr.f32.mxu0 0.0
  %v7570 = vand.u32 %v7289, 4294901760
  %v7571 = vsub.f32 %v7289, %v7570
  %v7572 = vand.u32 %v7571, 4294901760
  %v7573 = vsub.f32 %v7571, %v7572
  %v7574 = vand.u32 %v7573, 4294901760
  %7575 = vmatmul.mubr.f32.gmra.mxu0 %v7574
  %v7576 = vpop.f32.mrf.mxu0
  %v7577 = vadd.f32 0.0, %v7576
  %v7578 = vpop.f32.mrf.mxu0
  %7579 = vmatprep.mubr.f32.mxu0 0.0
  %v7580 = vand.u32 %v7292, 4294901760
  %v7581 = vsub.f32 %v7292, %v7580
  %v7582 = vand.u32 %v7581, 4294901760
  %v7583 = vsub.f32 %v7581, %v7582
  %v7584 = vand.u32 %v7583, 4294901760
  %7585 = vmatmul.mubr.f32.gmra.mxu0 %v7584
  %v7586 = vpop.f32.mrf.mxu0
  %v7587 = vadd.f32 0.0, %v7586
  %v7588 = vpop.f32.mrf.mxu0
  %7589 = vmatprep.mubr.f32.mxu0 0.0
  %v7590 = vand.u32 %v7295, 4294901760
  %v7591 = vsub.f32 %v7295, %v7590
  %v7592 = vand.u32 %v7591, 4294901760
  %v7593 = vsub.f32 %v7591, %v7592
  %v7594 = vand.u32 %v7593, 4294901760
  %7595 = vmatmul.mubr.f32.gmra.mxu0 %v7594
  %v7596 = vpop.f32.mrf.mxu0
  %v7597 = vadd.f32 0.0, %v7596
  %v7598 = vpop.f32.mrf.mxu0
  %7599 = vmatprep.mubr.f32.mxu0 0.0
  %v7600 = vand.u32 %v7298, 4294901760
  %v7601 = vsub.f32 %v7298, %v7600
  %v7602 = vand.u32 %v7601, 4294901760
  %v7603 = vsub.f32 %v7601, %v7602
  %v7604 = vand.u32 %v7603, 4294901760
  %7605 = vmatmul.mubr.f32.gmra.mxu0 %v7604
  %v7606 = vpop.f32.mrf.mxu0
  %v7607 = vadd.f32 0.0, %v7606
  %v7608 = vpop.f32.mrf.mxu0
  %7609 = vmatprep.mubr.f32.mxu0 0.0
  %v7610 = vand.u32 %v7301, 4294901760
  %v7611 = vsub.f32 %v7301, %v7610
  %v7612 = vand.u32 %v7611, 4294901760
  %v7613 = vsub.f32 %v7611, %v7612
  %v7614 = vand.u32 %v7613, 4294901760
  %7615 = vmatmul.mubr.f32.gmra.mxu0 %v7614
  %v7616 = vpop.f32.mrf.mxu0
  %v7617 = vadd.f32 0.0, %v7616
  %v7618 = vpop.f32.mrf.mxu0
  %7619 = vmatprep.mubr.f32.mxu0 0.0
  %v7620 = vand.u32 %v7304, 4294901760
  %v7621 = vsub.f32 %v7304, %v7620
  %v7622 = vand.u32 %v7621, 4294901760
  %v7623 = vsub.f32 %v7621, %v7622
  %v7624 = vand.u32 %v7623, 4294901760
  %7625 = vmatmul.mubr.f32.gmra.mxu0 %v7624
  %v7626 = vpop.f32.mrf.mxu0
  %v7627 = vadd.f32 0.0, %v7626
  %v7628 = vpop.f32.mrf.mxu0
  %7629 = vmatprep.mubr.f32.mxu0 0.0
  %v7630 = vand.u32 %v7307, 4294901760
  %v7631 = vsub.f32 %v7307, %v7630
  %v7632 = vand.u32 %v7631, 4294901760
  %v7633 = vsub.f32 %v7631, %v7632
  %v7634 = vand.u32 %v7633, 4294901760
  %7635 = vmatmul.mubr.f32.gmra.mxu0 %v7634
  %v7636 = vpop.f32.mrf.mxu0
  %v7637 = vadd.f32 0.0, %v7636
  %v7638 = vpop.f32.mrf.mxu0
  %7639 = vmatprep.mubr.f32.mxu0 0.0
  %v7640 = vand.u32 %v7310, 4294901760
  %v7641 = vsub.f32 %v7310, %v7640
  %v7642 = vand.u32 %v7641, 4294901760
  %v7643 = vsub.f32 %v7641, %v7642
  %v7644 = vand.u32 %v7643, 4294901760
  %7645 = vmatmul.mubr.f32.gmra.mxu0 %v7644
  %v7646 = vpop.f32.mrf.mxu0
  %v7647 = vadd.f32 0.0, %v7646
  %v7648 = vpop.f32.mrf.mxu0
  %7649 = vmatprep.mubr.f32.mxu0 0.0
  %v7650 = vand.u32 %v7313, 4294901760
  %v7651 = vsub.f32 %v7313, %v7650
  %v7652 = vand.u32 %v7651, 4294901760
  %v7653 = vsub.f32 %v7651, %v7652
  %v7654 = vand.u32 %v7653, 4294901760
  %7655 = vmatmul.mubr.f32.gmra.mxu0 %v7654
  %v7656 = vpop.f32.mrf.mxu0
  %v7657 = vadd.f32 0.0, %v7656
  %v7658 = vpop.f32.mrf.mxu0
  %7659 = vmatprep.mubr.f32.mxu0 0.0
  %v7660 = vand.u32 %v7316, 4294901760
  %v7661 = vsub.f32 %v7316, %v7660
  %v7662 = vand.u32 %v7661, 4294901760
  %v7663 = vsub.f32 %v7661, %v7662
  %v7664 = vand.u32 %v7663, 4294901760
  %7665 = vmatmul.mubr.f32.gmra.mxu0 %v7664
  %v7666 = vpop.f32.mrf.mxu0
  %v7667 = vadd.f32 0.0, %v7666
  %v7668 = vpop.f32.mrf.mxu0
  %7669 = vmatprep.mubr.f32.mxu0 0.0
  %v7670 = vand.u32 %v7319, 4294901760
  %v7671 = vsub.f32 %v7319, %v7670
  %v7672 = vand.u32 %v7671, 4294901760
  %v7673 = vsub.f32 %v7671, %v7672
  %v7674 = vand.u32 %v7673, 4294901760
  %7675 = vmatmul.mubr.f32.gmra.mxu0 %v7674
  %v7676 = vpop.f32.mrf.mxu0
  %v7677 = vadd.f32 0.0, %v7676
  %v7678 = vpop.f32.mrf.mxu0
  %7679 = vmatprep.mubr.f32.mxu0 0.0
  %v7680 = vand.u32 %v7322, 4294901760
  %v7681 = vsub.f32 %v7322, %v7680
  %v7682 = vand.u32 %v7681, 4294901760
  %v7683 = vsub.f32 %v7681, %v7682
  %v7684 = vand.u32 %v7683, 4294901760
  %7685 = vmatmul.mubr.f32.gmra.mxu0 %v7684
  %v7686 = vpop.f32.mrf.mxu0
  %v7687 = vadd.f32 0.0, %v7686
  %v7688 = vpop.f32.mrf.mxu0
  %7689 = vmatprep.mubr.f32.mxu0 0.0
  %v7690 = vand.u32 %v7325, 4294901760
  %v7691 = vsub.f32 %v7325, %v7690
  %v7692 = vand.u32 %v7691, 4294901760
  %v7693 = vsub.f32 %v7691, %v7692
  %v7694 = vand.u32 %v7693, 4294901760
  %7695 = vmatmul.mubr.f32.gmra.mxu0 %v7694
  %v7696 = vpop.f32.mrf.mxu0
  %v7697 = vadd.f32 0.0, %v7696
  %v7698 = vpop.f32.mrf.mxu0
  %7699 = vmatprep.mubr.f32.mxu0 0.0
  %v7700 = vand.u32 %v7328, 4294901760
  %v7701 = vsub.f32 %v7328, %v7700
  %v7702 = vand.u32 %v7701, 4294901760
  %v7703 = vsub.f32 %v7701, %v7702
  %v7704 = vand.u32 %v7703, 4294901760
  %7705 = vmatmul.mubr.f32.gmra.mxu0 %v7704
  %v7706 = vpop.f32.mrf.mxu0
  %v7707 = vadd.f32 0.0, %v7706
  %v7708 = vpop.f32.mrf.mxu0
  %7709 = vmatprep.mubr.f32.mxu0 0.0
  %v7710 = vand.u32 %v7331, 4294901760
  %v7711 = vsub.f32 %v7331, %v7710
  %v7712 = vand.u32 %v7711, 4294901760
  %v7713 = vsub.f32 %v7711, %v7712
  %v7714 = vand.u32 %v7713, 4294901760
  %7715 = vmatmul.mubr.f32.gmra.mxu0 %v7714
  %v7716 = vpop.f32.mrf.mxu0
  %v7717 = vadd.f32 0.0, %v7716
  %v7718 = vpop.f32.mrf.mxu0
  %7719 = vmatprep.mubr.f32.mxu0 0.0
  %v7720 = vand.u32 %v7334, 4294901760
  %v7721 = vsub.f32 %v7334, %v7720
  %v7722 = vand.u32 %v7721, 4294901760
  %v7723 = vsub.f32 %v7721, %v7722
  %v7724 = vand.u32 %v7723, 4294901760
  %7725 = vmatmul.mubr.f32.gmra.mxu0 %v7724
  %v7726 = vpop.f32.mrf.mxu0
  %v7727 = vadd.f32 0.0, %v7726
  %v7728 = vpop.f32.mrf.mxu0
  %7729 = vmatprep.mubr.f32.mxu0 0.0
  %v7730 = vand.u32 %v7337, 4294901760
  %v7731 = vsub.f32 %v7337, %v7730
  %v7732 = vand.u32 %v7731, 4294901760
  %v7733 = vsub.f32 %v7731, %v7732
  %v7734 = vand.u32 %v7733, 4294901760
  %7735 = vmatmul.mubr.f32.gmra.mxu0 %v7734
  %v7736 = vpop.f32.mrf.mxu0
  %v7737 = vadd.f32 0.0, %v7736
  %v7738 = vpop.f32.mrf.mxu0
  %7739 = vmatprep.mubr.f32.mxu0 0.0
  %v7740 = vand.u32 %v7340, 4294901760
  %v7741 = vsub.f32 %v7340, %v7740
  %v7742 = vand.u32 %v7741, 4294901760
  %v7743 = vsub.f32 %v7741, %v7742
  %v7744 = vand.u32 %v7743, 4294901760
  %7745 = vmatmul.mubr.f32.gmra.mxu0 %v7744
  %v7746 = vpop.f32.mrf.mxu0
  %v7747 = vadd.f32 0.0, %v7746
  %v7748 = vpop.f32.mrf.mxu0
  %7749 = vmatprep.mubr.f32.mxu0 0.0
  %v7750 = vand.u32 %v7343, 4294901760
  %v7751 = vsub.f32 %v7343, %v7750
  %v7752 = vand.u32 %v7751, 4294901760
  %v7753 = vsub.f32 %v7751, %v7752
  %v7754 = vand.u32 %v7753, 4294901760
  %7755 = vmatmul.mubr.f32.gmra.mxu0 %v7754
  %v7756 = vpop.f32.mrf.mxu0
  %v7757 = vadd.f32 0.0, %v7756
  %v7758 = vpop.f32.mrf.mxu0
  %7759 = vmatprep.mubr.f32.mxu0 0.0
  %v7760 = vand.u32 %v7346, 4294901760
  %v7761 = vsub.f32 %v7346, %v7760
  %v7762 = vand.u32 %v7761, 4294901760
  %v7763 = vsub.f32 %v7761, %v7762
  %v7764 = vand.u32 %v7763, 4294901760
  %7765 = vmatmul.mubr.f32.gmra.mxu0 %v7764
  %v7766 = vpop.f32.mrf.mxu0
  %v7767 = vadd.f32 0.0, %v7766
  %v7768 = vpop.f32.mrf.mxu0
  %7769 = vmatprep.mubr.f32.mxu0 0.0
  %v7770 = vand.u32 %v7349, 4294901760
  %v7771 = vsub.f32 %v7349, %v7770
  %v7772 = vand.u32 %v7771, 4294901760
  %v7773 = vsub.f32 %v7771, %v7772
  %v7774 = vand.u32 %v7773, 4294901760
  %7775 = vmatmul.mubr.f32.gmra.mxu0 %v7774
  %v7776 = vpop.f32.mrf.mxu0
  %v7777 = vadd.f32 0.0, %v7776
  %v7778 = vpop.f32.mrf.mxu0
  %7779 = vmatprep.mubr.f32.mxu0 0.0
  %v7780 = vand.u32 %v7352, 4294901760
  %v7781 = vsub.f32 %v7352, %v7780
  %v7782 = vand.u32 %v7781, 4294901760
  %v7783 = vsub.f32 %v7781, %v7782
  %v7784 = vand.u32 %v7783, 4294901760
  %7785 = vmatmul.mubr.f32.gmra.mxu0 %v7784
  %v7786 = vpop.f32.mrf.mxu0
  %v7787 = vadd.f32 0.0, %v7786
  %v7788 = vpop.f32.mrf.mxu0
  %7789 = vmatprep.mubr.f32.mxu0 0.0
  %v7790 = vand.u32 %v7355, 4294901760
  %v7791 = vsub.f32 %v7355, %v7790
  %v7792 = vand.u32 %v7791, 4294901760
  %v7793 = vsub.f32 %v7791, %v7792
  %v7794 = vand.u32 %v7793, 4294901760
  %7795 = vmatmul.mubr.f32.gmra.mxu0 %v7794
  %v7796 = vpop.f32.mrf.mxu0
  %v7797 = vadd.f32 0.0, %v7796
  %v7798 = vpop.f32.mrf.mxu0
  %7799 = vmatprep.mubr.f32.mxu0 0.0
  %v7800 = vand.u32 %v7358, 4294901760
  %v7801 = vsub.f32 %v7358, %v7800
  %v7802 = vand.u32 %v7801, 4294901760
  %v7803 = vsub.f32 %v7801, %v7802
  %v7804 = vand.u32 %v7803, 4294901760
  %7805 = vmatmul.mubr.f32.gmra.mxu0 %v7804
  %v7806 = vpop.f32.mrf.mxu0
  %v7807 = vadd.f32 0.0, %v7806
  %v7808 = vpop.f32.mrf.mxu0
  %7809 = vdwg.mxu0
  %7810 = vmatprep.subr.mxu0 0.0
  %7811 = vmatpush1.msra.mxu0 0.0
  %7812 = vmatprep.subr.mxu0 0.0
  %7813 = vmatpush1.msra.mxu0 0.0
  %7814 = vmatprep.subr.mxu0 0.0
  %7815 = vmatpush1.msra.mxu0 0.0
  %7816 = vmatprep.subr.mxu0 0.0
  %7817 = vmatpush1.msra.mxu0 0.0
  %7818 = vmatprep.subr.mxu0 0.0
  %7819 = vmatpush1.msra.mxu0 0.0
  %7820 = vmatprep.subr.mxu0 0.0
  %7821 = vmatpush1.msra.mxu0 0.0
  %7822 = vmatprep.subr.mxu0 0.0
  %7823 = vmatpush1.msra.mxu0 0.0
  %7824 = vmatprep.subr.mxu0 0.0
  %7825 = vmatpush1.msra.mxu0 0.0
  %7826 = vmatprep.subr.mxu0 0.0
  %7827 = vmatpush1.msra.mxu0 0.0
  %7828 = vmatprep.subr.mxu0 0.0
  %7829 = vmatpush1.msra.mxu0 0.0
  %7830 = vmatprep.subr.mxu0 0.0
  %7831 = vmatpush1.msra.mxu0 0.0
  %7832 = vmatprep.subr.mxu0 0.0
  %7833 = vmatpush1.msra.mxu0 0.0
  %7834 = vmatprep.subr.mxu0 0.0
  %7835 = vmatpush1.msra.mxu0 0.0
  %7836 = vmatprep.subr.mxu0 0.0
  %7837 = vmatpush1.msra.mxu0 0.0
  %7838 = vmatprep.subr.mxu0 0.0
  %v7839 = vand.u32 %v7361, 4294901760
  %v7840 = vsub.f32 %v7361, %v7839
  %v7841 = vand.u32 %v7840, 4294901760
  %v7842 = vsub.f32 %v7840, %v7841
  %v7843 = vand.u32 %v7842, 4294901760
  %7844 = vmatpush1.msra.mxu0 %v7843
  %7845 = vmatprep.subr.mxu0 0.0
  %v7846 = vand.u32 %v7244, 4294901760
  %v7847 = vsub.f32 %v7244, %v7846
  %v7848 = vand.u32 %v7847, 4294901760
  %v7849 = vsub.f32 %v7847, %v7848
  %v7850 = vand.u32 %v7849, 4294901760
  %7851 = vmatpush1.msra.mxu0 %v7850
  %7852 = vmatprep.subr.mxu0 0.0
  %7853 = vmatpush2.msra.mxu0 0.0
  %7854 = vmatprep.subr.mxu0 0.0
  %7855 = vmatpush2.msra.mxu0 0.0
  %7856 = vmatprep.subr.mxu0 0.0
  %7857 = vmatpush2.msra.mxu0 0.0
  %7858 = vmatprep.subr.mxu0 0.0
  %7859 = vmatpush2.msra.mxu0 0.0
  %7860 = vmatprep.subr.mxu0 0.0
  %7861 = vmatpush2.msra.mxu0 0.0
  %7862 = vmatprep.subr.mxu0 0.0
  %7863 = vmatpush2.msra.mxu0 0.0
  %7864 = vmatprep.subr.mxu0 0.0
  %7865 = vmatpush2.msra.mxu0 0.0
  %7866 = vmatprep.subr.mxu0 0.0
  %7867 = vmatpush2.msra.mxu0 0.0
  %7868 = vmatprep.subr.mxu0 0.0
  %7869 = vmatpush2.msra.mxu0 0.0
  %7870 = vmatprep.subr.mxu0 0.0
  %7871 = vmatpush2.msra.mxu0 0.0
  %7872 = vmatprep.subr.mxu0 0.0
  %7873 = vmatpush2.msra.mxu0 0.0
  %7874 = vmatprep.subr.mxu0 0.0
  %7875 = vmatpush2.msra.mxu0 0.0
  %7876 = vmatprep.subr.mxu0 0.0
  %7877 = vmatpush2.msra.mxu0 0.0
  %7878 = vmatprep.subr.mxu0 0.0
  %7879 = vmatpush2.msra.mxu0 0.0
  %7880 = vmatprep.subr.mxu0 0.0
  %7881 = vmatpush2.msra.mxu0 0.0
  %7882 = vmatprep.subr.mxu0 0.0
  %7883 = vmatpush2.msra.mxu0 0.0
  %7884 = vmatprep.mubr.f32.mxu0 0.0
  %v7885 = vand.u32 %v7247, 4294901760
  %7886 = vmatmul.mubr.f32.gmra.mxu0 %v7885
  %v7887 = vpop.f32.mrf.mxu0
  %v7888 = vadd.f32 %v7437, %v7887
  %v7889 = vpop.f32.mrf.mxu0
  %7890 = vmatprep.mubr.f32.mxu0 0.0
  %v7891 = vand.u32 %v7250, 4294901760
  %7892 = vmatmul.mubr.f32.gmra.mxu0 %v7891
  %v7893 = vpop.f32.mrf.mxu0
  %v7894 = vadd.f32 %v7447, %v7893
  %v7895 = vpop.f32.mrf.mxu0
  %7896 = vmatprep.mubr.f32.mxu0 0.0
  %v7897 = vand.u32 %v7253, 4294901760
  %7898 = vmatmul.mubr.f32.gmra.mxu0 %v7897
  %v7899 = vpop.f32.mrf.mxu0
  %v7900 = vadd.f32 %v7457, %v7899
  %v7901 = vpop.f32.mrf.mxu0
  %7902 = vmatprep.mubr.f32.mxu0 0.0
  %v7903 = vand.u32 %v7256, 4294901760
  %7904 = vmatmul.mubr.f32.gmra.mxu0 %v7903
  %v7905 = vpop.f32.mrf.mxu0
  %v7906 = vadd.f32 %v7467, %v7905
  %v7907 = vpop.f32.mrf.mxu0
  %7908 = vmatprep.mubr.f32.mxu0 0.0
  %v7909 = vand.u32 %v7259, 4294901760
  %7910 = vmatmul.mubr.f32.gmra.mxu0 %v7909
  %v7911 = vpop.f32.mrf.mxu0
  %v7912 = vadd.f32 %v7477, %v7911
  %v7913 = vpop.f32.mrf.mxu0
  %7914 = vmatprep.mubr.f32.mxu0 0.0
  %v7915 = vand.u32 %v7262, 4294901760
  %7916 = vmatmul.mubr.f32.gmra.mxu0 %v7915
  %v7917 = vpop.f32.mrf.mxu0
  %v7918 = vadd.f32 %v7487, %v7917
  %v7919 = vpop.f32.mrf.mxu0
  %7920 = vmatprep.mubr.f32.mxu0 0.0
  %v7921 = vand.u32 %v7265, 4294901760
  %7922 = vmatmul.mubr.f32.gmra.mxu0 %v7921
  %v7923 = vpop.f32.mrf.mxu0
  %v7924 = vadd.f32 %v7497, %v7923
  %v7925 = vpop.f32.mrf.mxu0
  %7926 = vmatprep.mubr.f32.mxu0 0.0
  %v7927 = vand.u32 %v7268, 4294901760
  %7928 = vmatmul.mubr.f32.gmra.mxu0 %v7927
  %v7929 = vpop.f32.mrf.mxu0
  %v7930 = vadd.f32 %v7507, %v7929
  %v7931 = vpop.f32.mrf.mxu0
  %7932 = vmatprep.mubr.f32.mxu0 0.0
  %v7933 = vand.u32 %v7271, 4294901760
  %7934 = vmatmul.mubr.f32.gmra.mxu0 %v7933
  %v7935 = vpop.f32.mrf.mxu0
  %v7936 = vadd.f32 %v7517, %v7935
  %v7937 = vpop.f32.mrf.mxu0
  %7938 = vmatprep.mubr.f32.mxu0 0.0
  %v7939 = vand.u32 %v7274, 4294901760
  %7940 = vmatmul.mubr.f32.gmra.mxu0 %v7939
  %v7941 = vpop.f32.mrf.mxu0
  %v7942 = vadd.f32 %v7527, %v7941
  %v7943 = vpop.f32.mrf.mxu0
  %7944 = vmatprep.mubr.f32.mxu0 0.0
  %v7945 = vand.u32 %v7277, 4294901760
  %7946 = vmatmul.mubr.f32.gmra.mxu0 %v7945
  %v7947 = vpop.f32.mrf.mxu0
  %v7948 = vadd.f32 %v7537, %v7947
  %v7949 = vpop.f32.mrf.mxu0
  %7950 = vmatprep.mubr.f32.mxu0 0.0
  %v7951 = vand.u32 %v7280, 4294901760
  %7952 = vmatmul.mubr.f32.gmra.mxu0 %v7951
  %v7953 = vpop.f32.mrf.mxu0
  %v7954 = vadd.f32 %v7547, %v7953
  %v7955 = vpop.f32.mrf.mxu0
  %7956 = vmatprep.mubr.f32.mxu0 0.0
  %v7957 = vand.u32 %v7283, 4294901760
  %7958 = vmatmul.mubr.f32.gmra.mxu0 %v7957
  %v7959 = vpop.f32.mrf.mxu0
  %v7960 = vadd.f32 %v7557, %v7959
  %v7961 = vpop.f32.mrf.mxu0
  %7962 = vmatprep.mubr.f32.mxu0 0.0
  %v7963 = vand.u32 %v7286, 4294901760
  %7964 = vmatmul.mubr.f32.gmra.mxu0 %v7963
  %v7965 = vpop.f32.mrf.mxu0
  %v7966 = vadd.f32 %v7567, %v7965
  %v7967 = vpop.f32.mrf.mxu0
  %7968 = vmatprep.mubr.f32.mxu0 0.0
  %v7969 = vand.u32 %v7289, 4294901760
  %7970 = vmatmul.mubr.f32.gmra.mxu0 %v7969
  %v7971 = vpop.f32.mrf.mxu0
  %v7972 = vadd.f32 %v7577, %v7971
  %v7973 = vpop.f32.mrf.mxu0
  %7974 = vmatprep.mubr.f32.mxu0 0.0
  %v7975 = vand.u32 %v7292, 4294901760
  %7976 = vmatmul.mubr.f32.gmra.mxu0 %v7975
  %v7977 = vpop.f32.mrf.mxu0
  %v7978 = vadd.f32 %v7587, %v7977
  %v7979 = vpop.f32.mrf.mxu0
  %7980 = vmatprep.mubr.f32.mxu0 0.0
  %v7981 = vand.u32 %v7295, 4294901760
  %7982 = vmatmul.mubr.f32.gmra.mxu0 %v7981
  %v7983 = vpop.f32.mrf.mxu0
  %v7984 = vadd.f32 %v7597, %v7983
  %v7985 = vpop.f32.mrf.mxu0
  %7986 = vmatprep.mubr.f32.mxu0 0.0
  %v7987 = vand.u32 %v7298, 4294901760
  %7988 = vmatmul.mubr.f32.gmra.mxu0 %v7987
  %v7989 = vpop.f32.mrf.mxu0
  %v7990 = vadd.f32 %v7607, %v7989
  %v7991 = vpop.f32.mrf.mxu0
  %7992 = vmatprep.mubr.f32.mxu0 0.0
  %v7993 = vand.u32 %v7301, 4294901760
  %7994 = vmatmul.mubr.f32.gmra.mxu0 %v7993
  %v7995 = vpop.f32.mrf.mxu0
  %v7996 = vadd.f32 %v7617, %v7995
  %v7997 = vpop.f32.mrf.mxu0
  %7998 = vmatprep.mubr.f32.mxu0 0.0
  %v7999 = vand.u32 %v7304, 4294901760
  %8000 = vmatmul.mubr.f32.gmra.mxu0 %v7999
  %v8001 = vpop.f32.mrf.mxu0
  %v8002 = vadd.f32 %v7627, %v8001
  %v8003 = vpop.f32.mrf.mxu0
  %8004 = vmatprep.mubr.f32.mxu0 0.0
  %v8005 = vand.u32 %v7307, 4294901760
  %8006 = vmatmul.mubr.f32.gmra.mxu0 %v8005
  %v8007 = vpop.f32.mrf.mxu0
  %v8008 = vadd.f32 %v7637, %v8007
  %v8009 = vpop.f32.mrf.mxu0
  %8010 = vmatprep.mubr.f32.mxu0 0.0
  %v8011 = vand.u32 %v7310, 4294901760
  %8012 = vmatmul.mubr.f32.gmra.mxu0 %v8011
  %v8013 = vpop.f32.mrf.mxu0
  %v8014 = vadd.f32 %v7647, %v8013
  %v8015 = vpop.f32.mrf.mxu0
  %8016 = vmatprep.mubr.f32.mxu0 0.0
  %v8017 = vand.u32 %v7313, 4294901760
  %8018 = vmatmul.mubr.f32.gmra.mxu0 %v8017
  %v8019 = vpop.f32.mrf.mxu0
  %v8020 = vadd.f32 %v7657, %v8019
  %v8021 = vpop.f32.mrf.mxu0
  %8022 = vmatprep.mubr.f32.mxu0 0.0
  %v8023 = vand.u32 %v7316, 4294901760
  %8024 = vmatmul.mubr.f32.gmra.mxu0 %v8023
  %v8025 = vpop.f32.mrf.mxu0
  %v8026 = vadd.f32 %v7667, %v8025
  %v8027 = vpop.f32.mrf.mxu0
  %8028 = vmatprep.mubr.f32.mxu0 0.0
  %v8029 = vand.u32 %v7319, 4294901760
  %8030 = vmatmul.mubr.f32.gmra.mxu0 %v8029
  %v8031 = vpop.f32.mrf.mxu0
  %v8032 = vadd.f32 %v7677, %v8031
  %v8033 = vpop.f32.mrf.mxu0
  %8034 = vmatprep.mubr.f32.mxu0 0.0
  %v8035 = vand.u32 %v7322, 4294901760
  %8036 = vmatmul.mubr.f32.gmra.mxu0 %v8035
  %v8037 = vpop.f32.mrf.mxu0
  %v8038 = vadd.f32 %v7687, %v8037
  %v8039 = vpop.f32.mrf.mxu0
  %8040 = vmatprep.mubr.f32.mxu0 0.0
  %v8041 = vand.u32 %v7325, 4294901760
  %8042 = vmatmul.mubr.f32.gmra.mxu0 %v8041
  %v8043 = vpop.f32.mrf.mxu0
  %v8044 = vadd.f32 %v7697, %v8043
  %v8045 = vpop.f32.mrf.mxu0
  %8046 = vmatprep.mubr.f32.mxu0 0.0
  %v8047 = vand.u32 %v7328, 4294901760
  %8048 = vmatmul.mubr.f32.gmra.mxu0 %v8047
  %v8049 = vpop.f32.mrf.mxu0
  %v8050 = vadd.f32 %v7707, %v8049
  %v8051 = vpop.f32.mrf.mxu0
  %8052 = vmatprep.mubr.f32.mxu0 0.0
  %v8053 = vand.u32 %v7331, 4294901760
  %8054 = vmatmul.mubr.f32.gmra.mxu0 %v8053
  %v8055 = vpop.f32.mrf.mxu0
  %v8056 = vadd.f32 %v7717, %v8055
  %v8057 = vpop.f32.mrf.mxu0
  %8058 = vmatprep.mubr.f32.mxu0 0.0
  %v8059 = vand.u32 %v7334, 4294901760
  %8060 = vmatmul.mubr.f32.gmra.mxu0 %v8059
  %v8061 = vpop.f32.mrf.mxu0
  %v8062 = vadd.f32 %v7727, %v8061
  %v8063 = vpop.f32.mrf.mxu0
  %8064 = vmatprep.mubr.f32.mxu0 0.0
  %v8065 = vand.u32 %v7337, 4294901760
  %8066 = vmatmul.mubr.f32.gmra.mxu0 %v8065
  %v8067 = vpop.f32.mrf.mxu0
  %v8068 = vadd.f32 %v7737, %v8067
  %v8069 = vpop.f32.mrf.mxu0
  %8070 = vmatprep.mubr.f32.mxu0 0.0
  %v8071 = vand.u32 %v7340, 4294901760
  %8072 = vmatmul.mubr.f32.gmra.mxu0 %v8071
  %v8073 = vpop.f32.mrf.mxu0
  %v8074 = vadd.f32 %v7747, %v8073
  %v8075 = vpop.f32.mrf.mxu0
  %8076 = vmatprep.mubr.f32.mxu0 0.0
  %v8077 = vand.u32 %v7343, 4294901760
  %8078 = vmatmul.mubr.f32.gmra.mxu0 %v8077
  %v8079 = vpop.f32.mrf.mxu0
  %v8080 = vadd.f32 %v7757, %v8079
  %v8081 = vpop.f32.mrf.mxu0
  %8082 = vmatprep.mubr.f32.mxu0 0.0
  %v8083 = vand.u32 %v7346, 4294901760
  %8084 = vmatmul.mubr.f32.gmra.mxu0 %v8083
  %v8085 = vpop.f32.mrf.mxu0
  %v8086 = vadd.f32 %v7767, %v8085
  %v8087 = vpop.f32.mrf.mxu0
  %8088 = vmatprep.mubr.f32.mxu0 0.0
  %v8089 = vand.u32 %v7349, 4294901760
  %8090 = vmatmul.mubr.f32.gmra.mxu0 %v8089
  %v8091 = vpop.f32.mrf.mxu0
  %v8092 = vadd.f32 %v7777, %v8091
  %v8093 = vpop.f32.mrf.mxu0
  %8094 = vmatprep.mubr.f32.mxu0 0.0
  %v8095 = vand.u32 %v7352, 4294901760
  %8096 = vmatmul.mubr.f32.gmra.mxu0 %v8095
  %v8097 = vpop.f32.mrf.mxu0
  %v8098 = vadd.f32 %v7787, %v8097
  %v8099 = vpop.f32.mrf.mxu0
  %8100 = vmatprep.mubr.f32.mxu0 0.0
  %v8101 = vand.u32 %v7355, 4294901760
  %8102 = vmatmul.mubr.f32.gmra.mxu0 %v8101
  %v8103 = vpop.f32.mrf.mxu0
  %v8104 = vadd.f32 %v7797, %v8103
  %v8105 = vpop.f32.mrf.mxu0
  %8106 = vmatprep.mubr.f32.mxu0 0.0
  %v8107 = vand.u32 %v7358, 4294901760
  %8108 = vmatmul.mubr.f32.gmra.mxu0 %v8107
  %v8109 = vpop.f32.mrf.mxu0
  %v8110 = vadd.f32 %v7807, %v8109
  %v8111 = vpop.f32.mrf.mxu0
  %8112 = vdwg.mxu0
  %8113 = vmatprep.subr.mxu0 0.0
  %8114 = vmatpush1.msra.mxu0 0.0
  %8115 = vmatprep.subr.mxu0 0.0
  %8116 = vmatpush1.msra.mxu0 0.0
  %8117 = vmatprep.subr.mxu0 0.0
  %8118 = vmatpush1.msra.mxu0 0.0
  %8119 = vmatprep.subr.mxu0 0.0
  %8120 = vmatpush1.msra.mxu0 0.0
  %8121 = vmatprep.subr.mxu0 0.0
  %8122 = vmatpush1.msra.mxu0 0.0
  %8123 = vmatprep.subr.mxu0 0.0
  %8124 = vmatpush1.msra.mxu0 0.0
  %8125 = vmatprep.subr.mxu0 0.0
  %8126 = vmatpush1.msra.mxu0 0.0
  %8127 = vmatprep.subr.mxu0 0.0
  %8128 = vmatpush1.msra.mxu0 0.0
  %8129 = vmatprep.subr.mxu0 0.0
  %8130 = vmatpush1.msra.mxu0 0.0
  %8131 = vmatprep.subr.mxu0 0.0
  %8132 = vmatpush1.msra.mxu0 0.0
  %8133 = vmatprep.subr.mxu0 0.0
  %8134 = vmatpush1.msra.mxu0 0.0
  %8135 = vmatprep.subr.mxu0 0.0
  %8136 = vmatpush1.msra.mxu0 0.0
  %8137 = vmatprep.subr.mxu0 0.0
  %8138 = vmatpush1.msra.mxu0 0.0
  %8139 = vmatprep.subr.mxu0 0.0
  %8140 = vmatpush1.msra.mxu0 0.0
  %8141 = vmatprep.subr.mxu0 0.0
  %v8142 = vand.u32 %v7361, 4294901760
  %v8143 = vsub.f32 %v7361, %v8142
  %8144 = vmatpush1.msra.mxu0 %v8143
  %8145 = vmatprep.subr.mxu0 0.0
  %v8146 = vand.u32 %v7244, 4294901760
  %v8147 = vsub.f32 %v7244, %v8146
  %8148 = vmatpush1.msra.mxu0 %v8147
  %8149 = vmatprep.subr.mxu0 0.0
  %8150 = vmatpush2.msra.mxu0 0.0
  %8151 = vmatprep.subr.mxu0 0.0
  %8152 = vmatpush2.msra.mxu0 0.0
  %8153 = vmatprep.subr.mxu0 0.0
  %8154 = vmatpush2.msra.mxu0 0.0
  %8155 = vmatprep.subr.mxu0 0.0
  %8156 = vmatpush2.msra.mxu0 0.0
  %8157 = vmatprep.subr.mxu0 0.0
  %8158 = vmatpush2.msra.mxu0 0.0
  %8159 = vmatprep.subr.mxu0 0.0
  %8160 = vmatpush2.msra.mxu0 0.0
  %8161 = vmatprep.subr.mxu0 0.0
  %8162 = vmatpush2.msra.mxu0 0.0
  %8163 = vmatprep.subr.mxu0 0.0
  %8164 = vmatpush2.msra.mxu0 0.0
  %8165 = vmatprep.subr.mxu0 0.0
  %8166 = vmatpush2.msra.mxu0 0.0
  %8167 = vmatprep.subr.mxu0 0.0
  %8168 = vmatpush2.msra.mxu0 0.0
  %8169 = vmatprep.subr.mxu0 0.0
  %8170 = vmatpush2.msra.mxu0 0.0
  %8171 = vmatprep.subr.mxu0 0.0
  %8172 = vmatpush2.msra.mxu0 0.0
  %8173 = vmatprep.subr.mxu0 0.0
  %8174 = vmatpush2.msra.mxu0 0.0
  %8175 = vmatprep.subr.mxu0 0.0
  %8176 = vmatpush2.msra.mxu0 0.0
  %8177 = vmatprep.subr.mxu0 0.0
  %8178 = vmatpush2.msra.mxu0 0.0
  %8179 = vmatprep.subr.mxu0 0.0
  %8180 = vmatpush2.msra.mxu0 0.0
  %8181 = vmatprep.mubr.f32.mxu0 0.0
  %v8182 = vand.u32 %v7247, 4294901760
  %v8183 = vsub.f32 %v7247, %v8182
  %8184 = vmatmul.mubr.f32.gmra.mxu0 %v8183
  %v8185 = vpop.f32.mrf.mxu0
  %v8186 = vadd.f32 %v7888, %v8185
  %v8187 = vpop.f32.mrf.mxu0
  %8188 = vmatprep.mubr.f32.mxu0 0.0
  %v8189 = vand.u32 %v7250, 4294901760
  %v8190 = vsub.f32 %v7250, %v8189
  %8191 = vmatmul.mubr.f32.gmra.mxu0 %v8190
  %v8192 = vpop.f32.mrf.mxu0
  %v8193 = vadd.f32 %v7894, %v8192
  %v8194 = vpop.f32.mrf.mxu0
  %8195 = vmatprep.mubr.f32.mxu0 0.0
  %v8196 = vand.u32 %v7253, 4294901760
  %v8197 = vsub.f32 %v7253, %v8196
  %8198 = vmatmul.mubr.f32.gmra.mxu0 %v8197
  %v8199 = vpop.f32.mrf.mxu0
  %v8200 = vadd.f32 %v7900, %v8199
  %v8201 = vpop.f32.mrf.mxu0
  %8202 = vmatprep.mubr.f32.mxu0 0.0
  %v8203 = vand.u32 %v7256, 4294901760
  %v8204 = vsub.f32 %v7256, %v8203
  %8205 = vmatmul.mubr.f32.gmra.mxu0 %v8204
  %v8206 = vpop.f32.mrf.mxu0
  %v8207 = vadd.f32 %v7906, %v8206
  %v8208 = vpop.f32.mrf.mxu0
  %8209 = vmatprep.mubr.f32.mxu0 0.0
  %v8210 = vand.u32 %v7259, 4294901760
  %v8211 = vsub.f32 %v7259, %v8210
  %8212 = vmatmul.mubr.f32.gmra.mxu0 %v8211
  %v8213 = vpop.f32.mrf.mxu0
  %v8214 = vadd.f32 %v7912, %v8213
  %v8215 = vpop.f32.mrf.mxu0
  %8216 = vmatprep.mubr.f32.mxu0 0.0
  %v8217 = vand.u32 %v7262, 4294901760
  %v8218 = vsub.f32 %v7262, %v8217
  %8219 = vmatmul.mubr.f32.gmra.mxu0 %v8218
  %v8220 = vpop.f32.mrf.mxu0
  %v8221 = vadd.f32 %v7918, %v8220
  %v8222 = vpop.f32.mrf.mxu0
  %8223 = vmatprep.mubr.f32.mxu0 0.0
  %v8224 = vand.u32 %v7265, 4294901760
  %v8225 = vsub.f32 %v7265, %v8224
  %8226 = vmatmul.mubr.f32.gmra.mxu0 %v8225
  %v8227 = vpop.f32.mrf.mxu0
  %v8228 = vadd.f32 %v7924, %v8227
  %v8229 = vpop.f32.mrf.mxu0
  %8230 = vmatprep.mubr.f32.mxu0 0.0
  %v8231 = vand.u32 %v7268, 4294901760
  %v8232 = vsub.f32 %v7268, %v8231
  %8233 = vmatmul.mubr.f32.gmra.mxu0 %v8232
  %v8234 = vpop.f32.mrf.mxu0
  %v8235 = vadd.f32 %v7930, %v8234
  %v8236 = vpop.f32.mrf.mxu0
  %8237 = vmatprep.mubr.f32.mxu0 0.0
  %v8238 = vand.u32 %v7271, 4294901760
  %v8239 = vsub.f32 %v7271, %v8238
  %8240 = vmatmul.mubr.f32.gmra.mxu0 %v8239
  %v8241 = vpop.f32.mrf.mxu0
  %v8242 = vadd.f32 %v7936, %v8241
  %v8243 = vpop.f32.mrf.mxu0
  %8244 = vmatprep.mubr.f32.mxu0 0.0
  %v8245 = vand.u32 %v7274, 4294901760
  %v8246 = vsub.f32 %v7274, %v8245
  %8247 = vmatmul.mubr.f32.gmra.mxu0 %v8246
  %v8248 = vpop.f32.mrf.mxu0
  %v8249 = vadd.f32 %v7942, %v8248
  %v8250 = vpop.f32.mrf.mxu0
  %8251 = vmatprep.mubr.f32.mxu0 0.0
  %v8252 = vand.u32 %v7277, 4294901760
  %v8253 = vsub.f32 %v7277, %v8252
  %8254 = vmatmul.mubr.f32.gmra.mxu0 %v8253
  %v8255 = vpop.f32.mrf.mxu0
  %v8256 = vadd.f32 %v7948, %v8255
  %v8257 = vpop.f32.mrf.mxu0
  %8258 = vmatprep.mubr.f32.mxu0 0.0
  %v8259 = vand.u32 %v7280, 4294901760
  %v8260 = vsub.f32 %v7280, %v8259
  %8261 = vmatmul.mubr.f32.gmra.mxu0 %v8260
  %v8262 = vpop.f32.mrf.mxu0
  %v8263 = vadd.f32 %v7954, %v8262
  %v8264 = vpop.f32.mrf.mxu0
  %8265 = vmatprep.mubr.f32.mxu0 0.0
  %v8266 = vand.u32 %v7283, 4294901760
  %v8267 = vsub.f32 %v7283, %v8266
  %8268 = vmatmul.mubr.f32.gmra.mxu0 %v8267
  %v8269 = vpop.f32.mrf.mxu0
  %v8270 = vadd.f32 %v7960, %v8269
  %v8271 = vpop.f32.mrf.mxu0
  %8272 = vmatprep.mubr.f32.mxu0 0.0
  %v8273 = vand.u32 %v7286, 4294901760
  %v8274 = vsub.f32 %v7286, %v8273
  %8275 = vmatmul.mubr.f32.gmra.mxu0 %v8274
  %v8276 = vpop.f32.mrf.mxu0
  %v8277 = vadd.f32 %v7966, %v8276
  %v8278 = vpop.f32.mrf.mxu0
  %8279 = vmatprep.mubr.f32.mxu0 0.0
  %v8280 = vand.u32 %v7289, 4294901760
  %v8281 = vsub.f32 %v7289, %v8280
  %8282 = vmatmul.mubr.f32.gmra.mxu0 %v8281
  %v8283 = vpop.f32.mrf.mxu0
  %v8284 = vadd.f32 %v7972, %v8283
  %v8285 = vpop.f32.mrf.mxu0
  %8286 = vmatprep.mubr.f32.mxu0 0.0
  %v8287 = vand.u32 %v7292, 4294901760
  %v8288 = vsub.f32 %v7292, %v8287
  %8289 = vmatmul.mubr.f32.gmra.mxu0 %v8288
  %v8290 = vpop.f32.mrf.mxu0
  %v8291 = vadd.f32 %v7978, %v8290
  %v8292 = vpop.f32.mrf.mxu0
  %8293 = vmatprep.mubr.f32.mxu0 0.0
  %v8294 = vand.u32 %v7295, 4294901760
  %v8295 = vsub.f32 %v7295, %v8294
  %8296 = vmatmul.mubr.f32.gmra.mxu0 %v8295
  %v8297 = vpop.f32.mrf.mxu0
  %v8298 = vadd.f32 %v7984, %v8297
  %v8299 = vpop.f32.mrf.mxu0
  %8300 = vmatprep.mubr.f32.mxu0 0.0
  %v8301 = vand.u32 %v7298, 4294901760
  %v8302 = vsub.f32 %v7298, %v8301
  %8303 = vmatmul.mubr.f32.gmra.mxu0 %v8302
  %v8304 = vpop.f32.mrf.mxu0
  %v8305 = vadd.f32 %v7990, %v8304
  %v8306 = vpop.f32.mrf.mxu0
  %8307 = vmatprep.mubr.f32.mxu0 0.0
  %v8308 = vand.u32 %v7301, 4294901760
  %v8309 = vsub.f32 %v7301, %v8308
  %8310 = vmatmul.mubr.f32.gmra.mxu0 %v8309
  %v8311 = vpop.f32.mrf.mxu0
  %v8312 = vadd.f32 %v7996, %v8311
  %v8313 = vpop.f32.mrf.mxu0
  %8314 = vmatprep.mubr.f32.mxu0 0.0
  %v8315 = vand.u32 %v7304, 4294901760
  %v8316 = vsub.f32 %v7304, %v8315
  %8317 = vmatmul.mubr.f32.gmra.mxu0 %v8316
  %v8318 = vpop.f32.mrf.mxu0
  %v8319 = vadd.f32 %v8002, %v8318
  %v8320 = vpop.f32.mrf.mxu0
  %8321 = vmatprep.mubr.f32.mxu0 0.0
  %v8322 = vand.u32 %v7307, 4294901760
  %v8323 = vsub.f32 %v7307, %v8322
  %8324 = vmatmul.mubr.f32.gmra.mxu0 %v8323
  %v8325 = vpop.f32.mrf.mxu0
  %v8326 = vadd.f32 %v8008, %v8325
  %v8327 = vpop.f32.mrf.mxu0
  %8328 = vmatprep.mubr.f32.mxu0 0.0
  %v8329 = vand.u32 %v7310, 4294901760
  %v8330 = vsub.f32 %v7310, %v8329
  %8331 = vmatmul.mubr.f32.gmra.mxu0 %v8330
  %v8332 = vpop.f32.mrf.mxu0
  %v8333 = vadd.f32 %v8014, %v8332
  %v8334 = vpop.f32.mrf.mxu0
  %8335 = vmatprep.mubr.f32.mxu0 0.0
  %v8336 = vand.u32 %v7313, 4294901760
  %v8337 = vsub.f32 %v7313, %v8336
  %8338 = vmatmul.mubr.f32.gmra.mxu0 %v8337
  %v8339 = vpop.f32.mrf.mxu0
  %v8340 = vadd.f32 %v8020, %v8339
  %v8341 = vpop.f32.mrf.mxu0
  %8342 = vmatprep.mubr.f32.mxu0 0.0
  %v8343 = vand.u32 %v7316, 4294901760
  %v8344 = vsub.f32 %v7316, %v8343
  %8345 = vmatmul.mubr.f32.gmra.mxu0 %v8344
  %v8346 = vpop.f32.mrf.mxu0
  %v8347 = vadd.f32 %v8026, %v8346
  %v8348 = vpop.f32.mrf.mxu0
  %8349 = vmatprep.mubr.f32.mxu0 0.0
  %v8350 = vand.u32 %v7319, 4294901760
  %v8351 = vsub.f32 %v7319, %v8350
  %8352 = vmatmul.mubr.f32.gmra.mxu0 %v8351
  %v8353 = vpop.f32.mrf.mxu0
  %v8354 = vadd.f32 %v8032, %v8353
  %v8355 = vpop.f32.mrf.mxu0
  %8356 = vmatprep.mubr.f32.mxu0 0.0
  %v8357 = vand.u32 %v7322, 4294901760
  %v8358 = vsub.f32 %v7322, %v8357
  %8359 = vmatmul.mubr.f32.gmra.mxu0 %v8358
  %v8360 = vpop.f32.mrf.mxu0
  %v8361 = vadd.f32 %v8038, %v8360
  %v8362 = vpop.f32.mrf.mxu0
  %8363 = vmatprep.mubr.f32.mxu0 0.0
  %v8364 = vand.u32 %v7325, 4294901760
  %v8365 = vsub.f32 %v7325, %v8364
  %8366 = vmatmul.mubr.f32.gmra.mxu0 %v8365
  %v8367 = vpop.f32.mrf.mxu0
  %v8368 = vadd.f32 %v8044, %v8367
  %v8369 = vpop.f32.mrf.mxu0
  %8370 = vmatprep.mubr.f32.mxu0 0.0
  %v8371 = vand.u32 %v7328, 4294901760
  %v8372 = vsub.f32 %v7328, %v8371
  %8373 = vmatmul.mubr.f32.gmra.mxu0 %v8372
  %v8374 = vpop.f32.mrf.mxu0
  %v8375 = vadd.f32 %v8050, %v8374
  %v8376 = vpop.f32.mrf.mxu0
  %8377 = vmatprep.mubr.f32.mxu0 0.0
  %v8378 = vand.u32 %v7331, 4294901760
  %v8379 = vsub.f32 %v7331, %v8378
  %8380 = vmatmul.mubr.f32.gmra.mxu0 %v8379
  %v8381 = vpop.f32.mrf.mxu0
  %v8382 = vadd.f32 %v8056, %v8381
  %v8383 = vpop.f32.mrf.mxu0
  %8384 = vmatprep.mubr.f32.mxu0 0.0
  %v8385 = vand.u32 %v7334, 4294901760
  %v8386 = vsub.f32 %v7334, %v8385
  %8387 = vmatmul.mubr.f32.gmra.mxu0 %v8386
  %v8388 = vpop.f32.mrf.mxu0
  %v8389 = vadd.f32 %v8062, %v8388
  %v8390 = vpop.f32.mrf.mxu0
  %8391 = vmatprep.mubr.f32.mxu0 0.0
  %v8392 = vand.u32 %v7337, 4294901760
  %v8393 = vsub.f32 %v7337, %v8392
  %8394 = vmatmul.mubr.f32.gmra.mxu0 %v8393
  %v8395 = vpop.f32.mrf.mxu0
  %v8396 = vadd.f32 %v8068, %v8395
  %v8397 = vpop.f32.mrf.mxu0
  %8398 = vmatprep.mubr.f32.mxu0 0.0
  %v8399 = vand.u32 %v7340, 4294901760
  %v8400 = vsub.f32 %v7340, %v8399
  %8401 = vmatmul.mubr.f32.gmra.mxu0 %v8400
  %v8402 = vpop.f32.mrf.mxu0
  %v8403 = vadd.f32 %v8074, %v8402
  %v8404 = vpop.f32.mrf.mxu0
  %8405 = vmatprep.mubr.f32.mxu0 0.0
  %v8406 = vand.u32 %v7343, 4294901760
  %v8407 = vsub.f32 %v7343, %v8406
  %8408 = vmatmul.mubr.f32.gmra.mxu0 %v8407
  %v8409 = vpop.f32.mrf.mxu0
  %v8410 = vadd.f32 %v8080, %v8409
  %v8411 = vpop.f32.mrf.mxu0
  %8412 = vmatprep.mubr.f32.mxu0 0.0
  %v8413 = vand.u32 %v7346, 4294901760
  %v8414 = vsub.f32 %v7346, %v8413
  %8415 = vmatmul.mubr.f32.gmra.mxu0 %v8414
  %v8416 = vpop.f32.mrf.mxu0
  %v8417 = vadd.f32 %v8086, %v8416
  %v8418 = vpop.f32.mrf.mxu0
  %8419 = vmatprep.mubr.f32.mxu0 0.0
  %v8420 = vand.u32 %v7349, 4294901760
  %v8421 = vsub.f32 %v7349, %v8420
  %8422 = vmatmul.mubr.f32.gmra.mxu0 %v8421
  %v8423 = vpop.f32.mrf.mxu0
  %v8424 = vadd.f32 %v8092, %v8423
  %v8425 = vpop.f32.mrf.mxu0
  %8426 = vmatprep.mubr.f32.mxu0 0.0
  %v8427 = vand.u32 %v7352, 4294901760
  %v8428 = vsub.f32 %v7352, %v8427
  %8429 = vmatmul.mubr.f32.gmra.mxu0 %v8428
  %v8430 = vpop.f32.mrf.mxu0
  %v8431 = vadd.f32 %v8098, %v8430
  %v8432 = vpop.f32.mrf.mxu0
  %8433 = vmatprep.mubr.f32.mxu0 0.0
  %v8434 = vand.u32 %v7355, 4294901760
  %v8435 = vsub.f32 %v7355, %v8434
  %8436 = vmatmul.mubr.f32.gmra.mxu0 %v8435
  %v8437 = vpop.f32.mrf.mxu0
  %v8438 = vadd.f32 %v8104, %v8437
  %v8439 = vpop.f32.mrf.mxu0
  %8440 = vmatprep.mubr.f32.mxu0 0.0
  %v8441 = vand.u32 %v7358, 4294901760
  %v8442 = vsub.f32 %v7358, %v8441
  %8443 = vmatmul.mubr.f32.gmra.mxu0 %v8442
  %v8444 = vpop.f32.mrf.mxu0
  %v8445 = vadd.f32 %v8110, %v8444
  %v8446 = vpop.f32.mrf.mxu0
  %8447 = vdwg.mxu0
  %8448 = vmatprep.subr.mxu0 0.0
  %8449 = vmatpush1.msra.mxu0 0.0
  %8450 = vmatprep.subr.mxu0 0.0
  %8451 = vmatpush1.msra.mxu0 0.0
  %8452 = vmatprep.subr.mxu0 0.0
  %8453 = vmatpush1.msra.mxu0 0.0
  %8454 = vmatprep.subr.mxu0 0.0
  %8455 = vmatpush1.msra.mxu0 0.0
  %8456 = vmatprep.subr.mxu0 0.0
  %8457 = vmatpush1.msra.mxu0 0.0
  %8458 = vmatprep.subr.mxu0 0.0
  %8459 = vmatpush1.msra.mxu0 0.0
  %8460 = vmatprep.subr.mxu0 0.0
  %8461 = vmatpush1.msra.mxu0 0.0
  %8462 = vmatprep.subr.mxu0 0.0
  %8463 = vmatpush1.msra.mxu0 0.0
  %8464 = vmatprep.subr.mxu0 0.0
  %8465 = vmatpush1.msra.mxu0 0.0
  %8466 = vmatprep.subr.mxu0 0.0
  %8467 = vmatpush1.msra.mxu0 0.0
  %8468 = vmatprep.subr.mxu0 0.0
  %8469 = vmatpush1.msra.mxu0 0.0
  %8470 = vmatprep.subr.mxu0 0.0
  %8471 = vmatpush1.msra.mxu0 0.0
  %8472 = vmatprep.subr.mxu0 0.0
  %8473 = vmatpush1.msra.mxu0 0.0
  %8474 = vmatprep.subr.mxu0 0.0
  %8475 = vmatpush1.msra.mxu0 0.0
  %8476 = vmatprep.subr.mxu0 0.0
  %v8477 = vand.u32 %v7361, 4294901760
  %8478 = vmatpush1.msra.mxu0 %v8477
  %8479 = vmatprep.subr.mxu0 0.0
  %v8480 = vand.u32 %v7244, 4294901760
  %8481 = vmatpush1.msra.mxu0 %v8480
  %8482 = vmatprep.subr.mxu0 0.0
  %8483 = vmatpush2.msra.mxu0 0.0
  %8484 = vmatprep.subr.mxu0 0.0
  %8485 = vmatpush2.msra.mxu0 0.0
  %8486 = vmatprep.subr.mxu0 0.0
  %8487 = vmatpush2.msra.mxu0 0.0
  %8488 = vmatprep.subr.mxu0 0.0
  %8489 = vmatpush2.msra.mxu0 0.0
  %8490 = vmatprep.subr.mxu0 0.0
  %8491 = vmatpush2.msra.mxu0 0.0
  %8492 = vmatprep.subr.mxu0 0.0
  %8493 = vmatpush2.msra.mxu0 0.0
  %8494 = vmatprep.subr.mxu0 0.0
  %8495 = vmatpush2.msra.mxu0 0.0
  %8496 = vmatprep.subr.mxu0 0.0
  %8497 = vmatpush2.msra.mxu0 0.0
  %8498 = vmatprep.subr.mxu0 0.0
  %8499 = vmatpush2.msra.mxu0 0.0
  %8500 = vmatprep.subr.mxu0 0.0
  %8501 = vmatpush2.msra.mxu0 0.0
  %8502 = vmatprep.subr.mxu0 0.0
  %8503 = vmatpush2.msra.mxu0 0.0
  %8504 = vmatprep.subr.mxu0 0.0
  %8505 = vmatpush2.msra.mxu0 0.0
  %8506 = vmatprep.subr.mxu0 0.0
  %8507 = vmatpush2.msra.mxu0 0.0
  %8508 = vmatprep.subr.mxu0 0.0
  %8509 = vmatpush2.msra.mxu0 0.0
  %8510 = vmatprep.subr.mxu0 0.0
  %8511 = vmatpush2.msra.mxu0 0.0
  %8512 = vmatprep.subr.mxu0 0.0
  %8513 = vmatpush2.msra.mxu0 0.0
  %8514 = vmatprep.mubr.f32.mxu0 0.0
  %v8515 = vand.u32 %v7247, 4294901760
  %v8516 = vsub.f32 %v7247, %v8515
  %v8517 = vand.u32 %v8516, 4294901760
  %8518 = vmatmul.mubr.f32.gmra.mxu0 %v8517
  %v8519 = vpop.f32.mrf.mxu0
  %v8520 = vadd.f32 %v8186, %v8519
  %v8521 = vpop.f32.mrf.mxu0
  %8522 = vmatprep.mubr.f32.mxu0 0.0
  %v8523 = vand.u32 %v7250, 4294901760
  %v8524 = vsub.f32 %v7250, %v8523
  %v8525 = vand.u32 %v8524, 4294901760
  %8526 = vmatmul.mubr.f32.gmra.mxu0 %v8525
  %v8527 = vpop.f32.mrf.mxu0
  %v8528 = vadd.f32 %v8193, %v8527
  %v8529 = vpop.f32.mrf.mxu0
  %8530 = vmatprep.mubr.f32.mxu0 0.0
  %v8531 = vand.u32 %v7253, 4294901760
  %v8532 = vsub.f32 %v7253, %v8531
  %v8533 = vand.u32 %v8532, 4294901760
  %8534 = vmatmul.mubr.f32.gmra.mxu0 %v8533
  %v8535 = vpop.f32.mrf.mxu0
  %v8536 = vadd.f32 %v8200, %v8535
  %v8537 = vpop.f32.mrf.mxu0
  %8538 = vmatprep.mubr.f32.mxu0 0.0
  %v8539 = vand.u32 %v7256, 4294901760
  %v8540 = vsub.f32 %v7256, %v8539
  %v8541 = vand.u32 %v8540, 4294901760
  %8542 = vmatmul.mubr.f32.gmra.mxu0 %v8541
  %v8543 = vpop.f32.mrf.mxu0
  %v8544 = vadd.f32 %v8207, %v8543
  %v8545 = vpop.f32.mrf.mxu0
  %8546 = vmatprep.mubr.f32.mxu0 0.0
  %v8547 = vand.u32 %v7259, 4294901760
  %v8548 = vsub.f32 %v7259, %v8547
  %v8549 = vand.u32 %v8548, 4294901760
  %8550 = vmatmul.mubr.f32.gmra.mxu0 %v8549
  %v8551 = vpop.f32.mrf.mxu0
  %v8552 = vadd.f32 %v8214, %v8551
  %v8553 = vpop.f32.mrf.mxu0
  %8554 = vmatprep.mubr.f32.mxu0 0.0
  %v8555 = vand.u32 %v7262, 4294901760
  %v8556 = vsub.f32 %v7262, %v8555
  %v8557 = vand.u32 %v8556, 4294901760
  %8558 = vmatmul.mubr.f32.gmra.mxu0 %v8557
  %v8559 = vpop.f32.mrf.mxu0
  %v8560 = vadd.f32 %v8221, %v8559
  %v8561 = vpop.f32.mrf.mxu0
  %8562 = vmatprep.mubr.f32.mxu0 0.0
  %v8563 = vand.u32 %v7265, 4294901760
  %v8564 = vsub.f32 %v7265, %v8563
  %v8565 = vand.u32 %v8564, 4294901760
  %8566 = vmatmul.mubr.f32.gmra.mxu0 %v8565
  %v8567 = vpop.f32.mrf.mxu0
  %v8568 = vadd.f32 %v8228, %v8567
  %v8569 = vpop.f32.mrf.mxu0
  %8570 = vmatprep.mubr.f32.mxu0 0.0
  %v8571 = vand.u32 %v7268, 4294901760
  %v8572 = vsub.f32 %v7268, %v8571
  %v8573 = vand.u32 %v8572, 4294901760
  %8574 = vmatmul.mubr.f32.gmra.mxu0 %v8573
  %v8575 = vpop.f32.mrf.mxu0
  %v8576 = vadd.f32 %v8235, %v8575
  %v8577 = vpop.f32.mrf.mxu0
  %8578 = vmatprep.mubr.f32.mxu0 0.0
  %v8579 = vand.u32 %v7271, 4294901760
  %v8580 = vsub.f32 %v7271, %v8579
  %v8581 = vand.u32 %v8580, 4294901760
  %8582 = vmatmul.mubr.f32.gmra.mxu0 %v8581
  %v8583 = vpop.f32.mrf.mxu0
  %v8584 = vadd.f32 %v8242, %v8583
  %v8585 = vpop.f32.mrf.mxu0
  %8586 = vmatprep.mubr.f32.mxu0 0.0
  %v8587 = vand.u32 %v7274, 4294901760
  %v8588 = vsub.f32 %v7274, %v8587
  %v8589 = vand.u32 %v8588, 4294901760
  %8590 = vmatmul.mubr.f32.gmra.mxu0 %v8589
  %v8591 = vpop.f32.mrf.mxu0
  %v8592 = vadd.f32 %v8249, %v8591
  %v8593 = vpop.f32.mrf.mxu0
  %8594 = vmatprep.mubr.f32.mxu0 0.0
  %v8595 = vand.u32 %v7277, 4294901760
  %v8596 = vsub.f32 %v7277, %v8595
  %v8597 = vand.u32 %v8596, 4294901760
  %8598 = vmatmul.mubr.f32.gmra.mxu0 %v8597
  %v8599 = vpop.f32.mrf.mxu0
  %v8600 = vadd.f32 %v8256, %v8599
  %v8601 = vpop.f32.mrf.mxu0
  %8602 = vmatprep.mubr.f32.mxu0 0.0
  %v8603 = vand.u32 %v7280, 4294901760
  %v8604 = vsub.f32 %v7280, %v8603
  %v8605 = vand.u32 %v8604, 4294901760
  %8606 = vmatmul.mubr.f32.gmra.mxu0 %v8605
  %v8607 = vpop.f32.mrf.mxu0
  %v8608 = vadd.f32 %v8263, %v8607
  %v8609 = vpop.f32.mrf.mxu0
  %8610 = vmatprep.mubr.f32.mxu0 0.0
  %v8611 = vand.u32 %v7283, 4294901760
  %v8612 = vsub.f32 %v7283, %v8611
  %v8613 = vand.u32 %v8612, 4294901760
  %8614 = vmatmul.mubr.f32.gmra.mxu0 %v8613
  %v8615 = vpop.f32.mrf.mxu0
  %v8616 = vadd.f32 %v8270, %v8615
  %v8617 = vpop.f32.mrf.mxu0
  %8618 = vmatprep.mubr.f32.mxu0 0.0
  %v8619 = vand.u32 %v7286, 4294901760
  %v8620 = vsub.f32 %v7286, %v8619
  %v8621 = vand.u32 %v8620, 4294901760
  %8622 = vmatmul.mubr.f32.gmra.mxu0 %v8621
  %v8623 = vpop.f32.mrf.mxu0
  %v8624 = vadd.f32 %v8277, %v8623
  %v8625 = vpop.f32.mrf.mxu0
  %8626 = vmatprep.mubr.f32.mxu0 0.0
  %v8627 = vand.u32 %v7289, 4294901760
  %v8628 = vsub.f32 %v7289, %v8627
  %v8629 = vand.u32 %v8628, 4294901760
  %8630 = vmatmul.mubr.f32.gmra.mxu0 %v8629
  %v8631 = vpop.f32.mrf.mxu0
  %v8632 = vadd.f32 %v8284, %v8631
  %v8633 = vpop.f32.mrf.mxu0
  %8634 = vmatprep.mubr.f32.mxu0 0.0
  %v8635 = vand.u32 %v7292, 4294901760
  %v8636 = vsub.f32 %v7292, %v8635
  %v8637 = vand.u32 %v8636, 4294901760
  %8638 = vmatmul.mubr.f32.gmra.mxu0 %v8637
  %v8639 = vpop.f32.mrf.mxu0
  %v8640 = vadd.f32 %v8291, %v8639
  %v8641 = vpop.f32.mrf.mxu0
  %8642 = vmatprep.mubr.f32.mxu0 0.0
  %v8643 = vand.u32 %v7295, 4294901760
  %v8644 = vsub.f32 %v7295, %v8643
  %v8645 = vand.u32 %v8644, 4294901760
  %8646 = vmatmul.mubr.f32.gmra.mxu0 %v8645
  %v8647 = vpop.f32.mrf.mxu0
  %v8648 = vadd.f32 %v8298, %v8647
  %v8649 = vpop.f32.mrf.mxu0
  %8650 = vmatprep.mubr.f32.mxu0 0.0
  %v8651 = vand.u32 %v7298, 4294901760
  %v8652 = vsub.f32 %v7298, %v8651
  %v8653 = vand.u32 %v8652, 4294901760
  %8654 = vmatmul.mubr.f32.gmra.mxu0 %v8653
  %v8655 = vpop.f32.mrf.mxu0
  %v8656 = vadd.f32 %v8305, %v8655
  %v8657 = vpop.f32.mrf.mxu0
  %8658 = vmatprep.mubr.f32.mxu0 0.0
  %v8659 = vand.u32 %v7301, 4294901760
  %v8660 = vsub.f32 %v7301, %v8659
  %v8661 = vand.u32 %v8660, 4294901760
  %8662 = vmatmul.mubr.f32.gmra.mxu0 %v8661
  %v8663 = vpop.f32.mrf.mxu0
  %v8664 = vadd.f32 %v8312, %v8663
  %v8665 = vpop.f32.mrf.mxu0
  %8666 = vmatprep.mubr.f32.mxu0 0.0
  %v8667 = vand.u32 %v7304, 4294901760
  %v8668 = vsub.f32 %v7304, %v8667
  %v8669 = vand.u32 %v8668, 4294901760
  %8670 = vmatmul.mubr.f32.gmra.mxu0 %v8669
  %v8671 = vpop.f32.mrf.mxu0
  %v8672 = vadd.f32 %v8319, %v8671
  %v8673 = vpop.f32.mrf.mxu0
  %8674 = vmatprep.mubr.f32.mxu0 0.0
  %v8675 = vand.u32 %v7307, 4294901760
  %v8676 = vsub.f32 %v7307, %v8675
  %v8677 = vand.u32 %v8676, 4294901760
  %8678 = vmatmul.mubr.f32.gmra.mxu0 %v8677
  %v8679 = vpop.f32.mrf.mxu0
  %v8680 = vadd.f32 %v8326, %v8679
  %v8681 = vpop.f32.mrf.mxu0
  %8682 = vmatprep.mubr.f32.mxu0 0.0
  %v8683 = vand.u32 %v7310, 4294901760
  %v8684 = vsub.f32 %v7310, %v8683
  %v8685 = vand.u32 %v8684, 4294901760
  %8686 = vmatmul.mubr.f32.gmra.mxu0 %v8685
  %v8687 = vpop.f32.mrf.mxu0
  %v8688 = vadd.f32 %v8333, %v8687
  %v8689 = vpop.f32.mrf.mxu0
  %8690 = vmatprep.mubr.f32.mxu0 0.0
  %v8691 = vand.u32 %v7313, 4294901760
  %v8692 = vsub.f32 %v7313, %v8691
  %v8693 = vand.u32 %v8692, 4294901760
  %8694 = vmatmul.mubr.f32.gmra.mxu0 %v8693
  %v8695 = vpop.f32.mrf.mxu0
  %v8696 = vadd.f32 %v8340, %v8695
  %v8697 = vpop.f32.mrf.mxu0
  %8698 = vmatprep.mubr.f32.mxu0 0.0
  %v8699 = vand.u32 %v7316, 4294901760
  %v8700 = vsub.f32 %v7316, %v8699
  %v8701 = vand.u32 %v8700, 4294901760
  %8702 = vmatmul.mubr.f32.gmra.mxu0 %v8701
  %v8703 = vpop.f32.mrf.mxu0
  %v8704 = vadd.f32 %v8347, %v8703
  %v8705 = vpop.f32.mrf.mxu0
  %8706 = vmatprep.mubr.f32.mxu0 0.0
  %v8707 = vand.u32 %v7319, 4294901760
  %v8708 = vsub.f32 %v7319, %v8707
  %v8709 = vand.u32 %v8708, 4294901760
  %8710 = vmatmul.mubr.f32.gmra.mxu0 %v8709
  %v8711 = vpop.f32.mrf.mxu0
  %v8712 = vadd.f32 %v8354, %v8711
  %v8713 = vpop.f32.mrf.mxu0
  %8714 = vmatprep.mubr.f32.mxu0 0.0
  %v8715 = vand.u32 %v7322, 4294901760
  %v8716 = vsub.f32 %v7322, %v8715
  %v8717 = vand.u32 %v8716, 4294901760
  %8718 = vmatmul.mubr.f32.gmra.mxu0 %v8717
  %v8719 = vpop.f32.mrf.mxu0
  %v8720 = vadd.f32 %v8361, %v8719
  %v8721 = vpop.f32.mrf.mxu0
  %8722 = vmatprep.mubr.f32.mxu0 0.0
  %v8723 = vand.u32 %v7325, 4294901760
  %v8724 = vsub.f32 %v7325, %v8723
  %v8725 = vand.u32 %v8724, 4294901760
  %8726 = vmatmul.mubr.f32.gmra.mxu0 %v8725
  %v8727 = vpop.f32.mrf.mxu0
  %v8728 = vadd.f32 %v8368, %v8727
  %v8729 = vpop.f32.mrf.mxu0
  %8730 = vmatprep.mubr.f32.mxu0 0.0
  %v8731 = vand.u32 %v7328, 4294901760
  %v8732 = vsub.f32 %v7328, %v8731
  %v8733 = vand.u32 %v8732, 4294901760
  %8734 = vmatmul.mubr.f32.gmra.mxu0 %v8733
  %v8735 = vpop.f32.mrf.mxu0
  %v8736 = vadd.f32 %v8375, %v8735
  %v8737 = vpop.f32.mrf.mxu0
  %8738 = vmatprep.mubr.f32.mxu0 0.0
  %v8739 = vand.u32 %v7331, 4294901760
  %v8740 = vsub.f32 %v7331, %v8739
  %v8741 = vand.u32 %v8740, 4294901760
  %8742 = vmatmul.mubr.f32.gmra.mxu0 %v8741
  %v8743 = vpop.f32.mrf.mxu0
  %v8744 = vadd.f32 %v8382, %v8743
  %v8745 = vpop.f32.mrf.mxu0
  %8746 = vmatprep.mubr.f32.mxu0 0.0
  %v8747 = vand.u32 %v7334, 4294901760
  %v8748 = vsub.f32 %v7334, %v8747
  %v8749 = vand.u32 %v8748, 4294901760
  %8750 = vmatmul.mubr.f32.gmra.mxu0 %v8749
  %v8751 = vpop.f32.mrf.mxu0
  %v8752 = vadd.f32 %v8389, %v8751
  %v8753 = vpop.f32.mrf.mxu0
  %8754 = vmatprep.mubr.f32.mxu0 0.0
  %v8755 = vand.u32 %v7337, 4294901760
  %v8756 = vsub.f32 %v7337, %v8755
  %v8757 = vand.u32 %v8756, 4294901760
  %8758 = vmatmul.mubr.f32.gmra.mxu0 %v8757
  %v8759 = vpop.f32.mrf.mxu0
  %v8760 = vadd.f32 %v8396, %v8759
  %v8761 = vpop.f32.mrf.mxu0
  %8762 = vmatprep.mubr.f32.mxu0 0.0
  %v8763 = vand.u32 %v7340, 4294901760
  %v8764 = vsub.f32 %v7340, %v8763
  %v8765 = vand.u32 %v8764, 4294901760
  %8766 = vmatmul.mubr.f32.gmra.mxu0 %v8765
  %v8767 = vpop.f32.mrf.mxu0
  %v8768 = vadd.f32 %v8403, %v8767
  %v8769 = vpop.f32.mrf.mxu0
  %8770 = vmatprep.mubr.f32.mxu0 0.0
  %v8771 = vand.u32 %v7343, 4294901760
  %v8772 = vsub.f32 %v7343, %v8771
  %v8773 = vand.u32 %v8772, 4294901760
  %8774 = vmatmul.mubr.f32.gmra.mxu0 %v8773
  %v8775 = vpop.f32.mrf.mxu0
  %v8776 = vadd.f32 %v8410, %v8775
  %v8777 = vpop.f32.mrf.mxu0
  %8778 = vmatprep.mubr.f32.mxu0 0.0
  %v8779 = vand.u32 %v7346, 4294901760
  %v8780 = vsub.f32 %v7346, %v8779
  %v8781 = vand.u32 %v8780, 4294901760
  %8782 = vmatmul.mubr.f32.gmra.mxu0 %v8781
  %v8783 = vpop.f32.mrf.mxu0
  %v8784 = vadd.f32 %v8417, %v8783
  %v8785 = vpop.f32.mrf.mxu0
  %8786 = vmatprep.mubr.f32.mxu0 0.0
  %v8787 = vand.u32 %v7349, 4294901760
  %v8788 = vsub.f32 %v7349, %v8787
  %v8789 = vand.u32 %v8788, 4294901760
  %8790 = vmatmul.mubr.f32.gmra.mxu0 %v8789
  %v8791 = vpop.f32.mrf.mxu0
  %v8792 = vadd.f32 %v8424, %v8791
  %v8793 = vpop.f32.mrf.mxu0
  %8794 = vmatprep.mubr.f32.mxu0 0.0
  %v8795 = vand.u32 %v7352, 4294901760
  %v8796 = vsub.f32 %v7352, %v8795
  %v8797 = vand.u32 %v8796, 4294901760
  %8798 = vmatmul.mubr.f32.gmra.mxu0 %v8797
  %v8799 = vpop.f32.mrf.mxu0
  %v8800 = vadd.f32 %v8431, %v8799
  %v8801 = vpop.f32.mrf.mxu0
  %8802 = vmatprep.mubr.f32.mxu0 0.0
  %v8803 = vand.u32 %v7355, 4294901760
  %v8804 = vsub.f32 %v7355, %v8803
  %v8805 = vand.u32 %v8804, 4294901760
  %8806 = vmatmul.mubr.f32.gmra.mxu0 %v8805
  %v8807 = vpop.f32.mrf.mxu0
  %v8808 = vadd.f32 %v8438, %v8807
  %v8809 = vpop.f32.mrf.mxu0
  %8810 = vmatprep.mubr.f32.mxu0 0.0
  %v8811 = vand.u32 %v7358, 4294901760
  %v8812 = vsub.f32 %v7358, %v8811
  %v8813 = vand.u32 %v8812, 4294901760
  %8814 = vmatmul.mubr.f32.gmra.mxu0 %v8813
  %v8815 = vpop.f32.mrf.mxu0
  %v8816 = vadd.f32 %v8445, %v8815
  %v8817 = vpop.f32.mrf.mxu0
  %8818 = vdwg.mxu0
  %8819 = vmatprep.subr.mxu0 0.0
  %8820 = vmatpush1.msra.mxu0 0.0
  %8821 = vmatprep.subr.mxu0 0.0
  %8822 = vmatpush1.msra.mxu0 0.0
  %8823 = vmatprep.subr.mxu0 0.0
  %8824 = vmatpush1.msra.mxu0 0.0
  %8825 = vmatprep.subr.mxu0 0.0
  %8826 = vmatpush1.msra.mxu0 0.0
  %8827 = vmatprep.subr.mxu0 0.0
  %8828 = vmatpush1.msra.mxu0 0.0
  %8829 = vmatprep.subr.mxu0 0.0
  %8830 = vmatpush1.msra.mxu0 0.0
  %8831 = vmatprep.subr.mxu0 0.0
  %8832 = vmatpush1.msra.mxu0 0.0
  %8833 = vmatprep.subr.mxu0 0.0
  %8834 = vmatpush1.msra.mxu0 0.0
  %8835 = vmatprep.subr.mxu0 0.0
  %8836 = vmatpush1.msra.mxu0 0.0
  %8837 = vmatprep.subr.mxu0 0.0
  %8838 = vmatpush1.msra.mxu0 0.0
  %8839 = vmatprep.subr.mxu0 0.0
  %8840 = vmatpush1.msra.mxu0 0.0
  %8841 = vmatprep.subr.mxu0 0.0
  %8842 = vmatpush1.msra.mxu0 0.0
  %8843 = vmatprep.subr.mxu0 0.0
  %8844 = vmatpush1.msra.mxu0 0.0
  %8845 = vmatprep.subr.mxu0 0.0
  %8846 = vmatpush1.msra.mxu0 0.0
  %8847 = vmatprep.subr.mxu0 0.0
  %v8848 = vand.u32 %v7361, 4294901760
  %v8849 = vsub.f32 %v7361, %v8848
  %v8850 = vand.u32 %v8849, 4294901760
  %8851 = vmatpush1.msra.mxu0 %v8850
  %8852 = vmatprep.subr.mxu0 0.0
  %v8853 = vand.u32 %v7244, 4294901760
  %v8854 = vsub.f32 %v7244, %v8853
  %v8855 = vand.u32 %v8854, 4294901760
  %8856 = vmatpush1.msra.mxu0 %v8855
  %8857 = vmatprep.subr.mxu0 0.0
  %8858 = vmatpush2.msra.mxu0 0.0
  %8859 = vmatprep.subr.mxu0 0.0
  %8860 = vmatpush2.msra.mxu0 0.0
  %8861 = vmatprep.subr.mxu0 0.0
  %8862 = vmatpush2.msra.mxu0 0.0
  %8863 = vmatprep.subr.mxu0 0.0
  %8864 = vmatpush2.msra.mxu0 0.0
  %8865 = vmatprep.subr.mxu0 0.0
  %8866 = vmatpush2.msra.mxu0 0.0
  %8867 = vmatprep.subr.mxu0 0.0
  %8868 = vmatpush2.msra.mxu0 0.0
  %8869 = vmatprep.subr.mxu0 0.0
  %8870 = vmatpush2.msra.mxu0 0.0
  %8871 = vmatprep.subr.mxu0 0.0
  %8872 = vmatpush2.msra.mxu0 0.0
  %8873 = vmatprep.subr.mxu0 0.0
  %8874 = vmatpush2.msra.mxu0 0.0
  %8875 = vmatprep.subr.mxu0 0.0
  %8876 = vmatpush2.msra.mxu0 0.0
  %8877 = vmatprep.subr.mxu0 0.0
  %8878 = vmatpush2.msra.mxu0 0.0
  %8879 = vmatprep.subr.mxu0 0.0
  %8880 = vmatpush2.msra.mxu0 0.0
  %8881 = vmatprep.subr.mxu0 0.0
  %8882 = vmatpush2.msra.mxu0 0.0
  %8883 = vmatprep.subr.mxu0 0.0
  %8884 = vmatpush2.msra.mxu0 0.0
  %8885 = vmatprep.subr.mxu0 0.0
  %8886 = vmatpush2.msra.mxu0 0.0
  %8887 = vmatprep.subr.mxu0 0.0
  %8888 = vmatpush2.msra.mxu0 0.0
  %8889 = vmatprep.mubr.f32.mxu0 0.0
  %v8890 = vand.u32 %v7247, 4294901760
  %8891 = vmatmul.mubr.f32.gmra.mxu0 %v8890
  %v8892 = vpop.f32.mrf.mxu0
  %v8893 = vadd.f32 %v8520, %v8892
  %v8894 = vpop.f32.mrf.mxu0
  %8895 = vmatprep.mubr.f32.mxu0 0.0
  %v8896 = vand.u32 %v7250, 4294901760
  %8897 = vmatmul.mubr.f32.gmra.mxu0 %v8896
  %v8898 = vpop.f32.mrf.mxu0
  %v8899 = vadd.f32 %v8528, %v8898
  %v8900 = vpop.f32.mrf.mxu0
  %8901 = vmatprep.mubr.f32.mxu0 0.0
  %v8902 = vand.u32 %v7253, 4294901760
  %8903 = vmatmul.mubr.f32.gmra.mxu0 %v8902
  %v8904 = vpop.f32.mrf.mxu0
  %v8905 = vadd.f32 %v8536, %v8904
  %v8906 = vpop.f32.mrf.mxu0
  %8907 = vmatprep.mubr.f32.mxu0 0.0
  %v8908 = vand.u32 %v7256, 4294901760
  %8909 = vmatmul.mubr.f32.gmra.mxu0 %v8908
  %v8910 = vpop.f32.mrf.mxu0
  %v8911 = vadd.f32 %v8544, %v8910
  %v8912 = vpop.f32.mrf.mxu0
  %8913 = vmatprep.mubr.f32.mxu0 0.0
  %v8914 = vand.u32 %v7259, 4294901760
  %8915 = vmatmul.mubr.f32.gmra.mxu0 %v8914
  %v8916 = vpop.f32.mrf.mxu0
  %v8917 = vadd.f32 %v8552, %v8916
  %v8918 = vpop.f32.mrf.mxu0
  %8919 = vmatprep.mubr.f32.mxu0 0.0
  %v8920 = vand.u32 %v7262, 4294901760
  %8921 = vmatmul.mubr.f32.gmra.mxu0 %v8920
  %v8922 = vpop.f32.mrf.mxu0
  %v8923 = vadd.f32 %v8560, %v8922
  %v8924 = vpop.f32.mrf.mxu0
  %8925 = vmatprep.mubr.f32.mxu0 0.0
  %v8926 = vand.u32 %v7265, 4294901760
  %8927 = vmatmul.mubr.f32.gmra.mxu0 %v8926
  %v8928 = vpop.f32.mrf.mxu0
  %v8929 = vadd.f32 %v8568, %v8928
  %v8930 = vpop.f32.mrf.mxu0
  %8931 = vmatprep.mubr.f32.mxu0 0.0
  %v8932 = vand.u32 %v7268, 4294901760
  %8933 = vmatmul.mubr.f32.gmra.mxu0 %v8932
  %v8934 = vpop.f32.mrf.mxu0
  %v8935 = vadd.f32 %v8576, %v8934
  %v8936 = vpop.f32.mrf.mxu0
  %8937 = vmatprep.mubr.f32.mxu0 0.0
  %v8938 = vand.u32 %v7271, 4294901760
  %8939 = vmatmul.mubr.f32.gmra.mxu0 %v8938
  %v8940 = vpop.f32.mrf.mxu0
  %v8941 = vadd.f32 %v8584, %v8940
  %v8942 = vpop.f32.mrf.mxu0
  %8943 = vmatprep.mubr.f32.mxu0 0.0
  %v8944 = vand.u32 %v7274, 4294901760
  %8945 = vmatmul.mubr.f32.gmra.mxu0 %v8944
  %v8946 = vpop.f32.mrf.mxu0
  %v8947 = vadd.f32 %v8592, %v8946
  %v8948 = vpop.f32.mrf.mxu0
  %8949 = vmatprep.mubr.f32.mxu0 0.0
  %v8950 = vand.u32 %v7277, 4294901760
  %8951 = vmatmul.mubr.f32.gmra.mxu0 %v8950
  %v8952 = vpop.f32.mrf.mxu0
  %v8953 = vadd.f32 %v8600, %v8952
  %v8954 = vpop.f32.mrf.mxu0
  %8955 = vmatprep.mubr.f32.mxu0 0.0
  %v8956 = vand.u32 %v7280, 4294901760
  %8957 = vmatmul.mubr.f32.gmra.mxu0 %v8956
  %v8958 = vpop.f32.mrf.mxu0
  %v8959 = vadd.f32 %v8608, %v8958
  %v8960 = vpop.f32.mrf.mxu0
  %8961 = vmatprep.mubr.f32.mxu0 0.0
  %v8962 = vand.u32 %v7283, 4294901760
  %8963 = vmatmul.mubr.f32.gmra.mxu0 %v8962
  %v8964 = vpop.f32.mrf.mxu0
  %v8965 = vadd.f32 %v8616, %v8964
  %v8966 = vpop.f32.mrf.mxu0
  %8967 = vmatprep.mubr.f32.mxu0 0.0
  %v8968 = vand.u32 %v7286, 4294901760
  %8969 = vmatmul.mubr.f32.gmra.mxu0 %v8968
  %v8970 = vpop.f32.mrf.mxu0
  %v8971 = vadd.f32 %v8624, %v8970
  %v8972 = vpop.f32.mrf.mxu0
  %8973 = vmatprep.mubr.f32.mxu0 0.0
  %v8974 = vand.u32 %v7289, 4294901760
  %8975 = vmatmul.mubr.f32.gmra.mxu0 %v8974
  %v8976 = vpop.f32.mrf.mxu0
  %v8977 = vadd.f32 %v8632, %v8976
  %v8978 = vpop.f32.mrf.mxu0
  %8979 = vmatprep.mubr.f32.mxu0 0.0
  %v8980 = vand.u32 %v7292, 4294901760
  %8981 = vmatmul.mubr.f32.gmra.mxu0 %v8980
  %v8982 = vpop.f32.mrf.mxu0
  %v8983 = vadd.f32 %v8640, %v8982
  %v8984 = vpop.f32.mrf.mxu0
  %8985 = vmatprep.mubr.f32.mxu0 0.0
  %v8986 = vand.u32 %v7295, 4294901760
  %8987 = vmatmul.mubr.f32.gmra.mxu0 %v8986
  %v8988 = vpop.f32.mrf.mxu0
  %v8989 = vadd.f32 %v8648, %v8988
  %v8990 = vpop.f32.mrf.mxu0
  %8991 = vmatprep.mubr.f32.mxu0 0.0
  %v8992 = vand.u32 %v7298, 4294901760
  %8993 = vmatmul.mubr.f32.gmra.mxu0 %v8992
  %v8994 = vpop.f32.mrf.mxu0
  %v8995 = vadd.f32 %v8656, %v8994
  %v8996 = vpop.f32.mrf.mxu0
  %8997 = vmatprep.mubr.f32.mxu0 0.0
  %v8998 = vand.u32 %v7301, 4294901760
  %8999 = vmatmul.mubr.f32.gmra.mxu0 %v8998
  %v9000 = vpop.f32.mrf.mxu0
  %v9001 = vadd.f32 %v8664, %v9000
  %v9002 = vpop.f32.mrf.mxu0
  %9003 = vmatprep.mubr.f32.mxu0 0.0
  %v9004 = vand.u32 %v7304, 4294901760
  %9005 = vmatmul.mubr.f32.gmra.mxu0 %v9004
  %v9006 = vpop.f32.mrf.mxu0
  %v9007 = vadd.f32 %v8672, %v9006
  %v9008 = vpop.f32.mrf.mxu0
  %9009 = vmatprep.mubr.f32.mxu0 0.0
  %v9010 = vand.u32 %v7307, 4294901760
  %9011 = vmatmul.mubr.f32.gmra.mxu0 %v9010
  %v9012 = vpop.f32.mrf.mxu0
  %v9013 = vadd.f32 %v8680, %v9012
  %v9014 = vpop.f32.mrf.mxu0
  %9015 = vmatprep.mubr.f32.mxu0 0.0
  %v9016 = vand.u32 %v7310, 4294901760
  %9017 = vmatmul.mubr.f32.gmra.mxu0 %v9016
  %v9018 = vpop.f32.mrf.mxu0
  %v9019 = vadd.f32 %v8688, %v9018
  %v9020 = vpop.f32.mrf.mxu0
  %9021 = vmatprep.mubr.f32.mxu0 0.0
  %v9022 = vand.u32 %v7313, 4294901760
  %9023 = vmatmul.mubr.f32.gmra.mxu0 %v9022
  %v9024 = vpop.f32.mrf.mxu0
  %v9025 = vadd.f32 %v8696, %v9024
  %v9026 = vpop.f32.mrf.mxu0
  %9027 = vmatprep.mubr.f32.mxu0 0.0
  %v9028 = vand.u32 %v7316, 4294901760
  %9029 = vmatmul.mubr.f32.gmra.mxu0 %v9028
  %v9030 = vpop.f32.mrf.mxu0
  %v9031 = vadd.f32 %v8704, %v9030
  %v9032 = vpop.f32.mrf.mxu0
  %9033 = vmatprep.mubr.f32.mxu0 0.0
  %v9034 = vand.u32 %v7319, 4294901760
  %9035 = vmatmul.mubr.f32.gmra.mxu0 %v9034
  %v9036 = vpop.f32.mrf.mxu0
  %v9037 = vadd.f32 %v8712, %v9036
  %v9038 = vpop.f32.mrf.mxu0
  %9039 = vmatprep.mubr.f32.mxu0 0.0
  %v9040 = vand.u32 %v7322, 4294901760
  %9041 = vmatmul.mubr.f32.gmra.mxu0 %v9040
  %v9042 = vpop.f32.mrf.mxu0
  %v9043 = vadd.f32 %v8720, %v9042
  %v9044 = vpop.f32.mrf.mxu0
  %9045 = vmatprep.mubr.f32.mxu0 0.0
  %v9046 = vand.u32 %v7325, 4294901760
  %9047 = vmatmul.mubr.f32.gmra.mxu0 %v9046
  %v9048 = vpop.f32.mrf.mxu0
  %v9049 = vadd.f32 %v8728, %v9048
  %v9050 = vpop.f32.mrf.mxu0
  %9051 = vmatprep.mubr.f32.mxu0 0.0
  %v9052 = vand.u32 %v7328, 4294901760
  %9053 = vmatmul.mubr.f32.gmra.mxu0 %v9052
  %v9054 = vpop.f32.mrf.mxu0
  %v9055 = vadd.f32 %v8736, %v9054
  %v9056 = vpop.f32.mrf.mxu0
  %9057 = vmatprep.mubr.f32.mxu0 0.0
  %v9058 = vand.u32 %v7331, 4294901760
  %9059 = vmatmul.mubr.f32.gmra.mxu0 %v9058
  %v9060 = vpop.f32.mrf.mxu0
  %v9061 = vadd.f32 %v8744, %v9060
  %v9062 = vpop.f32.mrf.mxu0
  %9063 = vmatprep.mubr.f32.mxu0 0.0
  %v9064 = vand.u32 %v7334, 4294901760
  %9065 = vmatmul.mubr.f32.gmra.mxu0 %v9064
  %v9066 = vpop.f32.mrf.mxu0
  %v9067 = vadd.f32 %v8752, %v9066
  %v9068 = vpop.f32.mrf.mxu0
  %9069 = vmatprep.mubr.f32.mxu0 0.0
  %v9070 = vand.u32 %v7337, 4294901760
  %9071 = vmatmul.mubr.f32.gmra.mxu0 %v9070
  %v9072 = vpop.f32.mrf.mxu0
  %v9073 = vadd.f32 %v8760, %v9072
  %v9074 = vpop.f32.mrf.mxu0
  %9075 = vmatprep.mubr.f32.mxu0 0.0
  %v9076 = vand.u32 %v7340, 4294901760
  %9077 = vmatmul.mubr.f32.gmra.mxu0 %v9076
  %v9078 = vpop.f32.mrf.mxu0
  %v9079 = vadd.f32 %v8768, %v9078
  %v9080 = vpop.f32.mrf.mxu0
  %9081 = vmatprep.mubr.f32.mxu0 0.0
  %v9082 = vand.u32 %v7343, 4294901760
  %9083 = vmatmul.mubr.f32.gmra.mxu0 %v9082
  %v9084 = vpop.f32.mrf.mxu0
  %v9085 = vadd.f32 %v8776, %v9084
  %v9086 = vpop.f32.mrf.mxu0
  %9087 = vmatprep.mubr.f32.mxu0 0.0
  %v9088 = vand.u32 %v7346, 4294901760
  %9089 = vmatmul.mubr.f32.gmra.mxu0 %v9088
  %v9090 = vpop.f32.mrf.mxu0
  %v9091 = vadd.f32 %v8784, %v9090
  %v9092 = vpop.f32.mrf.mxu0
  %9093 = vmatprep.mubr.f32.mxu0 0.0
  %v9094 = vand.u32 %v7349, 4294901760
  %9095 = vmatmul.mubr.f32.gmra.mxu0 %v9094
  %v9096 = vpop.f32.mrf.mxu0
  %v9097 = vadd.f32 %v8792, %v9096
  %v9098 = vpop.f32.mrf.mxu0
  %9099 = vmatprep.mubr.f32.mxu0 0.0
  %v9100 = vand.u32 %v7352, 4294901760
  %9101 = vmatmul.mubr.f32.gmra.mxu0 %v9100
  %v9102 = vpop.f32.mrf.mxu0
  %v9103 = vadd.f32 %v8800, %v9102
  %v9104 = vpop.f32.mrf.mxu0
  %9105 = vmatprep.mubr.f32.mxu0 0.0
  %v9106 = vand.u32 %v7355, 4294901760
  %9107 = vmatmul.mubr.f32.gmra.mxu0 %v9106
  %v9108 = vpop.f32.mrf.mxu0
  %v9109 = vadd.f32 %v8808, %v9108
  %v9110 = vpop.f32.mrf.mxu0
  %9111 = vmatprep.mubr.f32.mxu0 0.0
  %v9112 = vand.u32 %v7358, 4294901760
  %9113 = vmatmul.mubr.f32.gmra.mxu0 %v9112
  %v9114 = vpop.f32.mrf.mxu0
  %v9115 = vadd.f32 %v8816, %v9114
  %v9116 = vpop.f32.mrf.mxu0
  %9117 = vdwg.mxu0
  %9118 = vmatprep.subr.mxu0 0.0
  %9119 = vmatpush1.msra.mxu0 0.0
  %9120 = vmatprep.subr.mxu0 0.0
  %9121 = vmatpush1.msra.mxu0 0.0
  %9122 = vmatprep.subr.mxu0 0.0
  %9123 = vmatpush1.msra.mxu0 0.0
  %9124 = vmatprep.subr.mxu0 0.0
  %9125 = vmatpush1.msra.mxu0 0.0
  %9126 = vmatprep.subr.mxu0 0.0
  %9127 = vmatpush1.msra.mxu0 0.0
  %9128 = vmatprep.subr.mxu0 0.0
  %9129 = vmatpush1.msra.mxu0 0.0
  %9130 = vmatprep.subr.mxu0 0.0
  %9131 = vmatpush1.msra.mxu0 0.0
  %9132 = vmatprep.subr.mxu0 0.0
  %9133 = vmatpush1.msra.mxu0 0.0
  %9134 = vmatprep.subr.mxu0 0.0
  %9135 = vmatpush1.msra.mxu0 0.0
  %9136 = vmatprep.subr.mxu0 0.0
  %9137 = vmatpush1.msra.mxu0 0.0
  %9138 = vmatprep.subr.mxu0 0.0
  %9139 = vmatpush1.msra.mxu0 0.0
  %9140 = vmatprep.subr.mxu0 0.0
  %9141 = vmatpush1.msra.mxu0 0.0
  %9142 = vmatprep.subr.mxu0 0.0
  %9143 = vmatpush1.msra.mxu0 0.0
  %9144 = vmatprep.subr.mxu0 0.0
  %9145 = vmatpush1.msra.mxu0 0.0
  %9146 = vmatprep.subr.mxu0 0.0
  %v9147 = vand.u32 %v7361, 4294901760
  %9148 = vmatpush1.msra.mxu0 %v9147
  %9149 = vmatprep.subr.mxu0 0.0
  %v9150 = vand.u32 %v7244, 4294901760
  %9151 = vmatpush1.msra.mxu0 %v9150
  %9152 = vmatprep.subr.mxu0 0.0
  %9153 = vmatpush2.msra.mxu0 0.0
  %9154 = vmatprep.subr.mxu0 0.0
  %9155 = vmatpush2.msra.mxu0 0.0
  %9156 = vmatprep.subr.mxu0 0.0
  %9157 = vmatpush2.msra.mxu0 0.0
  %9158 = vmatprep.subr.mxu0 0.0
  %9159 = vmatpush2.msra.mxu0 0.0
  %9160 = vmatprep.subr.mxu0 0.0
  %9161 = vmatpush2.msra.mxu0 0.0
  %9162 = vmatprep.subr.mxu0 0.0
  %9163 = vmatpush2.msra.mxu0 0.0
  %9164 = vmatprep.subr.mxu0 0.0
  %9165 = vmatpush2.msra.mxu0 0.0
  %9166 = vmatprep.subr.mxu0 0.0
  %9167 = vmatpush2.msra.mxu0 0.0
  %9168 = vmatprep.subr.mxu0 0.0
  %9169 = vmatpush2.msra.mxu0 0.0
  %9170 = vmatprep.subr.mxu0 0.0
  %9171 = vmatpush2.msra.mxu0 0.0
  %9172 = vmatprep.subr.mxu0 0.0
  %9173 = vmatpush2.msra.mxu0 0.0
  %9174 = vmatprep.subr.mxu0 0.0
  %9175 = vmatpush2.msra.mxu0 0.0
  %9176 = vmatprep.subr.mxu0 0.0
  %9177 = vmatpush2.msra.mxu0 0.0
  %9178 = vmatprep.subr.mxu0 0.0
  %9179 = vmatpush2.msra.mxu0 0.0
  %9180 = vmatprep.subr.mxu0 0.0
  %9181 = vmatpush2.msra.mxu0 0.0
  %9182 = vmatprep.subr.mxu0 0.0
  %9183 = vmatpush2.msra.mxu0 0.0
  %9184 = vmatprep.mubr.f32.mxu0 0.0
  %v9185 = vand.u32 %v7247, 4294901760
  %9186 = vmatmul.mubr.f32.gmra.mxu0 %v9185
  %v9187 = vpop.f32.mrf.mxu0
  %v9188 = vadd.f32 %v8893, %v9187
  %v9189 = vpop.f32.mrf.mxu0
  %9190 = vmatprep.mubr.f32.mxu0 0.0
  %v9191 = vand.u32 %v7250, 4294901760
  %9192 = vmatmul.mubr.f32.gmra.mxu0 %v9191
  %v9193 = vpop.f32.mrf.mxu0
  %v9194 = vadd.f32 %v8899, %v9193
  %v9195 = vpop.f32.mrf.mxu0
  %9196 = vmatprep.mubr.f32.mxu0 0.0
  %v9197 = vand.u32 %v7253, 4294901760
  %9198 = vmatmul.mubr.f32.gmra.mxu0 %v9197
  %v9199 = vpop.f32.mrf.mxu0
  %v9200 = vadd.f32 %v8905, %v9199
  %v9201 = vpop.f32.mrf.mxu0
  %9202 = vmatprep.mubr.f32.mxu0 0.0
  %v9203 = vand.u32 %v7256, 4294901760
  %9204 = vmatmul.mubr.f32.gmra.mxu0 %v9203
  %v9205 = vpop.f32.mrf.mxu0
  %v9206 = vadd.f32 %v8911, %v9205
  %v9207 = vpop.f32.mrf.mxu0
  %9208 = vmatprep.mubr.f32.mxu0 0.0
  %v9209 = vand.u32 %v7259, 4294901760
  %9210 = vmatmul.mubr.f32.gmra.mxu0 %v9209
  %v9211 = vpop.f32.mrf.mxu0
  %v9212 = vadd.f32 %v8917, %v9211
  %v9213 = vpop.f32.mrf.mxu0
  %9214 = vmatprep.mubr.f32.mxu0 0.0
  %v9215 = vand.u32 %v7262, 4294901760
  %9216 = vmatmul.mubr.f32.gmra.mxu0 %v9215
  %v9217 = vpop.f32.mrf.mxu0
  %v9218 = vadd.f32 %v8923, %v9217
  %v9219 = vpop.f32.mrf.mxu0
  %9220 = vmatprep.mubr.f32.mxu0 0.0
  %v9221 = vand.u32 %v7265, 4294901760
  %9222 = vmatmul.mubr.f32.gmra.mxu0 %v9221
  %v9223 = vpop.f32.mrf.mxu0
  %v9224 = vadd.f32 %v8929, %v9223
  %v9225 = vpop.f32.mrf.mxu0
  %9226 = vmatprep.mubr.f32.mxu0 0.0
  %v9227 = vand.u32 %v7268, 4294901760
  %9228 = vmatmul.mubr.f32.gmra.mxu0 %v9227
  %v9229 = vpop.f32.mrf.mxu0
  %v9230 = vadd.f32 %v8935, %v9229
  %v9231 = vpop.f32.mrf.mxu0
  %9232 = vmatprep.mubr.f32.mxu0 0.0
  %v9233 = vand.u32 %v7271, 4294901760
  %9234 = vmatmul.mubr.f32.gmra.mxu0 %v9233
  %v9235 = vpop.f32.mrf.mxu0
  %v9236 = vadd.f32 %v8941, %v9235
  %v9237 = vpop.f32.mrf.mxu0
  %9238 = vmatprep.mubr.f32.mxu0 0.0
  %v9239 = vand.u32 %v7274, 4294901760
  %9240 = vmatmul.mubr.f32.gmra.mxu0 %v9239
  %v9241 = vpop.f32.mrf.mxu0
  %v9242 = vadd.f32 %v8947, %v9241
  %v9243 = vpop.f32.mrf.mxu0
  %9244 = vmatprep.mubr.f32.mxu0 0.0
  %v9245 = vand.u32 %v7277, 4294901760
  %9246 = vmatmul.mubr.f32.gmra.mxu0 %v9245
  %v9247 = vpop.f32.mrf.mxu0
  %v9248 = vadd.f32 %v8953, %v9247
  %v9249 = vpop.f32.mrf.mxu0
  %9250 = vmatprep.mubr.f32.mxu0 0.0
  %v9251 = vand.u32 %v7280, 4294901760
  %9252 = vmatmul.mubr.f32.gmra.mxu0 %v9251
  %v9253 = vpop.f32.mrf.mxu0
  %v9254 = vadd.f32 %v8959, %v9253
  %v9255 = vpop.f32.mrf.mxu0
  %9256 = vmatprep.mubr.f32.mxu0 0.0
  %v9257 = vand.u32 %v7283, 4294901760
  %9258 = vmatmul.mubr.f32.gmra.mxu0 %v9257
  %v9259 = vpop.f32.mrf.mxu0
  %v9260 = vadd.f32 %v8965, %v9259
  %v9261 = vpop.f32.mrf.mxu0
  %9262 = vmatprep.mubr.f32.mxu0 0.0
  %v9263 = vand.u32 %v7286, 4294901760
  %9264 = vmatmul.mubr.f32.gmra.mxu0 %v9263
  %v9265 = vpop.f32.mrf.mxu0
  %v9266 = vadd.f32 %v8971, %v9265
  %v9267 = vpop.f32.mrf.mxu0
  %9268 = vmatprep.mubr.f32.mxu0 0.0
  %v9269 = vand.u32 %v7289, 4294901760
  %9270 = vmatmul.mubr.f32.gmra.mxu0 %v9269
  %v9271 = vpop.f32.mrf.mxu0
  %v9272 = vadd.f32 %v8977, %v9271
  %v9273 = vpop.f32.mrf.mxu0
  %9274 = vmatprep.mubr.f32.mxu0 0.0
  %v9275 = vand.u32 %v7292, 4294901760
  %9276 = vmatmul.mubr.f32.gmra.mxu0 %v9275
  %v9277 = vpop.f32.mrf.mxu0
  %v9278 = vadd.f32 %v8983, %v9277
  %v9279 = vpop.f32.mrf.mxu0
  %9280 = vmatprep.mubr.f32.mxu0 0.0
  %v9281 = vand.u32 %v7295, 4294901760
  %9282 = vmatmul.mubr.f32.gmra.mxu0 %v9281
  %v9283 = vpop.f32.mrf.mxu0
  %v9284 = vadd.f32 %v8989, %v9283
  %v9285 = vpop.f32.mrf.mxu0
  %9286 = vmatprep.mubr.f32.mxu0 0.0
  %v9287 = vand.u32 %v7298, 4294901760
  %9288 = vmatmul.mubr.f32.gmra.mxu0 %v9287
  %v9289 = vpop.f32.mrf.mxu0
  %v9290 = vadd.f32 %v8995, %v9289
  %v9291 = vpop.f32.mrf.mxu0
  %9292 = vmatprep.mubr.f32.mxu0 0.0
  %v9293 = vand.u32 %v7301, 4294901760
  %9294 = vmatmul.mubr.f32.gmra.mxu0 %v9293
  %v9295 = vpop.f32.mrf.mxu0
  %v9296 = vadd.f32 %v9001, %v9295
  %v9297 = vpop.f32.mrf.mxu0
  %9298 = vmatprep.mubr.f32.mxu0 0.0
  %v9299 = vand.u32 %v7304, 4294901760
  %9300 = vmatmul.mubr.f32.gmra.mxu0 %v9299
  %v9301 = vpop.f32.mrf.mxu0
  %v9302 = vadd.f32 %v9007, %v9301
  %v9303 = vpop.f32.mrf.mxu0
  %9304 = vmatprep.mubr.f32.mxu0 0.0
  %v9305 = vand.u32 %v7307, 4294901760
  %9306 = vmatmul.mubr.f32.gmra.mxu0 %v9305
  %v9307 = vpop.f32.mrf.mxu0
  %v9308 = vadd.f32 %v9013, %v9307
  %v9309 = vpop.f32.mrf.mxu0
  %9310 = vmatprep.mubr.f32.mxu0 0.0
  %v9311 = vand.u32 %v7310, 4294901760
  %9312 = vmatmul.mubr.f32.gmra.mxu0 %v9311
  %v9313 = vpop.f32.mrf.mxu0
  %v9314 = vadd.f32 %v9019, %v9313
  %v9315 = vpop.f32.mrf.mxu0
  %9316 = vmatprep.mubr.f32.mxu0 0.0
  %v9317 = vand.u32 %v7313, 4294901760
  %9318 = vmatmul.mubr.f32.gmra.mxu0 %v9317
  %v9319 = vpop.f32.mrf.mxu0
  %v9320 = vadd.f32 %v9025, %v9319
  %v9321 = vpop.f32.mrf.mxu0
  %9322 = vmatprep.mubr.f32.mxu0 0.0
  %v9323 = vand.u32 %v7316, 4294901760
  %9324 = vmatmul.mubr.f32.gmra.mxu0 %v9323
  %v9325 = vpop.f32.mrf.mxu0
  %v9326 = vadd.f32 %v9031, %v9325
  %v9327 = vpop.f32.mrf.mxu0
  %9328 = vmatprep.mubr.f32.mxu0 0.0
  %v9329 = vand.u32 %v7319, 4294901760
  %9330 = vmatmul.mubr.f32.gmra.mxu0 %v9329
  %v9331 = vpop.f32.mrf.mxu0
  %v9332 = vadd.f32 %v9037, %v9331
  %v9333 = vpop.f32.mrf.mxu0
  %9334 = vmatprep.mubr.f32.mxu0 0.0
  %v9335 = vand.u32 %v7322, 4294901760
  %9336 = vmatmul.mubr.f32.gmra.mxu0 %v9335
  %v9337 = vpop.f32.mrf.mxu0
  %v9338 = vadd.f32 %v9043, %v9337
  %v9339 = vpop.f32.mrf.mxu0
  %9340 = vmatprep.mubr.f32.mxu0 0.0
  %v9341 = vand.u32 %v7325, 4294901760
  %9342 = vmatmul.mubr.f32.gmra.mxu0 %v9341
  %v9343 = vpop.f32.mrf.mxu0
  %v9344 = vadd.f32 %v9049, %v9343
  %v9345 = vpop.f32.mrf.mxu0
  %9346 = vmatprep.mubr.f32.mxu0 0.0
  %v9347 = vand.u32 %v7328, 4294901760
  %9348 = vmatmul.mubr.f32.gmra.mxu0 %v9347
  %v9349 = vpop.f32.mrf.mxu0
  %v9350 = vadd.f32 %v9055, %v9349
  %v9351 = vpop.f32.mrf.mxu0
  %9352 = vmatprep.mubr.f32.mxu0 0.0
  %v9353 = vand.u32 %v7331, 4294901760
  %9354 = vmatmul.mubr.f32.gmra.mxu0 %v9353
  %v9355 = vpop.f32.mrf.mxu0
  %v9356 = vadd.f32 %v9061, %v9355
  %v9357 = vpop.f32.mrf.mxu0
  %9358 = vmatprep.mubr.f32.mxu0 0.0
  %v9359 = vand.u32 %v7334, 4294901760
  %9360 = vmatmul.mubr.f32.gmra.mxu0 %v9359
  %v9361 = vpop.f32.mrf.mxu0
  %v9362 = vadd.f32 %v9067, %v9361
  %v9363 = vpop.f32.mrf.mxu0
  %9364 = vmatprep.mubr.f32.mxu0 0.0
  %v9365 = vand.u32 %v7337, 4294901760
  %9366 = vmatmul.mubr.f32.gmra.mxu0 %v9365
  %v9367 = vpop.f32.mrf.mxu0
  %v9368 = vadd.f32 %v9073, %v9367
  %v9369 = vpop.f32.mrf.mxu0
  %9370 = vmatprep.mubr.f32.mxu0 0.0
  %v9371 = vand.u32 %v7340, 4294901760
  %9372 = vmatmul.mubr.f32.gmra.mxu0 %v9371
  %v9373 = vpop.f32.mrf.mxu0
  %v9374 = vadd.f32 %v9079, %v9373
  %v9375 = vpop.f32.mrf.mxu0
  %9376 = vmatprep.mubr.f32.mxu0 0.0
  %v9377 = vand.u32 %v7343, 4294901760
  %9378 = vmatmul.mubr.f32.gmra.mxu0 %v9377
  %v9379 = vpop.f32.mrf.mxu0
  %v9380 = vadd.f32 %v9085, %v9379
  %v9381 = vpop.f32.mrf.mxu0
  %9382 = vmatprep.mubr.f32.mxu0 0.0
  %v9383 = vand.u32 %v7346, 4294901760
  %9384 = vmatmul.mubr.f32.gmra.mxu0 %v9383
  %v9385 = vpop.f32.mrf.mxu0
  %v9386 = vadd.f32 %v9091, %v9385
  %v9387 = vpop.f32.mrf.mxu0
  %9388 = vmatprep.mubr.f32.mxu0 0.0
  %v9389 = vand.u32 %v7349, 4294901760
  %9390 = vmatmul.mubr.f32.gmra.mxu0 %v9389
  %v9391 = vpop.f32.mrf.mxu0
  %v9392 = vadd.f32 %v9097, %v9391
  %v9393 = vpop.f32.mrf.mxu0
  %9394 = vmatprep.mubr.f32.mxu0 0.0
  %v9395 = vand.u32 %v7352, 4294901760
  %9396 = vmatmul.mubr.f32.gmra.mxu0 %v9395
  %v9397 = vpop.f32.mrf.mxu0
  %v9398 = vadd.f32 %v9103, %v9397
  %v9399 = vpop.f32.mrf.mxu0
  %9400 = vmatprep.mubr.f32.mxu0 0.0
  %v9401 = vand.u32 %v7355, 4294901760
  %9402 = vmatmul.mubr.f32.gmra.mxu0 %v9401
  %v9403 = vpop.f32.mrf.mxu0
  %v9404 = vadd.f32 %v9109, %v9403
  %v9405 = vpop.f32.mrf.mxu0
  %9406 = vmatprep.mubr.f32.mxu0 0.0
  %v9407 = vand.u32 %v7358, 4294901760
  %9408 = vmatmul.mubr.f32.gmra.mxu0 %v9407
  %v9409 = vpop.f32.mrf.mxu0
  %v9410 = vadd.f32 %v9115, %v9409
  %v9411 = vpop.f32.mrf.mxu0
  %9412 = vdwg.mxu0
  %v9413 = vmul.f32 %v9188, 0.083333336
  %v9414 = vmul.f32 %v9194, 0.083333336
  %v9415 = vmul.f32 %v9200, 0.083333336
  %v9416 = vmul.f32 %v9206, 0.083333336
  %v9417 = vmul.f32 %v9212, 0.083333336
  %v9418 = vmul.f32 %v9218, 0.083333336
  %v9419 = vmul.f32 %v9224, 0.083333336
  %v9420 = vmul.f32 %v9230, 0.083333336
  %v9421 = vmul.f32 %v9236, 0.083333336
  %v9422 = vmul.f32 %v9242, 0.083333336
  %v9423 = vmul.f32 %v9248, 0.083333336
  %v9424 = vmul.f32 %v9254, 0.083333336
  %v9425 = vmul.f32 %v9260, 0.083333336
  %v9426 = vmul.f32 %v9266, 0.083333336
  %v9427 = vmul.f32 %v9272, 0.083333336
  %v9428 = vmul.f32 %v9278, 0.083333336
  %v9429 = vmul.f32 %v9284, 0.083333336
  %v9430 = vmul.f32 %v9290, 0.083333336
  %v9431 = vmul.f32 %v9296, 0.083333336
  %v9432 = vmul.f32 %v9302, 0.083333336
  %v9433 = vmul.f32 %v9308, 0.083333336
  %v9434 = vmul.f32 %v9314, 0.083333336
  %v9435 = vmul.f32 %v9320, 0.083333336
  %v9436 = vmul.f32 %v9326, 0.083333336
  %v9437 = vmul.f32 %v9332, 0.083333336
  %v9438 = vmul.f32 %v9338, 0.083333336
  %v9439 = vmul.f32 %v9344, 0.083333336
  %v9440 = vmul.f32 %v9350, 0.083333336
  %v9441 = vmul.f32 %v9356, 0.083333336
  %v9442 = vmul.f32 %v9362, 0.083333336
  %v9443 = vmul.f32 %v9368, 0.083333336
  %v9444 = vmul.f32 %v9374, 0.083333336
  %v9445 = vmul.f32 %v9380, 0.083333336
  %v9446 = vmul.f32 %v9386, 0.083333336
  %v9447 = vmul.f32 %v9392, 0.083333336
  %v9448 = vmul.f32 %v9398, 0.083333336
  %v9449 = vmul.f32 %v9404, 0.083333336
  %v9450 = vmul.f32 %v9410, 0.083333336
  %v9451 = vrsqrt.pop %v9413
  %v9452 = vrsqrt.pop %v9414
  %v9453 = vrsqrt.pop %v9415
  %v9454 = vrsqrt.pop %v9416
  %v9455 = vrsqrt.pop %v9417
  %v9456 = vrsqrt.pop %v9418
  %v9457 = vrsqrt.pop %v9419
  %v9458 = vrsqrt.pop %v9420
  %v9459 = vrsqrt.pop %v9421
  %v9460 = vrsqrt.pop %v9422
  %v9461 = vrsqrt.pop %v9423
  %v9462 = vrsqrt.pop %v9424
  %v9463 = vrsqrt.pop %v9425
  %v9464 = vrsqrt.pop %v9426
  %v9465 = vrsqrt.pop %v9427
  %v9466 = vrsqrt.pop %v9428
  %v9467 = vrsqrt.pop %v9429
  %v9468 = vrsqrt.pop %v9430
  %v9469 = vrsqrt.pop %v9431
  %v9470 = vrsqrt.pop %v9432
  %v9471 = vrsqrt.pop %v9433
  %v9472 = vrsqrt.pop %v9434
  %v9473 = vrsqrt.pop %v9435
  %v9474 = vrsqrt.pop %v9436
  %v9475 = vrsqrt.pop %v9437
  %v9476 = vrsqrt.pop %v9438
  %v9477 = vrsqrt.pop %v9439
  %v9478 = vrsqrt.pop %v9440
  %v9479 = vrsqrt.pop %v9441
  %v9480 = vrsqrt.pop %v9442
  %v9481 = vrsqrt.pop %v9443
  %v9482 = vrsqrt.pop %v9444
  %v9483 = vrsqrt.pop %v9445
  %v9484 = vrsqrt.pop %v9446
  %v9485 = vrsqrt.pop %v9447
  %v9486 = vrsqrt.pop %v9448
  %v9487 = vrsqrt.pop %v9449
  %v9488 = vrsqrt.pop %v9450
  %v9489 = vmul.f32 %v4959, %v9451
  %v9490 = vmul.f32 %v4960, %v9452
  %v9491 = vmul.f32 %v4961, %v9453
  %v9492 = vmul.f32 %v4962, %v9454
  %v9493 = vmul.f32 %v4963, %v9455
  %v9494 = vmul.f32 %v4964, %v9456
  %v9495 = vmul.f32 %v4965, %v9457
  %v9496 = vmul.f32 %v4966, %v9458
  %v9497 = vmul.f32 %v4967, %v9459
  %v9498 = vmul.f32 %v4968, %v9460
  %v9499 = vmul.f32 %v4969, %v9461
  %v9500 = vmul.f32 %v4970, %v9462
  %v9501 = vmul.f32 %v4971, %v9463
  %v9502 = vmul.f32 %v4972, %v9464
  %v9503 = vmul.f32 %v4973, %v9465
  %v9504 = vmul.f32 %v4974, %v9466
  %v9505 = vmul.f32 %v4975, %v9467
  %v9506 = vmul.f32 %v4976, %v9468
  %v9507 = vmul.f32 %v4977, %v9469
  %v9508 = vmul.f32 %v4978, %v9470
  %v9509 = vmul.f32 %v4979, %v9471
  %v9510 = vmul.f32 %v4980, %v9472
  %v9511 = vmul.f32 %v4981, %v9473
  %v9512 = vmul.f32 %v4982, %v9474
  %v9513 = vmul.f32 %v4983, %v9475
  %v9514 = vmul.f32 %v4984, %v9476
  %v9515 = vmul.f32 %v4985, %v9477
  %v9516 = vmul.f32 %v4986, %v9478
  %v9517 = vmul.f32 %v4987, %v9479
  %v9518 = vmul.f32 %v4988, %v9480
  %v9519 = vmul.f32 %v4989, %v9481
  %v9520 = vmul.f32 %v4990, %v9482
  %v9521 = vmul.f32 %v4991, %v9483
  %v9522 = vmul.f32 %v4992, %v9484
  %v9523 = vmul.f32 %v4993, %v9485
  %v9524 = vmul.f32 %v4994, %v9486
  %v9525 = vmul.f32 %v4995, %v9487
  %v9526 = vmul.f32 %v4996, %v9488
  %9527 = vst.msk [vmem:[%s8] sm:$0xff] %vm5037, %v9489
  %9528 = vst.msk [vmem:[%s8 + $0x8] sm:$0xff] %vm5037, %v9490
  %9529 = vst.msk [vmem:[%s8 + $0x10] sm:$0xff] %vm5037, %v9491
  %9530 = vst.msk [vmem:[%s8 + $0x18] sm:$0xff] %vm5037, %v9492
  %9531 = vst.msk [vmem:[%s8 + $0x20] sm:$0xff] %vm5037, %v9493
  %9532 = vst.msk [vmem:[%s8 + $0x28] sm:$0xff] %vm5037, %v9494
  %9533 = vst.msk [vmem:[%s8 + $0x30] sm:$0xff] %vm5037, %v9495
  %9534 = vst.msk [vmem:[%s8 + $0x38] sm:$0xff] %vm5037, %v9496
  %9535 = vst.msk [vmem:[%s8 + $0x40] sm:$0xff] %vm5037, %v9497
  %9536 = vst.msk [vmem:[%s8 + $0x48] sm:$0xff] %vm5037, %v9498
  %9537 = vst.msk [vmem:[%s8 + $0x50] sm:$0xff] %vm5037, %v9499
  %9538 = vst.msk [vmem:[%s8 + $0x58] sm:$0xff] %vm5037, %v9500
  %9539 = vst.msk [vmem:[%s8 + $0x60] sm:$0xff] %vm5037, %v9501
  %9540 = vst.msk [vmem:[%s8 + $0x68] sm:$0xff] %vm5037, %v9502
  %9541 = vst.msk [vmem:[%s8 + $0x70] sm:$0xff] %vm5037, %v9503
  %9542 = vst.msk [vmem:[%s8 + $0x78] sm:$0xff] %vm5037, %v9504
  %9543 = vst.msk [vmem:[%s8 + $0x80] sm:$0xff] %vm5037, %v9505
  %9544 = vst.msk [vmem:[%s8 + $0x88] sm:$0xff] %vm5037, %v9506
  %9545 = vst.msk [vmem:[%s8 + $0x90] sm:$0xff] %vm5037, %v9507
  %9546 = vst.msk [vmem:[%s8 + $0x98] sm:$0xff] %vm5037, %v9508
  %9547 = vst.msk [vmem:[%s8 + $0xa0] sm:$0xff] %vm5037, %v9509
  %9548 = vst.msk [vmem:[%s8 + $0xa8] sm:$0xff] %vm5037, %v9510
  %9549 = vst.msk [vmem:[%s8 + $0xb0] sm:$0xff] %vm5037, %v9511
  %9550 = vst.msk [vmem:[%s8 + $0xb8] sm:$0xff] %vm5037, %v9512
  %9551 = vst.msk [vmem:[%s8 + $0xc0] sm:$0xff] %vm5037, %v9513
  %9552 = vst.msk [vmem:[%s8 + $0xc8] sm:$0xff] %vm5037, %v9514
  %9553 = vst.msk [vmem:[%s8 + $0xd0] sm:$0xff] %vm5037, %v9515
  %9554 = vst.msk [vmem:[%s8 + $0xd8] sm:$0xff] %vm5037, %v9516
  %9555 = vst.msk [vmem:[%s8 + $0xe0] sm:$0xff] %vm5037, %v9517
  %9556 = vst.msk [vmem:[%s8 + $0xe8] sm:$0xff] %vm5037, %v9518
  %9557 = vst.msk [vmem:[%s8 + $0xf0] sm:$0xff] %vm5037, %v9519
  %9558 = vst.msk [vmem:[%s8 + $0xf8] sm:$0xff] %vm5037, %v9520
  %9559 = vst.msk [vmem:[%s8 + $0x100] sm:$0xff] %vm5037, %v9521
  %9560 = vst.msk [vmem:[%s8 + $0x108] sm:$0xff] %vm5037, %v9522
  %9561 = vst.msk [vmem:[%s8 + $0x110] sm:$0xff] %vm5037, %v9523
  %9562 = vst.msk [vmem:[%s8 + $0x118] sm:$0xff] %vm5037, %v9524
  %9563 = vst.msk [vmem:[%s8 + $0x120] sm:$0xff] %vm5037, %v9525
  %9564 = vst.msk [vmem:[%s8 + $0x128] sm:$0xff] %vm5037, %v9526
  // Predicated region
  $region30: #{tpu_custom_call.1} parent=0 // pred_check
    _
  $region31: #{tpu_custom_call.1} parent=0 // pred_check_branch
    %9566 = sbr.rel (0) target = $region33
  $region32: #{tpu_custom_call.1} parent=0 // pred_region
    _
  $region33: #{tpu_custom_call.1} parent=0 // pred_fallthru
    _
  // Predicated region
  $region34: #{tpu_custom_call.1} parent=0 // pred_check
    _
  $region35: #{tpu_custom_call.1} parent=0 // pred_check_branch
    %9568 = sbr.rel (0) target = $region37
  $region36: #{tpu_custom_call.1} parent=0 // pred_region
    _
  $region37: #{tpu_custom_call.1} parent=0 // pred_fallthru
    _
  // Predicated region
  $region38: #{tpu_custom_call.1} parent=0 // pred_check
    _
  $region39: #{tpu_custom_call.1} parent=0 // pred_check_branch
    %9570 = sbr.rel (0) target = $region41
  $region40: #{tpu_custom_call.1} parent=0 // pred_region
    _
  $region41: #{tpu_custom_call.1} parent=0 // pred_fallthru
    _
  // Predicated region
  $region42: #{tpu_custom_call.1} parent=0 // pred_check
    _
  $region43: #{tpu_custom_call.1} parent=0 // pred_check_branch
    %9572 = sbr.rel (0) target = $region45
  $region44: #{tpu_custom_call.1} parent=0 // pred_region
    _
  $region45: #{tpu_custom_call.1} parent=0 // pred_fallthru
    _

</llo_original>
